<compile_context>
chip_gen: v5e
topology: v5e:2x2
jax: 0.10.0
libtpu: 0.0.40
codegen_flags: <defaults>
</compile_context>

<pallas_src>
import functools

import jax
import jax.numpy as jnp
from jax.experimental import pallas as pl
from jax.experimental.pallas import tpu as pltpu

EPS = 1e-5          # BatchNorm3d default eps
NEG_SLOPE = 0.01    # LeakyReLU default negative_slope


def _round_up(x, m):
    return (x + m - 1) // m * m


def conv_stats_kernel(x_ref, w_ref, mask_ref, sum_ref, sq_ref, im_ref, *,
                      offsets, kc, tile_p, n_tiles):
    """Pass 1 (stats only).  One grid step == one batch sample.

    x_ref    : (Kc, Pin)        bf16  zero-padded input, flattened spatial on lanes
    w_ref    : (Cout, 27*Kc)    bf16  weights, K-major = (tap, channel)
    mask_ref : (1, Pv)          f32   1.0 where a padded-grid column is a real output
    sum_ref  : (Cout, 1)        f32   per-sample sum of valid conv outputs
    sq_ref   : (Cout, 1)        f32   per-sample sum of squares of valid conv outputs
    im_ref   : (27*Kc, tile_p)  bf16  VMEM im2col staging scratch
    """
    cout = w_ref.shape[0]
    w = w_ref[...]                                     # hoisted out of the tile loop
    csum = jnp.zeros((cout, 1), jnp.float32)
    csq = jnp.zeros((cout, 1), jnp.float32)
    for j in range(n_tiles):                           # static unroll -> static offsets
        base = j * tile_p
        # Stage the 27 lane-shifted slabs ONCE into the aligned im2col scratch.
        for t, off in enumerate(offsets):
            im_ref[t * kc:(t + 1) * kc, :] = x_ref[:, base + off:base + off + tile_p]
        # Single fused-K MXU matmul, f32 accumulation.
        conv = jnp.dot(w, im_ref[...], preferred_element_type=jnp.float32)
        m = mask_ref[:, base:base + tile_p]
        masked = conv * m
        csum = csum + jnp.sum(masked, axis=1, keepdims=True)
        csq = csq + jnp.sum(masked * conv, axis=1, keepdims=True)
    sum_ref[...] = csum
    sq_ref[...] = csq


def conv_bn_lrelu_kernel(x_ref, w_ref, scale_ref, shift_ref, o_ref, im_ref, *,
                         offsets, kc, tile_p, n_tiles):
    """Pass 2: recompute conv (same fused-K matmul) + BN scale/shift + LeakyReLU."""
    w = w_ref[...]
    scale = scale_ref[...]          # (Cout, 1) -> broadcast over lanes
    shift = shift_ref[...]
    for j in range(n_tiles):
        base = j * tile_p
        for t, off in enumerate(offsets):
            im_ref[t * kc:(t + 1) * kc, :] = x_ref[:, base + off:base + off + tile_p]
        conv = jnp.dot(w, im_ref[...], preferred_element_type=jnp.float32)
        y = conv * scale + shift
        o_ref[:, base:base + tile_p] = jnp.where(y >= 0, y, NEG_SLOPE * y)


def conv_block_forward(x, w, bias, gamma, beta, *, tile_p=512,
                       mxu_dtype=jnp.bfloat16):
    """x: (N, Cin, D, H, W) f32 (PyTorch NCDHW). Returns (N, Cout, D, H, W) f32.

    `bias` is accepted for interface parity with nn.Conv3d but never added: under
    batch-statistics BatchNorm a per-channel constant cancels exactly (the mean
    absorbs it, the variance is unchanged), so the output is identical without it.
    """
    del bias
    assert tile_p % 128 == 0
    N, Cin, D, H, W = x.shape
    Cout = w.shape[0]

    W2, H2 = W + 2, H + 2
    HW2 = H2 * W2
    P = (D + 2) * HW2                        # padded spatial volume, flattened
    o_max = 2 * HW2 + 2 * W2 + 2             # largest tap offset (kd=kh=kw=2)
    Kc = _round_up(Cin, 16)                  # bf16 sublane packing (16 rows / vreg)
    K27 = 27 * Kc

    Pv = _round_up(P, tile_p)                # padded-grid output columns computed
    n_tiles = Pv // tile_p
    # Fold the flat tail (columns up to Pv + o_max must be readable) into the depth
    # padding so ONE jnp.pad produces the kernel-ready input slab.
    extra_d = -(-(Pv + o_max - P) // HW2)
    Pin = (D + 2 + extra_d) * HW2

    # ---- glue (single input-sized pass): cast + one pad + free reshape ----
    xf = jnp.pad(x.astype(mxu_dtype),
                 ((0, 0), (0, Kc - Cin), (1, 1 + extra_d), (1, 1), (1, 1)))
    xf = xf.reshape(N, Kc, Pin)

    # (Cout, Cin, 3,3,3) -> (Cout, 27*Kc); K-major order = (tap, channel), tap=(kd,kh,kw)
    wk = jnp.transpose(w, (0, 2, 3, 4, 1)).reshape(Cout, 27, Cin)
    wk = jnp.pad(wk, ((0, 0), (0, 0), (0, Kc - Cin))).astype(mxu_dtype).reshape(Cout, K27)
    offsets = tuple(kd * HW2 + kh * W2 + kw
                    for kd in range(3) for kh in range(3) for kw in range(3))

    # Valid-output mask over the padded flat grid: p = d*HW2 + h*W2 + w is a real
    # output iff d < D, h < H, w < W.
    p_idx = jnp.arange(Pv)
    d_idx = p_idx // HW2
    h_idx = (p_idx % HW2) // W2
    w_idx = p_idx % W2
    mask = ((d_idx < D) & (h_idx < H) & (w_idx < W)).astype(jnp.float32).reshape(1, Pv)

    cparams = pltpu.CompilerParams(
        dimension_semantics=("parallel",),
        vmem_limit_bytes=48 * 1024 * 1024)   # stays under v7x's 64 MiB physical VMEM

    # ---- pass 1: stats-only (no conv_out written to HBM) ----
    kern1 = functools.partial(conv_stats_kernel, offsets=offsets, kc=Kc,
                              tile_p=tile_p, n_tiles=n_tiles)
    psum, psq = pl.pallas_call(
        kern1,
        grid=(N,),
        in_specs=[
            pl.BlockSpec((None, Kc, Pin), lambda n: (n, 0, 0)),
            pl.BlockSpec((Cout, K27), lambda n: (0, 0)),
            pl.BlockSpec((1, Pv), lambda n: (0, 0)),
        ],
        out_specs=(
            pl.BlockSpec((None, Cout, 1), lambda n: (n, 0, 0)),
            pl.BlockSpec((None, Cout, 1), lambda n: (n, 0, 0)),
        ),
        out_shape=(
            jax.ShapeDtypeStruct((N, Cout, 1), jnp.float32),
            jax.ShapeDtypeStruct((N, Cout, 1), jnp.float32),
        ),
        scratch_shapes=[pltpu.VMEM((K27, tile_p), mxu_dtype)],
        compiler_params=cparams,
    )(xf, wk, mask)

    # ---- tiny (Cout-sized) BN fold in plain JAX: scale/shift precompute ----
    count = float(N * D * H * W)
    mean = jnp.sum(psum, axis=0) / count                         # (Cout, 1)
    var = jnp.sum(psq, axis=0) / count - mean * mean             # biased (BN batch stats)
    var = jnp.maximum(var, 0.0)                                  # guard FP cancellation
    scale = gamma.reshape(Cout, 1).astype(jnp.float32) * jax.lax.rsqrt(var + EPS)
    shift = beta.reshape(Cout, 1).astype(jnp.float32) - mean * scale

    # ---- pass 2: conv recompute fused with BN-apply + LeakyReLU, lane-dense stores ----
    kern2 = functools.partial(conv_bn_lrelu_kernel, offsets=offsets, kc=Kc,
                              tile_p=tile_p, n_tiles=n_tiles)
    y = pl.pallas_call(
        kern2,
        grid=(N,),
        in_specs=[
            pl.BlockSpec((None, Kc, Pin), lambda n: (n, 0, 0)),
            pl.BlockSpec((Cout, K27), lambda n: (0, 0)),
            pl.BlockSpec((Cout, 1), lambda n: (0, 0)),
            pl.BlockSpec((Cout, 1), lambda n: (0, 0)),
        ],
        out_specs=pl.BlockSpec((None, Cout, Pv), lambda n: (n, 0, 0)),
        out_shape=jax.ShapeDtypeStruct((N, Cout, Pv), jnp.float32),
        scratch_shapes=[pltpu.VMEM((K27, tile_p), mxu_dtype)],
        compiler_params=cparams,
    )(xf, wk, scale, shift)

    # Extract valid columns.  Result is already channel-major (no NCDHW transpose).
    # TODO(synk): fold this crop into pass 2 so the kernel writes (N,Cout,D,H,W) directly.
    y = y[:, :, :P].reshape(N, Cout, D + 2, H2, W2)
    return y[:, :, :D, :H, :W]


def reference(x, w, bias, gamma, beta):
    conv = jax.lax.conv_general_dilated(
        x, w, window_strides=(1, 1, 1),
        padding=((1, 1), (1, 1), (1, 1)),
        dimension_numbers=("NCDHW", "OIDHW", "NCDHW"))
    conv = conv + bias[None, :, None, None, None]
    mean = conv.mean(axis=(0, 2, 3, 4), keepdims=True)
    var = conv.var(axis=(0, 2, 3, 4), keepdims=True)      # biased, as BN uses
    y = (conv - mean) / jnp.sqrt(var + EPS)
    y = y * gamma[None, :, None, None, None] + beta[None, :, None, None, None]
    return jnp.where(y >= 0, y, NEG_SLOPE * y)


if __name__ == "__main__":
    key = jax.random.PRNGKey(0)
    N, Cin, Cout, D, H, W = 2, 4, 8, 8, 8, 8

    kx, kw, kb = jax.random.split(key, 3)
    x = jax.random.normal(kx, (N, Cin, D, H, W), jnp.float32)

    # Conv3d kaiming-uniform-style bound; BatchNorm3d init gamma=1, beta=0 (PyTorch defaults).
    fan_in = Cin * 3 * 3 * 3
    bound = 1.0 / (fan_in ** 0.5)
    w = jax.random.uniform(kw, (Cout, Cin, 3, 3, 3), jnp.float32, -bound, bound)
    bias = jax.random.uniform(kb, (Cout,), jnp.float32, -bound, bound)
    gamma = jnp.ones((Cout,), jnp.float32)
    beta = jnp.zeros((Cout,), jnp.float32)

    fwd = jax.jit(conv_block_forward)
    out = jax.block_until_ready(fwd(x, w, bias, gamma, beta))
    assert out.shape == (N, Cout, D, H, W)

    # Tight check: reference with the same bf16 quantization of the MXU operands
    # (everything else — accumulation, BN, LeakyReLU — is f32 in both; the conv bias
    # cancels exactly under batch-stat BN, so the references still apply).
    xq = x.astype(jnp.bfloat16).astype(jnp.float32)
    wq = w.astype(jnp.bfloat16).astype(jnp.float32)
    ref_q = reference(xq, wq, bias, gamma, beta)
    err_q = float(jnp.max(jnp.abs(out - ref_q)))
    assert jnp.allclose(out, ref_q, atol=1e-3, rtol=1e-3), err_q

    # Sanity check against the exact f32 module semantics (difference = bf16 MXU operands).
    ref = reference(x, w, bias, gamma, beta)
    err = float(jnp.max(jnp.abs(out - ref)))
    assert jnp.allclose(out, ref, atol=1e-1, rtol=1e-1), err

    print("KERNEL_OK")
</pallas_src>

<mosaic_0001>
module attributes {stable_mosaic.version = 11 : i64} {
  func.func @conv_stats_kernel(%arg0: i32, %arg1: memref<1x16x1300xbf16, #tpu.memory_space<vmem>>, %arg2: memref<8x432xbf16, #tpu.memory_space<vmem>>, %arg3: memref<1x1024xf32, #tpu.memory_space<vmem>>, %arg4: memref<1x8x1xf32, #tpu.memory_space<vmem>>, %arg5: memref<1x8x1xf32, #tpu.memory_space<vmem>>, %arg6: memref<432x512xbf16, #tpu.memory_space<vmem>>) attributes {dimension_semantics = [#tpu.dimension_semantics<parallel>], iteration_bounds = array<i64: 2>, scalar_prefetch = 0 : i64, scratch_operands = 1 : i64, tpu.core_type = #tpu.core_type<tc>, window_params = [{transform_indices = @transform_0, window_bounds = array<i64: 1, 16, 1300>}, {pipeline_mode = #tpu.pipeline_mode<synchronous>, transform_indices = @transform_1, window_bounds = array<i64: 8, 432>}, {pipeline_mode = #tpu.pipeline_mode<synchronous>, transform_indices = @transform_2, window_bounds = array<i64: 1, 1024>}, {transform_indices = @transform_3, window_bounds = array<i64: 1, 8, 1>}, {transform_indices = @transform_4, window_bounds = array<i64: 1, 8, 1>}]} {
    %c0 = arith.constant 0 : index
    %c0_0 = arith.constant 0 : index
    %0 = vector.load %arg2[%c0, %c0_0] : memref<8x432xbf16, #tpu.memory_space<vmem>>, vector<8x432xbf16>
    %cst = arith.constant 0.000000e+00 : f32
    %1 = vector.broadcast %cst : f32 to vector<8x1xf32>
    %cst_1 = arith.constant 0.000000e+00 : f32
    %2 = vector.broadcast %cst_1 : f32 to vector<8x1xf32>
    %c0_2 = arith.constant 0 : index
    %c0_3 = arith.constant 0 : index
    %c0_4 = arith.constant 0 : index
    %3 = vector.load %arg1[%c0_2, %c0_3, %c0_4] : memref<1x16x1300xbf16, #tpu.memory_space<vmem>>, vector<1x16x512xbf16>
    %4 = vector.shape_cast %3 : vector<1x16x512xbf16> to vector<16x512xbf16>
    %c0_5 = arith.constant 0 : index
    %c0_6 = arith.constant 0 : index
    %5 = vector.load %arg6[%c0_5, %c0_6] : memref<432x512xbf16, #tpu.memory_space<vmem>>, vector<16x512xbf16>
    tpu.vector_store %arg6[%c0_5, %c0_6], %4 {strides = array<i32>} : memref<432x512xbf16, #tpu.memory_space<vmem>>, vector<16x512xbf16>,
    %c0_7 = arith.constant 0 : index
    %c0_8 = arith.constant 0 : index
    %c1 = arith.constant 1 : index
    %6 = vector.load %arg1[%c0_7, %c0_8, %c1] : memref<1x16x1300xbf16, #tpu.memory_space<vmem>>, vector<1x16x512xbf16>
    %7 = vector.shape_cast %6 : vector<1x16x512xbf16> to vector<16x512xbf16>
    %c16 = arith.constant 16 : index
    %c0_9 = arith.constant 0 : index
    %8 = vector.load %arg6[%c16, %c0_9] : memref<432x512xbf16, #tpu.memory_space<vmem>>, vector<16x512xbf16>
    tpu.vector_store %arg6[%c16, %c0_9], %7 {strides = array<i32>} : memref<432x512xbf16, #tpu.memory_space<vmem>>, vector<16x512xbf16>,
    %c0_10 = arith.constant 0 : index
    %c0_11 = arith.constant 0 : index
    %c2 = arith.constant 2 : index
    %9 = vector.load %arg1[%c0_10, %c0_11, %c2] : memref<1x16x1300xbf16, #tpu.memory_space<vmem>>, vector<1x16x512xbf16>
    %10 = vector.shape_cast %9 : vector<1x16x512xbf16> to vector<16x512xbf16>
    %c32 = arith.constant 32 : index
    %c0_12 = arith.constant 0 : index
    %11 = vector.load %arg6[%c32, %c0_12] : memref<432x512xbf16, #tpu.memory_space<vmem>>, vector<16x512xbf16>
    tpu.vector_store %arg6[%c32, %c0_12], %10 {strides = array<i32>} : memref<432x512xbf16, #tpu.memory_space<vmem>>, vector<16x512xbf16>,
    %c0_13 = arith.constant 0 : index
    %c0_14 = arith.constant 0 : index
    %c10 = arith.constant 10 : index
    %12 = vector.load %arg1[%c0_13, %c0_14, %c10] : memref<1x16x1300xbf16, #tpu.memory_space<vmem>>, vector<1x16x512xbf16>
    %13 = vector.shape_cast %12 : vector<1x16x512xbf16> to vector<16x512xbf16>
    %c48 = arith.constant 48 : index
    %c0_15 = arith.constant 0 : index
    %14 = vector.load %arg6[%c48, %c0_15] : memref<432x512xbf16, #tpu.memory_space<vmem>>, vector<16x512xbf16>
    tpu.vector_store %arg6[%c48, %c0_15], %13 {strides = array<i32>} : memref<432x512xbf16, #tpu.memory_space<vmem>>, vector<16x512xbf16>,
    %c0_16 = arith.constant 0 : index
    %c0_17 = arith.constant 0 : index
    %c11 = arith.constant 11 : index
    %15 = vector.load %arg1[%c0_16, %c0_17, %c11] : memref<1x16x1300xbf16, #tpu.memory_space<vmem>>, vector<1x16x512xbf16>
    %16 = vector.shape_cast %15 : vector<1x16x512xbf16> to vector<16x512xbf16>
    %c64 = arith.constant 64 : index
    %c0_18 = arith.constant 0 : index
    %17 = vector.load %arg6[%c64, %c0_18] : memref<432x512xbf16, #tpu.memory_space<vmem>>, vector<16x512xbf16>
    tpu.vector_store %arg6[%c64, %c0_18], %16 {strides = array<i32>} : memref<432x512xbf16, #tpu.memory_space<vmem>>, vector<16x512xbf16>,
    %c0_19 = arith.constant 0 : index
    %c0_20 = arith.constant 0 : index
    %c12 = arith.constant 12 : index
    %18 = vector.load %arg1[%c0_19, %c0_20, %c12] : memref<1x16x1300xbf16, #tpu.memory_space<vmem>>, vector<1x16x512xbf16>
    %19 = vector.shape_cast %18 : vector<1x16x512xbf16> to vector<16x512xbf16>
    %c80 = arith.constant 80 : index
    %c0_21 = arith.constant 0 : index
    %20 = vector.load %arg6[%c80, %c0_21] : memref<432x512xbf16, #tpu.memory_space<vmem>>, vector<16x512xbf16>
    tpu.vector_store %arg6[%c80, %c0_21], %19 {strides = array<i32>} : memref<432x512xbf16, #tpu.memory_space<vmem>>, vector<16x512xbf16>,
    %c0_22 = arith.constant 0 : index
    %c0_23 = arith.constant 0 : index
    %c20 = arith.constant 20 : index
    %21 = vector.load %arg1[%c0_22, %c0_23, %c20] : memref<1x16x1300xbf16, #tpu.memory_space<vmem>>, vector<1x16x512xbf16>
    %22 = vector.shape_cast %21 : vector<1x16x512xbf16> to vector<16x512xbf16>
    %c96 = arith.constant 96 : index
    %c0_24 = arith.constant 0 : index
    %23 = vector.load %arg6[%c96, %c0_24] : memref<432x512xbf16, #tpu.memory_space<vmem>>, vector<16x512xbf16>
    tpu.vector_store %arg6[%c96, %c0_24], %22 {strides = array<i32>} : memref<432x512xbf16, #tpu.memory_space<vmem>>, vector<16x512xbf16>,
    %c0_25 = arith.constant 0 : index
    %c0_26 = arith.constant 0 : index
    %c21 = arith.constant 21 : index
    %24 = vector.load %arg1[%c0_25, %c0_26, %c21] : memref<1x16x1300xbf16, #tpu.memory_space<vmem>>, vector<1x16x512xbf16>
    %25 = vector.shape_cast %24 : vector<1x16x512xbf16> to vector<16x512xbf16>
    %c112 = arith.constant 112 : index
    %c0_27 = arith.constant 0 : index
    %26 = vector.load %arg6[%c112, %c0_27] : memref<432x512xbf16, #tpu.memory_space<vmem>>, vector<16x512xbf16>
    tpu.vector_store %arg6[%c112, %c0_27], %25 {strides = array<i32>} : memref<432x512xbf16, #tpu.memory_space<vmem>>, vector<16x512xbf16>,
    %c0_28 = arith.constant 0 : index
    %c0_29 = arith.constant 0 : index
    %c22 = arith.constant 22 : index
    %27 = vector.load %arg1[%c0_28, %c0_29, %c22] : memref<1x16x1300xbf16, #tpu.memory_space<vmem>>, vector<1x16x512xbf16>
    %28 = vector.shape_cast %27 : vector<1x16x512xbf16> to vector<16x512xbf16>
    %c128 = arith.constant 128 : index
    %c0_30 = arith.constant 0 : index
    %29 = vector.load %arg6[%c128, %c0_30] : memref<432x512xbf16, #tpu.memory_space<vmem>>, vector<16x512xbf16>
    tpu.vector_store %arg6[%c128, %c0_30], %28 {strides = array<i32>} : memref<432x512xbf16, #tpu.memory_space<vmem>>, vector<16x512xbf16>,
    %c0_31 = arith.constant 0 : index
    %c0_32 = arith.constant 0 : index
    %c100 = arith.constant 100 : index
    %30 = vector.load %arg1[%c0_31, %c0_32, %c100] : memref<1x16x1300xbf16, #tpu.memory_space<vmem>>, vector<1x16x512xbf16>
    %31 = vector.shape_cast %30 : vector<1x16x512xbf16> to vector<16x512xbf16>
    %c144 = arith.constant 144 : index
    %c0_33 = arith.constant 0 : index
    %32 = vector.load %arg6[%c144, %c0_33] : memref<432x512xbf16, #tpu.memory_space<vmem>>, vector<16x512xbf16>
    tpu.vector_store %arg6[%c144, %c0_33], %31 {strides = array<i32>} : memref<432x512xbf16, #tpu.memory_space<vmem>>, vector<16x512xbf16>,
    %c0_34 = arith.constant 0 : index
    %c0_35 = arith.constant 0 : index
    %c101 = arith.constant 101 : index
    %33 = vector.load %arg1[%c0_34, %c0_35, %c101] : memref<1x16x1300xbf16, #tpu.memory_space<vmem>>, vector<1x16x512xbf16>
    %34 = vector.shape_cast %33 : vector<1x16x512xbf16> to vector<16x512xbf16>
    %c160 = arith.constant 160 : index
    %c0_36 = arith.constant 0 : index
    %35 = vector.load %arg6[%c160, %c0_36] : memref<432x512xbf16, #tpu.memory_space<vmem>>, vector<16x512xbf16>
    tpu.vector_store %arg6[%c160, %c0_36], %34 {strides = array<i32>} : memref<432x512xbf16, #tpu.memory_space<vmem>>, vector<16x512xbf16>,
    %c0_37 = arith.constant 0 : index
    %c0_38 = arith.constant 0 : index
    %c102 = arith.constant 102 : index
    %36 = vector.load %arg1[%c0_37, %c0_38, %c102] : memref<1x16x1300xbf16, #tpu.memory_space<vmem>>, vector<1x16x512xbf16>
    %37 = vector.shape_cast %36 : vector<1x16x512xbf16> to vector<16x512xbf16>
    %c176 = arith.constant 176 : index
    %c0_39 = arith.constant 0 : index
    %38 = vector.load %arg6[%c176, %c0_39] : memref<432x512xbf16, #tpu.memory_space<vmem>>, vector<16x512xbf16>
    tpu.vector_store %arg6[%c176, %c0_39], %37 {strides = array<i32>} : memref<432x512xbf16, #tpu.memory_space<vmem>>, vector<16x512xbf16>,
    %c0_40 = arith.constant 0 : index
    %c0_41 = arith.constant 0 : index
    %c110 = arith.constant 110 : index
    %39 = vector.load %arg1[%c0_40, %c0_41, %c110] : memref<1x16x1300xbf16, #tpu.memory_space<vmem>>, vector<1x16x512xbf16>
    %40 = vector.shape_cast %39 : vector<1x16x512xbf16> to vector<16x512xbf16>
    %c192 = arith.constant 192 : index
    %c0_42 = arith.constant 0 : index
    %41 = vector.load %arg6[%c192, %c0_42] : memref<432x512xbf16, #tpu.memory_space<vmem>>, vector<16x512xbf16>
    tpu.vector_store %arg6[%c192, %c0_42], %40 {strides = array<i32>} : memref<432x512xbf16, #tpu.memory_space<vmem>>, vector<16x512xbf16>,
    %c0_43 = arith.constant 0 : index
    %c0_44 = arith.constant 0 : index
    %c111 = arith.constant 111 : index
    %42 = vector.load %arg1[%c0_43, %c0_44, %c111] : memref<1x16x1300xbf16, #tpu.memory_space<vmem>>, vector<1x16x512xbf16>
    %43 = vector.shape_cast %42 : vector<1x16x512xbf16> to vector<16x512xbf16>
    %c208 = arith.constant 208 : index
    %c0_45 = arith.constant 0 : index
    %44 = vector.load %arg6[%c208, %c0_45] : memref<432x512xbf16, #tpu.memory_space<vmem>>, vector<16x512xbf16>
    tpu.vector_store %arg6[%c208, %c0_45], %43 {strides = array<i32>} : memref<432x512xbf16, #tpu.memory_space<vmem>>, vector<16x512xbf16>,
    %c0_46 = arith.constant 0 : index
    %c0_47 = arith.constant 0 : index
    %c112_48 = arith.constant 112 : index
    %45 = vector.load %arg1[%c0_46, %c0_47, %c112_48] : memref<1x16x1300xbf16, #tpu.memory_space<vmem>>, vector<1x16x512xbf16>
    %46 = vector.shape_cast %45 : vector<1x16x512xbf16> to vector<16x512xbf16>
    %c224 = arith.constant 224 : index
    %c0_49 = arith.constant 0 : index
    %47 = vector.load %arg6[%c224, %c0_49] : memref<432x512xbf16, #tpu.memory_space<vmem>>, vector<16x512xbf16>
    tpu.vector_store %arg6[%c224, %c0_49], %46 {strides = array<i32>} : memref<432x512xbf16, #tpu.memory_space<vmem>>, vector<16x512xbf16>,
    %c0_50 = arith.constant 0 : index
    %c0_51 = arith.constant 0 : index
    %c120 = arith.constant 120 : index
    %48 = vector.load %arg1[%c0_50, %c0_51, %c120] : memref<1x16x1300xbf16, #tpu.memory_space<vmem>>, vector<1x16x512xbf16>
    %49 = vector.shape_cast %48 : vector<1x16x512xbf16> to vector<16x512xbf16>
    %c240 = arith.constant 240 : index
    %c0_52 = arith.constant 0 : index
    %50 = vector.load %arg6[%c240, %c0_52] : memref<432x512xbf16, #tpu.memory_space<vmem>>, vector<16x512xbf16>
    tpu.vector_store %arg6[%c240, %c0_52], %49 {strides = array<i32>} : memref<432x512xbf16, #tpu.memory_space<vmem>>, vector<16x512xbf16>,
    %c0_53 = arith.constant 0 : index
    %c0_54 = arith.constant 0 : index
    %c121 = arith.constant 121 : index
    %51 = vector.load %arg1[%c0_53, %c0_54, %c121] : memref<1x16x1300xbf16, #tpu.memory_space<vmem>>, vector<1x16x512xbf16>
    %52 = vector.shape_cast %51 : vector<1x16x512xbf16> to vector<16x512xbf16>
    %c256 = arith.constant 256 : index
    %c0_55 = arith.constant 0 : index
    %53 = vector.load %arg6[%c256, %c0_55] : memref<432x512xbf16, #tpu.memory_space<vmem>>, vector<16x512xbf16>
    tpu.vector_store %arg6[%c256, %c0_55], %52 {strides = array<i32>} : memref<432x512xbf16, #tpu.memory_space<vmem>>, vector<16x512xbf16>,
    %c0_56 = arith.constant 0 : index
    %c0_57 = arith.constant 0 : index
    %c122 = arith.constant 122 : index
    %54 = vector.load %arg1[%c0_56, %c0_57, %c122] : memref<1x16x1300xbf16, #tpu.memory_space<vmem>>, vector<1x16x512xbf16>
    %55 = vector.shape_cast %54 : vector<1x16x512xbf16> to vector<16x512xbf16>
    %c272 = arith.constant 272 : index
    %c0_58 = arith.constant 0 : index
    %56 = vector.load %arg6[%c272, %c0_58] : memref<432x512xbf16, #tpu.memory_space<vmem>>, vector<16x512xbf16>
    tpu.vector_store %arg6[%c272, %c0_58], %55 {strides = array<i32>} : memref<432x512xbf16, #tpu.memory_space<vmem>>, vector<16x512xbf16>,
    %c0_59 = arith.constant 0 : index
    %c0_60 = arith.constant 0 : index
    %c200 = arith.constant 200 : index
    %57 = vector.load %arg1[%c0_59, %c0_60, %c200] : memref<1x16x1300xbf16, #tpu.memory_space<vmem>>, vector<1x16x512xbf16>
    %58 = vector.shape_cast %57 : vector<1x16x512xbf16> to vector<16x512xbf16>
    %c288 = arith.constant 288 : index
    %c0_61 = arith.constant 0 : index
    %59 = vector.load %arg6[%c288, %c0_61] : memref<432x512xbf16, #tpu.memory_space<vmem>>, vector<16x512xbf16>
    tpu.vector_store %arg6[%c288, %c0_61], %58 {strides = array<i32>} : memref<432x512xbf16, #tpu.memory_space<vmem>>, vector<16x512xbf16>,
    %c0_62 = arith.constant 0 : index
    %c0_63 = arith.constant 0 : index
    %c201 = arith.constant 201 : index
    %60 = vector.load %arg1[%c0_62, %c0_63, %c201] : memref<1x16x1300xbf16, #tpu.memory_space<vmem>>, vector<1x16x512xbf16>
    %61 = vector.shape_cast %60 : vector<1x16x512xbf16> to vector<16x512xbf16>
    %c304 = arith.constant 304 : index
    %c0_64 = arith.constant 0 : index
    %62 = vector.load %arg6[%c304, %c0_64] : memref<432x512xbf16, #tpu.memory_space<vmem>>, vector<16x512xbf16>
    tpu.vector_store %arg6[%c304, %c0_64], %61 {strides = array<i32>} : memref<432x512xbf16, #tpu.memory_space<vmem>>, vector<16x512xbf16>,
    %c0_65 = arith.constant 0 : index
    %c0_66 = arith.constant 0 : index
    %c202 = arith.constant 202 : index
    %63 = vector.load %arg1[%c0_65, %c0_66, %c202] : memref<1x16x1300xbf16, #tpu.memory_space<vmem>>, vector<1x16x512xbf16>
    %64 = vector.shape_cast %63 : vector<1x16x512xbf16> to vector<16x512xbf16>
    %c320 = arith.constant 320 : index
    %c0_67 = arith.constant 0 : index
    %65 = vector.load %arg6[%c320, %c0_67] : memref<432x512xbf16, #tpu.memory_space<vmem>>, vector<16x512xbf16>
    tpu.vector_store %arg6[%c320, %c0_67], %64 {strides = array<i32>} : memref<432x512xbf16, #tpu.memory_space<vmem>>, vector<16x512xbf16>,
    %c0_68 = arith.constant 0 : index
    %c0_69 = arith.constant 0 : index
    %c210 = arith.constant 210 : index
    %66 = vector.load %arg1[%c0_68, %c0_69, %c210] : memref<1x16x1300xbf16, #tpu.memory_space<vmem>>, vector<1x16x512xbf16>
    %67 = vector.shape_cast %66 : vector<1x16x512xbf16> to vector<16x512xbf16>
    %c336 = arith.constant 336 : index
    %c0_70 = arith.constant 0 : index
    %68 = vector.load %arg6[%c336, %c0_70] : memref<432x512xbf16, #tpu.memory_space<vmem>>, vector<16x512xbf16>
    tpu.vector_store %arg6[%c336, %c0_70], %67 {strides = array<i32>} : memref<432x512xbf16, #tpu.memory_space<vmem>>, vector<16x512xbf16>,
    %c0_71 = arith.constant 0 : index
    %c0_72 = arith.constant 0 : index
    %c211 = arith.constant 211 : index
    %69 = vector.load %arg1[%c0_71, %c0_72, %c211] : memref<1x16x1300xbf16, #tpu.memory_space<vmem>>, vector<1x16x512xbf16>
    %70 = vector.shape_cast %69 : vector<1x16x512xbf16> to vector<16x512xbf16>
    %c352 = arith.constant 352 : index
    %c0_73 = arith.constant 0 : index
    %71 = vector.load %arg6[%c352, %c0_73] : memref<432x512xbf16, #tpu.memory_space<vmem>>, vector<16x512xbf16>
    tpu.vector_store %arg6[%c352, %c0_73], %70 {strides = array<i32>} : memref<432x512xbf16, #tpu.memory_space<vmem>>, vector<16x512xbf16>,
    %c0_74 = arith.constant 0 : index
    %c0_75 = arith.constant 0 : index
    %c212 = arith.constant 212 : index
    %72 = vector.load %arg1[%c0_74, %c0_75, %c212] : memref<1x16x1300xbf16, #tpu.memory_space<vmem>>, vector<1x16x512xbf16>
    %73 = vector.shape_cast %72 : vector<1x16x512xbf16> to vector<16x512xbf16>
    %c368 = arith.constant 368 : index
    %c0_76 = arith.constant 0 : index
    %74 = vector.load %arg6[%c368, %c0_76] : memref<432x512xbf16, #tpu.memory_space<vmem>>, vector<16x512xbf16>
    tpu.vector_store %arg6[%c368, %c0_76], %73 {strides = array<i32>} : memref<432x512xbf16, #tpu.memory_space<vmem>>, vector<16x512xbf16>,
    %c0_77 = arith.constant 0 : index
    %c0_78 = arith.constant 0 : index
    %c220 = arith.constant 220 : index
    %75 = vector.load %arg1[%c0_77, %c0_78, %c220] : memref<1x16x1300xbf16, #tpu.memory_space<vmem>>, vector<1x16x512xbf16>
    %76 = vector.shape_cast %75 : vector<1x16x512xbf16> to vector<16x512xbf16>
    %c384 = arith.constant 384 : index
    %c0_79 = arith.constant 0 : index
    %77 = vector.load %arg6[%c384, %c0_79] : memref<432x512xbf16, #tpu.memory_space<vmem>>, vector<16x512xbf16>
    tpu.vector_store %arg6[%c384, %c0_79], %76 {strides = array<i32>} : memref<432x512xbf16, #tpu.memory_space<vmem>>, vector<16x512xbf16>,
    %c0_80 = arith.constant 0 : index
    %c0_81 = arith.constant 0 : index
    %c221 = arith.constant 221 : index
    %78 = vector.load %arg1[%c0_80, %c0_81, %c221] : memref<1x16x1300xbf16, #tpu.memory_space<vmem>>, vector<1x16x512xbf16>
    %79 = vector.shape_cast %78 : vector<1x16x512xbf16> to vector<16x512xbf16>
    %c400 = arith.constant 400 : index
    %c0_82 = arith.constant 0 : index
    %80 = vector.load %arg6[%c400, %c0_82] : memref<432x512xbf16, #tpu.memory_space<vmem>>, vector<16x512xbf16>
    tpu.vector_store %arg6[%c400, %c0_82], %79 {strides = array<i32>} : memref<432x512xbf16, #tpu.memory_space<vmem>>, vector<16x512xbf16>,
    %c0_83 = arith.constant 0 : index
    %c0_84 = arith.constant 0 : index
    %c222 = arith.constant 222 : index
    %81 = vector.load %arg1[%c0_83, %c0_84, %c222] : memref<1x16x1300xbf16, #tpu.memory_space<vmem>>, vector<1x16x512xbf16>
    %82 = vector.shape_cast %81 : vector<1x16x512xbf16> to vector<16x512xbf16>
    %c416 = arith.constant 416 : index
    %c0_85 = arith.constant 0 : index
    %83 = vector.load %arg6[%c416, %c0_85] : memref<432x512xbf16, #tpu.memory_space<vmem>>, vector<16x512xbf16>
    tpu.vector_store %arg6[%c416, %c0_85], %82 {strides = array<i32>} : memref<432x512xbf16, #tpu.memory_space<vmem>>, vector<16x512xbf16>,
    %c0_86 = arith.constant 0 : index
    %c0_87 = arith.constant 0 : index
    %84 = vector.load %arg6[%c0_86, %c0_87] : memref<432x512xbf16, #tpu.memory_space<vmem>>, vector<432x512xbf16>
    %cst_88 = arith.constant dense<0.000000e+00> : vector<8x512xf32>
    %85 = tpu.matmul %0, %84, %cst_88 {dimension_numbers = #tpu.dot_dimension_numbers<[1], [0], [0], [1], [0, 0, 1, 1], [], []>} : vector<8x432xbf16>, vector<432x512xbf16>, vector<8x512xf32> -> vector<8x512xf32>
    %c0_89 = arith.constant 0 : index
    %c0_90 = arith.constant 0 : index
    %86 = vector.load %arg3[%c0_89, %c0_90] : memref<1x1024xf32, #tpu.memory_space<vmem>>, vector<1x512xf32>
    %87 = vector.broadcast %86 : vector<1x512xf32> to vector<8x512xf32>
    %88 = arith.mulf %85, %87 : vector<8x512xf32>
    %cst_91 = arith.constant dense<0.000000e+00> : vector<8xf32>
    %89 = vector.multi_reduction <add>, %88, %cst_91 [1] : vector<8x512xf32> to vector<8xf32>
    %90 = vector.shape_cast %89 : vector<8xf32> to vector<8x1xf32>
    %91 = arith.addf %1, %90 : vector<8x1xf32>
    %92 = arith.mulf %88, %85 : vector<8x512xf32>
    %cst_92 = arith.constant dense<0.000000e+00> : vector<8xf32>
    %93 = vector.multi_reduction <add>, %92, %cst_92 [1] : vector<8x512xf32> to vector<8xf32>
    %94 = vector.shape_cast %93 : vector<8xf32> to vector<8x1xf32>
    %95 = arith.addf %2, %94 : vector<8x1xf32>
    %c0_93 = arith.constant 0 : index
    %c0_94 = arith.constant 0 : index
    %c512 = arith.constant 512 : index
    %96 = vector.load %arg1[%c0_93, %c0_94, %c512] : memref<1x16x1300xbf16, #tpu.memory_space<vmem>>, vector<1x16x512xbf16>
    %97 = vector.shape_cast %96 : vector<1x16x512xbf16> to vector<16x512xbf16>
    %c0_95 = arith.constant 0 : index
    %c0_96 = arith.constant 0 : index
    %98 = vector.load %arg6[%c0_95, %c0_96] : memref<432x512xbf16, #tpu.memory_space<vmem>>, vector<16x512xbf16>
    tpu.vector_store %arg6[%c0_95, %c0_96], %97 {strides = array<i32>} : memref<432x512xbf16, #tpu.memory_space<vmem>>, vector<16x512xbf16>,
    %c0_97 = arith.constant 0 : index
    %c0_98 = arith.constant 0 : index
    %c513 = arith.constant 513 : index
    %99 = vector.load %arg1[%c0_97, %c0_98, %c513] : memref<1x16x1300xbf16, #tpu.memory_space<vmem>>, vector<1x16x512xbf16>
    %100 = vector.shape_cast %99 : vector<1x16x512xbf16> to vector<16x512xbf16>
    %c16_99 = arith.constant 16 : index
    %c0_100 = arith.constant 0 : index
    %101 = vector.load %arg6[%c16_99, %c0_100] : memref<432x512xbf16, #tpu.memory_space<vmem>>, vector<16x512xbf16>
    tpu.vector_store %arg6[%c16_99, %c0_100], %100 {strides = array<i32>} : memref<432x512xbf16, #tpu.memory_space<vmem>>, vector<16x512xbf16>,
    %c0_101 = arith.constant 0 : index
    %c0_102 = arith.constant 0 : index
    %c514 = arith.constant 514 : index
    %102 = vector.load %arg1[%c0_101, %c0_102, %c514] : memref<1x16x1300xbf16, #tpu.memory_space<vmem>>, vector<1x16x512xbf16>
    %103 = vector.shape_cast %102 : vector<1x16x512xbf16> to vector<16x512xbf16>
    %c32_103 = arith.constant 32 : index
    %c0_104 = arith.constant 0 : index
    %104 = vector.load %arg6[%c32_103, %c0_104] : memref<432x512xbf16, #tpu.memory_space<vmem>>, vector<16x512xbf16>
    tpu.vector_store %arg6[%c32_103, %c0_104], %103 {strides = array<i32>} : memref<432x512xbf16, #tpu.memory_space<vmem>>, vector<16x512xbf16>,
    %c0_105 = arith.constant 0 : index
    %c0_106 = arith.constant 0 : index
    %c522 = arith.constant 522 : index
    %105 = vector.load %arg1[%c0_105, %c0_106, %c522] : memref<1x16x1300xbf16, #tpu.memory_space<vmem>>, vector<1x16x512xbf16>
    %106 = vector.shape_cast %105 : vector<1x16x512xbf16> to vector<16x512xbf16>
    %c48_107 = arith.constant 48 : index
    %c0_108 = arith.constant 0 : index
    %107 = vector.load %arg6[%c48_107, %c0_108] : memref<432x512xbf16, #tpu.memory_space<vmem>>, vector<16x512xbf16>
    tpu.vector_store %arg6[%c48_107, %c0_108], %106 {strides = array<i32>} : memref<432x512xbf16, #tpu.memory_space<vmem>>, vector<16x512xbf16>,
    %c0_109 = arith.constant 0 : index
    %c0_110 = arith.constant 0 : index
    %c523 = arith.constant 523 : index
    %108 = vector.load %arg1[%c0_109, %c0_110, %c523] : memref<1x16x1300xbf16, #tpu.memory_space<vmem>>, vector<1x16x512xbf16>
    %109 = vector.shape_cast %108 : vector<1x16x512xbf16> to vector<16x512xbf16>
    %c64_111 = arith.constant 64 : index
    %c0_112 = arith.constant 0 : index
    %110 = vector.load %arg6[%c64_111, %c0_112] : memref<432x512xbf16, #tpu.memory_space<vmem>>, vector<16x512xbf16>
    tpu.vector_store %arg6[%c64_111, %c0_112], %109 {strides = array<i32>} : memref<432x512xbf16, #tpu.memory_space<vmem>>, vector<16x512xbf16>,
    %c0_113 = arith.constant 0 : index
    %c0_114 = arith.constant 0 : index
    %c524 = arith.constant 524 : index
    %111 = vector.load %arg1[%c0_113, %c0_114, %c524] : memref<1x16x1300xbf16, #tpu.memory_space<vmem>>, vector<1x16x512xbf16>
    %112 = vector.shape_cast %111 : vector<1x16x512xbf16> to vector<16x512xbf16>
    %c80_115 = arith.constant 80 : index
    %c0_116 = arith.constant 0 : index
    %113 = vector.load %arg6[%c80_115, %c0_116] : memref<432x512xbf16, #tpu.memory_space<vmem>>, vector<16x512xbf16>
    tpu.vector_store %arg6[%c80_115, %c0_116], %112 {strides = array<i32>} : memref<432x512xbf16, #tpu.memory_space<vmem>>, vector<16x512xbf16>,
    %c0_117 = arith.constant 0 : index
    %c0_118 = arith.constant 0 : index
    %c532 = arith.constant 532 : index
    %114 = vector.load %arg1[%c0_117, %c0_118, %c532] : memref<1x16x1300xbf16, #tpu.memory_space<vmem>>, vector<1x16x512xbf16>
    %115 = vector.shape_cast %114 : vector<1x16x512xbf16> to vector<16x512xbf16>
    %c96_119 = arith.constant 96 : index
    %c0_120 = arith.constant 0 : index
    %116 = vector.load %arg6[%c96_119, %c0_120] : memref<432x512xbf16, #tpu.memory_space<vmem>>, vector<16x512xbf16>
    tpu.vector_store %arg6[%c96_119, %c0_120], %115 {strides = array<i32>} : memref<432x512xbf16, #tpu.memory_space<vmem>>, vector<16x512xbf16>,
    %c0_121 = arith.constant 0 : index
    %c0_122 = arith.constant 0 : index
    %c533 = arith.constant 533 : index
    %117 = vector.load %arg1[%c0_121, %c0_122, %c533] : memref<1x16x1300xbf16, #tpu.memory_space<vmem>>, vector<1x16x512xbf16>
    %118 = vector.shape_cast %117 : vector<1x16x512xbf16> to vector<16x512xbf16>
    %c112_123 = arith.constant 112 : index
    %c0_124 = arith.constant 0 : index
    %119 = vector.load %arg6[%c112_123, %c0_124] : memref<432x512xbf16, #tpu.memory_space<vmem>>, vector<16x512xbf16>
    tpu.vector_store %arg6[%c112_123, %c0_124], %118 {strides = array<i32>} : memref<432x512xbf16, #tpu.memory_space<vmem>>, vector<16x512xbf16>,
    %c0_125 = arith.constant 0 : index
    %c0_126 = arith.constant 0 : index
    %c534 = arith.constant 534 : index
    %120 = vector.load %arg1[%c0_125, %c0_126, %c534] : memref<1x16x1300xbf16, #tpu.memory_space<vmem>>, vector<1x16x512xbf16>
    %121 = vector.shape_cast %120 : vector<1x16x512xbf16> to vector<16x512xbf16>
    %c128_127 = arith.constant 128 : index
    %c0_128 = arith.constant 0 : index
    %122 = vector.load %arg6[%c128_127, %c0_128] : memref<432x512xbf16, #tpu.memory_space<vmem>>, vector<16x512xbf16>
    tpu.vector_store %arg6[%c128_127, %c0_128], %121 {strides = array<i32>} : memref<432x512xbf16, #tpu.memory_space<vmem>>, vector<16x512xbf16>,
    %c0_129 = arith.constant 0 : index
    %c0_130 = arith.constant 0 : index
    %c612 = arith.constant 612 : index
    %123 = vector.load %arg1[%c0_129, %c0_130, %c612] : memref<1x16x1300xbf16, #tpu.memory_space<vmem>>, vector<1x16x512xbf16>
    %124 = vector.shape_cast %123 : vector<1x16x512xbf16> to vector<16x512xbf16>
    %c144_131 = arith.constant 144 : index
    %c0_132 = arith.constant 0 : index
    %125 = vector.load %arg6[%c144_131, %c0_132] : memref<432x512xbf16, #tpu.memory_space<vmem>>, vector<16x512xbf16>
    tpu.vector_store %arg6[%c144_131, %c0_132], %124 {strides = array<i32>} : memref<432x512xbf16, #tpu.memory_space<vmem>>, vector<16x512xbf16>,
    %c0_133 = arith.constant 0 : index
    %c0_134 = arith.constant 0 : index
    %c613 = arith.constant 613 : index
    %126 = vector.load %arg1[%c0_133, %c0_134, %c613] : memref<1x16x1300xbf16, #tpu.memory_space<vmem>>, vector<1x16x512xbf16>
    %127 = vector.shape_cast %126 : vector<1x16x512xbf16> to vector<16x512xbf16>
    %c160_135 = arith.constant 160 : index
    %c0_136 = arith.constant 0 : index
    %128 = vector.load %arg6[%c160_135, %c0_136] : memref<432x512xbf16, #tpu.memory_space<vmem>>, vector<16x512xbf16>
    tpu.vector_store %arg6[%c160_135, %c0_136], %127 {strides = array<i32>} : memref<432x512xbf16, #tpu.memory_space<vmem>>, vector<16x512xbf16>,
    %c0_137 = arith.constant 0 : index
    %c0_138 = arith.constant 0 : index
    %c614 = arith.constant 614 : index
    %129 = vector.load %arg1[%c0_137, %c0_138, %c614] : memref<1x16x1300xbf16, #tpu.memory_space<vmem>>, vector<1x16x512xbf16>
    %130 = vector.shape_cast %129 : vector<1x16x512xbf16> to vector<16x512xbf16>
    %c176_139 = arith.constant 176 : index
    %c0_140 = arith.constant 0 : index
    %131 = vector.load %arg6[%c176_139, %c0_140] : memref<432x512xbf16, #tpu.memory_space<vmem>>, vector<16x512xbf16>
    tpu.vector_store %arg6[%c176_139, %c0_140], %130 {strides = array<i32>} : memref<432x512xbf16, #tpu.memory_space<vmem>>, vector<16x512xbf16>,
    %c0_141 = arith.constant 0 : index
    %c0_142 = arith.constant 0 : index
    %c622 = arith.constant 622 : index
    %132 = vector.load %arg1[%c0_141, %c0_142, %c622] : memref<1x16x1300xbf16, #tpu.memory_space<vmem>>, vector<1x16x512xbf16>
    %133 = vector.shape_cast %132 : vector<1x16x512xbf16> to vector<16x512xbf16>
    %c192_143 = arith.constant 192 : index
    %c0_144 = arith.constant 0 : index
    %134 = vector.load %arg6[%c192_143, %c0_144] : memref<432x512xbf16, #tpu.memory_space<vmem>>, vector<16x512xbf16>
    tpu.vector_store %arg6[%c192_143, %c0_144], %133 {strides = array<i32>} : memref<432x512xbf16, #tpu.memory_space<vmem>>, vector<16x512xbf16>,
    %c0_145 = arith.constant 0 : index
    %c0_146 = arith.constant 0 : index
    %c623 = arith.constant 623 : index
    %135 = vector.load %arg1[%c0_145, %c0_146, %c623] : memref<1x16x1300xbf16, #tpu.memory_space<vmem>>, vector<1x16x512xbf16>
    %136 = vector.shape_cast %135 : vector<1x16x512xbf16> to vector<16x512xbf16>
    %c208_147 = arith.constant 208 : index
    %c0_148 = arith.constant 0 : index
    %137 = vector.load %arg6[%c208_147, %c0_148] : memref<432x512xbf16, #tpu.memory_space<vmem>>, vector<16x512xbf16>
    tpu.vector_store %arg6[%c208_147, %c0_148], %136 {strides = array<i32>} : memref<432x512xbf16, #tpu.memory_space<vmem>>, vector<16x512xbf16>,
    %c0_149 = arith.constant 0 : index
    %c0_150 = arith.constant 0 : index
    %c624 = arith.constant 624 : index
    %138 = vector.load %arg1[%c0_149, %c0_150, %c624] : memref<1x16x1300xbf16, #tpu.memory_space<vmem>>, vector<1x16x512xbf16>
    %139 = vector.shape_cast %138 : vector<1x16x512xbf16> to vector<16x512xbf16>
    %c224_151 = arith.constant 224 : index
    %c0_152 = arith.constant 0 : index
    %140 = vector.load %arg6[%c224_151, %c0_152] : memref<432x512xbf16, #tpu.memory_space<vmem>>, vector<16x512xbf16>
    tpu.vector_store %arg6[%c224_151, %c0_152], %139 {strides = array<i32>} : memref<432x512xbf16, #tpu.memory_space<vmem>>, vector<16x512xbf16>,
    %c0_153 = arith.constant 0 : index
    %c0_154 = arith.constant 0 : index
    %c632 = arith.constant 632 : index
    %141 = vector.load %arg1[%c0_153, %c0_154, %c632] : memref<1x16x1300xbf16, #tpu.memory_space<vmem>>, vector<1x16x512xbf16>
    %142 = vector.shape_cast %141 : vector<1x16x512xbf16> to vector<16x512xbf16>
    %c240_155 = arith.constant 240 : index
    %c0_156 = arith.constant 0 : index
    %143 = vector.load %arg6[%c240_155, %c0_156] : memref<432x512xbf16, #tpu.memory_space<vmem>>, vector<16x512xbf16>
    tpu.vector_store %arg6[%c240_155, %c0_156], %142 {strides = array<i32>} : memref<432x512xbf16, #tpu.memory_space<vmem>>, vector<16x512xbf16>,
    %c0_157 = arith.constant 0 : index
    %c0_158 = arith.constant 0 : index
    %c633 = arith.constant 633 : index
    %144 = vector.load %arg1[%c0_157, %c0_158, %c633] : memref<1x16x1300xbf16, #tpu.memory_space<vmem>>, vector<1x16x512xbf16>
    %145 = vector.shape_cast %144 : vector<1x16x512xbf16> to vector<16x512xbf16>
    %c256_159 = arith.constant 256 : index
    %c0_160 = arith.constant 0 : index
    %146 = vector.load %arg6[%c256_159, %c0_160] : memref<432x512xbf16, #tpu.memory_space<vmem>>, vector<16x512xbf16>
    tpu.vector_store %arg6[%c256_159, %c0_160], %145 {strides = array<i32>} : memref<432x512xbf16, #tpu.memory_space<vmem>>, vector<16x512xbf16>,
    %c0_161 = arith.constant 0 : index
    %c0_162 = arith.constant 0 : index
    %c634 = arith.constant 634 : index
    %147 = vector.load %arg1[%c0_161, %c0_162, %c634] : memref<1x16x1300xbf16, #tpu.memory_space<vmem>>, vector<1x16x512xbf16>
    %148 = vector.shape_cast %147 : vector<1x16x512xbf16> to vector<16x512xbf16>
    %c272_163 = arith.constant 272 : index
    %c0_164 = arith.constant 0 : index
    %149 = vector.load %arg6[%c272_163, %c0_164] : memref<432x512xbf16, #tpu.memory_space<vmem>>, vector<16x512xbf16>
    tpu.vector_store %arg6[%c272_163, %c0_164], %148 {strides = array<i32>} : memref<432x512xbf16, #tpu.memory_space<vmem>>, vector<16x512xbf16>,
    %c0_165 = arith.constant 0 : index
    %c0_166 = arith.constant 0 : index
    %c712 = arith.constant 712 : index
    %150 = vector.load %arg1[%c0_165, %c0_166, %c712] : memref<1x16x1300xbf16, #tpu.memory_space<vmem>>, vector<1x16x512xbf16>
    %151 = vector.shape_cast %150 : vector<1x16x512xbf16> to vector<16x512xbf16>
    %c288_167 = arith.constant 288 : index
    %c0_168 = arith.constant 0 : index
    %152 = vector.load %arg6[%c288_167, %c0_168] : memref<432x512xbf16, #tpu.memory_space<vmem>>, vector<16x512xbf16>
    tpu.vector_store %arg6[%c288_167, %c0_168], %151 {strides = array<i32>} : memref<432x512xbf16, #tpu.memory_space<vmem>>, vector<16x512xbf16>,
    %c0_169 = arith.constant 0 : index
    %c0_170 = arith.constant 0 : index
    %c713 = arith.constant 713 : index
    %153 = vector.load %arg1[%c0_169, %c0_170, %c713] : memref<1x16x1300xbf16, #tpu.memory_space<vmem>>, vector<1x16x512xbf16>
    %154 = vector.shape_cast %153 : vector<1x16x512xbf16> to vector<16x512xbf16>
    %c304_171 = arith.constant 304 : index
    %c0_172 = arith.constant 0 : index
    %155 = vector.load %arg6[%c304_171, %c0_172] : memref<432x512xbf16, #tpu.memory_space<vmem>>, vector<16x512xbf16>
    tpu.vector_store %arg6[%c304_171, %c0_172], %154 {strides = array<i32>} : memref<432x512xbf16, #tpu.memory_space<vmem>>, vector<16x512xbf16>,
    %c0_173 = arith.constant 0 : index
    %c0_174 = arith.constant 0 : index
    %c714 = arith.constant 714 : index
    %156 = vector.load %arg1[%c0_173, %c0_174, %c714] : memref<1x16x1300xbf16, #tpu.memory_space<vmem>>, vector<1x16x512xbf16>
    %157 = vector.shape_cast %156 : vector<1x16x512xbf16> to vector<16x512xbf16>
    %c320_175 = arith.constant 320 : index
    %c0_176 = arith.constant 0 : index
    %158 = vector.load %arg6[%c320_175, %c0_176] : memref<432x512xbf16, #tpu.memory_space<vmem>>, vector<16x512xbf16>
    tpu.vector_store %arg6[%c320_175, %c0_176], %157 {strides = array<i32>} : memref<432x512xbf16, #tpu.memory_space<vmem>>, vector<16x512xbf16>,
    %c0_177 = arith.constant 0 : index
    %c0_178 = arith.constant 0 : index
    %c722 = arith.constant 722 : index
    %159 = vector.load %arg1[%c0_177, %c0_178, %c722] : memref<1x16x1300xbf16, #tpu.memory_space<vmem>>, vector<1x16x512xbf16>
    %160 = vector.shape_cast %159 : vector<1x16x512xbf16> to vector<16x512xbf16>
    %c336_179 = arith.constant 336 : index
    %c0_180 = arith.constant 0 : index
    %161 = vector.load %arg6[%c336_179, %c0_180] : memref<432x512xbf16, #tpu.memory_space<vmem>>, vector<16x512xbf16>
    tpu.vector_store %arg6[%c336_179, %c0_180], %160 {strides = array<i32>} : memref<432x512xbf16, #tpu.memory_space<vmem>>, vector<16x512xbf16>,
    %c0_181 = arith.constant 0 : index
    %c0_182 = arith.constant 0 : index
    %c723 = arith.constant 723 : index
    %162 = vector.load %arg1[%c0_181, %c0_182, %c723] : memref<1x16x1300xbf16, #tpu.memory_space<vmem>>, vector<1x16x512xbf16>
    %163 = vector.shape_cast %162 : vector<1x16x512xbf16> to vector<16x512xbf16>
    %c352_183 = arith.constant 352 : index
    %c0_184 = arith.constant 0 : index
    %164 = vector.load %arg6[%c352_183, %c0_184] : memref<432x512xbf16, #tpu.memory_space<vmem>>, vector<16x512xbf16>
    tpu.vector_store %arg6[%c352_183, %c0_184], %163 {strides = array<i32>} : memref<432x512xbf16, #tpu.memory_space<vmem>>, vector<16x512xbf16>,
    %c0_185 = arith.constant 0 : index
    %c0_186 = arith.constant 0 : index
    %c724 = arith.constant 724 : index
    %165 = vector.load %arg1[%c0_185, %c0_186, %c724] : memref<1x16x1300xbf16, #tpu.memory_space<vmem>>, vector<1x16x512xbf16>
    %166 = vector.shape_cast %165 : vector<1x16x512xbf16> to vector<16x512xbf16>
    %c368_187 = arith.constant 368 : index
    %c0_188 = arith.constant 0 : index
    %167 = vector.load %arg6[%c368_187, %c0_188] : memref<432x512xbf16, #tpu.memory_space<vmem>>, vector<16x512xbf16>
    tpu.vector_store %arg6[%c368_187, %c0_188], %166 {strides = array<i32>} : memref<432x512xbf16, #tpu.memory_space<vmem>>, vector<16x512xbf16>,
    %c0_189 = arith.constant 0 : index
    %c0_190 = arith.constant 0 : index
    %c732 = arith.constant 732 : index
    %168 = vector.load %arg1[%c0_189, %c0_190, %c732] : memref<1x16x1300xbf16, #tpu.memory_space<vmem>>, vector<1x16x512xbf16>
    %169 = vector.shape_cast %168 : vector<1x16x512xbf16> to vector<16x512xbf16>
    %c384_191 = arith.constant 384 : index
    %c0_192 = arith.constant 0 : index
    %170 = vector.load %arg6[%c384_191, %c0_192] : memref<432x512xbf16, #tpu.memory_space<vmem>>, vector<16x512xbf16>
    tpu.vector_store %arg6[%c384_191, %c0_192], %169 {strides = array<i32>} : memref<432x512xbf16, #tpu.memory_space<vmem>>, vector<16x512xbf16>,
    %c0_193 = arith.constant 0 : index
    %c0_194 = arith.constant 0 : index
    %c733 = arith.constant 733 : index
    %171 = vector.load %arg1[%c0_193, %c0_194, %c733] : memref<1x16x1300xbf16, #tpu.memory_space<vmem>>, vector<1x16x512xbf16>
    %172 = vector.shape_cast %171 : vector<1x16x512xbf16> to vector<16x512xbf16>
    %c400_195 = arith.constant 400 : index
    %c0_196 = arith.constant 0 : index
    %173 = vector.load %arg6[%c400_195, %c0_196] : memref<432x512xbf16, #tpu.memory_space<vmem>>, vector<16x512xbf16>
    tpu.vector_store %arg6[%c400_195, %c0_196], %172 {strides = array<i32>} : memref<432x512xbf16, #tpu.memory_space<vmem>>, vector<16x512xbf16>,
    %c0_197 = arith.constant 0 : index
    %c0_198 = arith.constant 0 : index
    %c734 = arith.constant 734 : index
    %174 = vector.load %arg1[%c0_197, %c0_198, %c734] : memref<1x16x1300xbf16, #tpu.memory_space<vmem>>, vector<1x16x512xbf16>
    %175 = vector.shape_cast %174 : vector<1x16x512xbf16> to vector<16x512xbf16>
    %c416_199 = arith.constant 416 : index
    %c0_200 = arith.constant 0 : index
    %176 = vector.load %arg6[%c416_199, %c0_200] : memref<432x512xbf16, #tpu.memory_space<vmem>>, vector<16x512xbf16>
    tpu.vector_store %arg6[%c416_199, %c0_200], %175 {strides = array<i32>} : memref<432x512xbf16, #tpu.memory_space<vmem>>, vector<16x512xbf16>,
    %c0_201 = arith.constant 0 : index
    %c0_202 = arith.constant 0 : index
    %177 = vector.load %arg6[%c0_201, %c0_202] : memref<432x512xbf16, #tpu.memory_space<vmem>>, vector<432x512xbf16>
    %cst_203 = arith.constant dense<0.000000e+00> : vector<8x512xf32>
    %178 = tpu.matmul %0, %177, %cst_203 {dimension_numbers = #tpu.dot_dimension_numbers<[1], [0], [0], [1], [0, 0, 1, 1], [], []>} : vector<8x432xbf16>, vector<432x512xbf16>, vector<8x512xf32> -> vector<8x512xf32>
    %c0_204 = arith.constant 0 : index
    %c512_205 = arith.constant 512 : index
    %179 = vector.load %arg3[%c0_204, %c512_205] : memref<1x1024xf32, #tpu.memory_space<vmem>>, vector<1x512xf32>
    %180 = vector.broadcast %179 : vector<1x512xf32> to vector<8x512xf32>
    %181 = arith.mulf %178, %180 : vector<8x512xf32>
    %cst_206 = arith.constant dense<0.000000e+00> : vector<8xf32>
    %182 = vector.multi_reduction <add>, %181, %cst_206 [1] : vector<8x512xf32> to vector<8xf32>
    %183 = vector.shape_cast %182 : vector<8xf32> to vector<8x1xf32>
    %184 = arith.addf %91, %183 : vector<8x1xf32>
    %185 = arith.mulf %181, %178 : vector<8x512xf32>
    %cst_207 = arith.constant dense<0.000000e+00> : vector<8xf32>
    %186 = vector.multi_reduction <add>, %185, %cst_207 [1] : vector<8x512xf32> to vector<8xf32>
    %187 = vector.shape_cast %186 : vector<8xf32> to vector<8x1xf32>
    %188 = arith.addf %95, %187 : vector<8x1xf32>
    %c0_208 = arith.constant 0 : index
    %c0_209 = arith.constant 0 : index
    %c0_210 = arith.constant 0 : index
    %189 = vector.load %arg4[%c0_208, %c0_209, %c0_210] : memref<1x8x1xf32, #tpu.memory_space<vmem>>, vector<1x8x1xf32>
    %190 = vector.shape_cast %189 : vector<1x8x1xf32> to vector<8x1xf32>
    %191 = vector.shape_cast %184 : vector<8x1xf32> to vector<1x8x1xf32>
    tpu.vector_store %arg4[%c0_208, %c0_209, %c0_210], %191 {strides = array<i32>} : memref<1x8x1xf32, #tpu.memory_space<vmem>>, vector<1x8x1xf32>,
    %c0_211 = arith.constant 0 : index
    %c0_212 = arith.constant 0 : index
    %c0_213 = arith.constant 0 : index
    %192 = vector.load %arg5[%c0_211, %c0_212, %c0_213] : memref<1x8x1xf32, #tpu.memory_space<vmem>>, vector<1x8x1xf32>
    %193 = vector.shape_cast %192 : vector<1x8x1xf32> to vector<8x1xf32>
    %194 = vector.shape_cast %188 : vector<8x1xf32> to vector<1x8x1xf32>
    tpu.vector_store %arg5[%c0_211, %c0_212, %c0_213], %194 {strides = array<i32>} : memref<1x8x1xf32, #tpu.memory_space<vmem>>, vector<1x8x1xf32>,
    return
  }
  func.func @transform_0(%arg0: i32) -> (i32, i32, i32) {
    %c0_i32 = arith.constant 0 : i32
    %c0_i32_0 = arith.constant 0 : i32
    %c0_i32_1 = arith.constant 0 : i32
    return %arg0, %c0_i32, %c0_i32_0 : i32, i32, i32
  }
  func.func @transform_1(%arg0: i32) -> (i32, i32) {
    %c0_i32 = arith.constant 0 : i32
    %c0_i32_0 = arith.constant 0 : i32
    %c0_i32_1 = arith.constant 0 : i32
    return %c0_i32, %c0_i32_0 : i32, i32
  }
  func.func @transform_2(%arg0: i32) -> (i32, i32) {
    %c0_i32 = arith.constant 0 : i32
    %c0_i32_0 = arith.constant 0 : i32
    %c0_i32_1 = arith.constant 0 : i32
    return %c0_i32, %c0_i32_0 : i32, i32
  }
  func.func @transform_3(%arg0: i32) -> (i32, i32, i32) {
    %c0_i32 = arith.constant 0 : i32
    %c0_i32_0 = arith.constant 0 : i32
    %c0_i32_1 = arith.constant 0 : i32
    return %arg0, %c0_i32, %c0_i32_0 : i32, i32, i32
  }
  func.func @transform_4(%arg0: i32) -> (i32, i32, i32) {
    %c0_i32 = arith.constant 0 : i32
    %c0_i32_0 = arith.constant 0 : i32
    %c0_i32_1 = arith.constant 0 : i32
    return %arg0, %c0_i32, %c0_i32_0 : i32, i32, i32
  }
}

module attributes {stable_mosaic.version = 11 : i64} {
  func.func @conv_bn_lrelu_kernel(%arg0: i32, %arg1: memref<1x16x1300xbf16, #tpu.memory_space<vmem>>, %arg2: memref<8x432xbf16, #tpu.memory_space<vmem>>, %arg3: memref<8x1xf32, #tpu.memory_space<vmem>>, %arg4: memref<8x1xf32, #tpu.memory_space<vmem>>, %arg5: memref<1x8x1024xf32, #tpu.memory_space<vmem>>, %arg6: memref<432x512xbf16, #tpu.memory_space<vmem>>) attributes {dimension_semantics = [#tpu.dimension_semantics<parallel>], iteration_bounds = array<i64: 2>, scalar_prefetch = 0 : i64, scratch_operands = 1 : i64, tpu.core_type = #tpu.core_type<tc>, window_params = [{transform_indices = @transform_0, window_bounds = array<i64: 1, 16, 1300>}, {pipeline_mode = #tpu.pipeline_mode<synchronous>, transform_indices = @transform_1, window_bounds = array<i64: 8, 432>}, {pipeline_mode = #tpu.pipeline_mode<synchronous>, transform_indices = @transform_2, window_bounds = array<i64: 8, 1>}, {pipeline_mode = #tpu.pipeline_mode<synchronous>, transform_indices = @transform_3, window_bounds = array<i64: 8, 1>}, {transform_indices = @transform_4, window_bounds = array<i64: 1, 8, 1024>}]} {
    %c0 = arith.constant 0 : index
    %c0_0 = arith.constant 0 : index
    %0 = vector.load %arg2[%c0, %c0_0] : memref<8x432xbf16, #tpu.memory_space<vmem>>, vector<8x432xbf16>
    %c0_1 = arith.constant 0 : index
    %c0_2 = arith.constant 0 : index
    %1 = vector.load %arg3[%c0_1, %c0_2] : memref<8x1xf32, #tpu.memory_space<vmem>>, vector<8x1xf32>
    %c0_3 = arith.constant 0 : index
    %c0_4 = arith.constant 0 : index
    %2 = vector.load %arg4[%c0_3, %c0_4] : memref<8x1xf32, #tpu.memory_space<vmem>>, vector<8x1xf32>
    %c0_5 = arith.constant 0 : index
    %c0_6 = arith.constant 0 : index
    %c0_7 = arith.constant 0 : index
    %3 = vector.load %arg1[%c0_5, %c0_6, %c0_7] : memref<1x16x1300xbf16, #tpu.memory_space<vmem>>, vector<1x16x512xbf16>
    %4 = vector.shape_cast %3 : vector<1x16x512xbf16> to vector<16x512xbf16>
    %c0_8 = arith.constant 0 : index
    %c0_9 = arith.constant 0 : index
    %5 = vector.load %arg6[%c0_8, %c0_9] : memref<432x512xbf16, #tpu.memory_space<vmem>>, vector<16x512xbf16>
    tpu.vector_store %arg6[%c0_8, %c0_9], %4 {strides = array<i32>} : memref<432x512xbf16, #tpu.memory_space<vmem>>, vector<16x512xbf16>,
    %c0_10 = arith.constant 0 : index
    %c0_11 = arith.constant 0 : index
    %c1 = arith.constant 1 : index
    %6 = vector.load %arg1[%c0_10, %c0_11, %c1] : memref<1x16x1300xbf16, #tpu.memory_space<vmem>>, vector<1x16x512xbf16>
    %7 = vector.shape_cast %6 : vector<1x16x512xbf16> to vector<16x512xbf16>
    %c16 = arith.constant 16 : index
    %c0_12 = arith.constant 0 : index
    %8 = vector.load %arg6[%c16, %c0_12] : memref<432x512xbf16, #tpu.memory_space<vmem>>, vector<16x512xbf16>
    tpu.vector_store %arg6[%c16, %c0_12], %7 {strides = array<i32>} : memref<432x512xbf16, #tpu.memory_space<vmem>>, vector<16x512xbf16>,
    %c0_13 = arith.constant 0 : index
    %c0_14 = arith.constant 0 : index
    %c2 = arith.constant 2 : index
    %9 = vector.load %arg1[%c0_13, %c0_14, %c2] : memref<1x16x1300xbf16, #tpu.memory_space<vmem>>, vector<1x16x512xbf16>
    %10 = vector.shape_cast %9 : vector<1x16x512xbf16> to vector<16x512xbf16>
    %c32 = arith.constant 32 : index
    %c0_15 = arith.constant 0 : index
    %11 = vector.load %arg6[%c32, %c0_15] : memref<432x512xbf16, #tpu.memory_space<vmem>>, vector<16x512xbf16>
    tpu.vector_store %arg6[%c32, %c0_15], %10 {strides = array<i32>} : memref<432x512xbf16, #tpu.memory_space<vmem>>, vector<16x512xbf16>,
    %c0_16 = arith.constant 0 : index
    %c0_17 = arith.constant 0 : index
    %c10 = arith.constant 10 : index
    %12 = vector.load %arg1[%c0_16, %c0_17, %c10] : memref<1x16x1300xbf16, #tpu.memory_space<vmem>>, vector<1x16x512xbf16>
    %13 = vector.shape_cast %12 : vector<1x16x512xbf16> to vector<16x512xbf16>
    %c48 = arith.constant 48 : index
    %c0_18 = arith.constant 0 : index
    %14 = vector.load %arg6[%c48, %c0_18] : memref<432x512xbf16, #tpu.memory_space<vmem>>, vector<16x512xbf16>
    tpu.vector_store %arg6[%c48, %c0_18], %13 {strides = array<i32>} : memref<432x512xbf16, #tpu.memory_space<vmem>>, vector<16x512xbf16>,
    %c0_19 = arith.constant 0 : index
    %c0_20 = arith.constant 0 : index
    %c11 = arith.constant 11 : index
    %15 = vector.load %arg1[%c0_19, %c0_20, %c11] : memref<1x16x1300xbf16, #tpu.memory_space<vmem>>, vector<1x16x512xbf16>
    %16 = vector.shape_cast %15 : vector<1x16x512xbf16> to vector<16x512xbf16>
    %c64 = arith.constant 64 : index
    %c0_21 = arith.constant 0 : index
    %17 = vector.load %arg6[%c64, %c0_21] : memref<432x512xbf16, #tpu.memory_space<vmem>>, vector<16x512xbf16>
    tpu.vector_store %arg6[%c64, %c0_21], %16 {strides = array<i32>} : memref<432x512xbf16, #tpu.memory_space<vmem>>, vector<16x512xbf16>,
    %c0_22 = arith.constant 0 : index
    %c0_23 = arith.constant 0 : index
    %c12 = arith.constant 12 : index
    %18 = vector.load %arg1[%c0_22, %c0_23, %c12] : memref<1x16x1300xbf16, #tpu.memory_space<vmem>>, vector<1x16x512xbf16>
    %19 = vector.shape_cast %18 : vector<1x16x512xbf16> to vector<16x512xbf16>
    %c80 = arith.constant 80 : index
    %c0_24 = arith.constant 0 : index
    %20 = vector.load %arg6[%c80, %c0_24] : memref<432x512xbf16, #tpu.memory_space<vmem>>, vector<16x512xbf16>
    tpu.vector_store %arg6[%c80, %c0_24], %19 {strides = array<i32>} : memref<432x512xbf16, #tpu.memory_space<vmem>>, vector<16x512xbf16>,
    %c0_25 = arith.constant 0 : index
    %c0_26 = arith.constant 0 : index
    %c20 = arith.constant 20 : index
    %21 = vector.load %arg1[%c0_25, %c0_26, %c20] : memref<1x16x1300xbf16, #tpu.memory_space<vmem>>, vector<1x16x512xbf16>
    %22 = vector.shape_cast %21 : vector<1x16x512xbf16> to vector<16x512xbf16>
    %c96 = arith.constant 96 : index
    %c0_27 = arith.constant 0 : index
    %23 = vector.load %arg6[%c96, %c0_27] : memref<432x512xbf16, #tpu.memory_space<vmem>>, vector<16x512xbf16>
    tpu.vector_store %arg6[%c96, %c0_27], %22 {strides = array<i32>} : memref<432x512xbf16, #tpu.memory_space<vmem>>, vector<16x512xbf16>,
    %c0_28 = arith.constant 0 : index
    %c0_29 = arith.constant 0 : index
    %c21 = arith.constant 21 : index
    %24 = vector.load %arg1[%c0_28, %c0_29, %c21] : memref<1x16x1300xbf16, #tpu.memory_space<vmem>>, vector<1x16x512xbf16>
    %25 = vector.shape_cast %24 : vector<1x16x512xbf16> to vector<16x512xbf16>
    %c112 = arith.constant 112 : index
    %c0_30 = arith.constant 0 : index
    %26 = vector.load %arg6[%c112, %c0_30] : memref<432x512xbf16, #tpu.memory_space<vmem>>, vector<16x512xbf16>
    tpu.vector_store %arg6[%c112, %c0_30], %25 {strides = array<i32>} : memref<432x512xbf16, #tpu.memory_space<vmem>>, vector<16x512xbf16>,
    %c0_31 = arith.constant 0 : index
    %c0_32 = arith.constant 0 : index
    %c22 = arith.constant 22 : index
    %27 = vector.load %arg1[%c0_31, %c0_32, %c22] : memref<1x16x1300xbf16, #tpu.memory_space<vmem>>, vector<1x16x512xbf16>
    %28 = vector.shape_cast %27 : vector<1x16x512xbf16> to vector<16x512xbf16>
    %c128 = arith.constant 128 : index
    %c0_33 = arith.constant 0 : index
    %29 = vector.load %arg6[%c128, %c0_33] : memref<432x512xbf16, #tpu.memory_space<vmem>>, vector<16x512xbf16>
    tpu.vector_store %arg6[%c128, %c0_33], %28 {strides = array<i32>} : memref<432x512xbf16, #tpu.memory_space<vmem>>, vector<16x512xbf16>,
    %c0_34 = arith.constant 0 : index
    %c0_35 = arith.constant 0 : index
    %c100 = arith.constant 100 : index
    %30 = vector.load %arg1[%c0_34, %c0_35, %c100] : memref<1x16x1300xbf16, #tpu.memory_space<vmem>>, vector<1x16x512xbf16>
    %31 = vector.shape_cast %30 : vector<1x16x512xbf16> to vector<16x512xbf16>
    %c144 = arith.constant 144 : index
    %c0_36 = arith.constant 0 : index
    %32 = vector.load %arg6[%c144, %c0_36] : memref<432x512xbf16, #tpu.memory_space<vmem>>, vector<16x512xbf16>
    tpu.vector_store %arg6[%c144, %c0_36], %31 {strides = array<i32>} : memref<432x512xbf16, #tpu.memory_space<vmem>>, vector<16x512xbf16>,
    %c0_37 = arith.constant 0 : index
    %c0_38 = arith.constant 0 : index
    %c101 = arith.constant 101 : index
    %33 = vector.load %arg1[%c0_37, %c0_38, %c101] : memref<1x16x1300xbf16, #tpu.memory_space<vmem>>, vector<1x16x512xbf16>
    %34 = vector.shape_cast %33 : vector<1x16x512xbf16> to vector<16x512xbf16>
    %c160 = arith.constant 160 : index
    %c0_39 = arith.constant 0 : index
    %35 = vector.load %arg6[%c160, %c0_39] : memref<432x512xbf16, #tpu.memory_space<vmem>>, vector<16x512xbf16>
    tpu.vector_store %arg6[%c160, %c0_39], %34 {strides = array<i32>} : memref<432x512xbf16, #tpu.memory_space<vmem>>, vector<16x512xbf16>,
    %c0_40 = arith.constant 0 : index
    %c0_41 = arith.constant 0 : index
    %c102 = arith.constant 102 : index
    %36 = vector.load %arg1[%c0_40, %c0_41, %c102] : memref<1x16x1300xbf16, #tpu.memory_space<vmem>>, vector<1x16x512xbf16>
    %37 = vector.shape_cast %36 : vector<1x16x512xbf16> to vector<16x512xbf16>
    %c176 = arith.constant 176 : index
    %c0_42 = arith.constant 0 : index
    %38 = vector.load %arg6[%c176, %c0_42] : memref<432x512xbf16, #tpu.memory_space<vmem>>, vector<16x512xbf16>
    tpu.vector_store %arg6[%c176, %c0_42], %37 {strides = array<i32>} : memref<432x512xbf16, #tpu.memory_space<vmem>>, vector<16x512xbf16>,
    %c0_43 = arith.constant 0 : index
    %c0_44 = arith.constant 0 : index
    %c110 = arith.constant 110 : index
    %39 = vector.load %arg1[%c0_43, %c0_44, %c110] : memref<1x16x1300xbf16, #tpu.memory_space<vmem>>, vector<1x16x512xbf16>
    %40 = vector.shape_cast %39 : vector<1x16x512xbf16> to vector<16x512xbf16>
    %c192 = arith.constant 192 : index
    %c0_45 = arith.constant 0 : index
    %41 = vector.load %arg6[%c192, %c0_45] : memref<432x512xbf16, #tpu.memory_space<vmem>>, vector<16x512xbf16>
    tpu.vector_store %arg6[%c192, %c0_45], %40 {strides = array<i32>} : memref<432x512xbf16, #tpu.memory_space<vmem>>, vector<16x512xbf16>,
    %c0_46 = arith.constant 0 : index
    %c0_47 = arith.constant 0 : index
    %c111 = arith.constant 111 : index
    %42 = vector.load %arg1[%c0_46, %c0_47, %c111] : memref<1x16x1300xbf16, #tpu.memory_space<vmem>>, vector<1x16x512xbf16>
    %43 = vector.shape_cast %42 : vector<1x16x512xbf16> to vector<16x512xbf16>
    %c208 = arith.constant 208 : index
    %c0_48 = arith.constant 0 : index
    %44 = vector.load %arg6[%c208, %c0_48] : memref<432x512xbf16, #tpu.memory_space<vmem>>, vector<16x512xbf16>
    tpu.vector_store %arg6[%c208, %c0_48], %43 {strides = array<i32>} : memref<432x512xbf16, #tpu.memory_space<vmem>>, vector<16x512xbf16>,
    %c0_49 = arith.constant 0 : index
    %c0_50 = arith.constant 0 : index
    %c112_51 = arith.constant 112 : index
    %45 = vector.load %arg1[%c0_49, %c0_50, %c112_51] : memref<1x16x1300xbf16, #tpu.memory_space<vmem>>, vector<1x16x512xbf16>
    %46 = vector.shape_cast %45 : vector<1x16x512xbf16> to vector<16x512xbf16>
    %c224 = arith.constant 224 : index
    %c0_52 = arith.constant 0 : index
    %47 = vector.load %arg6[%c224, %c0_52] : memref<432x512xbf16, #tpu.memory_space<vmem>>, vector<16x512xbf16>
    tpu.vector_store %arg6[%c224, %c0_52], %46 {strides = array<i32>} : memref<432x512xbf16, #tpu.memory_space<vmem>>, vector<16x512xbf16>,
    %c0_53 = arith.constant 0 : index
    %c0_54 = arith.constant 0 : index
    %c120 = arith.constant 120 : index
    %48 = vector.load %arg1[%c0_53, %c0_54, %c120] : memref<1x16x1300xbf16, #tpu.memory_space<vmem>>, vector<1x16x512xbf16>
    %49 = vector.shape_cast %48 : vector<1x16x512xbf16> to vector<16x512xbf16>
    %c240 = arith.constant 240 : index
    %c0_55 = arith.constant 0 : index
    %50 = vector.load %arg6[%c240, %c0_55] : memref<432x512xbf16, #tpu.memory_space<vmem>>, vector<16x512xbf16>
    tpu.vector_store %arg6[%c240, %c0_55], %49 {strides = array<i32>} : memref<432x512xbf16, #tpu.memory_space<vmem>>, vector<16x512xbf16>,
    %c0_56 = arith.constant 0 : index
    %c0_57 = arith.constant 0 : index
    %c121 = arith.constant 121 : index
    %51 = vector.load %arg1[%c0_56, %c0_57, %c121] : memref<1x16x1300xbf16, #tpu.memory_space<vmem>>, vector<1x16x512xbf16>
    %52 = vector.shape_cast %51 : vector<1x16x512xbf16> to vector<16x512xbf16>
    %c256 = arith.constant 256 : index
    %c0_58 = arith.constant 0 : index
    %53 = vector.load %arg6[%c256, %c0_58] : memref<432x512xbf16, #tpu.memory_space<vmem>>, vector<16x512xbf16>
    tpu.vector_store %arg6[%c256, %c0_58], %52 {strides = array<i32>} : memref<432x512xbf16, #tpu.memory_space<vmem>>, vector<16x512xbf16>,
    %c0_59 = arith.constant 0 : index
    %c0_60 = arith.constant 0 : index
    %c122 = arith.constant 122 : index
    %54 = vector.load %arg1[%c0_59, %c0_60, %c122] : memref<1x16x1300xbf16, #tpu.memory_space<vmem>>, vector<1x16x512xbf16>
    %55 = vector.shape_cast %54 : vector<1x16x512xbf16> to vector<16x512xbf16>
    %c272 = arith.constant 272 : index
    %c0_61 = arith.constant 0 : index
    %56 = vector.load %arg6[%c272, %c0_61] : memref<432x512xbf16, #tpu.memory_space<vmem>>, vector<16x512xbf16>
    tpu.vector_store %arg6[%c272, %c0_61], %55 {strides = array<i32>} : memref<432x512xbf16, #tpu.memory_space<vmem>>, vector<16x512xbf16>,
    %c0_62 = arith.constant 0 : index
    %c0_63 = arith.constant 0 : index
    %c200 = arith.constant 200 : index
    %57 = vector.load %arg1[%c0_62, %c0_63, %c200] : memref<1x16x1300xbf16, #tpu.memory_space<vmem>>, vector<1x16x512xbf16>
    %58 = vector.shape_cast %57 : vector<1x16x512xbf16> to vector<16x512xbf16>
    %c288 = arith.constant 288 : index
    %c0_64 = arith.constant 0 : index
    %59 = vector.load %arg6[%c288, %c0_64] : memref<432x512xbf16, #tpu.memory_space<vmem>>, vector<16x512xbf16>
    tpu.vector_store %arg6[%c288, %c0_64], %58 {strides = array<i32>} : memref<432x512xbf16, #tpu.memory_space<vmem>>, vector<16x512xbf16>,
    %c0_65 = arith.constant 0 : index
    %c0_66 = arith.constant 0 : index
    %c201 = arith.constant 201 : index
    %60 = vector.load %arg1[%c0_65, %c0_66, %c201] : memref<1x16x1300xbf16, #tpu.memory_space<vmem>>, vector<1x16x512xbf16>
    %61 = vector.shape_cast %60 : vector<1x16x512xbf16> to vector<16x512xbf16>
    %c304 = arith.constant 304 : index
    %c0_67 = arith.constant 0 : index
    %62 = vector.load %arg6[%c304, %c0_67] : memref<432x512xbf16, #tpu.memory_space<vmem>>, vector<16x512xbf16>
    tpu.vector_store %arg6[%c304, %c0_67], %61 {strides = array<i32>} : memref<432x512xbf16, #tpu.memory_space<vmem>>, vector<16x512xbf16>,
    %c0_68 = arith.constant 0 : index
    %c0_69 = arith.constant 0 : index
    %c202 = arith.constant 202 : index
    %63 = vector.load %arg1[%c0_68, %c0_69, %c202] : memref<1x16x1300xbf16, #tpu.memory_space<vmem>>, vector<1x16x512xbf16>
    %64 = vector.shape_cast %63 : vector<1x16x512xbf16> to vector<16x512xbf16>
    %c320 = arith.constant 320 : index
    %c0_70 = arith.constant 0 : index
    %65 = vector.load %arg6[%c320, %c0_70] : memref<432x512xbf16, #tpu.memory_space<vmem>>, vector<16x512xbf16>
    tpu.vector_store %arg6[%c320, %c0_70], %64 {strides = array<i32>} : memref<432x512xbf16, #tpu.memory_space<vmem>>, vector<16x512xbf16>,
    %c0_71 = arith.constant 0 : index
    %c0_72 = arith.constant 0 : index
    %c210 = arith.constant 210 : index
    %66 = vector.load %arg1[%c0_71, %c0_72, %c210] : memref<1x16x1300xbf16, #tpu.memory_space<vmem>>, vector<1x16x512xbf16>
    %67 = vector.shape_cast %66 : vector<1x16x512xbf16> to vector<16x512xbf16>
    %c336 = arith.constant 336 : index
    %c0_73 = arith.constant 0 : index
    %68 = vector.load %arg6[%c336, %c0_73] : memref<432x512xbf16, #tpu.memory_space<vmem>>, vector<16x512xbf16>
    tpu.vector_store %arg6[%c336, %c0_73], %67 {strides = array<i32>} : memref<432x512xbf16, #tpu.memory_space<vmem>>, vector<16x512xbf16>,
    %c0_74 = arith.constant 0 : index
    %c0_75 = arith.constant 0 : index
    %c211 = arith.constant 211 : index
    %69 = vector.load %arg1[%c0_74, %c0_75, %c211] : memref<1x16x1300xbf16, #tpu.memory_space<vmem>>, vector<1x16x512xbf16>
    %70 = vector.shape_cast %69 : vector<1x16x512xbf16> to vector<16x512xbf16>
    %c352 = arith.constant 352 : index
    %c0_76 = arith.constant 0 : index
    %71 = vector.load %arg6[%c352, %c0_76] : memref<432x512xbf16, #tpu.memory_space<vmem>>, vector<16x512xbf16>
    tpu.vector_store %arg6[%c352, %c0_76], %70 {strides = array<i32>} : memref<432x512xbf16, #tpu.memory_space<vmem>>, vector<16x512xbf16>,
    %c0_77 = arith.constant 0 : index
    %c0_78 = arith.constant 0 : index
    %c212 = arith.constant 212 : index
    %72 = vector.load %arg1[%c0_77, %c0_78, %c212] : memref<1x16x1300xbf16, #tpu.memory_space<vmem>>, vector<1x16x512xbf16>
    %73 = vector.shape_cast %72 : vector<1x16x512xbf16> to vector<16x512xbf16>
    %c368 = arith.constant 368 : index
    %c0_79 = arith.constant 0 : index
    %74 = vector.load %arg6[%c368, %c0_79] : memref<432x512xbf16, #tpu.memory_space<vmem>>, vector<16x512xbf16>
    tpu.vector_store %arg6[%c368, %c0_79], %73 {strides = array<i32>} : memref<432x512xbf16, #tpu.memory_space<vmem>>, vector<16x512xbf16>,
    %c0_80 = arith.constant 0 : index
    %c0_81 = arith.constant 0 : index
    %c220 = arith.constant 220 : index
    %75 = vector.load %arg1[%c0_80, %c0_81, %c220] : memref<1x16x1300xbf16, #tpu.memory_space<vmem>>, vector<1x16x512xbf16>
    %76 = vector.shape_cast %75 : vector<1x16x512xbf16> to vector<16x512xbf16>
    %c384 = arith.constant 384 : index
    %c0_82 = arith.constant 0 : index
    %77 = vector.load %arg6[%c384, %c0_82] : memref<432x512xbf16, #tpu.memory_space<vmem>>, vector<16x512xbf16>
    tpu.vector_store %arg6[%c384, %c0_82], %76 {strides = array<i32>} : memref<432x512xbf16, #tpu.memory_space<vmem>>, vector<16x512xbf16>,
    %c0_83 = arith.constant 0 : index
    %c0_84 = arith.constant 0 : index
    %c221 = arith.constant 221 : index
    %78 = vector.load %arg1[%c0_83, %c0_84, %c221] : memref<1x16x1300xbf16, #tpu.memory_space<vmem>>, vector<1x16x512xbf16>
    %79 = vector.shape_cast %78 : vector<1x16x512xbf16> to vector<16x512xbf16>
    %c400 = arith.constant 400 : index
    %c0_85 = arith.constant 0 : index
    %80 = vector.load %arg6[%c400, %c0_85] : memref<432x512xbf16, #tpu.memory_space<vmem>>, vector<16x512xbf16>
    tpu.vector_store %arg6[%c400, %c0_85], %79 {strides = array<i32>} : memref<432x512xbf16, #tpu.memory_space<vmem>>, vector<16x512xbf16>,
    %c0_86 = arith.constant 0 : index
    %c0_87 = arith.constant 0 : index
    %c222 = arith.constant 222 : index
    %81 = vector.load %arg1[%c0_86, %c0_87, %c222] : memref<1x16x1300xbf16, #tpu.memory_space<vmem>>, vector<1x16x512xbf16>
    %82 = vector.shape_cast %81 : vector<1x16x512xbf16> to vector<16x512xbf16>
    %c416 = arith.constant 416 : index
    %c0_88 = arith.constant 0 : index
    %83 = vector.load %arg6[%c416, %c0_88] : memref<432x512xbf16, #tpu.memory_space<vmem>>, vector<16x512xbf16>
    tpu.vector_store %arg6[%c416, %c0_88], %82 {strides = array<i32>} : memref<432x512xbf16, #tpu.memory_space<vmem>>, vector<16x512xbf16>,
    %c0_89 = arith.constant 0 : index
    %c0_90 = arith.constant 0 : index
    %84 = vector.load %arg6[%c0_89, %c0_90] : memref<432x512xbf16, #tpu.memory_space<vmem>>, vector<432x512xbf16>
    %cst = arith.constant dense<0.000000e+00> : vector<8x512xf32>
    %85 = tpu.matmul %0, %84, %cst {dimension_numbers = #tpu.dot_dimension_numbers<[1], [0], [0], [1], [0, 0, 1, 1], [], []>} : vector<8x432xbf16>, vector<432x512xbf16>, vector<8x512xf32> -> vector<8x512xf32>
    %86 = vector.broadcast %1 : vector<8x1xf32> to vector<8x512xf32>
    %87 = arith.mulf %85, %86 : vector<8x512xf32>
    %88 = vector.broadcast %2 : vector<8x1xf32> to vector<8x512xf32>
    %89 = arith.addf %87, %88 : vector<8x512xf32>
    %cst_91 = arith.constant 0.000000e+00 : f32
    %90 = vector.broadcast %cst_91 : f32 to vector<8x512xf32>
    %91 = arith.cmpf oge, %89, %90 : vector<8x512xf32>
    %cst_92 = arith.constant 0.00999999977 : f32
    %92 = vector.broadcast %cst_92 : f32 to vector<8x512xf32>
    %93 = arith.mulf %92, %89 : vector<8x512xf32>
    %94 = arith.select %91, %89, %93 : vector<8x512xi1>, vector<8x512xf32>
    %c0_93 = arith.constant 0 : index
    %c0_94 = arith.constant 0 : index
    %c0_95 = arith.constant 0 : index
    %95 = vector.load %arg5[%c0_93, %c0_94, %c0_95] : memref<1x8x1024xf32, #tpu.memory_space<vmem>>, vector<1x8x512xf32>
    %96 = vector.shape_cast %95 : vector<1x8x512xf32> to vector<8x512xf32>
    %97 = vector.shape_cast %94 : vector<8x512xf32> to vector<1x8x512xf32>
    tpu.vector_store %arg5[%c0_93, %c0_94, %c0_95], %97 {strides = array<i32>} : memref<1x8x1024xf32, #tpu.memory_space<vmem>>, vector<1x8x512xf32>,
    %c0_96 = arith.constant 0 : index
    %c0_97 = arith.constant 0 : index
    %c512 = arith.constant 512 : index
    %98 = vector.load %arg1[%c0_96, %c0_97, %c512] : memref<1x16x1300xbf16, #tpu.memory_space<vmem>>, vector<1x16x512xbf16>
    %99 = vector.shape_cast %98 : vector<1x16x512xbf16> to vector<16x512xbf16>
    %c0_98 = arith.constant 0 : index
    %c0_99 = arith.constant 0 : index
    %100 = vector.load %arg6[%c0_98, %c0_99] : memref<432x512xbf16, #tpu.memory_space<vmem>>, vector<16x512xbf16>
    tpu.vector_store %arg6[%c0_98, %c0_99], %99 {strides = array<i32>} : memref<432x512xbf16, #tpu.memory_space<vmem>>, vector<16x512xbf16>,
    %c0_100 = arith.constant 0 : index
    %c0_101 = arith.constant 0 : index
    %c513 = arith.constant 513 : index
    %101 = vector.load %arg1[%c0_100, %c0_101, %c513] : memref<1x16x1300xbf16, #tpu.memory_space<vmem>>, vector<1x16x512xbf16>
    %102 = vector.shape_cast %101 : vector<1x16x512xbf16> to vector<16x512xbf16>
    %c16_102 = arith.constant 16 : index
    %c0_103 = arith.constant 0 : index
    %103 = vector.load %arg6[%c16_102, %c0_103] : memref<432x512xbf16, #tpu.memory_space<vmem>>, vector<16x512xbf16>
    tpu.vector_store %arg6[%c16_102, %c0_103], %102 {strides = array<i32>} : memref<432x512xbf16, #tpu.memory_space<vmem>>, vector<16x512xbf16>,
    %c0_104 = arith.constant 0 : index
    %c0_105 = arith.constant 0 : index
    %c514 = arith.constant 514 : index
    %104 = vector.load %arg1[%c0_104, %c0_105, %c514] : memref<1x16x1300xbf16, #tpu.memory_space<vmem>>, vector<1x16x512xbf16>
    %105 = vector.shape_cast %104 : vector<1x16x512xbf16> to vector<16x512xbf16>
    %c32_106 = arith.constant 32 : index
    %c0_107 = arith.constant 0 : index
    %106 = vector.load %arg6[%c32_106, %c0_107] : memref<432x512xbf16, #tpu.memory_space<vmem>>, vector<16x512xbf16>
    tpu.vector_store %arg6[%c32_106, %c0_107], %105 {strides = array<i32>} : memref<432x512xbf16, #tpu.memory_space<vmem>>, vector<16x512xbf16>,
    %c0_108 = arith.constant 0 : index
    %c0_109 = arith.constant 0 : index
    %c522 = arith.constant 522 : index
    %107 = vector.load %arg1[%c0_108, %c0_109, %c522] : memref<1x16x1300xbf16, #tpu.memory_space<vmem>>, vector<1x16x512xbf16>
    %108 = vector.shape_cast %107 : vector<1x16x512xbf16> to vector<16x512xbf16>
    %c48_110 = arith.constant 48 : index
    %c0_111 = arith.constant 0 : index
    %109 = vector.load %arg6[%c48_110, %c0_111] : memref<432x512xbf16, #tpu.memory_space<vmem>>, vector<16x512xbf16>
    tpu.vector_store %arg6[%c48_110, %c0_111], %108 {strides = array<i32>} : memref<432x512xbf16, #tpu.memory_space<vmem>>, vector<16x512xbf16>,
    %c0_112 = arith.constant 0 : index
    %c0_113 = arith.constant 0 : index
    %c523 = arith.constant 523 : index
    %110 = vector.load %arg1[%c0_112, %c0_113, %c523] : memref<1x16x1300xbf16, #tpu.memory_space<vmem>>, vector<1x16x512xbf16>
    %111 = vector.shape_cast %110 : vector<1x16x512xbf16> to vector<16x512xbf16>
    %c64_114 = arith.constant 64 : index
    %c0_115 = arith.constant 0 : index
    %112 = vector.load %arg6[%c64_114, %c0_115] : memref<432x512xbf16, #tpu.memory_space<vmem>>, vector<16x512xbf16>
    tpu.vector_store %arg6[%c64_114, %c0_115], %111 {strides = array<i32>} : memref<432x512xbf16, #tpu.memory_space<vmem>>, vector<16x512xbf16>,
    %c0_116 = arith.constant 0 : index
    %c0_117 = arith.constant 0 : index
    %c524 = arith.constant 524 : index
    %113 = vector.load %arg1[%c0_116, %c0_117, %c524] : memref<1x16x1300xbf16, #tpu.memory_space<vmem>>, vector<1x16x512xbf16>
    %114 = vector.shape_cast %113 : vector<1x16x512xbf16> to vector<16x512xbf16>
    %c80_118 = arith.constant 80 : index
    %c0_119 = arith.constant 0 : index
    %115 = vector.load %arg6[%c80_118, %c0_119] : memref<432x512xbf16, #tpu.memory_space<vmem>>, vector<16x512xbf16>
    tpu.vector_store %arg6[%c80_118, %c0_119], %114 {strides = array<i32>} : memref<432x512xbf16, #tpu.memory_space<vmem>>, vector<16x512xbf16>,
    %c0_120 = arith.constant 0 : index
    %c0_121 = arith.constant 0 : index
    %c532 = arith.constant 532 : index
    %116 = vector.load %arg1[%c0_120, %c0_121, %c532] : memref<1x16x1300xbf16, #tpu.memory_space<vmem>>, vector<1x16x512xbf16>
    %117 = vector.shape_cast %116 : vector<1x16x512xbf16> to vector<16x512xbf16>
    %c96_122 = arith.constant 96 : index
    %c0_123 = arith.constant 0 : index
    %118 = vector.load %arg6[%c96_122, %c0_123] : memref<432x512xbf16, #tpu.memory_space<vmem>>, vector<16x512xbf16>
    tpu.vector_store %arg6[%c96_122, %c0_123], %117 {strides = array<i32>} : memref<432x512xbf16, #tpu.memory_space<vmem>>, vector<16x512xbf16>,
    %c0_124 = arith.constant 0 : index
    %c0_125 = arith.constant 0 : index
    %c533 = arith.constant 533 : index
    %119 = vector.load %arg1[%c0_124, %c0_125, %c533] : memref<1x16x1300xbf16, #tpu.memory_space<vmem>>, vector<1x16x512xbf16>
    %120 = vector.shape_cast %119 : vector<1x16x512xbf16> to vector<16x512xbf16>
    %c112_126 = arith.constant 112 : index
    %c0_127 = arith.constant 0 : index
    %121 = vector.load %arg6[%c112_126, %c0_127] : memref<432x512xbf16, #tpu.memory_space<vmem>>, vector<16x512xbf16>
    tpu.vector_store %arg6[%c112_126, %c0_127], %120 {strides = array<i32>} : memref<432x512xbf16, #tpu.memory_space<vmem>>, vector<16x512xbf16>,
    %c0_128 = arith.constant 0 : index
    %c0_129 = arith.constant 0 : index
    %c534 = arith.constant 534 : index
    %122 = vector.load %arg1[%c0_128, %c0_129, %c534] : memref<1x16x1300xbf16, #tpu.memory_space<vmem>>, vector<1x16x512xbf16>
    %123 = vector.shape_cast %122 : vector<1x16x512xbf16> to vector<16x512xbf16>
    %c128_130 = arith.constant 128 : index
    %c0_131 = arith.constant 0 : index
    %124 = vector.load %arg6[%c128_130, %c0_131] : memref<432x512xbf16, #tpu.memory_space<vmem>>, vector<16x512xbf16>
    tpu.vector_store %arg6[%c128_130, %c0_131], %123 {strides = array<i32>} : memref<432x512xbf16, #tpu.memory_space<vmem>>, vector<16x512xbf16>,
    %c0_132 = arith.constant 0 : index
    %c0_133 = arith.constant 0 : index
    %c612 = arith.constant 612 : index
    %125 = vector.load %arg1[%c0_132, %c0_133, %c612] : memref<1x16x1300xbf16, #tpu.memory_space<vmem>>, vector<1x16x512xbf16>
    %126 = vector.shape_cast %125 : vector<1x16x512xbf16> to vector<16x512xbf16>
    %c144_134 = arith.constant 144 : index
    %c0_135 = arith.constant 0 : index
    %127 = vector.load %arg6[%c144_134, %c0_135] : memref<432x512xbf16, #tpu.memory_space<vmem>>, vector<16x512xbf16>
    tpu.vector_store %arg6[%c144_134, %c0_135], %126 {strides = array<i32>} : memref<432x512xbf16, #tpu.memory_space<vmem>>, vector<16x512xbf16>,
    %c0_136 = arith.constant 0 : index
    %c0_137 = arith.constant 0 : index
    %c613 = arith.constant 613 : index
    %128 = vector.load %arg1[%c0_136, %c0_137, %c613] : memref<1x16x1300xbf16, #tpu.memory_space<vmem>>, vector<1x16x512xbf16>
    %129 = vector.shape_cast %128 : vector<1x16x512xbf16> to vector<16x512xbf16>
    %c160_138 = arith.constant 160 : index
    %c0_139 = arith.constant 0 : index
    %130 = vector.load %arg6[%c160_138, %c0_139] : memref<432x512xbf16, #tpu.memory_space<vmem>>, vector<16x512xbf16>
    tpu.vector_store %arg6[%c160_138, %c0_139], %129 {strides = array<i32>} : memref<432x512xbf16, #tpu.memory_space<vmem>>, vector<16x512xbf16>,
    %c0_140 = arith.constant 0 : index
    %c0_141 = arith.constant 0 : index
    %c614 = arith.constant 614 : index
    %131 = vector.load %arg1[%c0_140, %c0_141, %c614] : memref<1x16x1300xbf16, #tpu.memory_space<vmem>>, vector<1x16x512xbf16>
    %132 = vector.shape_cast %131 : vector<1x16x512xbf16> to vector<16x512xbf16>
    %c176_142 = arith.constant 176 : index
    %c0_143 = arith.constant 0 : index
    %133 = vector.load %arg6[%c176_142, %c0_143] : memref<432x512xbf16, #tpu.memory_space<vmem>>, vector<16x512xbf16>
    tpu.vector_store %arg6[%c176_142, %c0_143], %132 {strides = array<i32>} : memref<432x512xbf16, #tpu.memory_space<vmem>>, vector<16x512xbf16>,
    %c0_144 = arith.constant 0 : index
    %c0_145 = arith.constant 0 : index
    %c622 = arith.constant 622 : index
    %134 = vector.load %arg1[%c0_144, %c0_145, %c622] : memref<1x16x1300xbf16, #tpu.memory_space<vmem>>, vector<1x16x512xbf16>
    %135 = vector.shape_cast %134 : vector<1x16x512xbf16> to vector<16x512xbf16>
    %c192_146 = arith.constant 192 : index
    %c0_147 = arith.constant 0 : index
    %136 = vector.load %arg6[%c192_146, %c0_147] : memref<432x512xbf16, #tpu.memory_space<vmem>>, vector<16x512xbf16>
    tpu.vector_store %arg6[%c192_146, %c0_147], %135 {strides = array<i32>} : memref<432x512xbf16, #tpu.memory_space<vmem>>, vector<16x512xbf16>,
    %c0_148 = arith.constant 0 : index
    %c0_149 = arith.constant 0 : index
    %c623 = arith.constant 623 : index
    %137 = vector.load %arg1[%c0_148, %c0_149, %c623] : memref<1x16x1300xbf16, #tpu.memory_space<vmem>>, vector<1x16x512xbf16>
    %138 = vector.shape_cast %137 : vector<1x16x512xbf16> to vector<16x512xbf16>
    %c208_150 = arith.constant 208 : index
    %c0_151 = arith.constant 0 : index
    %139 = vector.load %arg6[%c208_150, %c0_151] : memref<432x512xbf16, #tpu.memory_space<vmem>>, vector<16x512xbf16>
    tpu.vector_store %arg6[%c208_150, %c0_151], %138 {strides = array<i32>} : memref<432x512xbf16, #tpu.memory_space<vmem>>, vector<16x512xbf16>,
    %c0_152 = arith.constant 0 : index
    %c0_153 = arith.constant 0 : index
    %c624 = arith.constant 624 : index
    %140 = vector.load %arg1[%c0_152, %c0_153, %c624] : memref<1x16x1300xbf16, #tpu.memory_space<vmem>>, vector<1x16x512xbf16>
    %141 = vector.shape_cast %140 : vector<1x16x512xbf16> to vector<16x512xbf16>
    %c224_154 = arith.constant 224 : index
    %c0_155 = arith.constant 0 : index
    %142 = vector.load %arg6[%c224_154, %c0_155] : memref<432x512xbf16, #tpu.memory_space<vmem>>, vector<16x512xbf16>
    tpu.vector_store %arg6[%c224_154, %c0_155], %141 {strides = array<i32>} : memref<432x512xbf16, #tpu.memory_space<vmem>>, vector<16x512xbf16>,
    %c0_156 = arith.constant 0 : index
    %c0_157 = arith.constant 0 : index
    %c632 = arith.constant 632 : index
    %143 = vector.load %arg1[%c0_156, %c0_157, %c632] : memref<1x16x1300xbf16, #tpu.memory_space<vmem>>, vector<1x16x512xbf16>
    %144 = vector.shape_cast %143 : vector<1x16x512xbf16> to vector<16x512xbf16>
    %c240_158 = arith.constant 240 : index
    %c0_159 = arith.constant 0 : index
    %145 = vector.load %arg6[%c240_158, %c0_159] : memref<432x512xbf16, #tpu.memory_space<vmem>>, vector<16x512xbf16>
    tpu.vector_store %arg6[%c240_158, %c0_159], %144 {strides = array<i32>} : memref<432x512xbf16, #tpu.memory_space<vmem>>, vector<16x512xbf16>,
    %c0_160 = arith.constant 0 : index
    %c0_161 = arith.constant 0 : index
    %c633 = arith.constant 633 : index
    %146 = vector.load %arg1[%c0_160, %c0_161, %c633] : memref<1x16x1300xbf16, #tpu.memory_space<vmem>>, vector<1x16x512xbf16>
    %147 = vector.shape_cast %146 : vector<1x16x512xbf16> to vector<16x512xbf16>
    %c256_162 = arith.constant 256 : index
    %c0_163 = arith.constant 0 : index
    %148 = vector.load %arg6[%c256_162, %c0_163] : memref<432x512xbf16, #tpu.memory_space<vmem>>, vector<16x512xbf16>
    tpu.vector_store %arg6[%c256_162, %c0_163], %147 {strides = array<i32>} : memref<432x512xbf16, #tpu.memory_space<vmem>>, vector<16x512xbf16>,
    %c0_164 = arith.constant 0 : index
    %c0_165 = arith.constant 0 : index
    %c634 = arith.constant 634 : index
    %149 = vector.load %arg1[%c0_164, %c0_165, %c634] : memref<1x16x1300xbf16, #tpu.memory_space<vmem>>, vector<1x16x512xbf16>
    %150 = vector.shape_cast %149 : vector<1x16x512xbf16> to vector<16x512xbf16>
    %c272_166 = arith.constant 272 : index
    %c0_167 = arith.constant 0 : index
    %151 = vector.load %arg6[%c272_166, %c0_167] : memref<432x512xbf16, #tpu.memory_space<vmem>>, vector<16x512xbf16>
    tpu.vector_store %arg6[%c272_166, %c0_167], %150 {strides = array<i32>} : memref<432x512xbf16, #tpu.memory_space<vmem>>, vector<16x512xbf16>,
    %c0_168 = arith.constant 0 : index
    %c0_169 = arith.constant 0 : index
    %c712 = arith.constant 712 : index
    %152 = vector.load %arg1[%c0_168, %c0_169, %c712] : memref<1x16x1300xbf16, #tpu.memory_space<vmem>>, vector<1x16x512xbf16>
    %153 = vector.shape_cast %152 : vector<1x16x512xbf16> to vector<16x512xbf16>
    %c288_170 = arith.constant 288 : index
    %c0_171 = arith.constant 0 : index
    %154 = vector.load %arg6[%c288_170, %c0_171] : memref<432x512xbf16, #tpu.memory_space<vmem>>, vector<16x512xbf16>
    tpu.vector_store %arg6[%c288_170, %c0_171], %153 {strides = array<i32>} : memref<432x512xbf16, #tpu.memory_space<vmem>>, vector<16x512xbf16>,
    %c0_172 = arith.constant 0 : index
    %c0_173 = arith.constant 0 : index
    %c713 = arith.constant 713 : index
    %155 = vector.load %arg1[%c0_172, %c0_173, %c713] : memref<1x16x1300xbf16, #tpu.memory_space<vmem>>, vector<1x16x512xbf16>
    %156 = vector.shape_cast %155 : vector<1x16x512xbf16> to vector<16x512xbf16>
    %c304_174 = arith.constant 304 : index
    %c0_175 = arith.constant 0 : index
    %157 = vector.load %arg6[%c304_174, %c0_175] : memref<432x512xbf16, #tpu.memory_space<vmem>>, vector<16x512xbf16>
    tpu.vector_store %arg6[%c304_174, %c0_175], %156 {strides = array<i32>} : memref<432x512xbf16, #tpu.memory_space<vmem>>, vector<16x512xbf16>,
    %c0_176 = arith.constant 0 : index
    %c0_177 = arith.constant 0 : index
    %c714 = arith.constant 714 : index
    %158 = vector.load %arg1[%c0_176, %c0_177, %c714] : memref<1x16x1300xbf16, #tpu.memory_space<vmem>>, vector<1x16x512xbf16>
    %159 = vector.shape_cast %158 : vector<1x16x512xbf16> to vector<16x512xbf16>
    %c320_178 = arith.constant 320 : index
    %c0_179 = arith.constant 0 : index
    %160 = vector.load %arg6[%c320_178, %c0_179] : memref<432x512xbf16, #tpu.memory_space<vmem>>, vector<16x512xbf16>
    tpu.vector_store %arg6[%c320_178, %c0_179], %159 {strides = array<i32>} : memref<432x512xbf16, #tpu.memory_space<vmem>>, vector<16x512xbf16>,
    %c0_180 = arith.constant 0 : index
    %c0_181 = arith.constant 0 : index
    %c722 = arith.constant 722 : index
    %161 = vector.load %arg1[%c0_180, %c0_181, %c722] : memref<1x16x1300xbf16, #tpu.memory_space<vmem>>, vector<1x16x512xbf16>
    %162 = vector.shape_cast %161 : vector<1x16x512xbf16> to vector<16x512xbf16>
    %c336_182 = arith.constant 336 : index
    %c0_183 = arith.constant 0 : index
    %163 = vector.load %arg6[%c336_182, %c0_183] : memref<432x512xbf16, #tpu.memory_space<vmem>>, vector<16x512xbf16>
    tpu.vector_store %arg6[%c336_182, %c0_183], %162 {strides = array<i32>} : memref<432x512xbf16, #tpu.memory_space<vmem>>, vector<16x512xbf16>,
    %c0_184 = arith.constant 0 : index
    %c0_185 = arith.constant 0 : index
    %c723 = arith.constant 723 : index
    %164 = vector.load %arg1[%c0_184, %c0_185, %c723] : memref<1x16x1300xbf16, #tpu.memory_space<vmem>>, vector<1x16x512xbf16>
    %165 = vector.shape_cast %164 : vector<1x16x512xbf16> to vector<16x512xbf16>
    %c352_186 = arith.constant 352 : index
    %c0_187 = arith.constant 0 : index
    %166 = vector.load %arg6[%c352_186, %c0_187] : memref<432x512xbf16, #tpu.memory_space<vmem>>, vector<16x512xbf16>
    tpu.vector_store %arg6[%c352_186, %c0_187], %165 {strides = array<i32>} : memref<432x512xbf16, #tpu.memory_space<vmem>>, vector<16x512xbf16>,
    %c0_188 = arith.constant 0 : index
    %c0_189 = arith.constant 0 : index
    %c724 = arith.constant 724 : index
    %167 = vector.load %arg1[%c0_188, %c0_189, %c724] : memref<1x16x1300xbf16, #tpu.memory_space<vmem>>, vector<1x16x512xbf16>
    %168 = vector.shape_cast %167 : vector<1x16x512xbf16> to vector<16x512xbf16>
    %c368_190 = arith.constant 368 : index
    %c0_191 = arith.constant 0 : index
    %169 = vector.load %arg6[%c368_190, %c0_191] : memref<432x512xbf16, #tpu.memory_space<vmem>>, vector<16x512xbf16>
    tpu.vector_store %arg6[%c368_190, %c0_191], %168 {strides = array<i32>} : memref<432x512xbf16, #tpu.memory_space<vmem>>, vector<16x512xbf16>,
    %c0_192 = arith.constant 0 : index
    %c0_193 = arith.constant 0 : index
    %c732 = arith.constant 732 : index
    %170 = vector.load %arg1[%c0_192, %c0_193, %c732] : memref<1x16x1300xbf16, #tpu.memory_space<vmem>>, vector<1x16x512xbf16>
    %171 = vector.shape_cast %170 : vector<1x16x512xbf16> to vector<16x512xbf16>
    %c384_194 = arith.constant 384 : index
    %c0_195 = arith.constant 0 : index
    %172 = vector.load %arg6[%c384_194, %c0_195] : memref<432x512xbf16, #tpu.memory_space<vmem>>, vector<16x512xbf16>
    tpu.vector_store %arg6[%c384_194, %c0_195], %171 {strides = array<i32>} : memref<432x512xbf16, #tpu.memory_space<vmem>>, vector<16x512xbf16>,
    %c0_196 = arith.constant 0 : index
    %c0_197 = arith.constant 0 : index
    %c733 = arith.constant 733 : index
    %173 = vector.load %arg1[%c0_196, %c0_197, %c733] : memref<1x16x1300xbf16, #tpu.memory_space<vmem>>, vector<1x16x512xbf16>
    %174 = vector.shape_cast %173 : vector<1x16x512xbf16> to vector<16x512xbf16>
    %c400_198 = arith.constant 400 : index
    %c0_199 = arith.constant 0 : index
    %175 = vector.load %arg6[%c400_198, %c0_199] : memref<432x512xbf16, #tpu.memory_space<vmem>>, vector<16x512xbf16>
    tpu.vector_store %arg6[%c400_198, %c0_199], %174 {strides = array<i32>} : memref<432x512xbf16, #tpu.memory_space<vmem>>, vector<16x512xbf16>,
    %c0_200 = arith.constant 0 : index
    %c0_201 = arith.constant 0 : index
    %c734 = arith.constant 734 : index
    %176 = vector.load %arg1[%c0_200, %c0_201, %c734] : memref<1x16x1300xbf16, #tpu.memory_space<vmem>>, vector<1x16x512xbf16>
    %177 = vector.shape_cast %176 : vector<1x16x512xbf16> to vector<16x512xbf16>
    %c416_202 = arith.constant 416 : index
    %c0_203 = arith.constant 0 : index
    %178 = vector.load %arg6[%c416_202, %c0_203] : memref<432x512xbf16, #tpu.memory_space<vmem>>, vector<16x512xbf16>
    tpu.vector_store %arg6[%c416_202, %c0_203], %177 {strides = array<i32>} : memref<432x512xbf16, #tpu.memory_space<vmem>>, vector<16x512xbf16>,
    %c0_204 = arith.constant 0 : index
    %c0_205 = arith.constant 0 : index
    %179 = vector.load %arg6[%c0_204, %c0_205] : memref<432x512xbf16, #tpu.memory_space<vmem>>, vector<432x512xbf16>
    %cst_206 = arith.constant dense<0.000000e+00> : vector<8x512xf32>
    %180 = tpu.matmul %0, %179, %cst_206 {dimension_numbers = #tpu.dot_dimension_numbers<[1], [0], [0], [1], [0, 0, 1, 1], [], []>} : vector<8x432xbf16>, vector<432x512xbf16>, vector<8x512xf32> -> vector<8x512xf32>
    %181 = vector.broadcast %1 : vector<8x1xf32> to vector<8x512xf32>
    %182 = arith.mulf %180, %181 : vector<8x512xf32>
    %183 = vector.broadcast %2 : vector<8x1xf32> to vector<8x512xf32>
    %184 = arith.addf %182, %183 : vector<8x512xf32>
    %cst_207 = arith.constant 0.000000e+00 : f32
    %185 = vector.broadcast %cst_207 : f32 to vector<8x512xf32>
    %186 = arith.cmpf oge, %184, %185 : vector<8x512xf32>
    %cst_208 = arith.constant 0.00999999977 : f32
    %187 = vector.broadcast %cst_208 : f32 to vector<8x512xf32>
    %188 = arith.mulf %187, %184 : vector<8x512xf32>
    %189 = arith.select %186, %184, %188 : vector<8x512xi1>, vector<8x512xf32>
    %c0_209 = arith.constant 0 : index
    %c0_210 = arith.constant 0 : index
    %c512_211 = arith.constant 512 : index
    %190 = vector.load %arg5[%c0_209, %c0_210, %c512_211] : memref<1x8x1024xf32, #tpu.memory_space<vmem>>, vector<1x8x512xf32>
    %191 = vector.shape_cast %190 : vector<1x8x512xf32> to vector<8x512xf32>
    %192 = vector.shape_cast %189 : vector<8x512xf32> to vector<1x8x512xf32>
    tpu.vector_store %arg5[%c0_209, %c0_210, %c512_211], %192 {strides = array<i32>} : memref<1x8x1024xf32, #tpu.memory_space<vmem>>, vector<1x8x512xf32>,
    return
  }
  func.func @transform_0(%arg0: i32) -> (i32, i32, i32) {
    %c0_i32 = arith.constant 0 : i32
    %c0_i32_0 = arith.constant 0 : i32
    %c0_i32_1 = arith.constant 0 : i32
    return %arg0, %c0_i32, %c0_i32_0 : i32, i32, i32
  }
  func.func @transform_1(%arg0: i32) -> (i32, i32) {
    %c0_i32 = arith.constant 0 : i32
    %c0_i32_0 = arith.constant 0 : i32
    %c0_i32_1 = arith.constant 0 : i32
    return %c0_i32, %c0_i32_0 : i32, i32
  }
  func.func @transform_2(%arg0: i32) -> (i32, i32) {
    %c0_i32 = arith.constant 0 : i32
    %c0_i32_0 = arith.constant 0 : i32
    %c0_i32_1 = arith.constant 0 : i32
    return %c0_i32, %c0_i32_0 : i32, i32
  }
  func.func @transform_3(%arg0: i32) -> (i32, i32) {
    %c0_i32 = arith.constant 0 : i32
    %c0_i32_0 = arith.constant 0 : i32
    %c0_i32_1 = arith.constant 0 : i32
    return %c0_i32, %c0_i32_0 : i32, i32
  }
  func.func @transform_4(%arg0: i32) -> (i32, i32, i32) {
    %c0_i32 = arith.constant 0 : i32
    %c0_i32_0 = arith.constant 0 : i32
    %c0_i32_1 = arith.constant 0 : i32
    return %arg0, %c0_i32, %c0_i32_0 : i32, i32, i32
  }
}

</mosaic_0001>

<llo_original>
// kernel: conv_block_forward.2
$region0: #{conv_block_forward.2}
  #allocation0 [shape = 'u32[]', space=smem, size = 0x4, offset = 0x4, fixed_abs, tag = 'smem constant byte address 0x4 - core index']
  #allocation1 [shape = 'u32[72,128]{1,0:T(1,128)}', space=vmem, size = 0x9000, scoped, tag = 'internal scratch']
  #allocation2 [shape = 'bf16[432,512]{1,0:T(8,128)(2,1)}', space=vmem, size = 0x6c000, scoped, tag = 'scratch operand']
  %s0 = inlined_call_operand.vmem [shape: bf16[2,16,1300], index: 0, kind: input, shape index: {}]
  %s1 = inlined_call_operand.vmem [shape: bf16[8,432], index: 1, kind: input, shape index: {}]
  %s2 = inlined_call_operand.vmem [shape: f32[1,1024], index: 2, kind: input, shape index: {}]
  %s3 = inlined_call_operand.vmem [shape: f32[2,8,1], index: 3, kind: output, shape index: {0}]
  %s4 = inlined_call_operand.vmem [shape: f32[2,8,1], index: 4, kind: output, shape index: {1}]
  %5 = xla_tuple %s3, %s4
  %s6 = sld [smem:[#allocation0]]
  $region53: #{conv_block_forward.2} parent=0
    _
  %s8 = ssub.s32 1, %s6
  %s9 = scalar_select 0, %s8, %s6
  loop: start=0, step=1, limit=4
  $region2: #{conv_block_forward.2} parent=0 // loop_pre_header
    _
  $region3: #{conv_block_forward.2} parent=0 // loop_header
    %s11 = sphi 0, %s15
    %p12 = scmp.ge.s32.totalorder %s11, 4
    %s21 = sphi 0, %s23
    %s24 = sphi 0, %s21
    %s25 = sphi 0, %s24
    %s41 = sphi 0, %s25
    %s45 = sphi 0, %s45
    %s47 = sphi 0, %s45
    %s48 = sphi 0, %s47
    %s62 = sphi 0, %s48
    %s66 = sphi 0, %s66
    %s68 = sphi 0, %s66
    %s69 = sphi 0, %s68
    %s83 = sphi 0, %s69
    %s89 = sphi 0, %s91
    %s92 = sphi 0, %s89
    %s93 = sphi 0, %s92
    %s109 = sphi 0, %s93
    %s115 = sphi 0, %s117
    %s118 = sphi 0, %s115
    %s119 = sphi 0, %s118
    %s135 = sphi 0, %s119
  $region4: #{conv_block_forward.2} parent=0 // loop_header_branch
    %14 = sbr.rel (%p12) target = $region8
  $region5: #{conv_block_forward.2} parent=0 // loop_body
    %s16 = ssub.s32 %s11, 1
    %s17 = ssub.s32 %s11, 2
    %s18 = sadd.s32 %s11, 1
    %s19 = ssub.s32 %s11, %s18
    %p20 = scmp.eq.s32.totalorder %s19, 0
    %s22 = sadd.s32 %s21, 1
    %s23 = scalar_select %p20, %s21, %s22
    %p26 = pneg %p20
    %p27 = scmp.eq.s32.totalorder %s11, 1
    %p28 = por %p26, %p27
    %p29 = scmp.ne.s32.totalorder %s21, %s24
    %p30 = scmp.eq.s32.totalorder %s11, 0
    %p31 = por %p29, %p30
    %p32 = scmp.ne.s32.totalorder %s21, %s24
    %p33 = scmp.eq.s32.totalorder %s16, 1
    %p34 = por %p32, %p33
    %p35 = scmp.ne.s32.totalorder %s24, %s25
    %p36 = scmp.eq.s32.totalorder %s16, 0
    %p37 = por %p35, %p36
    %p38 = scmp.ne.s32.totalorder %s24, %s25
    %p39 = scmp.eq.s32.totalorder %s17, 1
    %p40 = por %p38, %p39
    %p42 = scmp.ne.s32.totalorder %s25, %s41
    %p43 = scmp.eq.s32.totalorder %s17, 0
    %p44 = por %p42, %p43
    %s46 = sadd.s32 %s45, 1
    %p49 = scmp.eq.s32.totalorder %s11, 1
    %p50 = scmp.ne.s32.totalorder %s45, %s47
    %p51 = scmp.eq.s32.totalorder %s11, 0
    %p52 = por %p50, %p51
    %p53 = scmp.ne.s32.totalorder %s45, %s47
    %p54 = scmp.eq.s32.totalorder %s16, 1
    %p55 = por %p53, %p54
    %p56 = scmp.ne.s32.totalorder %s47, %s48
    %p57 = scmp.eq.s32.totalorder %s16, 0
    %p58 = por %p56, %p57
    %p59 = scmp.ne.s32.totalorder %s47, %s48
    %p60 = scmp.eq.s32.totalorder %s17, 1
    %p61 = por %p59, %p60
    %p63 = scmp.ne.s32.totalorder %s48, %s62
    %p64 = scmp.eq.s32.totalorder %s17, 0
    %p65 = por %p63, %p64
    %s67 = sadd.s32 %s66, 1
    %p70 = scmp.eq.s32.totalorder %s11, 1
    %p71 = scmp.ne.s32.totalorder %s66, %s68
    %p72 = scmp.eq.s32.totalorder %s11, 0
    %p73 = por %p71, %p72
    %p74 = scmp.ne.s32.totalorder %s66, %s68
    %p75 = scmp.eq.s32.totalorder %s16, 1
    %p76 = por %p74, %p75
    %p77 = scmp.ne.s32.totalorder %s68, %s69
    %p78 = scmp.eq.s32.totalorder %s16, 0
    %p79 = por %p77, %p78
    %p80 = scmp.ne.s32.totalorder %s68, %s69
    %p81 = scmp.eq.s32.totalorder %s17, 1
    %p82 = por %p80, %p81
    %p84 = scmp.ne.s32.totalorder %s69, %s83
    %p85 = scmp.eq.s32.totalorder %s17, 0
    %p86 = por %p84, %p85
    %s87 = ssub.s32 %s11, %s18
    %p88 = scmp.eq.s32.totalorder %s87, 0
    %s90 = sadd.s32 %s89, 1
    %s91 = scalar_select %p88, %s89, %s90
    %p94 = pneg %p88
    %p95 = scmp.eq.s32.totalorder %s11, 1
    %p96 = por %p94, %p95
    %p97 = scmp.ne.s32.totalorder %s89, %s92
    %p98 = scmp.eq.s32.totalorder %s11, 0
    %p99 = por %p97, %p98
    %p100 = scmp.ne.s32.totalorder %s89, %s92
    %p101 = scmp.eq.s32.totalorder %s16, 1
    %p102 = por %p100, %p101
    %p103 = scmp.ne.s32.totalorder %s92, %s93
    %p104 = scmp.eq.s32.totalorder %s16, 0
    %p105 = por %p103, %p104
    %p106 = scmp.ne.s32.totalorder %s92, %s93
    %p107 = scmp.eq.s32.totalorder %s17, 1
    %p108 = por %p106, %p107
    %p110 = scmp.ne.s32.totalorder %s93, %s109
    %p111 = scmp.eq.s32.totalorder %s17, 0
    %p112 = por %p110, %p111
    %s113 = ssub.s32 %s11, %s18
    %p114 = scmp.eq.s32.totalorder %s113, 0
    %s116 = sadd.s32 %s115, 1
    %s117 = scalar_select %p114, %s115, %s116
    %p120 = pneg %p114
    %p121 = scmp.eq.s32.totalorder %s11, 1
    %p122 = por %p120, %p121
    %p123 = scmp.ne.s32.totalorder %s115, %s118
    %p124 = scmp.eq.s32.totalorder %s11, 0
    %p125 = por %p123, %p124
    %p126 = scmp.ne.s32.totalorder %s115, %s118
    %p127 = scmp.eq.s32.totalorder %s16, 1
    %p128 = por %p126, %p127
    %p129 = scmp.ne.s32.totalorder %s118, %s119
    %p130 = scmp.eq.s32.totalorder %s16, 0
    %p131 = por %p129, %p130
    %p132 = scmp.ne.s32.totalorder %s118, %s119
    %p133 = scmp.eq.s32.totalorder %s17, 1
    %p134 = por %p132, %p133
    %p136 = scmp.ne.s32.totalorder %s119, %s135
    %p137 = scmp.eq.s32.totalorder %s17, 0
    %p138 = por %p136, %p137
    %p139 = scmp.le.s32.totalorder 1, %s11
    %p140 = scmp.lt.s32.totalorder %s11, 3
    %p141 = pnand %p139, %p140
    %p142 = pneg %p141
    // Predicated region
    $region9: #{conv_block_forward.2} parent=5 // pred_check
      _
    $region10: #{conv_block_forward.2} parent=5 // pred_check_branch
      %144 = sbr.rel (%p141) target = $region12
    $region11: #{conv_block_forward.2} parent=5 // pred_region
      %s145 = ssub.s32 %s11, 1
      // Predicated region
      $region13: #{conv_block_forward.2} parent=11 // pred_check
        %p146 = pneg %p58
      $region14: #{conv_block_forward.2} parent=11 // pred_check_branch
        %148 = sbr.rel (%p146) target = $region16
      $region15: #{conv_block_forward.2} parent=11 // pred_region
        _
      $region16: #{conv_block_forward.2} parent=11 // pred_fallthru
        _
      // Predicated region
      $region17: #{conv_block_forward.2} parent=11 // pred_check
        %p149 = pneg %p79
      $region18: #{conv_block_forward.2} parent=11 // pred_check_branch
        %151 = sbr.rel (%p149) target = $region20
      $region19: #{conv_block_forward.2} parent=11 // pred_region
        _
      $region20: #{conv_block_forward.2} parent=11 // pred_fallthru
        _
    $region12: #{conv_block_forward.2} parent=5 // pred_fallthru
      _
    %p152 = scmp.lt.s32.totalorder %s11, 2
    // Predicated region
    $region21: #{conv_block_forward.2} parent=5 // pred_check
      %p153 = pneg %p152
    $region22: #{conv_block_forward.2} parent=5 // pred_check_branch
      %155 = sbr.rel (%p153) target = $region24
    $region23: #{conv_block_forward.2} parent=5 // pred_region
      // Predicated region
      $region25: #{conv_block_forward.2} parent=23 // pred_check
        %p156 = pneg %p31
      $region26: #{conv_block_forward.2} parent=23 // pred_check_branch
        %158 = sbr.rel (%p156) target = $region28
      $region27: #{conv_block_forward.2} parent=23 // pred_region
        %p159 = scmp.lt.s32.totalorder %s11, 1
        %s160 = scalar_select %p159, %s11, 1
        %s161 = smul.addr %s160, 22
        %s162 = smul.addr %s161, 4
        %s163 = scalar_lea.vmem %s0, %s162
      $region28: #{conv_block_forward.2} parent=23 // pred_fallthru
        _
    $region24: #{conv_block_forward.2} parent=5 // pred_fallthru
      _
    %p164 = scmp.le.s32.totalorder 1, %s11
    %p165 = scmp.lt.s32.totalorder %s11, 3
    %p166 = pnand %p164, %p165
    %p167 = pneg %p166
    // Predicated region
    $region29: #{conv_block_forward.2} parent=5 // pred_check
      _
    $region30: #{conv_block_forward.2} parent=5 // pred_check_branch
      %169 = sbr.rel (%p166) target = $region32
    $region31: #{conv_block_forward.2} parent=5 // pred_region
      %s170 = ssub.s32 %s11, 1
      %p171 = scmp.lt.s32.totalorder %s16, 1
      %s172 = scalar_select %p171, %s16, 1
      %s173 = smul.addr %s172, 22
      %s174 = smul.addr %s173, 4
      %s175 = scalar_lea.vmem %s0, %s174
      %p176 = pneg %p37
      %p177 = pneg %p34
      %p178 = pneg %p58
      %p179 = pneg %p55
      %p180 = pneg %p79
      %p181 = pneg %p76
      %p182 = pneg %p105
      %p183 = pneg %p102
      %p184 = scmp.lt.s32.totalorder %s16, 1
      %s185 = scalar_select %p184, %s16, 1
      %s186 = smul.addr %s185, 8
      %s187 = scalar_lea.vmem %s3, %s186
      %p188 = pneg %p131
      %p189 = pneg %p128
      %p190 = scmp.lt.s32.totalorder %s16, 1
      %s191 = scalar_select %p190, %s16, 1
      %s192 = smul.addr %s191, 8
      %s193 = scalar_lea.vmem %s4, %s192
      %p194 = scmp.lt.s32.totalorder %s16, 1
      %s195 = scalar_select %p194, %s16, 1
      %s196 = smul.addr %s195, 22
      %s197 = smul.addr %s196, 4
      %s198 = scalar_lea.vmem %s0, %s197
      %p199 = scmp.lt.s32.totalorder %s16, 1
      %s200 = scalar_select %p199, %s16, 1
      %s201 = smul.addr %s200, 8
      %s202 = scalar_lea.vmem %s3, %s201
      %p203 = scmp.lt.s32.totalorder %s16, 1
      %s204 = scalar_select %p203, %s16, 1
      %s205 = smul.addr %s204, 8
      %s206 = scalar_lea.vmem %s4, %s205
      %v208 = vld [vmem:[%s1] sm:$0xff]
      %v209 = vld [vmem:[%s1 + $0x8] sm:$0xff]
      %v210 = vld [vmem:[%s198] sm:$0xff]
      %v211 = vld [vmem:[%s198 + $0x8] sm:$0xff]
      %v212 = vld [vmem:[%s198 + $0x2c] sm:$0xff]
      %v213 = vld [vmem:[%s198 + $0x34] sm:$0xff]
      %214 = vst [vmem:[#allocation2] sm:$0xff] %v210
      %215 = vst [vmem:[#allocation2 + $0x8] sm:$0xff] %v211
      %216 = vst [vmem:[#allocation2 + $0x10] sm:$0xff] %v212
      %217 = vst [vmem:[#allocation2 + $0x18] sm:$0xff] %v213
      %v218 = vld [vmem:[%s198] sm:$0xff]
      %v219 = vld [vmem:[%s198 + $0x8] sm:$0xff]
      %v220 = vld [vmem:[%s198 + $0x10] sm:$0xf]
      %v221 = vld [vmem:[%s198 + $0x2c] sm:$0xff]
      %v222 = vld [vmem:[%s198 + $0x34] sm:$0xff]
      %v223 = vld [vmem:[%s198 + $0x3c] sm:$0xf]
      %230 = vrot.lane.b32.xlu0 %v218, 127
      %v231 = vpop.permute.xlu0 %230
      %232 = vrot.lane.b32.xlu0 %v219, 127
      %v233 = vpop.permute.xlu0 %232
      %234 = vrot.lane.b32.xlu0 %v220, 127
      %v235 = vpop.permute.xlu0 %234
      %236 = vrot.lane.b32.xlu0 %v221, 127
      %v237 = vpop.permute.xlu0 %236
      %238 = vrot.lane.b32.xlu0 %v222, 127
      %v239 = vpop.permute.xlu0 %238
      %240 = vrot.lane.b32.xlu0 %v223, 127
      %v241 = vpop.permute.xlu0 %240
      %v242 = vrot.slane %v231, 4
      %v243 = vrot.slane %v233, 4
      %v244 = vrot.slane %v235, 4
      %v245 = vrot.slane %v237, 4
      %v246 = vrot.slane %v239, 4
      %v247 = vrot.slane %v241, 4
      %vm248 = vcmask 1043456
      %v249 = vsel %vm248, %v242, %v243
      %vm250 = vcmask 1039360
      %v251 = vsel %vm250, %v231, %v249
      %v252 = vsel %vm248, %v243, %v244
      %v253 = vsel %vm250, %v233, %v252
      %v254 = vsel %vm248, %v245, %v246
      %v255 = vsel %vm250, %v237, %v254
      %v256 = vsel %vm248, %v246, %v247
      %v257 = vsel %vm250, %v239, %v256
      %262 = vst [vmem:[#allocation2 + $0x20] sm:$0xff] %v251
      %263 = vst [vmem:[#allocation2 + $0x28] sm:$0xff] %v253
      %264 = vst [vmem:[#allocation2 + $0x30] sm:$0xff] %v255
      %265 = vst [vmem:[#allocation2 + $0x38] sm:$0xff] %v257
      %v266 = vld [vmem:[%s198] sm:$0xff]
      %v267 = vld [vmem:[%s198 + $0x8] sm:$0xff]
      %v268 = vld [vmem:[%s198 + $0x10] sm:$0xf]
      %v269 = vld [vmem:[%s198 + $0x2c] sm:$0xff]
      %v270 = vld [vmem:[%s198 + $0x34] sm:$0xff]
      %v271 = vld [vmem:[%s198 + $0x3c] sm:$0xf]
      %278 = vrot.lane.b32.xlu0 %v266, 126
      %v279 = vpop.permute.xlu0 %278
      %280 = vrot.lane.b32.xlu0 %v267, 126
      %v281 = vpop.permute.xlu0 %280
      %282 = vrot.lane.b32.xlu0 %v268, 126
      %v283 = vpop.permute.xlu0 %282
      %284 = vrot.lane.b32.xlu0 %v269, 126
      %v285 = vpop.permute.xlu0 %284
      %286 = vrot.lane.b32.xlu0 %v270, 126
      %v287 = vpop.permute.xlu0 %286
      %288 = vrot.lane.b32.xlu0 %v271, 126
      %v289 = vpop.permute.xlu0 %288
      %v290 = vrot.slane %v279, 4
      %v291 = vrot.slane %v281, 4
      %v292 = vrot.slane %v283, 4
      %v293 = vrot.slane %v285, 4
      %v294 = vrot.slane %v287, 4
      %v295 = vrot.slane %v289, 4
      %v296 = vsel %vm248, %v290, %v291
      %vm297 = vcmask 1031168
      %v298 = vsel %vm297, %v279, %v296
      %v299 = vsel %vm248, %v291, %v292
      %v300 = vsel %vm297, %v281, %v299
      %v301 = vsel %vm248, %v293, %v294
      %v302 = vsel %vm297, %v285, %v301
      %v303 = vsel %vm248, %v294, %v295
      %v304 = vsel %vm297, %v287, %v303
      %309 = vst [vmem:[#allocation2 + $0x40] sm:$0xff] %v298
      %310 = vst [vmem:[#allocation2 + $0x48] sm:$0xff] %v300
      %311 = vst [vmem:[#allocation2 + $0x50] sm:$0xff] %v302
      %312 = vst [vmem:[#allocation2 + $0x58] sm:$0xff] %v304
      %v313 = vld [vmem:[%s198] sm:$0xff]
      %v314 = vld [vmem:[%s198 + $0x8] sm:$0xff]
      %v315 = vld [vmem:[%s198 + $0x10] sm:$0xf]
      %v316 = vld [vmem:[%s198 + $0x2c] sm:$0xff]
      %v317 = vld [vmem:[%s198 + $0x34] sm:$0xff]
      %v318 = vld [vmem:[%s198 + $0x3c] sm:$0xf]
      %325 = vrot.lane.b32.xlu0 %v313, 118
      %v326 = vpop.permute.xlu0 %325
      %327 = vrot.lane.b32.xlu0 %v314, 118
      %v328 = vpop.permute.xlu0 %327
      %329 = vrot.lane.b32.xlu0 %v315, 118
      %v330 = vpop.permute.xlu0 %329
      %331 = vrot.lane.b32.xlu0 %v316, 118
      %v332 = vpop.permute.xlu0 %331
      %333 = vrot.lane.b32.xlu0 %v317, 118
      %v334 = vpop.permute.xlu0 %333
      %335 = vrot.lane.b32.xlu0 %v318, 118
      %v336 = vpop.permute.xlu0 %335
      %v337 = vrot.slane %v326, 4
      %v338 = vrot.slane %v328, 4
      %v339 = vrot.slane %v330, 4
      %v340 = vrot.slane %v332, 4
      %v341 = vrot.slane %v334, 4
      %v342 = vrot.slane %v336, 4
      %v343 = vsel %vm248, %v337, %v338
      %vm344 = vcmask 965632
      %v345 = vsel %vm344, %v326, %v343
      %v346 = vsel %vm248, %v338, %v339
      %v347 = vsel %vm344, %v328, %v346
      %v348 = vsel %vm248, %v340, %v341
      %v349 = vsel %vm344, %v332, %v348
      %v350 = vsel %vm248, %v341, %v342
      %v351 = vsel %vm344, %v334, %v350
      %356 = vst [vmem:[#allocation2 + $0x60] sm:$0xff] %v345
      %357 = vst [vmem:[#allocation2 + $0x68] sm:$0xff] %v347
      %358 = vst [vmem:[#allocation2 + $0x70] sm:$0xff] %v349
      %359 = vst [vmem:[#allocation2 + $0x78] sm:$0xff] %v351
      %v360 = vld [vmem:[%s198] sm:$0xff]
      %v361 = vld [vmem:[%s198 + $0x8] sm:$0xff]
      %v362 = vld [vmem:[%s198 + $0x10] sm:$0xf]
      %v363 = vld [vmem:[%s198 + $0x2c] sm:$0xff]
      %v364 = vld [vmem:[%s198 + $0x34] sm:$0xff]
      %v365 = vld [vmem:[%s198 + $0x3c] sm:$0xf]
      %372 = vrot.lane.b32.xlu0 %v360, 117
      %v373 = vpop.permute.xlu0 %372
      %374 = vrot.lane.b32.xlu0 %v361, 117
      %v375 = vpop.permute.xlu0 %374
      %376 = vrot.lane.b32.xlu0 %v362, 117
      %v377 = vpop.permute.xlu0 %376
      %378 = vrot.lane.b32.xlu0 %v363, 117
      %v379 = vpop.permute.xlu0 %378
      %380 = vrot.lane.b32.xlu0 %v364, 117
      %v381 = vpop.permute.xlu0 %380
      %382 = vrot.lane.b32.xlu0 %v365, 117
      %v383 = vpop.permute.xlu0 %382
      %v384 = vrot.slane %v373, 4
      %v385 = vrot.slane %v375, 4
      %v386 = vrot.slane %v377, 4
      %v387 = vrot.slane %v379, 4
      %v388 = vrot.slane %v381, 4
      %v389 = vrot.slane %v383, 4
      %v390 = vsel %vm248, %v384, %v385
      %vm391 = vcmask 957440
      %v392 = vsel %vm391, %v373, %v390
      %v393 = vsel %vm248, %v385, %v386
      %v394 = vsel %vm391, %v375, %v393
      %v395 = vsel %vm248, %v387, %v388
      %v396 = vsel %vm391, %v379, %v395
      %v397 = vsel %vm248, %v388, %v389
      %v398 = vsel %vm391, %v381, %v397
      %403 = vst [vmem:[#allocation2 + $0x80] sm:$0xff] %v392
      %404 = vst [vmem:[#allocation2 + $0x88] sm:$0xff] %v394
      %405 = vst [vmem:[#allocation2 + $0x90] sm:$0xff] %v396
      %406 = vst [vmem:[#allocation2 + $0x98] sm:$0xff] %v398
      %v407 = vld [vmem:[%s198] sm:$0xff]
      %v408 = vld [vmem:[%s198 + $0x8] sm:$0xff]
      %v409 = vld [vmem:[%s198 + $0x10] sm:$0xf]
      %v410 = vld [vmem:[%s198 + $0x2c] sm:$0xff]
      %v411 = vld [vmem:[%s198 + $0x34] sm:$0xff]
      %v412 = vld [vmem:[%s198 + $0x3c] sm:$0xf]
      %419 = vrot.lane.b32.xlu0 %v407, 116
      %v420 = vpop.permute.xlu0 %419
      %421 = vrot.lane.b32.xlu0 %v408, 116
      %v422 = vpop.permute.xlu0 %421
      %423 = vrot.lane.b32.xlu0 %v409, 116
      %v424 = vpop.permute.xlu0 %423
      %425 = vrot.lane.b32.xlu0 %v410, 116
      %v426 = vpop.permute.xlu0 %425
      %427 = vrot.lane.b32.xlu0 %v411, 116
      %v428 = vpop.permute.xlu0 %427
      %429 = vrot.lane.b32.xlu0 %v412, 116
      %v430 = vpop.permute.xlu0 %429
      %v431 = vrot.slane %v420, 4
      %v432 = vrot.slane %v422, 4
      %v433 = vrot.slane %v424, 4
      %v434 = vrot.slane %v426, 4
      %v435 = vrot.slane %v428, 4
      %v436 = vrot.slane %v430, 4
      %v437 = vsel %vm248, %v431, %v432
      %vm438 = vcmask 949248
      %v439 = vsel %vm438, %v420, %v437
      %v440 = vsel %vm248, %v432, %v433
      %v441 = vsel %vm438, %v422, %v440
      %v442 = vsel %vm248, %v434, %v435
      %v443 = vsel %vm438, %v426, %v442
      %v444 = vsel %vm248, %v435, %v436
      %v445 = vsel %vm438, %v428, %v444
      %450 = vst [vmem:[#allocation2 + $0xa0] sm:$0xff] %v439
      %451 = vst [vmem:[#allocation2 + $0xa8] sm:$0xff] %v441
      %452 = vst [vmem:[#allocation2 + $0xb0] sm:$0xff] %v443
      %453 = vst [vmem:[#allocation2 + $0xb8] sm:$0xff] %v445
      %v454 = vld [vmem:[%s198] sm:$0xff]
      %v455 = vld [vmem:[%s198 + $0x8] sm:$0xff]
      %v456 = vld [vmem:[%s198 + $0x10] sm:$0xf]
      %v457 = vld [vmem:[%s198 + $0x2c] sm:$0xff]
      %v458 = vld [vmem:[%s198 + $0x34] sm:$0xff]
      %v459 = vld [vmem:[%s198 + $0x3c] sm:$0xf]
      %466 = vrot.lane.b32.xlu0 %v454, 108
      %v467 = vpop.permute.xlu0 %466
      %468 = vrot.lane.b32.xlu0 %v455, 108
      %v469 = vpop.permute.xlu0 %468
      %470 = vrot.lane.b32.xlu0 %v456, 108
      %v471 = vpop.permute.xlu0 %470
      %472 = vrot.lane.b32.xlu0 %v457, 108
      %v473 = vpop.permute.xlu0 %472
      %474 = vrot.lane.b32.xlu0 %v458, 108
      %v475 = vpop.permute.xlu0 %474
      %476 = vrot.lane.b32.xlu0 %v459, 108
      %v477 = vpop.permute.xlu0 %476
      %v478 = vrot.slane %v467, 4
      %v479 = vrot.slane %v469, 4
      %v480 = vrot.slane %v471, 4
      %v481 = vrot.slane %v473, 4
      %v482 = vrot.slane %v475, 4
      %v483 = vrot.slane %v477, 4
      %v484 = vsel %vm248, %v478, %v479
      %vm485 = vcmask 883712
      %v486 = vsel %vm485, %v467, %v484
      %v487 = vsel %vm248, %v479, %v480
      %v488 = vsel %vm485, %v469, %v487
      %v489 = vsel %vm248, %v481, %v482
      %v490 = vsel %vm485, %v473, %v489
      %v491 = vsel %vm248, %v482, %v483
      %v492 = vsel %vm485, %v475, %v491
      %497 = vst [vmem:[#allocation2 + $0xc0] sm:$0xff] %v486
      %498 = vst [vmem:[#allocation2 + $0xc8] sm:$0xff] %v488
      %499 = vst [vmem:[#allocation2 + $0xd0] sm:$0xff] %v490
      %500 = vst [vmem:[#allocation2 + $0xd8] sm:$0xff] %v492
      %v501 = vld [vmem:[%s198] sm:$0xff]
      %v502 = vld [vmem:[%s198 + $0x8] sm:$0xff]
      %v503 = vld [vmem:[%s198 + $0x10] sm:$0xf]
      %v504 = vld [vmem:[%s198 + $0x2c] sm:$0xff]
      %v505 = vld [vmem:[%s198 + $0x34] sm:$0xff]
      %v506 = vld [vmem:[%s198 + $0x3c] sm:$0xf]
      %513 = vrot.lane.b32.xlu0 %v501, 107
      %v514 = vpop.permute.xlu0 %513
      %515 = vrot.lane.b32.xlu0 %v502, 107
      %v516 = vpop.permute.xlu0 %515
      %517 = vrot.lane.b32.xlu0 %v503, 107
      %v518 = vpop.permute.xlu0 %517
      %519 = vrot.lane.b32.xlu0 %v504, 107
      %v520 = vpop.permute.xlu0 %519
      %521 = vrot.lane.b32.xlu0 %v505, 107
      %v522 = vpop.permute.xlu0 %521
      %523 = vrot.lane.b32.xlu0 %v506, 107
      %v524 = vpop.permute.xlu0 %523
      %v525 = vrot.slane %v514, 4
      %v526 = vrot.slane %v516, 4
      %v527 = vrot.slane %v518, 4
      %v528 = vrot.slane %v520, 4
      %v529 = vrot.slane %v522, 4
      %v530 = vrot.slane %v524, 4
      %v531 = vsel %vm248, %v525, %v526
      %vm532 = vcmask 875520
      %v533 = vsel %vm532, %v514, %v531
      %v534 = vsel %vm248, %v526, %v527
      %v535 = vsel %vm532, %v516, %v534
      %v536 = vsel %vm248, %v528, %v529
      %v537 = vsel %vm532, %v520, %v536
      %v538 = vsel %vm248, %v529, %v530
      %v539 = vsel %vm532, %v522, %v538
      %544 = vst [vmem:[#allocation2 + $0xe0] sm:$0xff] %v533
      %545 = vst [vmem:[#allocation2 + $0xe8] sm:$0xff] %v535
      %546 = vst [vmem:[#allocation2 + $0xf0] sm:$0xff] %v537
      %547 = vst [vmem:[#allocation2 + $0xf8] sm:$0xff] %v539
      %v548 = vld [vmem:[%s198] sm:$0xff]
      %v549 = vld [vmem:[%s198 + $0x8] sm:$0xff]
      %v550 = vld [vmem:[%s198 + $0x10] sm:$0xf]
      %v551 = vld [vmem:[%s198 + $0x2c] sm:$0xff]
      %v552 = vld [vmem:[%s198 + $0x34] sm:$0xff]
      %v553 = vld [vmem:[%s198 + $0x3c] sm:$0xf]
      %560 = vrot.lane.b32.xlu0 %v548, 106
      %v561 = vpop.permute.xlu0 %560
      %562 = vrot.lane.b32.xlu0 %v549, 106
      %v563 = vpop.permute.xlu0 %562
      %564 = vrot.lane.b32.xlu0 %v550, 106
      %v565 = vpop.permute.xlu0 %564
      %566 = vrot.lane.b32.xlu0 %v551, 106
      %v567 = vpop.permute.xlu0 %566
      %568 = vrot.lane.b32.xlu0 %v552, 106
      %v569 = vpop.permute.xlu0 %568
      %570 = vrot.lane.b32.xlu0 %v553, 106
      %v571 = vpop.permute.xlu0 %570
      %v572 = vrot.slane %v561, 4
      %v573 = vrot.slane %v563, 4
      %v574 = vrot.slane %v565, 4
      %v575 = vrot.slane %v567, 4
      %v576 = vrot.slane %v569, 4
      %v577 = vrot.slane %v571, 4
      %v578 = vsel %vm248, %v572, %v573
      %vm579 = vcmask 867328
      %v580 = vsel %vm579, %v561, %v578
      %v581 = vsel %vm248, %v573, %v574
      %v582 = vsel %vm579, %v563, %v581
      %v583 = vsel %vm248, %v575, %v576
      %v584 = vsel %vm579, %v567, %v583
      %v585 = vsel %vm248, %v576, %v577
      %v586 = vsel %vm579, %v569, %v585
      %591 = vst [vmem:[#allocation2 + $0x100] sm:$0xff] %v580
      %592 = vst [vmem:[#allocation2 + $0x108] sm:$0xff] %v582
      %593 = vst [vmem:[#allocation2 + $0x110] sm:$0xff] %v584
      %594 = vst [vmem:[#allocation2 + $0x118] sm:$0xff] %v586
      %v595 = vld [vmem:[%s198] sm:$0xff]
      %v596 = vld [vmem:[%s198 + $0x8] sm:$0xff]
      %v597 = vld [vmem:[%s198 + $0x10] sm:$0xf]
      %v598 = vld [vmem:[%s198 + $0x2c] sm:$0xff]
      %v599 = vld [vmem:[%s198 + $0x34] sm:$0xff]
      %v600 = vld [vmem:[%s198 + $0x3c] sm:$0xf]
      %607 = vrot.lane.b32.xlu0 %v595, 28
      %v608 = vpop.permute.xlu0 %607
      %609 = vrot.lane.b32.xlu0 %v596, 28
      %v610 = vpop.permute.xlu0 %609
      %611 = vrot.lane.b32.xlu0 %v597, 28
      %v612 = vpop.permute.xlu0 %611
      %613 = vrot.lane.b32.xlu0 %v598, 28
      %v614 = vpop.permute.xlu0 %613
      %615 = vrot.lane.b32.xlu0 %v599, 28
      %v616 = vpop.permute.xlu0 %615
      %617 = vrot.lane.b32.xlu0 %v600, 28
      %v618 = vpop.permute.xlu0 %617
      %v619 = vrot.slane %v608, 4
      %v620 = vrot.slane %v610, 4
      %v621 = vrot.slane %v612, 4
      %v622 = vrot.slane %v614, 4
      %v623 = vrot.slane %v616, 4
      %v624 = vrot.slane %v618, 4
      %v625 = vsel %vm248, %v619, %v620
      %vm626 = vcmask 228352
      %v627 = vsel %vm626, %v608, %v625
      %v628 = vsel %vm248, %v620, %v621
      %v629 = vsel %vm626, %v610, %v628
      %v630 = vsel %vm248, %v622, %v623
      %v631 = vsel %vm626, %v614, %v630
      %v632 = vsel %vm248, %v623, %v624
      %v633 = vsel %vm626, %v616, %v632
      %638 = vst [vmem:[#allocation2 + $0x120] sm:$0xff] %v627
      %639 = vst [vmem:[#allocation2 + $0x128] sm:$0xff] %v629
      %640 = vst [vmem:[#allocation2 + $0x130] sm:$0xff] %v631
      %641 = vst [vmem:[#allocation2 + $0x138] sm:$0xff] %v633
      %v642 = vld [vmem:[%s198] sm:$0xff]
      %v643 = vld [vmem:[%s198 + $0x8] sm:$0xff]
      %v644 = vld [vmem:[%s198 + $0x10] sm:$0xf]
      %v645 = vld [vmem:[%s198 + $0x2c] sm:$0xff]
      %v646 = vld [vmem:[%s198 + $0x34] sm:$0xff]
      %v647 = vld [vmem:[%s198 + $0x3c] sm:$0xf]
      %654 = vrot.lane.b32.xlu0 %v642, 27
      %v655 = vpop.permute.xlu0 %654
      %656 = vrot.lane.b32.xlu0 %v643, 27
      %v657 = vpop.permute.xlu0 %656
      %658 = vrot.lane.b32.xlu0 %v644, 27
      %v659 = vpop.permute.xlu0 %658
      %660 = vrot.lane.b32.xlu0 %v645, 27
      %v661 = vpop.permute.xlu0 %660
      %662 = vrot.lane.b32.xlu0 %v646, 27
      %v663 = vpop.permute.xlu0 %662
      %664 = vrot.lane.b32.xlu0 %v647, 27
      %v665 = vpop.permute.xlu0 %664
      %v666 = vrot.slane %v655, 4
      %v667 = vrot.slane %v657, 4
      %v668 = vrot.slane %v659, 4
      %v669 = vrot.slane %v661, 4
      %v670 = vrot.slane %v663, 4
      %v671 = vrot.slane %v665, 4
      %v672 = vsel %vm248, %v666, %v667
      %vm673 = vcmask 220160
      %v674 = vsel %vm673, %v655, %v672
      %v675 = vsel %vm248, %v667, %v668
      %v676 = vsel %vm673, %v657, %v675
      %v677 = vsel %vm248, %v669, %v670
      %v678 = vsel %vm673, %v661, %v677
      %v679 = vsel %vm248, %v670, %v671
      %v680 = vsel %vm673, %v663, %v679
      %685 = vst [vmem:[#allocation2 + $0x140] sm:$0xff] %v674
      %686 = vst [vmem:[#allocation2 + $0x148] sm:$0xff] %v676
      %687 = vst [vmem:[#allocation2 + $0x150] sm:$0xff] %v678
      %688 = vst [vmem:[#allocation2 + $0x158] sm:$0xff] %v680
      %v689 = vld [vmem:[%s198] sm:$0xff]
      %v690 = vld [vmem:[%s198 + $0x8] sm:$0xff]
      %v691 = vld [vmem:[%s198 + $0x10] sm:$0xf]
      %v692 = vld [vmem:[%s198 + $0x2c] sm:$0xff]
      %v693 = vld [vmem:[%s198 + $0x34] sm:$0xff]
      %v694 = vld [vmem:[%s198 + $0x3c] sm:$0xf]
      %701 = vrot.lane.b32.xlu0 %v689, 26
      %v702 = vpop.permute.xlu0 %701
      %703 = vrot.lane.b32.xlu0 %v690, 26
      %v704 = vpop.permute.xlu0 %703
      %705 = vrot.lane.b32.xlu0 %v691, 26
      %v706 = vpop.permute.xlu0 %705
      %707 = vrot.lane.b32.xlu0 %v692, 26
      %v708 = vpop.permute.xlu0 %707
      %709 = vrot.lane.b32.xlu0 %v693, 26
      %v710 = vpop.permute.xlu0 %709
      %711 = vrot.lane.b32.xlu0 %v694, 26
      %v712 = vpop.permute.xlu0 %711
      %v713 = vrot.slane %v702, 4
      %v714 = vrot.slane %v704, 4
      %v715 = vrot.slane %v706, 4
      %v716 = vrot.slane %v708, 4
      %v717 = vrot.slane %v710, 4
      %v718 = vrot.slane %v712, 4
      %v719 = vsel %vm248, %v713, %v714
      %vm720 = vcmask 211968
      %v721 = vsel %vm720, %v702, %v719
      %v722 = vsel %vm248, %v714, %v715
      %v723 = vsel %vm720, %v704, %v722
      %v724 = vsel %vm248, %v716, %v717
      %v725 = vsel %vm720, %v708, %v724
      %v726 = vsel %vm248, %v717, %v718
      %v727 = vsel %vm720, %v710, %v726
      %732 = vst [vmem:[#allocation2 + $0x160] sm:$0xff] %v721
      %733 = vst [vmem:[#allocation2 + $0x168] sm:$0xff] %v723
      %734 = vst [vmem:[#allocation2 + $0x170] sm:$0xff] %v725
      %735 = vst [vmem:[#allocation2 + $0x178] sm:$0xff] %v727
      %v736 = vld [vmem:[%s198] sm:$0xff]
      %v737 = vld [vmem:[%s198 + $0x8] sm:$0xff]
      %v738 = vld [vmem:[%s198 + $0x10] sm:$0xf]
      %v739 = vld [vmem:[%s198 + $0x2c] sm:$0xff]
      %v740 = vld [vmem:[%s198 + $0x34] sm:$0xff]
      %v741 = vld [vmem:[%s198 + $0x3c] sm:$0xf]
      %748 = vrot.lane.b32.xlu0 %v736, 18
      %v749 = vpop.permute.xlu0 %748
      %750 = vrot.lane.b32.xlu0 %v737, 18
      %v751 = vpop.permute.xlu0 %750
      %752 = vrot.lane.b32.xlu0 %v738, 18
      %v753 = vpop.permute.xlu0 %752
      %754 = vrot.lane.b32.xlu0 %v739, 18
      %v755 = vpop.permute.xlu0 %754
      %756 = vrot.lane.b32.xlu0 %v740, 18
      %v757 = vpop.permute.xlu0 %756
      %758 = vrot.lane.b32.xlu0 %v741, 18
      %v759 = vpop.permute.xlu0 %758
      %v760 = vrot.slane %v749, 4
      %v761 = vrot.slane %v751, 4
      %v762 = vrot.slane %v753, 4
      %v763 = vrot.slane %v755, 4
      %v764 = vrot.slane %v757, 4
      %v765 = vrot.slane %v759, 4
      %v766 = vsel %vm248, %v760, %v761
      %vm767 = vcmask 146432
      %v768 = vsel %vm767, %v749, %v766
      %v769 = vsel %vm248, %v761, %v762
      %v770 = vsel %vm767, %v751, %v769
      %v771 = vsel %vm248, %v763, %v764
      %v772 = vsel %vm767, %v755, %v771
      %v773 = vsel %vm248, %v764, %v765
      %v774 = vsel %vm767, %v757, %v773
      %779 = vst [vmem:[#allocation2 + $0x180] sm:$0xff] %v768
      %780 = vst [vmem:[#allocation2 + $0x188] sm:$0xff] %v770
      %781 = vst [vmem:[#allocation2 + $0x190] sm:$0xff] %v772
      %782 = vst [vmem:[#allocation2 + $0x198] sm:$0xff] %v774
      %v783 = vld [vmem:[%s198] sm:$0xff]
      %v784 = vld [vmem:[%s198 + $0x8] sm:$0xff]
      %v785 = vld [vmem:[%s198 + $0x10] sm:$0xf]
      %v786 = vld [vmem:[%s198 + $0x2c] sm:$0xff]
      %v787 = vld [vmem:[%s198 + $0x34] sm:$0xff]
      %v788 = vld [vmem:[%s198 + $0x3c] sm:$0xf]
      %795 = vrot.lane.b32.xlu0 %v783, 17
      %v796 = vpop.permute.xlu0 %795
      %797 = vrot.lane.b32.xlu0 %v784, 17
      %v798 = vpop.permute.xlu0 %797
      %799 = vrot.lane.b32.xlu0 %v785, 17
      %v800 = vpop.permute.xlu0 %799
      %801 = vrot.lane.b32.xlu0 %v786, 17
      %v802 = vpop.permute.xlu0 %801
      %803 = vrot.lane.b32.xlu0 %v787, 17
      %v804 = vpop.permute.xlu0 %803
      %805 = vrot.lane.b32.xlu0 %v788, 17
      %v806 = vpop.permute.xlu0 %805
      %v807 = vrot.slane %v796, 4
      %v808 = vrot.slane %v798, 4
      %v809 = vrot.slane %v800, 4
      %v810 = vrot.slane %v802, 4
      %v811 = vrot.slane %v804, 4
      %v812 = vrot.slane %v806, 4
      %v813 = vsel %vm248, %v807, %v808
      %vm814 = vcmask 138240
      %v815 = vsel %vm814, %v796, %v813
      %v816 = vsel %vm248, %v808, %v809
      %v817 = vsel %vm814, %v798, %v816
      %v818 = vsel %vm248, %v810, %v811
      %v819 = vsel %vm814, %v802, %v818
      %v820 = vsel %vm248, %v811, %v812
      %v821 = vsel %vm814, %v804, %v820
      %826 = vst [vmem:[#allocation2 + $0x1a0] sm:$0xff] %v815
      %827 = vst [vmem:[#allocation2 + $0x1a8] sm:$0xff] %v817
      %828 = vst [vmem:[#allocation2 + $0x1b0] sm:$0xff] %v819
      %829 = vst [vmem:[#allocation2 + $0x1b8] sm:$0xff] %v821
      %v830 = vld [vmem:[%s198] sm:$0xff]
      %v831 = vld [vmem:[%s198 + $0x8] sm:$0xff]
      %v832 = vld [vmem:[%s198 + $0x10] sm:$0xf]
      %v833 = vld [vmem:[%s198 + $0x2c] sm:$0xff]
      %v834 = vld [vmem:[%s198 + $0x34] sm:$0xff]
      %v835 = vld [vmem:[%s198 + $0x3c] sm:$0xf]
      %842 = vrot.lane.b32.xlu0 %v830, 16
      %v843 = vpop.permute.xlu0 %842
      %844 = vrot.lane.b32.xlu0 %v831, 16
      %v845 = vpop.permute.xlu0 %844
      %846 = vrot.lane.b32.xlu0 %v832, 16
      %v847 = vpop.permute.xlu0 %846
      %848 = vrot.lane.b32.xlu0 %v833, 16
      %v849 = vpop.permute.xlu0 %848
      %850 = vrot.lane.b32.xlu0 %v834, 16
      %v851 = vpop.permute.xlu0 %850
      %852 = vrot.lane.b32.xlu0 %v835, 16
      %v853 = vpop.permute.xlu0 %852
      %v854 = vrot.slane %v843, 4
      %v855 = vrot.slane %v845, 4
      %v856 = vrot.slane %v847, 4
      %v857 = vrot.slane %v849, 4
      %v858 = vrot.slane %v851, 4
      %v859 = vrot.slane %v853, 4
      %v860 = vsel %vm248, %v854, %v855
      %vm861 = vcmask 130048
      %v862 = vsel %vm861, %v843, %v860
      %v863 = vsel %vm248, %v855, %v856
      %v864 = vsel %vm861, %v845, %v863
      %v865 = vsel %vm248, %v857, %v858
      %v866 = vsel %vm861, %v849, %v865
      %v867 = vsel %vm248, %v858, %v859
      %v868 = vsel %vm861, %v851, %v867
      %873 = vst [vmem:[#allocation2 + $0x1c0] sm:$0xff] %v862
      %874 = vst [vmem:[#allocation2 + $0x1c8] sm:$0xff] %v864
      %875 = vst [vmem:[#allocation2 + $0x1d0] sm:$0xff] %v866
      %876 = vst [vmem:[#allocation2 + $0x1d8] sm:$0xff] %v868
      %v877 = vld [vmem:[%s198] sm:$0xff]
      %v878 = vld [vmem:[%s198 + $0x8] sm:$0xff]
      %v879 = vld [vmem:[%s198 + $0x10] sm:$0xf]
      %v880 = vld [vmem:[%s198 + $0x2c] sm:$0xff]
      %v881 = vld [vmem:[%s198 + $0x34] sm:$0xff]
      %v882 = vld [vmem:[%s198 + $0x3c] sm:$0xf]
      %889 = vrot.lane.b32.xlu0 %v877, 8
      %v890 = vpop.permute.xlu0 %889
      %891 = vrot.lane.b32.xlu0 %v878, 8
      %v892 = vpop.permute.xlu0 %891
      %893 = vrot.lane.b32.xlu0 %v879, 8
      %v894 = vpop.permute.xlu0 %893
      %895 = vrot.lane.b32.xlu0 %v880, 8
      %v896 = vpop.permute.xlu0 %895
      %897 = vrot.lane.b32.xlu0 %v881, 8
      %v898 = vpop.permute.xlu0 %897
      %899 = vrot.lane.b32.xlu0 %v882, 8
      %v900 = vpop.permute.xlu0 %899
      %v901 = vrot.slane %v890, 4
      %v902 = vrot.slane %v892, 4
      %v903 = vrot.slane %v894, 4
      %v904 = vrot.slane %v896, 4
      %v905 = vrot.slane %v898, 4
      %v906 = vrot.slane %v900, 4
      %v907 = vsel %vm248, %v901, %v902
      %vm908 = vcmask 64512
      %v909 = vsel %vm908, %v890, %v907
      %v910 = vsel %vm248, %v902, %v903
      %v911 = vsel %vm908, %v892, %v910
      %v912 = vsel %vm248, %v904, %v905
      %v913 = vsel %vm908, %v896, %v912
      %v914 = vsel %vm248, %v905, %v906
      %v915 = vsel %vm908, %v898, %v914
      %920 = vst [vmem:[#allocation2 + $0x1e0] sm:$0xff] %v909
      %921 = vst [vmem:[#allocation2 + $0x1e8] sm:$0xff] %v911
      %922 = vst [vmem:[#allocation2 + $0x1f0] sm:$0xff] %v913
      %923 = vst [vmem:[#allocation2 + $0x1f8] sm:$0xff] %v915
      %v924 = vld [vmem:[%s198] sm:$0xff]
      %v925 = vld [vmem:[%s198 + $0x8] sm:$0xff]
      %v926 = vld [vmem:[%s198 + $0x10] sm:$0xf]
      %v927 = vld [vmem:[%s198 + $0x2c] sm:$0xff]
      %v928 = vld [vmem:[%s198 + $0x34] sm:$0xff]
      %v929 = vld [vmem:[%s198 + $0x3c] sm:$0xf]
      %936 = vrot.lane.b32.xlu0 %v924, 7
      %v937 = vpop.permute.xlu0 %936
      %938 = vrot.lane.b32.xlu0 %v925, 7
      %v939 = vpop.permute.xlu0 %938
      %940 = vrot.lane.b32.xlu0 %v926, 7
      %v941 = vpop.permute.xlu0 %940
      %942 = vrot.lane.b32.xlu0 %v927, 7
      %v943 = vpop.permute.xlu0 %942
      %944 = vrot.lane.b32.xlu0 %v928, 7
      %v945 = vpop.permute.xlu0 %944
      %946 = vrot.lane.b32.xlu0 %v929, 7
      %v947 = vpop.permute.xlu0 %946
      %v948 = vrot.slane %v937, 4
      %v949 = vrot.slane %v939, 4
      %v950 = vrot.slane %v941, 4
      %v951 = vrot.slane %v943, 4
      %v952 = vrot.slane %v945, 4
      %v953 = vrot.slane %v947, 4
      %v954 = vsel %vm248, %v948, %v949
      %vm955 = vcmask 56320
      %v956 = vsel %vm955, %v937, %v954
      %v957 = vsel %vm248, %v949, %v950
      %v958 = vsel %vm955, %v939, %v957
      %v959 = vsel %vm248, %v951, %v952
      %v960 = vsel %vm955, %v943, %v959
      %v961 = vsel %vm248, %v952, %v953
      %v962 = vsel %vm955, %v945, %v961
      %967 = vst [vmem:[#allocation2 + $0x200] sm:$0xff] %v956
      %968 = vst [vmem:[#allocation2 + $0x208] sm:$0xff] %v958
      %969 = vst [vmem:[#allocation2 + $0x210] sm:$0xff] %v960
      %970 = vst [vmem:[#allocation2 + $0x218] sm:$0xff] %v962
      %v971 = vld [vmem:[%s198] sm:$0xff]
      %v972 = vld [vmem:[%s198 + $0x8] sm:$0xff]
      %v973 = vld [vmem:[%s198 + $0x10] sm:$0xf]
      %v974 = vld [vmem:[%s198 + $0x2c] sm:$0xff]
      %v975 = vld [vmem:[%s198 + $0x34] sm:$0xff]
      %v976 = vld [vmem:[%s198 + $0x3c] sm:$0xf]
      %983 = vrot.lane.b32.xlu0 %v971, 6
      %v984 = vpop.permute.xlu0 %983
      %985 = vrot.lane.b32.xlu0 %v972, 6
      %v986 = vpop.permute.xlu0 %985
      %987 = vrot.lane.b32.xlu0 %v973, 6
      %v988 = vpop.permute.xlu0 %987
      %989 = vrot.lane.b32.xlu0 %v974, 6
      %v990 = vpop.permute.xlu0 %989
      %991 = vrot.lane.b32.xlu0 %v975, 6
      %v992 = vpop.permute.xlu0 %991
      %993 = vrot.lane.b32.xlu0 %v976, 6
      %v994 = vpop.permute.xlu0 %993
      %v995 = vrot.slane %v984, 4
      %v996 = vrot.slane %v986, 4
      %v997 = vrot.slane %v988, 4
      %v998 = vrot.slane %v990, 4
      %v999 = vrot.slane %v992, 4
      %v1000 = vrot.slane %v994, 4
      %v1001 = vsel %vm248, %v995, %v996
      %vm1002 = vcmask 48128
      %v1003 = vsel %vm1002, %v984, %v1001
      %v1004 = vsel %vm248, %v996, %v997
      %v1005 = vsel %vm1002, %v986, %v1004
      %v1006 = vsel %vm248, %v998, %v999
      %v1007 = vsel %vm1002, %v990, %v1006
      %v1008 = vsel %vm248, %v999, %v1000
      %v1009 = vsel %vm1002, %v992, %v1008
      %1014 = vst [vmem:[#allocation2 + $0x220] sm:$0xff] %v1003
      %1015 = vst [vmem:[#allocation2 + $0x228] sm:$0xff] %v1005
      %1016 = vst [vmem:[#allocation2 + $0x230] sm:$0xff] %v1007
      %1017 = vst [vmem:[#allocation2 + $0x238] sm:$0xff] %v1009
      %v1018 = vld [vmem:[%s198 + $0x4] sm:$0xff]
      %v1019 = vld [vmem:[%s198 + $0xc] sm:$0xff]
      %v1020 = vld [vmem:[%s198 + $0x14] sm:$0xf]
      %v1021 = vld [vmem:[%s198 + $0x30] sm:$0xff]
      %v1022 = vld [vmem:[%s198 + $0x38] sm:$0xff]
      %v1023 = vld [vmem:[%s198 + $0x40] sm:$0xf]
      %1030 = vrot.lane.b32.xlu0 %v1018, 56
      %v1031 = vpop.permute.xlu0 %1030
      %1032 = vrot.lane.b32.xlu0 %v1019, 56
      %v1033 = vpop.permute.xlu0 %1032
      %1034 = vrot.lane.b32.xlu0 %v1020, 56
      %v1035 = vpop.permute.xlu0 %1034
      %1036 = vrot.lane.b32.xlu0 %v1021, 56
      %v1037 = vpop.permute.xlu0 %1036
      %1038 = vrot.lane.b32.xlu0 %v1022, 56
      %v1039 = vpop.permute.xlu0 %1038
      %1040 = vrot.lane.b32.xlu0 %v1023, 56
      %v1041 = vpop.permute.xlu0 %1040
      %v1042 = vrot.slane %v1031, 4
      %v1043 = vrot.slane %v1033, 4
      %v1044 = vrot.slane %v1035, 4
      %v1045 = vrot.slane %v1037, 4
      %v1046 = vrot.slane %v1039, 4
      %v1047 = vrot.slane %v1041, 4
      %v1048 = vsel %vm248, %v1042, %v1043
      %vm1049 = vcmask 457728
      %v1050 = vsel %vm1049, %v1031, %v1048
      %v1051 = vsel %vm248, %v1043, %v1044
      %v1052 = vsel %vm1049, %v1033, %v1051
      %v1053 = vsel %vm248, %v1045, %v1046
      %v1054 = vsel %vm1049, %v1037, %v1053
      %v1055 = vsel %vm248, %v1046, %v1047
      %v1056 = vsel %vm1049, %v1039, %v1055
      %1061 = vst [vmem:[#allocation2 + $0x240] sm:$0xff] %v1050
      %1062 = vst [vmem:[#allocation2 + $0x248] sm:$0xff] %v1052
      %1063 = vst [vmem:[#allocation2 + $0x250] sm:$0xff] %v1054
      %1064 = vst [vmem:[#allocation2 + $0x258] sm:$0xff] %v1056
      %v1065 = vld [vmem:[%s198 + $0x4] sm:$0xff]
      %v1066 = vld [vmem:[%s198 + $0xc] sm:$0xff]
      %v1067 = vld [vmem:[%s198 + $0x14] sm:$0xf]
      %v1068 = vld [vmem:[%s198 + $0x30] sm:$0xff]
      %v1069 = vld [vmem:[%s198 + $0x38] sm:$0xff]
      %v1070 = vld [vmem:[%s198 + $0x40] sm:$0xf]
      %1077 = vrot.lane.b32.xlu0 %v1065, 55
      %v1078 = vpop.permute.xlu0 %1077
      %1079 = vrot.lane.b32.xlu0 %v1066, 55
      %v1080 = vpop.permute.xlu0 %1079
      %1081 = vrot.lane.b32.xlu0 %v1067, 55
      %v1082 = vpop.permute.xlu0 %1081
      %1083 = vrot.lane.b32.xlu0 %v1068, 55
      %v1084 = vpop.permute.xlu0 %1083
      %1085 = vrot.lane.b32.xlu0 %v1069, 55
      %v1086 = vpop.permute.xlu0 %1085
      %1087 = vrot.lane.b32.xlu0 %v1070, 55
      %v1088 = vpop.permute.xlu0 %1087
      %v1089 = vrot.slane %v1078, 4
      %v1090 = vrot.slane %v1080, 4
      %v1091 = vrot.slane %v1082, 4
      %v1092 = vrot.slane %v1084, 4
      %v1093 = vrot.slane %v1086, 4
      %v1094 = vrot.slane %v1088, 4
      %v1095 = vsel %vm248, %v1089, %v1090
      %vm1096 = vcmask 449536
      %v1097 = vsel %vm1096, %v1078, %v1095
      %v1098 = vsel %vm248, %v1090, %v1091
      %v1099 = vsel %vm1096, %v1080, %v1098
      %v1100 = vsel %vm248, %v1092, %v1093
      %v1101 = vsel %vm1096, %v1084, %v1100
      %v1102 = vsel %vm248, %v1093, %v1094
      %v1103 = vsel %vm1096, %v1086, %v1102
      %1108 = vst [vmem:[#allocation2 + $0x260] sm:$0xff] %v1097
      %1109 = vst [vmem:[#allocation2 + $0x268] sm:$0xff] %v1099
      %1110 = vst [vmem:[#allocation2 + $0x270] sm:$0xff] %v1101
      %1111 = vst [vmem:[#allocation2 + $0x278] sm:$0xff] %v1103
      %v1112 = vld [vmem:[%s198 + $0x4] sm:$0xff]
      %v1113 = vld [vmem:[%s198 + $0xc] sm:$0xff]
      %v1114 = vld [vmem:[%s198 + $0x14] sm:$0xf]
      %v1115 = vld [vmem:[%s198 + $0x30] sm:$0xff]
      %v1116 = vld [vmem:[%s198 + $0x38] sm:$0xff]
      %v1117 = vld [vmem:[%s198 + $0x40] sm:$0xf]
      %1124 = vrot.lane.b32.xlu0 %v1112, 54
      %v1125 = vpop.permute.xlu0 %1124
      %1126 = vrot.lane.b32.xlu0 %v1113, 54
      %v1127 = vpop.permute.xlu0 %1126
      %1128 = vrot.lane.b32.xlu0 %v1114, 54
      %v1129 = vpop.permute.xlu0 %1128
      %1130 = vrot.lane.b32.xlu0 %v1115, 54
      %v1131 = vpop.permute.xlu0 %1130
      %1132 = vrot.lane.b32.xlu0 %v1116, 54
      %v1133 = vpop.permute.xlu0 %1132
      %1134 = vrot.lane.b32.xlu0 %v1117, 54
      %v1135 = vpop.permute.xlu0 %1134
      %v1136 = vrot.slane %v1125, 4
      %v1137 = vrot.slane %v1127, 4
      %v1138 = vrot.slane %v1129, 4
      %v1139 = vrot.slane %v1131, 4
      %v1140 = vrot.slane %v1133, 4
      %v1141 = vrot.slane %v1135, 4
      %v1142 = vsel %vm248, %v1136, %v1137
      %vm1143 = vcmask 441344
      %v1144 = vsel %vm1143, %v1125, %v1142
      %v1145 = vsel %vm248, %v1137, %v1138
      %v1146 = vsel %vm1143, %v1127, %v1145
      %v1147 = vsel %vm248, %v1139, %v1140
      %v1148 = vsel %vm1143, %v1131, %v1147
      %v1149 = vsel %vm248, %v1140, %v1141
      %v1150 = vsel %vm1143, %v1133, %v1149
      %1155 = vst [vmem:[#allocation2 + $0x280] sm:$0xff] %v1144
      %1156 = vst [vmem:[#allocation2 + $0x288] sm:$0xff] %v1146
      %1157 = vst [vmem:[#allocation2 + $0x290] sm:$0xff] %v1148
      %1158 = vst [vmem:[#allocation2 + $0x298] sm:$0xff] %v1150
      %v1159 = vld [vmem:[%s198 + $0x4] sm:$0xff]
      %v1160 = vld [vmem:[%s198 + $0xc] sm:$0xff]
      %v1161 = vld [vmem:[%s198 + $0x14] sm:$0xf]
      %v1162 = vld [vmem:[%s198 + $0x30] sm:$0xff]
      %v1163 = vld [vmem:[%s198 + $0x38] sm:$0xff]
      %v1164 = vld [vmem:[%s198 + $0x40] sm:$0xf]
      %1171 = vrot.lane.b32.xlu0 %v1159, 46
      %v1172 = vpop.permute.xlu0 %1171
      %1173 = vrot.lane.b32.xlu0 %v1160, 46
      %v1174 = vpop.permute.xlu0 %1173
      %1175 = vrot.lane.b32.xlu0 %v1161, 46
      %v1176 = vpop.permute.xlu0 %1175
      %1177 = vrot.lane.b32.xlu0 %v1162, 46
      %v1178 = vpop.permute.xlu0 %1177
      %1179 = vrot.lane.b32.xlu0 %v1163, 46
      %v1180 = vpop.permute.xlu0 %1179
      %1181 = vrot.lane.b32.xlu0 %v1164, 46
      %v1182 = vpop.permute.xlu0 %1181
      %v1183 = vrot.slane %v1172, 4
      %v1184 = vrot.slane %v1174, 4
      %v1185 = vrot.slane %v1176, 4
      %v1186 = vrot.slane %v1178, 4
      %v1187 = vrot.slane %v1180, 4
      %v1188 = vrot.slane %v1182, 4
      %v1189 = vsel %vm248, %v1183, %v1184
      %vm1190 = vcmask 375808
      %v1191 = vsel %vm1190, %v1172, %v1189
      %v1192 = vsel %vm248, %v1184, %v1185
      %v1193 = vsel %vm1190, %v1174, %v1192
      %v1194 = vsel %vm248, %v1186, %v1187
      %v1195 = vsel %vm1190, %v1178, %v1194
      %v1196 = vsel %vm248, %v1187, %v1188
      %v1197 = vsel %vm1190, %v1180, %v1196
      %1202 = vst [vmem:[#allocation2 + $0x2a0] sm:$0xff] %v1191
      %1203 = vst [vmem:[#allocation2 + $0x2a8] sm:$0xff] %v1193
      %1204 = vst [vmem:[#allocation2 + $0x2b0] sm:$0xff] %v1195
      %1205 = vst [vmem:[#allocation2 + $0x2b8] sm:$0xff] %v1197
      %v1206 = vld [vmem:[%s198 + $0x4] sm:$0xff]
      %v1207 = vld [vmem:[%s198 + $0xc] sm:$0xff]
      %v1208 = vld [vmem:[%s198 + $0x14] sm:$0xf]
      %v1209 = vld [vmem:[%s198 + $0x30] sm:$0xff]
      %v1210 = vld [vmem:[%s198 + $0x38] sm:$0xff]
      %v1211 = vld [vmem:[%s198 + $0x40] sm:$0xf]
      %1218 = vrot.lane.b32.xlu0 %v1206, 45
      %v1219 = vpop.permute.xlu0 %1218
      %1220 = vrot.lane.b32.xlu0 %v1207, 45
      %v1221 = vpop.permute.xlu0 %1220
      %1222 = vrot.lane.b32.xlu0 %v1208, 45
      %v1223 = vpop.permute.xlu0 %1222
      %1224 = vrot.lane.b32.xlu0 %v1209, 45
      %v1225 = vpop.permute.xlu0 %1224
      %1226 = vrot.lane.b32.xlu0 %v1210, 45
      %v1227 = vpop.permute.xlu0 %1226
      %1228 = vrot.lane.b32.xlu0 %v1211, 45
      %v1229 = vpop.permute.xlu0 %1228
      %v1230 = vrot.slane %v1219, 4
      %v1231 = vrot.slane %v1221, 4
      %v1232 = vrot.slane %v1223, 4
      %v1233 = vrot.slane %v1225, 4
      %v1234 = vrot.slane %v1227, 4
      %v1235 = vrot.slane %v1229, 4
      %v1236 = vsel %vm248, %v1230, %v1231
      %vm1237 = vcmask 367616
      %v1238 = vsel %vm1237, %v1219, %v1236
      %v1239 = vsel %vm248, %v1231, %v1232
      %v1240 = vsel %vm1237, %v1221, %v1239
      %v1241 = vsel %vm248, %v1233, %v1234
      %v1242 = vsel %vm1237, %v1225, %v1241
      %v1243 = vsel %vm248, %v1234, %v1235
      %v1244 = vsel %vm1237, %v1227, %v1243
      %1249 = vst [vmem:[#allocation2 + $0x2c0] sm:$0xff] %v1238
      %1250 = vst [vmem:[#allocation2 + $0x2c8] sm:$0xff] %v1240
      %1251 = vst [vmem:[#allocation2 + $0x2d0] sm:$0xff] %v1242
      %1252 = vst [vmem:[#allocation2 + $0x2d8] sm:$0xff] %v1244
      %v1253 = vld [vmem:[%s198 + $0x4] sm:$0xff]
      %v1254 = vld [vmem:[%s198 + $0xc] sm:$0xff]
      %v1255 = vld [vmem:[%s198 + $0x14] sm:$0xf]
      %v1256 = vld [vmem:[%s198 + $0x30] sm:$0xff]
      %v1257 = vld [vmem:[%s198 + $0x38] sm:$0xff]
      %v1258 = vld [vmem:[%s198 + $0x40] sm:$0xf]
      %1265 = vrot.lane.b32.xlu0 %v1253, 44
      %v1266 = vpop.permute.xlu0 %1265
      %1267 = vrot.lane.b32.xlu0 %v1254, 44
      %v1268 = vpop.permute.xlu0 %1267
      %1269 = vrot.lane.b32.xlu0 %v1255, 44
      %v1270 = vpop.permute.xlu0 %1269
      %1271 = vrot.lane.b32.xlu0 %v1256, 44
      %v1272 = vpop.permute.xlu0 %1271
      %1273 = vrot.lane.b32.xlu0 %v1257, 44
      %v1274 = vpop.permute.xlu0 %1273
      %1275 = vrot.lane.b32.xlu0 %v1258, 44
      %v1276 = vpop.permute.xlu0 %1275
      %v1277 = vrot.slane %v1266, 4
      %v1278 = vrot.slane %v1268, 4
      %v1279 = vrot.slane %v1270, 4
      %v1280 = vrot.slane %v1272, 4
      %v1281 = vrot.slane %v1274, 4
      %v1282 = vrot.slane %v1276, 4
      %v1283 = vsel %vm248, %v1277, %v1278
      %vm1284 = vcmask 359424
      %v1285 = vsel %vm1284, %v1266, %v1283
      %v1286 = vsel %vm248, %v1278, %v1279
      %v1287 = vsel %vm1284, %v1268, %v1286
      %v1288 = vsel %vm248, %v1280, %v1281
      %v1289 = vsel %vm1284, %v1272, %v1288
      %v1290 = vsel %vm248, %v1281, %v1282
      %v1291 = vsel %vm1284, %v1274, %v1290
      %1296 = vst [vmem:[#allocation2 + $0x2e0] sm:$0xff] %v1285
      %1297 = vst [vmem:[#allocation2 + $0x2e8] sm:$0xff] %v1287
      %1298 = vst [vmem:[#allocation2 + $0x2f0] sm:$0xff] %v1289
      %1299 = vst [vmem:[#allocation2 + $0x2f8] sm:$0xff] %v1291
      %v1300 = vld [vmem:[%s198 + $0x4] sm:$0xff]
      %v1301 = vld [vmem:[%s198 + $0xc] sm:$0xff]
      %v1302 = vld [vmem:[%s198 + $0x14] sm:$0xf]
      %v1303 = vld [vmem:[%s198 + $0x30] sm:$0xff]
      %v1304 = vld [vmem:[%s198 + $0x38] sm:$0xff]
      %v1305 = vld [vmem:[%s198 + $0x40] sm:$0xf]
      %1312 = vrot.lane.b32.xlu0 %v1300, 36
      %v1313 = vpop.permute.xlu0 %1312
      %1314 = vrot.lane.b32.xlu0 %v1301, 36
      %v1315 = vpop.permute.xlu0 %1314
      %1316 = vrot.lane.b32.xlu0 %v1302, 36
      %v1317 = vpop.permute.xlu0 %1316
      %1318 = vrot.lane.b32.xlu0 %v1303, 36
      %v1319 = vpop.permute.xlu0 %1318
      %1320 = vrot.lane.b32.xlu0 %v1304, 36
      %v1321 = vpop.permute.xlu0 %1320
      %1322 = vrot.lane.b32.xlu0 %v1305, 36
      %v1323 = vpop.permute.xlu0 %1322
      %v1324 = vrot.slane %v1313, 4
      %v1325 = vrot.slane %v1315, 4
      %v1326 = vrot.slane %v1317, 4
      %v1327 = vrot.slane %v1319, 4
      %v1328 = vrot.slane %v1321, 4
      %v1329 = vrot.slane %v1323, 4
      %v1330 = vsel %vm248, %v1324, %v1325
      %vm1331 = vcmask 293888
      %v1332 = vsel %vm1331, %v1313, %v1330
      %v1333 = vsel %vm248, %v1325, %v1326
      %v1334 = vsel %vm1331, %v1315, %v1333
      %v1335 = vsel %vm248, %v1327, %v1328
      %v1336 = vsel %vm1331, %v1319, %v1335
      %v1337 = vsel %vm248, %v1328, %v1329
      %v1338 = vsel %vm1331, %v1321, %v1337
      %1343 = vst [vmem:[#allocation2 + $0x300] sm:$0xff] %v1332
      %1344 = vst [vmem:[#allocation2 + $0x308] sm:$0xff] %v1334
      %1345 = vst [vmem:[#allocation2 + $0x310] sm:$0xff] %v1336
      %1346 = vst [vmem:[#allocation2 + $0x318] sm:$0xff] %v1338
      %v1347 = vld [vmem:[%s198 + $0x4] sm:$0xff]
      %v1348 = vld [vmem:[%s198 + $0xc] sm:$0xff]
      %v1349 = vld [vmem:[%s198 + $0x14] sm:$0xf]
      %v1350 = vld [vmem:[%s198 + $0x30] sm:$0xff]
      %v1351 = vld [vmem:[%s198 + $0x38] sm:$0xff]
      %v1352 = vld [vmem:[%s198 + $0x40] sm:$0xf]
      %1359 = vrot.lane.b32.xlu0 %v1347, 35
      %v1360 = vpop.permute.xlu0 %1359
      %1361 = vrot.lane.b32.xlu0 %v1348, 35
      %v1362 = vpop.permute.xlu0 %1361
      %1363 = vrot.lane.b32.xlu0 %v1349, 35
      %v1364 = vpop.permute.xlu0 %1363
      %1365 = vrot.lane.b32.xlu0 %v1350, 35
      %v1366 = vpop.permute.xlu0 %1365
      %1367 = vrot.lane.b32.xlu0 %v1351, 35
      %v1368 = vpop.permute.xlu0 %1367
      %1369 = vrot.lane.b32.xlu0 %v1352, 35
      %v1370 = vpop.permute.xlu0 %1369
      %v1371 = vrot.slane %v1360, 4
      %v1372 = vrot.slane %v1362, 4
      %v1373 = vrot.slane %v1364, 4
      %v1374 = vrot.slane %v1366, 4
      %v1375 = vrot.slane %v1368, 4
      %v1376 = vrot.slane %v1370, 4
      %v1377 = vsel %vm248, %v1371, %v1372
      %vm1378 = vcmask 285696
      %v1379 = vsel %vm1378, %v1360, %v1377
      %v1380 = vsel %vm248, %v1372, %v1373
      %v1381 = vsel %vm1378, %v1362, %v1380
      %v1382 = vsel %vm248, %v1374, %v1375
      %v1383 = vsel %vm1378, %v1366, %v1382
      %v1384 = vsel %vm248, %v1375, %v1376
      %v1385 = vsel %vm1378, %v1368, %v1384
      %1390 = vst [vmem:[#allocation2 + $0x320] sm:$0xff] %v1379
      %1391 = vst [vmem:[#allocation2 + $0x328] sm:$0xff] %v1381
      %1392 = vst [vmem:[#allocation2 + $0x330] sm:$0xff] %v1383
      %1393 = vst [vmem:[#allocation2 + $0x338] sm:$0xff] %v1385
      %v1394 = vld [vmem:[%s198 + $0x4] sm:$0xff]
      %v1395 = vld [vmem:[%s198 + $0xc] sm:$0xff]
      %v1396 = vld [vmem:[%s198 + $0x14] sm:$0xf]
      %v1397 = vld [vmem:[%s198 + $0x30] sm:$0xff]
      %v1398 = vld [vmem:[%s198 + $0x38] sm:$0xff]
      %v1399 = vld [vmem:[%s198 + $0x40] sm:$0xf]
      %1406 = vrot.lane.b32.xlu0 %v1394, 34
      %v1407 = vpop.permute.xlu0 %1406
      %1408 = vrot.lane.b32.xlu0 %v1395, 34
      %v1409 = vpop.permute.xlu0 %1408
      %1410 = vrot.lane.b32.xlu0 %v1396, 34
      %v1411 = vpop.permute.xlu0 %1410
      %1412 = vrot.lane.b32.xlu0 %v1397, 34
      %v1413 = vpop.permute.xlu0 %1412
      %1414 = vrot.lane.b32.xlu0 %v1398, 34
      %v1415 = vpop.permute.xlu0 %1414
      %1416 = vrot.lane.b32.xlu0 %v1399, 34
      %v1417 = vpop.permute.xlu0 %1416
      %v1418 = vrot.slane %v1407, 4
      %v1419 = vrot.slane %v1409, 4
      %v1420 = vrot.slane %v1411, 4
      %v1421 = vrot.slane %v1413, 4
      %v1422 = vrot.slane %v1415, 4
      %v1423 = vrot.slane %v1417, 4
      %v1424 = vsel %vm248, %v1418, %v1419
      %vm1425 = vcmask 277504
      %v1426 = vsel %vm1425, %v1407, %v1424
      %v1427 = vsel %vm248, %v1419, %v1420
      %v1428 = vsel %vm1425, %v1409, %v1427
      %v1429 = vsel %vm248, %v1421, %v1422
      %v1430 = vsel %vm1425, %v1413, %v1429
      %v1431 = vsel %vm248, %v1422, %v1423
      %v1432 = vsel %vm1425, %v1415, %v1431
      %1437 = vst [vmem:[#allocation2 + $0x340] sm:$0xff] %v1426
      %1438 = vst [vmem:[#allocation2 + $0x348] sm:$0xff] %v1428
      %1439 = vst [vmem:[#allocation2 + $0x350] sm:$0xff] %v1430
      %1440 = vst [vmem:[#allocation2 + $0x358] sm:$0xff] %v1432
      %v1441 = vld [vmem:[#allocation2] sm:$0xff]
      %v1442 = vld [vmem:[#allocation2 + $0x8] sm:$0xff]
      %v1443 = vld [vmem:[#allocation2 + $0x10] sm:$0xff]
      %v1444 = vld [vmem:[#allocation2 + $0x18] sm:$0xff]
      %v1445 = vld [vmem:[#allocation2 + $0x20] sm:$0xff]
      %v1446 = vld [vmem:[#allocation2 + $0x28] sm:$0xff]
      %v1447 = vld [vmem:[#allocation2 + $0x30] sm:$0xff]
      %v1448 = vld [vmem:[#allocation2 + $0x38] sm:$0xff]
      %v1449 = vld [vmem:[#allocation2 + $0x40] sm:$0xff]
      %v1450 = vld [vmem:[#allocation2 + $0x48] sm:$0xff]
      %v1451 = vld [vmem:[#allocation2 + $0x50] sm:$0xff]
      %v1452 = vld [vmem:[#allocation2 + $0x58] sm:$0xff]
      %v1453 = vld [vmem:[#allocation2 + $0x60] sm:$0xff]
      %v1454 = vld [vmem:[#allocation2 + $0x68] sm:$0xff]
      %v1455 = vld [vmem:[#allocation2 + $0x70] sm:$0xff]
      %v1456 = vld [vmem:[#allocation2 + $0x78] sm:$0xff]
      %v1457 = vld [vmem:[#allocation2 + $0x80] sm:$0xff]
      %v1458 = vld [vmem:[#allocation2 + $0x88] sm:$0xff]
      %v1459 = vld [vmem:[#allocation2 + $0x90] sm:$0xff]
      %v1460 = vld [vmem:[#allocation2 + $0x98] sm:$0xff]
      %v1461 = vld [vmem:[#allocation2 + $0xa0] sm:$0xff]
      %v1462 = vld [vmem:[#allocation2 + $0xa8] sm:$0xff]
      %v1463 = vld [vmem:[#allocation2 + $0xb0] sm:$0xff]
      %v1464 = vld [vmem:[#allocation2 + $0xb8] sm:$0xff]
      %v1465 = vld [vmem:[#allocation2 + $0xc0] sm:$0xff]
      %v1466 = vld [vmem:[#allocation2 + $0xc8] sm:$0xff]
      %v1467 = vld [vmem:[#allocation2 + $0xd0] sm:$0xff]
      %v1468 = vld [vmem:[#allocation2 + $0xd8] sm:$0xff]
      %v1469 = vld [vmem:[#allocation2 + $0xe0] sm:$0xff]
      %v1470 = vld [vmem:[#allocation2 + $0xe8] sm:$0xff]
      %v1471 = vld [vmem:[#allocation2 + $0xf0] sm:$0xff]
      %v1472 = vld [vmem:[#allocation2 + $0xf8] sm:$0xff]
      %v1473 = vld [vmem:[#allocation2 + $0x100] sm:$0xff]
      %v1474 = vld [vmem:[#allocation2 + $0x108] sm:$0xff]
      %v1475 = vld [vmem:[#allocation2 + $0x110] sm:$0xff]
      %v1476 = vld [vmem:[#allocation2 + $0x118] sm:$0xff]
      %v1477 = vld [vmem:[#allocation2 + $0x120] sm:$0xff]
      %v1478 = vld [vmem:[#allocation2 + $0x128] sm:$0xff]
      %v1479 = vld [vmem:[#allocation2 + $0x130] sm:$0xff]
      %v1480 = vld [vmem:[#allocation2 + $0x138] sm:$0xff]
      %v1481 = vld [vmem:[#allocation2 + $0x140] sm:$0xff]
      %v1482 = vld [vmem:[#allocation2 + $0x148] sm:$0xff]
      %v1483 = vld [vmem:[#allocation2 + $0x150] sm:$0xff]
      %v1484 = vld [vmem:[#allocation2 + $0x158] sm:$0xff]
      %v1485 = vld [vmem:[#allocation2 + $0x160] sm:$0xff]
      %v1486 = vld [vmem:[#allocation2 + $0x168] sm:$0xff]
      %v1487 = vld [vmem:[#allocation2 + $0x170] sm:$0xff]
      %v1488 = vld [vmem:[#allocation2 + $0x178] sm:$0xff]
      %v1489 = vld [vmem:[#allocation2 + $0x180] sm:$0xff]
      %v1490 = vld [vmem:[#allocation2 + $0x188] sm:$0xff]
      %v1491 = vld [vmem:[#allocation2 + $0x190] sm:$0xff]
      %v1492 = vld [vmem:[#allocation2 + $0x198] sm:$0xff]
      %v1493 = vld [vmem:[#allocation2 + $0x1a0] sm:$0xff]
      %v1494 = vld [vmem:[#allocation2 + $0x1a8] sm:$0xff]
      %v1495 = vld [vmem:[#allocation2 + $0x1b0] sm:$0xff]
      %v1496 = vld [vmem:[#allocation2 + $0x1b8] sm:$0xff]
      %v1497 = vld [vmem:[#allocation2 + $0x1c0] sm:$0xff]
      %v1498 = vld [vmem:[#allocation2 + $0x1c8] sm:$0xff]
      %v1499 = vld [vmem:[#allocation2 + $0x1d0] sm:$0xff]
      %v1500 = vld [vmem:[#allocation2 + $0x1d8] sm:$0xff]
      %v1501 = vld [vmem:[#allocation2 + $0x1e0] sm:$0xff]
      %v1502 = vld [vmem:[#allocation2 + $0x1e8] sm:$0xff]
      %v1503 = vld [vmem:[#allocation2 + $0x1f0] sm:$0xff]
      %v1504 = vld [vmem:[#allocation2 + $0x1f8] sm:$0xff]
      %v1505 = vld [vmem:[#allocation2 + $0x200] sm:$0xff]
      %v1506 = vld [vmem:[#allocation2 + $0x208] sm:$0xff]
      %v1507 = vld [vmem:[#allocation2 + $0x210] sm:$0xff]
      %v1508 = vld [vmem:[#allocation2 + $0x218] sm:$0xff]
      %v1509 = vld [vmem:[#allocation2 + $0x220] sm:$0xff]
      %v1510 = vld [vmem:[#allocation2 + $0x228] sm:$0xff]
      %v1511 = vld [vmem:[#allocation2 + $0x230] sm:$0xff]
      %v1512 = vld [vmem:[#allocation2 + $0x238] sm:$0xff]
      %v1513 = vld [vmem:[#allocation2 + $0x240] sm:$0xff]
      %v1514 = vld [vmem:[#allocation2 + $0x248] sm:$0xff]
      %v1515 = vld [vmem:[#allocation2 + $0x250] sm:$0xff]
      %v1516 = vld [vmem:[#allocation2 + $0x258] sm:$0xff]
      %v1517 = vld [vmem:[#allocation2 + $0x260] sm:$0xff]
      %v1518 = vld [vmem:[#allocation2 + $0x268] sm:$0xff]
      %v1519 = vld [vmem:[#allocation2 + $0x270] sm:$0xff]
      %v1520 = vld [vmem:[#allocation2 + $0x278] sm:$0xff]
      %v1521 = vld [vmem:[#allocation2 + $0x280] sm:$0xff]
      %v1522 = vld [vmem:[#allocation2 + $0x288] sm:$0xff]
      %v1523 = vld [vmem:[#allocation2 + $0x290] sm:$0xff]
      %v1524 = vld [vmem:[#allocation2 + $0x298] sm:$0xff]
      %v1525 = vld [vmem:[#allocation2 + $0x2a0] sm:$0xff]
      %v1526 = vld [vmem:[#allocation2 + $0x2a8] sm:$0xff]
      %v1527 = vld [vmem:[#allocation2 + $0x2b0] sm:$0xff]
      %v1528 = vld [vmem:[#allocation2 + $0x2b8] sm:$0xff]
      %v1529 = vld [vmem:[#allocation2 + $0x2c0] sm:$0xff]
      %v1530 = vld [vmem:[#allocation2 + $0x2c8] sm:$0xff]
      %v1531 = vld [vmem:[#allocation2 + $0x2d0] sm:$0xff]
      %v1532 = vld [vmem:[#allocation2 + $0x2d8] sm:$0xff]
      %v1533 = vld [vmem:[#allocation2 + $0x2e0] sm:$0xff]
      %v1534 = vld [vmem:[#allocation2 + $0x2e8] sm:$0xff]
      %v1535 = vld [vmem:[#allocation2 + $0x2f0] sm:$0xff]
      %v1536 = vld [vmem:[#allocation2 + $0x2f8] sm:$0xff]
      %v1537 = vld [vmem:[#allocation2 + $0x300] sm:$0xff]
      %v1538 = vld [vmem:[#allocation2 + $0x308] sm:$0xff]
      %v1539 = vld [vmem:[#allocation2 + $0x310] sm:$0xff]
      %v1540 = vld [vmem:[#allocation2 + $0x318] sm:$0xff]
      %v1541 = vld [vmem:[#allocation2 + $0x320] sm:$0xff]
      %v1542 = vld [vmem:[#allocation2 + $0x328] sm:$0xff]
      %v1543 = vld [vmem:[#allocation2 + $0x330] sm:$0xff]
      %v1544 = vld [vmem:[#allocation2 + $0x338] sm:$0xff]
      %v1545 = vld [vmem:[#allocation2 + $0x340] sm:$0xff]
      %v1546 = vld [vmem:[#allocation2 + $0x348] sm:$0xff]
      %v1547 = vld [vmem:[#allocation2 + $0x350] sm:$0xff]
      %v1548 = vld [vmem:[#allocation2 + $0x358] sm:$0xff]
      %v1551 = vunpack.c.l.b16 %v208
      %v1552 = vunpack.c.h.b16 %v208
      %v1553 = vunpack.c.l.b16 %v209
      %v1554 = vunpack.c.h.b16 %v209
      %v1555 = vpack.c.b16 %v1551, %v1551
      %v1556 = vpack.c.b16 %v1552, %v1552
      %v1557 = vpack.c.b16 %v1553, %v1553
      %v1558 = vpack.c.b16 %v1554, %v1554
      %v1670 = vunpack.c.l.b16 %v1441
      %v1671 = vunpack.c.h.b16 %v1441
      %v1672 = vunpack.c.l.b16 %v1442
      %v1673 = vunpack.c.h.b16 %v1442
      %v1674 = vunpack.c.l.b16 %v1443
      %v1675 = vunpack.c.h.b16 %v1443
      %v1676 = vunpack.c.l.b16 %v1444
      %v1677 = vunpack.c.h.b16 %v1444
      %v1678 = vunpack.c.l.b16 %v1445
      %v1679 = vunpack.c.h.b16 %v1445
      %v1680 = vunpack.c.l.b16 %v1446
      %v1681 = vunpack.c.h.b16 %v1446
      %v1682 = vunpack.c.l.b16 %v1447
      %v1683 = vunpack.c.h.b16 %v1447
      %v1684 = vunpack.c.l.b16 %v1448
      %v1685 = vunpack.c.h.b16 %v1448
      %v1686 = vunpack.c.l.b16 %v1449
      %v1687 = vunpack.c.h.b16 %v1449
      %v1688 = vunpack.c.l.b16 %v1450
      %v1689 = vunpack.c.h.b16 %v1450
      %v1690 = vunpack.c.l.b16 %v1451
      %v1691 = vunpack.c.h.b16 %v1451
      %v1692 = vunpack.c.l.b16 %v1452
      %v1693 = vunpack.c.h.b16 %v1452
      %v1694 = vunpack.c.l.b16 %v1453
      %v1695 = vunpack.c.h.b16 %v1453
      %v1696 = vunpack.c.l.b16 %v1454
      %v1697 = vunpack.c.h.b16 %v1454
      %v1698 = vunpack.c.l.b16 %v1455
      %v1699 = vunpack.c.h.b16 %v1455
      %v1700 = vunpack.c.l.b16 %v1456
      %v1701 = vunpack.c.h.b16 %v1456
      %v1702 = vunpack.c.l.b16 %v1457
      %v1703 = vunpack.c.h.b16 %v1457
      %v1704 = vunpack.c.l.b16 %v1458
      %v1705 = vunpack.c.h.b16 %v1458
      %v1706 = vunpack.c.l.b16 %v1459
      %v1707 = vunpack.c.h.b16 %v1459
      %v1708 = vunpack.c.l.b16 %v1460
      %v1709 = vunpack.c.h.b16 %v1460
      %v1710 = vunpack.c.l.b16 %v1461
      %v1711 = vunpack.c.h.b16 %v1461
      %v1712 = vunpack.c.l.b16 %v1462
      %v1713 = vunpack.c.h.b16 %v1462
      %v1714 = vunpack.c.l.b16 %v1463
      %v1715 = vunpack.c.h.b16 %v1463
      %v1716 = vunpack.c.l.b16 %v1464
      %v1717 = vunpack.c.h.b16 %v1464
      %v1718 = vunpack.c.l.b16 %v1465
      %v1719 = vunpack.c.h.b16 %v1465
      %v1720 = vunpack.c.l.b16 %v1466
      %v1721 = vunpack.c.h.b16 %v1466
      %v1722 = vunpack.c.l.b16 %v1467
      %v1723 = vunpack.c.h.b16 %v1467
      %v1724 = vunpack.c.l.b16 %v1468
      %v1725 = vunpack.c.h.b16 %v1468
      %v1726 = vunpack.c.l.b16 %v1469
      %v1727 = vunpack.c.h.b16 %v1469
      %v1728 = vunpack.c.l.b16 %v1470
      %v1729 = vunpack.c.h.b16 %v1470
      %v1730 = vunpack.c.l.b16 %v1471
      %v1731 = vunpack.c.h.b16 %v1471
      %v1732 = vunpack.c.l.b16 %v1472
      %v1733 = vunpack.c.h.b16 %v1472
      %v1734 = vunpack.c.l.b16 %v1473
      %v1735 = vunpack.c.h.b16 %v1473
      %v1736 = vunpack.c.l.b16 %v1474
      %v1737 = vunpack.c.h.b16 %v1474
      %v1738 = vunpack.c.l.b16 %v1475
      %v1739 = vunpack.c.h.b16 %v1475
      %v1740 = vunpack.c.l.b16 %v1476
      %v1741 = vunpack.c.h.b16 %v1476
      %v1742 = vunpack.c.l.b16 %v1477
      %v1743 = vunpack.c.h.b16 %v1477
      %v1744 = vunpack.c.l.b16 %v1478
      %v1745 = vunpack.c.h.b16 %v1478
      %v1746 = vunpack.c.l.b16 %v1479
      %v1747 = vunpack.c.h.b16 %v1479
      %v1748 = vunpack.c.l.b16 %v1480
      %v1749 = vunpack.c.h.b16 %v1480
      %v1750 = vunpack.c.l.b16 %v1481
      %v1751 = vunpack.c.h.b16 %v1481
      %v1752 = vunpack.c.l.b16 %v1482
      %v1753 = vunpack.c.h.b16 %v1482
      %v1754 = vunpack.c.l.b16 %v1483
      %v1755 = vunpack.c.h.b16 %v1483
      %v1756 = vunpack.c.l.b16 %v1484
      %v1757 = vunpack.c.h.b16 %v1484
      %v1758 = vunpack.c.l.b16 %v1485
      %v1759 = vunpack.c.h.b16 %v1485
      %v1760 = vunpack.c.l.b16 %v1486
      %v1761 = vunpack.c.h.b16 %v1486
      %v1762 = vunpack.c.l.b16 %v1487
      %v1763 = vunpack.c.h.b16 %v1487
      %v1764 = vunpack.c.l.b16 %v1488
      %v1765 = vunpack.c.h.b16 %v1488
      %v1766 = vunpack.c.l.b16 %v1489
      %v1767 = vunpack.c.h.b16 %v1489
      %v1768 = vunpack.c.l.b16 %v1490
      %v1769 = vunpack.c.h.b16 %v1490
      %v1770 = vunpack.c.l.b16 %v1491
      %v1771 = vunpack.c.h.b16 %v1491
      %v1772 = vunpack.c.l.b16 %v1492
      %v1773 = vunpack.c.h.b16 %v1492
      %v1774 = vunpack.c.l.b16 %v1493
      %v1775 = vunpack.c.h.b16 %v1493
      %v1776 = vunpack.c.l.b16 %v1494
      %v1777 = vunpack.c.h.b16 %v1494
      %v1778 = vunpack.c.l.b16 %v1495
      %v1779 = vunpack.c.h.b16 %v1495
      %v1780 = vunpack.c.l.b16 %v1496
      %v1781 = vunpack.c.h.b16 %v1496
      %v1782 = vunpack.c.l.b16 %v1497
      %v1783 = vunpack.c.h.b16 %v1497
      %v1784 = vunpack.c.l.b16 %v1498
      %v1785 = vunpack.c.h.b16 %v1498
      %v1786 = vunpack.c.l.b16 %v1499
      %v1787 = vunpack.c.h.b16 %v1499
      %v1788 = vunpack.c.l.b16 %v1500
      %v1789 = vunpack.c.h.b16 %v1500
      %v1790 = vunpack.c.l.b16 %v1501
      %v1791 = vunpack.c.h.b16 %v1501
      %v1792 = vunpack.c.l.b16 %v1502
      %v1793 = vunpack.c.h.b16 %v1502
      %v1794 = vunpack.c.l.b16 %v1503
      %v1795 = vunpack.c.h.b16 %v1503
      %v1796 = vunpack.c.l.b16 %v1504
      %v1797 = vunpack.c.h.b16 %v1504
      %v1798 = vunpack.c.l.b16 %v1505
      %v1799 = vunpack.c.h.b16 %v1505
      %v1800 = vunpack.c.l.b16 %v1506
      %v1801 = vunpack.c.h.b16 %v1506
      %v1802 = vunpack.c.l.b16 %v1507
      %v1803 = vunpack.c.h.b16 %v1507
      %v1804 = vunpack.c.l.b16 %v1508
      %v1805 = vunpack.c.h.b16 %v1508
      %v1806 = vunpack.c.l.b16 %v1509
      %v1807 = vunpack.c.h.b16 %v1509
      %v1808 = vunpack.c.l.b16 %v1510
      %v1809 = vunpack.c.h.b16 %v1510
      %v1810 = vunpack.c.l.b16 %v1511
      %v1811 = vunpack.c.h.b16 %v1511
      %v1812 = vunpack.c.l.b16 %v1512
      %v1813 = vunpack.c.h.b16 %v1512
      %v1814 = vunpack.c.l.b16 %v1513
      %v1815 = vunpack.c.h.b16 %v1513
      %v1816 = vunpack.c.l.b16 %v1514
      %v1817 = vunpack.c.h.b16 %v1514
      %v1818 = vunpack.c.l.b16 %v1515
      %v1819 = vunpack.c.h.b16 %v1515
      %v1820 = vunpack.c.l.b16 %v1516
      %v1821 = vunpack.c.h.b16 %v1516
      %v1822 = vunpack.c.l.b16 %v1517
      %v1823 = vunpack.c.h.b16 %v1517
      %v1824 = vunpack.c.l.b16 %v1518
      %v1825 = vunpack.c.h.b16 %v1518
      %v1826 = vunpack.c.l.b16 %v1519
      %v1827 = vunpack.c.h.b16 %v1519
      %v1828 = vunpack.c.l.b16 %v1520
      %v1829 = vunpack.c.h.b16 %v1520
      %v1830 = vunpack.c.l.b16 %v1521
      %v1831 = vunpack.c.h.b16 %v1521
      %v1832 = vunpack.c.l.b16 %v1522
      %v1833 = vunpack.c.h.b16 %v1522
      %v1834 = vunpack.c.l.b16 %v1523
      %v1835 = vunpack.c.h.b16 %v1523
      %v1836 = vunpack.c.l.b16 %v1524
      %v1837 = vunpack.c.h.b16 %v1524
      %v1838 = vunpack.c.l.b16 %v1525
      %v1839 = vunpack.c.h.b16 %v1525
      %v1840 = vunpack.c.l.b16 %v1526
      %v1841 = vunpack.c.h.b16 %v1526
      %v1842 = vunpack.c.l.b16 %v1527
      %v1843 = vunpack.c.h.b16 %v1527
      %v1844 = vunpack.c.l.b16 %v1528
      %v1845 = vunpack.c.h.b16 %v1528
      %v1846 = vunpack.c.l.b16 %v1529
      %v1847 = vunpack.c.h.b16 %v1529
      %v1848 = vunpack.c.l.b16 %v1530
      %v1849 = vunpack.c.h.b16 %v1530
      %v1850 = vunpack.c.l.b16 %v1531
      %v1851 = vunpack.c.h.b16 %v1531
      %v1852 = vunpack.c.l.b16 %v1532
      %v1853 = vunpack.c.h.b16 %v1532
      %v1854 = vunpack.c.l.b16 %v1533
      %v1855 = vunpack.c.h.b16 %v1533
      %v1856 = vunpack.c.l.b16 %v1534
      %v1857 = vunpack.c.h.b16 %v1534
      %v1858 = vunpack.c.l.b16 %v1535
      %v1859 = vunpack.c.h.b16 %v1535
      %v1860 = vunpack.c.l.b16 %v1536
      %v1861 = vunpack.c.h.b16 %v1536
      %v1862 = vunpack.c.l.b16 %v1537
      %v1863 = vunpack.c.h.b16 %v1537
      %v1864 = vunpack.c.l.b16 %v1538
      %v1865 = vunpack.c.h.b16 %v1538
      %v1866 = vunpack.c.l.b16 %v1539
      %v1867 = vunpack.c.h.b16 %v1539
      %v1868 = vunpack.c.l.b16 %v1540
      %v1869 = vunpack.c.h.b16 %v1540
      %v1870 = vunpack.c.l.b16 %v1541
      %v1871 = vunpack.c.h.b16 %v1541
      %v1872 = vunpack.c.l.b16 %v1542
      %v1873 = vunpack.c.h.b16 %v1542
      %v1874 = vunpack.c.l.b16 %v1543
      %v1875 = vunpack.c.h.b16 %v1543
      %v1876 = vunpack.c.l.b16 %v1544
      %v1877 = vunpack.c.h.b16 %v1544
      %v1878 = vunpack.c.l.b16 %v1545
      %v1879 = vunpack.c.h.b16 %v1545
      %v1880 = vunpack.c.l.b16 %v1546
      %v1881 = vunpack.c.h.b16 %v1546
      %v1882 = vunpack.c.l.b16 %v1547
      %v1883 = vunpack.c.h.b16 %v1547
      %v1884 = vunpack.c.l.b16 %v1548
      %v1885 = vunpack.c.h.b16 %v1548
      %v1886 = vpack.c.b16 %v1674, %v1670
      %v1887 = vpack.c.b16 %v1675, %v1671
      %v1888 = vpack.c.b16 %v1676, %v1672
      %v1889 = vpack.c.b16 %v1677, %v1673
      %v1890 = vpack.c.b16 %v1682, %v1678
      %v1891 = vpack.c.b16 %v1683, %v1679
      %v1892 = vpack.c.b16 %v1684, %v1680
      %v1893 = vpack.c.b16 %v1685, %v1681
      %v1894 = vpack.c.b16 %v1690, %v1686
      %v1895 = vpack.c.b16 %v1691, %v1687
      %v1896 = vpack.c.b16 %v1692, %v1688
      %v1897 = vpack.c.b16 %v1693, %v1689
      %v1898 = vpack.c.b16 %v1698, %v1694
      %v1899 = vpack.c.b16 %v1699, %v1695
      %v1900 = vpack.c.b16 %v1700, %v1696
      %v1901 = vpack.c.b16 %v1701, %v1697
      %v1902 = vpack.c.b16 %v1706, %v1702
      %v1903 = vpack.c.b16 %v1707, %v1703
      %v1904 = vpack.c.b16 %v1708, %v1704
      %v1905 = vpack.c.b16 %v1709, %v1705
      %v1906 = vpack.c.b16 %v1714, %v1710
      %v1907 = vpack.c.b16 %v1715, %v1711
      %v1908 = vpack.c.b16 %v1716, %v1712
      %v1909 = vpack.c.b16 %v1717, %v1713
      %v1910 = vpack.c.b16 %v1722, %v1718
      %v1911 = vpack.c.b16 %v1723, %v1719
      %v1912 = vpack.c.b16 %v1724, %v1720
      %v1913 = vpack.c.b16 %v1725, %v1721
      %v1914 = vpack.c.b16 %v1730, %v1726
      %v1915 = vpack.c.b16 %v1731, %v1727
      %v1916 = vpack.c.b16 %v1732, %v1728
      %v1917 = vpack.c.b16 %v1733, %v1729
      %v1918 = vpack.c.b16 %v1738, %v1734
      %v1919 = vpack.c.b16 %v1739, %v1735
      %v1920 = vpack.c.b16 %v1740, %v1736
      %v1921 = vpack.c.b16 %v1741, %v1737
      %v1922 = vpack.c.b16 %v1746, %v1742
      %v1923 = vpack.c.b16 %v1747, %v1743
      %v1924 = vpack.c.b16 %v1748, %v1744
      %v1925 = vpack.c.b16 %v1749, %v1745
      %v1926 = vpack.c.b16 %v1754, %v1750
      %v1927 = vpack.c.b16 %v1755, %v1751
      %v1928 = vpack.c.b16 %v1756, %v1752
      %v1929 = vpack.c.b16 %v1757, %v1753
      %v1930 = vpack.c.b16 %v1762, %v1758
      %v1931 = vpack.c.b16 %v1763, %v1759
      %v1932 = vpack.c.b16 %v1764, %v1760
      %v1933 = vpack.c.b16 %v1765, %v1761
      %v1934 = vpack.c.b16 %v1770, %v1766
      %v1935 = vpack.c.b16 %v1771, %v1767
      %v1936 = vpack.c.b16 %v1772, %v1768
      %v1937 = vpack.c.b16 %v1773, %v1769
      %v1938 = vpack.c.b16 %v1778, %v1774
      %v1939 = vpack.c.b16 %v1779, %v1775
      %v1940 = vpack.c.b16 %v1780, %v1776
      %v1941 = vpack.c.b16 %v1781, %v1777
      %v1942 = vpack.c.b16 %v1786, %v1782
      %v1943 = vpack.c.b16 %v1787, %v1783
      %v1944 = vpack.c.b16 %v1788, %v1784
      %v1945 = vpack.c.b16 %v1789, %v1785
      %v1946 = vpack.c.b16 %v1794, %v1790
      %v1947 = vpack.c.b16 %v1795, %v1791
      %v1948 = vpack.c.b16 %v1796, %v1792
      %v1949 = vpack.c.b16 %v1797, %v1793
      %v1950 = vpack.c.b16 %v1802, %v1798
      %v1951 = vpack.c.b16 %v1803, %v1799
      %v1952 = vpack.c.b16 %v1804, %v1800
      %v1953 = vpack.c.b16 %v1805, %v1801
      %v1954 = vpack.c.b16 %v1810, %v1806
      %v1955 = vpack.c.b16 %v1811, %v1807
      %v1956 = vpack.c.b16 %v1812, %v1808
      %v1957 = vpack.c.b16 %v1813, %v1809
      %v1958 = vpack.c.b16 %v1818, %v1814
      %v1959 = vpack.c.b16 %v1819, %v1815
      %v1960 = vpack.c.b16 %v1820, %v1816
      %v1961 = vpack.c.b16 %v1821, %v1817
      %v1962 = vpack.c.b16 %v1826, %v1822
      %v1963 = vpack.c.b16 %v1827, %v1823
      %v1964 = vpack.c.b16 %v1828, %v1824
      %v1965 = vpack.c.b16 %v1829, %v1825
      %v1966 = vpack.c.b16 %v1834, %v1830
      %v1967 = vpack.c.b16 %v1835, %v1831
      %v1968 = vpack.c.b16 %v1836, %v1832
      %v1969 = vpack.c.b16 %v1837, %v1833
      %v1970 = vpack.c.b16 %v1842, %v1838
      %v1971 = vpack.c.b16 %v1843, %v1839
      %v1972 = vpack.c.b16 %v1844, %v1840
      %v1973 = vpack.c.b16 %v1845, %v1841
      %v1974 = vpack.c.b16 %v1850, %v1846
      %v1975 = vpack.c.b16 %v1851, %v1847
      %v1976 = vpack.c.b16 %v1852, %v1848
      %v1977 = vpack.c.b16 %v1853, %v1849
      %v1978 = vpack.c.b16 %v1858, %v1854
      %v1979 = vpack.c.b16 %v1859, %v1855
      %v1980 = vpack.c.b16 %v1860, %v1856
      %v1981 = vpack.c.b16 %v1861, %v1857
      %v1982 = vpack.c.b16 %v1866, %v1862
      %v1983 = vpack.c.b16 %v1867, %v1863
      %v1984 = vpack.c.b16 %v1868, %v1864
      %v1985 = vpack.c.b16 %v1869, %v1865
      %v1986 = vpack.c.b16 %v1874, %v1870
      %v1987 = vpack.c.b16 %v1875, %v1871
      %v1988 = vpack.c.b16 %v1876, %v1872
      %v1989 = vpack.c.b16 %v1877, %v1873
      %v1990 = vpack.c.b16 %v1882, %v1878
      %v1991 = vpack.c.b16 %v1883, %v1879
      %v1992 = vpack.c.b16 %v1884, %v1880
      %v1993 = vpack.c.b16 %v1885, %v1881
      %vm2102 = vcmask 392192
      %v2104 = vsel %vm2102, %v1558, 0
      %2106 = vmatpush.bf16.msra.mxu0 %v1914
      %2107 = vmatpush.bf16.msra.mxu0 %v1910
      %2108 = vmatpush.bf16.msra.mxu0 %v1906
      %2109 = vmatpush.bf16.msra.mxu0 %v1902
      %2110 = vmatpush.bf16.msra.mxu0 %v1898
      %2111 = vmatpush.bf16.msra.mxu0 %v1894
      %2112 = vmatpush.bf16.msra.mxu0 %v1890
      %2113 = vmatpush.bf16.msra.mxu0 %v1886
      %2114 = vmatmul.bf16.gmra.mxu0 %v1555
      %v2115 = vpop.f32.mrf.mxu0
      %v2116 = vadd.f32 0.0, %v2115
      %v2117 = vpop.f32.mrf.mxu0
      %2118 = vdwg.mxu0
      %2119 = vmatpush.bf16.msra.mxu0 %v1946
      %2120 = vmatpush.bf16.msra.mxu0 %v1942
      %2121 = vmatpush.bf16.msra.mxu0 %v1938
      %2122 = vmatpush.bf16.msra.mxu0 %v1934
      %2123 = vmatpush.bf16.msra.mxu0 %v1930
      %2124 = vmatpush.bf16.msra.mxu0 %v1926
      %2125 = vmatpush.bf16.msra.mxu0 %v1922
      %2126 = vmatpush.bf16.msra.mxu0 %v1918
      %2127 = vmatmul.bf16.gmra.mxu0 %v1556
      %v2128 = vpop.f32.mrf.mxu0
      %v2129 = vadd.f32 %v2116, %v2128
      %v2130 = vpop.f32.mrf.mxu0
      %2131 = vdwg.mxu0
      %2132 = vmatpush.bf16.msra.mxu0 %v1978
      %2133 = vmatpush.bf16.msra.mxu0 %v1974
      %2134 = vmatpush.bf16.msra.mxu0 %v1970
      %2135 = vmatpush.bf16.msra.mxu0 %v1966
      %2136 = vmatpush.bf16.msra.mxu0 %v1962
      %2137 = vmatpush.bf16.msra.mxu0 %v1958
      %2138 = vmatpush.bf16.msra.mxu0 %v1954
      %2139 = vmatpush.bf16.msra.mxu0 %v1950
      %2140 = vmatmul.bf16.gmra.mxu0 %v1557
      %v2141 = vpop.f32.mrf.mxu0
      %v2142 = vadd.f32 %v2129, %v2141
      %v2143 = vpop.f32.mrf.mxu0
      %2144 = vdwg.mxu0
      %2145 = vmatpush.bf16.msra.mxu0 0
      %2146 = vmatpush.bf16.msra.mxu0 0
      %2147 = vmatpush.bf16.msra.mxu0 0
      %2148 = vmatpush.bf16.msra.mxu0 0
      %2149 = vmatpush.bf16.msra.mxu0 0
      %2150 = vmatpush.bf16.msra.mxu0 %v1990
      %2151 = vmatpush.bf16.msra.mxu0 %v1986
      %2152 = vmatpush.bf16.msra.mxu0 %v1982
      %2153 = vmatmul.bf16.gmra.mxu0 %v2104
      %v2154 = vpop.f32.mrf.mxu0
      %v2155 = vadd.f32 %v2142, %v2154
      %v2156 = vpop.f32.mrf.mxu0
      %2157 = vdwg.mxu0
      %2158 = vmatpush.bf16.msra.mxu0 %v1915
      %2159 = vmatpush.bf16.msra.mxu0 %v1911
      %2160 = vmatpush.bf16.msra.mxu0 %v1907
      %2161 = vmatpush.bf16.msra.mxu0 %v1903
      %2162 = vmatpush.bf16.msra.mxu0 %v1899
      %2163 = vmatpush.bf16.msra.mxu0 %v1895
      %2164 = vmatpush.bf16.msra.mxu0 %v1891
      %2165 = vmatpush.bf16.msra.mxu0 %v1887
      %2166 = vmatmul.bf16.gmra.mxu0 %v1555
      %v2167 = vpop.f32.mrf.mxu0
      %v2168 = vadd.f32 0.0, %v2167
      %v2169 = vpop.f32.mrf.mxu0
      %2170 = vdwg.mxu0
      %2171 = vmatpush.bf16.msra.mxu0 %v1947
      %2172 = vmatpush.bf16.msra.mxu0 %v1943
      %2173 = vmatpush.bf16.msra.mxu0 %v1939
      %2174 = vmatpush.bf16.msra.mxu0 %v1935
      %2175 = vmatpush.bf16.msra.mxu0 %v1931
      %2176 = vmatpush.bf16.msra.mxu0 %v1927
      %2177 = vmatpush.bf16.msra.mxu0 %v1923
      %2178 = vmatpush.bf16.msra.mxu0 %v1919
      %2179 = vmatmul.bf16.gmra.mxu0 %v1556
      %v2180 = vpop.f32.mrf.mxu0
      %v2181 = vadd.f32 %v2168, %v2180
      %v2182 = vpop.f32.mrf.mxu0
      %2183 = vdwg.mxu0
      %2184 = vmatpush.bf16.msra.mxu0 %v1979
      %2185 = vmatpush.bf16.msra.mxu0 %v1975
      %2186 = vmatpush.bf16.msra.mxu0 %v1971
      %2187 = vmatpush.bf16.msra.mxu0 %v1967
      %2188 = vmatpush.bf16.msra.mxu0 %v1963
      %2189 = vmatpush.bf16.msra.mxu0 %v1959
      %2190 = vmatpush.bf16.msra.mxu0 %v1955
      %2191 = vmatpush.bf16.msra.mxu0 %v1951
      %2192 = vmatmul.bf16.gmra.mxu0 %v1557
      %v2193 = vpop.f32.mrf.mxu0
      %v2194 = vadd.f32 %v2181, %v2193
      %v2195 = vpop.f32.mrf.mxu0
      %2196 = vdwg.mxu0
      %2197 = vmatpush.bf16.msra.mxu0 0
      %2198 = vmatpush.bf16.msra.mxu0 0
      %2199 = vmatpush.bf16.msra.mxu0 0
      %2200 = vmatpush.bf16.msra.mxu0 0
      %2201 = vmatpush.bf16.msra.mxu0 0
      %2202 = vmatpush.bf16.msra.mxu0 %v1991
      %2203 = vmatpush.bf16.msra.mxu0 %v1987
      %2204 = vmatpush.bf16.msra.mxu0 %v1983
      %2205 = vmatmul.bf16.gmra.mxu0 %v2104
      %v2206 = vpop.f32.mrf.mxu0
      %v2207 = vadd.f32 %v2194, %v2206
      %v2208 = vpop.f32.mrf.mxu0
      %2209 = vdwg.mxu0
      %2210 = vmatpush.bf16.msra.mxu0 %v1916
      %2211 = vmatpush.bf16.msra.mxu0 %v1912
      %2212 = vmatpush.bf16.msra.mxu0 %v1908
      %2213 = vmatpush.bf16.msra.mxu0 %v1904
      %2214 = vmatpush.bf16.msra.mxu0 %v1900
      %2215 = vmatpush.bf16.msra.mxu0 %v1896
      %2216 = vmatpush.bf16.msra.mxu0 %v1892
      %2217 = vmatpush.bf16.msra.mxu0 %v1888
      %2218 = vmatmul.bf16.gmra.mxu0 %v1555
      %v2219 = vpop.f32.mrf.mxu0
      %v2220 = vadd.f32 0.0, %v2219
      %v2221 = vpop.f32.mrf.mxu0
      %2222 = vdwg.mxu0
      %2223 = vmatpush.bf16.msra.mxu0 %v1948
      %2224 = vmatpush.bf16.msra.mxu0 %v1944
      %2225 = vmatpush.bf16.msra.mxu0 %v1940
      %2226 = vmatpush.bf16.msra.mxu0 %v1936
      %2227 = vmatpush.bf16.msra.mxu0 %v1932
      %2228 = vmatpush.bf16.msra.mxu0 %v1928
      %2229 = vmatpush.bf16.msra.mxu0 %v1924
      %2230 = vmatpush.bf16.msra.mxu0 %v1920
      %2231 = vmatmul.bf16.gmra.mxu0 %v1556
      %v2232 = vpop.f32.mrf.mxu0
      %v2233 = vadd.f32 %v2220, %v2232
      %v2234 = vpop.f32.mrf.mxu0
      %2235 = vdwg.mxu0
      %2236 = vmatpush.bf16.msra.mxu0 %v1980
      %2237 = vmatpush.bf16.msra.mxu0 %v1976
      %2238 = vmatpush.bf16.msra.mxu0 %v1972
      %2239 = vmatpush.bf16.msra.mxu0 %v1968
      %2240 = vmatpush.bf16.msra.mxu0 %v1964
      %2241 = vmatpush.bf16.msra.mxu0 %v1960
      %2242 = vmatpush.bf16.msra.mxu0 %v1956
      %2243 = vmatpush.bf16.msra.mxu0 %v1952
      %2244 = vmatmul.bf16.gmra.mxu0 %v1557
      %v2245 = vpop.f32.mrf.mxu0
      %v2246 = vadd.f32 %v2233, %v2245
      %v2247 = vpop.f32.mrf.mxu0
      %2248 = vdwg.mxu0
      %2249 = vmatpush.bf16.msra.mxu0 0
      %2250 = vmatpush.bf16.msra.mxu0 0
      %2251 = vmatpush.bf16.msra.mxu0 0
      %2252 = vmatpush.bf16.msra.mxu0 0
      %2253 = vmatpush.bf16.msra.mxu0 0
      %2254 = vmatpush.bf16.msra.mxu0 %v1992
      %2255 = vmatpush.bf16.msra.mxu0 %v1988
      %2256 = vmatpush.bf16.msra.mxu0 %v1984
      %2257 = vmatmul.bf16.gmra.mxu0 %v2104
      %v2258 = vpop.f32.mrf.mxu0
      %v2259 = vadd.f32 %v2246, %v2258
      %v2260 = vpop.f32.mrf.mxu0
      %2261 = vdwg.mxu0
      %2262 = vmatpush.bf16.msra.mxu0 %v1917
      %2263 = vmatpush.bf16.msra.mxu0 %v1913
      %2264 = vmatpush.bf16.msra.mxu0 %v1909
      %2265 = vmatpush.bf16.msra.mxu0 %v1905
      %2266 = vmatpush.bf16.msra.mxu0 %v1901
      %2267 = vmatpush.bf16.msra.mxu0 %v1897
      %2268 = vmatpush.bf16.msra.mxu0 %v1893
      %2269 = vmatpush.bf16.msra.mxu0 %v1889
      %2270 = vmatmul.bf16.gmra.mxu0 %v1555
      %v2271 = vpop.f32.mrf.mxu0
      %v2272 = vadd.f32 0.0, %v2271
      %v2273 = vpop.f32.mrf.mxu0
      %2274 = vdwg.mxu0
      %2275 = vmatpush.bf16.msra.mxu0 %v1949
      %2276 = vmatpush.bf16.msra.mxu0 %v1945
      %2277 = vmatpush.bf16.msra.mxu0 %v1941
      %2278 = vmatpush.bf16.msra.mxu0 %v1937
      %2279 = vmatpush.bf16.msra.mxu0 %v1933
      %2280 = vmatpush.bf16.msra.mxu0 %v1929
      %2281 = vmatpush.bf16.msra.mxu0 %v1925
      %2282 = vmatpush.bf16.msra.mxu0 %v1921
      %2283 = vmatmul.bf16.gmra.mxu0 %v1556
      %v2284 = vpop.f32.mrf.mxu0
      %v2285 = vadd.f32 %v2272, %v2284
      %v2286 = vpop.f32.mrf.mxu0
      %2287 = vdwg.mxu0
      %2288 = vmatpush.bf16.msra.mxu0 %v1981
      %2289 = vmatpush.bf16.msra.mxu0 %v1977
      %2290 = vmatpush.bf16.msra.mxu0 %v1973
      %2291 = vmatpush.bf16.msra.mxu0 %v1969
      %2292 = vmatpush.bf16.msra.mxu0 %v1965
      %2293 = vmatpush.bf16.msra.mxu0 %v1961
      %2294 = vmatpush.bf16.msra.mxu0 %v1957
      %2295 = vmatpush.bf16.msra.mxu0 %v1953
      %2296 = vmatmul.bf16.gmra.mxu0 %v1557
      %v2297 = vpop.f32.mrf.mxu0
      %v2298 = vadd.f32 %v2285, %v2297
      %v2299 = vpop.f32.mrf.mxu0
      %2300 = vdwg.mxu0
      %2301 = vmatpush.bf16.msra.mxu0 0
      %2302 = vmatpush.bf16.msra.mxu0 0
      %2303 = vmatpush.bf16.msra.mxu0 0
      %2304 = vmatpush.bf16.msra.mxu0 0
      %2305 = vmatpush.bf16.msra.mxu0 0
      %2306 = vmatpush.bf16.msra.mxu0 %v1993
      %2307 = vmatpush.bf16.msra.mxu0 %v1989
      %2308 = vmatpush.bf16.msra.mxu0 %v1985
      %2309 = vmatmul.bf16.gmra.mxu0 %v2104
      %v2310 = vpop.f32.mrf.mxu0
      %v2311 = vadd.f32 %v2298, %v2310
      %v2312 = vpop.f32.mrf.mxu0
      %2313 = vdwg.mxu0
      %v2314 = vld [vmem:[%s2] sm:$0xf]
      %v2316 = vperm.slane %v2314, 0
      %v2317 = vperm.slane %v2314, 1
      %v2318 = vperm.slane %v2314, 2
      %v2319 = vperm.slane %v2314, 3
      %v2324 = vmul.f32 %v2155, %v2316
      %v2325 = vmul.f32 %v2207, %v2317
      %v2326 = vmul.f32 %v2259, %v2318
      %v2327 = vmul.f32 %v2311, %v2319
      %v2328 = vadd.f32 %v2324, %v2325
      %v2329 = vadd.f32 %v2328, %v2326
      %v2330 = vadd.f32 %v2329, %v2327
      %2331 = vadd.xlane.f32.xlu0 %v2330
      %v2332 = vpop.xlane.xlu0 %2331
      %v2333 = vadd.f32 %v2332, 0.0
      %v2334 = vmul.f32 %v2324, %v2155
      %v2335 = vmul.f32 %v2325, %v2207
      %v2336 = vmul.f32 %v2326, %v2259
      %v2337 = vmul.f32 %v2327, %v2311
      %v2338 = vadd.f32 %v2334, %v2335
      %v2339 = vadd.f32 %v2338, %v2336
      %v2340 = vadd.f32 %v2339, %v2337
      %2341 = vadd.xlane.f32.xlu0 %v2340
      %v2342 = vpop.xlane.xlu0 %2341
      %v2343 = vadd.f32 %v2342, 0.0
      %v2344 = vld [vmem:[%s198 + $0x10] sm:$0xff]
      %v2345 = vld [vmem:[%s198 + $0x18] sm:$0xff]
      %v2346 = vld [vmem:[%s198 + $0x3c] sm:$0xff]
      %v2347 = vld [vmem:[%s198 + $0x44] sm:$0xff]
      %2348 = vst [vmem:[#allocation2] sm:$0xff] %v2344
      %2349 = vst [vmem:[#allocation2 + $0x8] sm:$0xff] %v2345
      %2350 = vst [vmem:[#allocation2 + $0x10] sm:$0xff] %v2346
      %2351 = vst [vmem:[#allocation2 + $0x18] sm:$0xff] %v2347
      %v2352 = vld [vmem:[%s198 + $0x10] sm:$0xff]
      %v2353 = vld [vmem:[%s198 + $0x18] sm:$0xff]
      %v2354 = vld [vmem:[%s198 + $0x20] sm:$0xf]
      %v2355 = vld [vmem:[%s198 + $0x3c] sm:$0xff]
      %v2356 = vld [vmem:[%s198 + $0x44] sm:$0xff]
      %v2357 = vld [vmem:[%s198 + $0x4c] sm:$0xf]
      %2364 = vrot.lane.b32.xlu0 %v2352, 127
      %v2365 = vpop.permute.xlu0 %2364
      %2366 = vrot.lane.b32.xlu0 %v2353, 127
      %v2367 = vpop.permute.xlu0 %2366
      %2368 = vrot.lane.b32.xlu0 %v2354, 127
      %v2369 = vpop.permute.xlu0 %2368
      %2370 = vrot.lane.b32.xlu0 %v2355, 127
      %v2371 = vpop.permute.xlu0 %2370
      %2372 = vrot.lane.b32.xlu0 %v2356, 127
      %v2373 = vpop.permute.xlu0 %2372
      %2374 = vrot.lane.b32.xlu0 %v2357, 127
      %v2375 = vpop.permute.xlu0 %2374
      %v2376 = vrot.slane %v2365, 4
      %v2377 = vrot.slane %v2367, 4
      %v2378 = vrot.slane %v2369, 4
      %v2379 = vrot.slane %v2371, 4
      %v2380 = vrot.slane %v2373, 4
      %v2381 = vrot.slane %v2375, 4
      %v2382 = vsel %vm248, %v2376, %v2377
      %v2383 = vsel %vm250, %v2365, %v2382
      %v2384 = vsel %vm248, %v2377, %v2378
      %v2385 = vsel %vm250, %v2367, %v2384
      %v2386 = vsel %vm248, %v2379, %v2380
      %v2387 = vsel %vm250, %v2371, %v2386
      %v2388 = vsel %vm248, %v2380, %v2381
      %v2389 = vsel %vm250, %v2373, %v2388
      %2394 = vst [vmem:[#allocation2 + $0x20] sm:$0xff] %v2383
      %2395 = vst [vmem:[#allocation2 + $0x28] sm:$0xff] %v2385
      %2396 = vst [vmem:[#allocation2 + $0x30] sm:$0xff] %v2387
      %2397 = vst [vmem:[#allocation2 + $0x38] sm:$0xff] %v2389
      %v2398 = vld [vmem:[%s198 + $0x10] sm:$0xff]
      %v2399 = vld [vmem:[%s198 + $0x18] sm:$0xff]
      %v2400 = vld [vmem:[%s198 + $0x20] sm:$0xf]
      %v2401 = vld [vmem:[%s198 + $0x3c] sm:$0xff]
      %v2402 = vld [vmem:[%s198 + $0x44] sm:$0xff]
      %v2403 = vld [vmem:[%s198 + $0x4c] sm:$0xf]
      %2410 = vrot.lane.b32.xlu0 %v2398, 126
      %v2411 = vpop.permute.xlu0 %2410
      %2412 = vrot.lane.b32.xlu0 %v2399, 126
      %v2413 = vpop.permute.xlu0 %2412
      %2414 = vrot.lane.b32.xlu0 %v2400, 126
      %v2415 = vpop.permute.xlu0 %2414
      %2416 = vrot.lane.b32.xlu0 %v2401, 126
      %v2417 = vpop.permute.xlu0 %2416
      %2418 = vrot.lane.b32.xlu0 %v2402, 126
      %v2419 = vpop.permute.xlu0 %2418
      %2420 = vrot.lane.b32.xlu0 %v2403, 126
      %v2421 = vpop.permute.xlu0 %2420
      %v2422 = vrot.slane %v2411, 4
      %v2423 = vrot.slane %v2413, 4
      %v2424 = vrot.slane %v2415, 4
      %v2425 = vrot.slane %v2417, 4
      %v2426 = vrot.slane %v2419, 4
      %v2427 = vrot.slane %v2421, 4
      %v2428 = vsel %vm248, %v2422, %v2423
      %v2429 = vsel %vm297, %v2411, %v2428
      %v2430 = vsel %vm248, %v2423, %v2424
      %v2431 = vsel %vm297, %v2413, %v2430
      %v2432 = vsel %vm248, %v2425, %v2426
      %v2433 = vsel %vm297, %v2417, %v2432
      %v2434 = vsel %vm248, %v2426, %v2427
      %v2435 = vsel %vm297, %v2419, %v2434
      %2440 = vst [vmem:[#allocation2 + $0x40] sm:$0xff] %v2429
      %2441 = vst [vmem:[#allocation2 + $0x48] sm:$0xff] %v2431
      %2442 = vst [vmem:[#allocation2 + $0x50] sm:$0xff] %v2433
      %2443 = vst [vmem:[#allocation2 + $0x58] sm:$0xff] %v2435
      %v2444 = vld [vmem:[%s198 + $0x10] sm:$0xff]
      %v2445 = vld [vmem:[%s198 + $0x18] sm:$0xff]
      %v2446 = vld [vmem:[%s198 + $0x20] sm:$0xf]
      %v2447 = vld [vmem:[%s198 + $0x3c] sm:$0xff]
      %v2448 = vld [vmem:[%s198 + $0x44] sm:$0xff]
      %v2449 = vld [vmem:[%s198 + $0x4c] sm:$0xf]
      %2456 = vrot.lane.b32.xlu0 %v2444, 118
      %v2457 = vpop.permute.xlu0 %2456
      %2458 = vrot.lane.b32.xlu0 %v2445, 118
      %v2459 = vpop.permute.xlu0 %2458
      %2460 = vrot.lane.b32.xlu0 %v2446, 118
      %v2461 = vpop.permute.xlu0 %2460
      %2462 = vrot.lane.b32.xlu0 %v2447, 118
      %v2463 = vpop.permute.xlu0 %2462
      %2464 = vrot.lane.b32.xlu0 %v2448, 118
      %v2465 = vpop.permute.xlu0 %2464
      %2466 = vrot.lane.b32.xlu0 %v2449, 118
      %v2467 = vpop.permute.xlu0 %2466
      %v2468 = vrot.slane %v2457, 4
      %v2469 = vrot.slane %v2459, 4
      %v2470 = vrot.slane %v2461, 4
      %v2471 = vrot.slane %v2463, 4
      %v2472 = vrot.slane %v2465, 4
      %v2473 = vrot.slane %v2467, 4
      %v2474 = vsel %vm248, %v2468, %v2469
      %v2475 = vsel %vm344, %v2457, %v2474
      %v2476 = vsel %vm248, %v2469, %v2470
      %v2477 = vsel %vm344, %v2459, %v2476
      %v2478 = vsel %vm248, %v2471, %v2472
      %v2479 = vsel %vm344, %v2463, %v2478
      %v2480 = vsel %vm248, %v2472, %v2473
      %v2481 = vsel %vm344, %v2465, %v2480
      %2486 = vst [vmem:[#allocation2 + $0x60] sm:$0xff] %v2475
      %2487 = vst [vmem:[#allocation2 + $0x68] sm:$0xff] %v2477
      %2488 = vst [vmem:[#allocation2 + $0x70] sm:$0xff] %v2479
      %2489 = vst [vmem:[#allocation2 + $0x78] sm:$0xff] %v2481
      %v2490 = vld [vmem:[%s198 + $0x10] sm:$0xff]
      %v2491 = vld [vmem:[%s198 + $0x18] sm:$0xff]
      %v2492 = vld [vmem:[%s198 + $0x20] sm:$0xf]
      %v2493 = vld [vmem:[%s198 + $0x3c] sm:$0xff]
      %v2494 = vld [vmem:[%s198 + $0x44] sm:$0xff]
      %v2495 = vld [vmem:[%s198 + $0x4c] sm:$0xf]
      %2502 = vrot.lane.b32.xlu0 %v2490, 117
      %v2503 = vpop.permute.xlu0 %2502
      %2504 = vrot.lane.b32.xlu0 %v2491, 117
      %v2505 = vpop.permute.xlu0 %2504
      %2506 = vrot.lane.b32.xlu0 %v2492, 117
      %v2507 = vpop.permute.xlu0 %2506
      %2508 = vrot.lane.b32.xlu0 %v2493, 117
      %v2509 = vpop.permute.xlu0 %2508
      %2510 = vrot.lane.b32.xlu0 %v2494, 117
      %v2511 = vpop.permute.xlu0 %2510
      %2512 = vrot.lane.b32.xlu0 %v2495, 117
      %v2513 = vpop.permute.xlu0 %2512
      %v2514 = vrot.slane %v2503, 4
      %v2515 = vrot.slane %v2505, 4
      %v2516 = vrot.slane %v2507, 4
      %v2517 = vrot.slane %v2509, 4
      %v2518 = vrot.slane %v2511, 4
      %v2519 = vrot.slane %v2513, 4
      %v2520 = vsel %vm248, %v2514, %v2515
      %v2521 = vsel %vm391, %v2503, %v2520
      %v2522 = vsel %vm248, %v2515, %v2516
      %v2523 = vsel %vm391, %v2505, %v2522
      %v2524 = vsel %vm248, %v2517, %v2518
      %v2525 = vsel %vm391, %v2509, %v2524
      %v2526 = vsel %vm248, %v2518, %v2519
      %v2527 = vsel %vm391, %v2511, %v2526
      %2532 = vst [vmem:[#allocation2 + $0x80] sm:$0xff] %v2521
      %2533 = vst [vmem:[#allocation2 + $0x88] sm:$0xff] %v2523
      %2534 = vst [vmem:[#allocation2 + $0x90] sm:$0xff] %v2525
      %2535 = vst [vmem:[#allocation2 + $0x98] sm:$0xff] %v2527
      %v2536 = vld [vmem:[%s198 + $0x10] sm:$0xff]
      %v2537 = vld [vmem:[%s198 + $0x18] sm:$0xff]
      %v2538 = vld [vmem:[%s198 + $0x20] sm:$0xf]
      %v2539 = vld [vmem:[%s198 + $0x3c] sm:$0xff]
      %v2540 = vld [vmem:[%s198 + $0x44] sm:$0xff]
      %v2541 = vld [vmem:[%s198 + $0x4c] sm:$0xf]
      %2548 = vrot.lane.b32.xlu0 %v2536, 116
      %v2549 = vpop.permute.xlu0 %2548
      %2550 = vrot.lane.b32.xlu0 %v2537, 116
      %v2551 = vpop.permute.xlu0 %2550
      %2552 = vrot.lane.b32.xlu0 %v2538, 116
      %v2553 = vpop.permute.xlu0 %2552
      %2554 = vrot.lane.b32.xlu0 %v2539, 116
      %v2555 = vpop.permute.xlu0 %2554
      %2556 = vrot.lane.b32.xlu0 %v2540, 116
      %v2557 = vpop.permute.xlu0 %2556
      %2558 = vrot.lane.b32.xlu0 %v2541, 116
      %v2559 = vpop.permute.xlu0 %2558
      %v2560 = vrot.slane %v2549, 4
      %v2561 = vrot.slane %v2551, 4
      %v2562 = vrot.slane %v2553, 4
      %v2563 = vrot.slane %v2555, 4
      %v2564 = vrot.slane %v2557, 4
      %v2565 = vrot.slane %v2559, 4
      %v2566 = vsel %vm248, %v2560, %v2561
      %v2567 = vsel %vm438, %v2549, %v2566
      %v2568 = vsel %vm248, %v2561, %v2562
      %v2569 = vsel %vm438, %v2551, %v2568
      %v2570 = vsel %vm248, %v2563, %v2564
      %v2571 = vsel %vm438, %v2555, %v2570
      %v2572 = vsel %vm248, %v2564, %v2565
      %v2573 = vsel %vm438, %v2557, %v2572
      %2578 = vst [vmem:[#allocation2 + $0xa0] sm:$0xff] %v2567
      %2579 = vst [vmem:[#allocation2 + $0xa8] sm:$0xff] %v2569
      %2580 = vst [vmem:[#allocation2 + $0xb0] sm:$0xff] %v2571
      %2581 = vst [vmem:[#allocation2 + $0xb8] sm:$0xff] %v2573
      %v2582 = vld [vmem:[%s198 + $0x10] sm:$0xff]
      %v2583 = vld [vmem:[%s198 + $0x18] sm:$0xff]
      %v2584 = vld [vmem:[%s198 + $0x20] sm:$0xf]
      %v2585 = vld [vmem:[%s198 + $0x3c] sm:$0xff]
      %v2586 = vld [vmem:[%s198 + $0x44] sm:$0xff]
      %v2587 = vld [vmem:[%s198 + $0x4c] sm:$0xf]
      %2594 = vrot.lane.b32.xlu0 %v2582, 108
      %v2595 = vpop.permute.xlu0 %2594
      %2596 = vrot.lane.b32.xlu0 %v2583, 108
      %v2597 = vpop.permute.xlu0 %2596
      %2598 = vrot.lane.b32.xlu0 %v2584, 108
      %v2599 = vpop.permute.xlu0 %2598
      %2600 = vrot.lane.b32.xlu0 %v2585, 108
      %v2601 = vpop.permute.xlu0 %2600
      %2602 = vrot.lane.b32.xlu0 %v2586, 108
      %v2603 = vpop.permute.xlu0 %2602
      %2604 = vrot.lane.b32.xlu0 %v2587, 108
      %v2605 = vpop.permute.xlu0 %2604
      %v2606 = vrot.slane %v2595, 4
      %v2607 = vrot.slane %v2597, 4
      %v2608 = vrot.slane %v2599, 4
      %v2609 = vrot.slane %v2601, 4
      %v2610 = vrot.slane %v2603, 4
      %v2611 = vrot.slane %v2605, 4
      %v2612 = vsel %vm248, %v2606, %v2607
      %v2613 = vsel %vm485, %v2595, %v2612
      %v2614 = vsel %vm248, %v2607, %v2608
      %v2615 = vsel %vm485, %v2597, %v2614
      %v2616 = vsel %vm248, %v2609, %v2610
      %v2617 = vsel %vm485, %v2601, %v2616
      %v2618 = vsel %vm248, %v2610, %v2611
      %v2619 = vsel %vm485, %v2603, %v2618
      %2624 = vst [vmem:[#allocation2 + $0xc0] sm:$0xff] %v2613
      %2625 = vst [vmem:[#allocation2 + $0xc8] sm:$0xff] %v2615
      %2626 = vst [vmem:[#allocation2 + $0xd0] sm:$0xff] %v2617
      %2627 = vst [vmem:[#allocation2 + $0xd8] sm:$0xff] %v2619
      %v2628 = vld [vmem:[%s198 + $0x10] sm:$0xff]
      %v2629 = vld [vmem:[%s198 + $0x18] sm:$0xff]
      %v2630 = vld [vmem:[%s198 + $0x20] sm:$0xf]
      %v2631 = vld [vmem:[%s198 + $0x3c] sm:$0xff]
      %v2632 = vld [vmem:[%s198 + $0x44] sm:$0xff]
      %v2633 = vld [vmem:[%s198 + $0x4c] sm:$0xf]
      %2640 = vrot.lane.b32.xlu0 %v2628, 107
      %v2641 = vpop.permute.xlu0 %2640
      %2642 = vrot.lane.b32.xlu0 %v2629, 107
      %v2643 = vpop.permute.xlu0 %2642
      %2644 = vrot.lane.b32.xlu0 %v2630, 107
      %v2645 = vpop.permute.xlu0 %2644
      %2646 = vrot.lane.b32.xlu0 %v2631, 107
      %v2647 = vpop.permute.xlu0 %2646
      %2648 = vrot.lane.b32.xlu0 %v2632, 107
      %v2649 = vpop.permute.xlu0 %2648
      %2650 = vrot.lane.b32.xlu0 %v2633, 107
      %v2651 = vpop.permute.xlu0 %2650
      %v2652 = vrot.slane %v2641, 4
      %v2653 = vrot.slane %v2643, 4
      %v2654 = vrot.slane %v2645, 4
      %v2655 = vrot.slane %v2647, 4
      %v2656 = vrot.slane %v2649, 4
      %v2657 = vrot.slane %v2651, 4
      %v2658 = vsel %vm248, %v2652, %v2653
      %v2659 = vsel %vm532, %v2641, %v2658
      %v2660 = vsel %vm248, %v2653, %v2654
      %v2661 = vsel %vm532, %v2643, %v2660
      %v2662 = vsel %vm248, %v2655, %v2656
      %v2663 = vsel %vm532, %v2647, %v2662
      %v2664 = vsel %vm248, %v2656, %v2657
      %v2665 = vsel %vm532, %v2649, %v2664
      %2670 = vst [vmem:[#allocation2 + $0xe0] sm:$0xff] %v2659
      %2671 = vst [vmem:[#allocation2 + $0xe8] sm:$0xff] %v2661
      %2672 = vst [vmem:[#allocation2 + $0xf0] sm:$0xff] %v2663
      %2673 = vst [vmem:[#allocation2 + $0xf8] sm:$0xff] %v2665
      %v2674 = vld [vmem:[%s198 + $0x10] sm:$0xff]
      %v2675 = vld [vmem:[%s198 + $0x18] sm:$0xff]
      %v2676 = vld [vmem:[%s198 + $0x20] sm:$0xf]
      %v2677 = vld [vmem:[%s198 + $0x3c] sm:$0xff]
      %v2678 = vld [vmem:[%s198 + $0x44] sm:$0xff]
      %v2679 = vld [vmem:[%s198 + $0x4c] sm:$0xf]
      %2686 = vrot.lane.b32.xlu0 %v2674, 106
      %v2687 = vpop.permute.xlu0 %2686
      %2688 = vrot.lane.b32.xlu0 %v2675, 106
      %v2689 = vpop.permute.xlu0 %2688
      %2690 = vrot.lane.b32.xlu0 %v2676, 106
      %v2691 = vpop.permute.xlu0 %2690
      %2692 = vrot.lane.b32.xlu0 %v2677, 106
      %v2693 = vpop.permute.xlu0 %2692
      %2694 = vrot.lane.b32.xlu0 %v2678, 106
      %v2695 = vpop.permute.xlu0 %2694
      %2696 = vrot.lane.b32.xlu0 %v2679, 106
      %v2697 = vpop.permute.xlu0 %2696
      %v2698 = vrot.slane %v2687, 4
      %v2699 = vrot.slane %v2689, 4
      %v2700 = vrot.slane %v2691, 4
      %v2701 = vrot.slane %v2693, 4
      %v2702 = vrot.slane %v2695, 4
      %v2703 = vrot.slane %v2697, 4
      %v2704 = vsel %vm248, %v2698, %v2699
      %v2705 = vsel %vm579, %v2687, %v2704
      %v2706 = vsel %vm248, %v2699, %v2700
      %v2707 = vsel %vm579, %v2689, %v2706
      %v2708 = vsel %vm248, %v2701, %v2702
      %v2709 = vsel %vm579, %v2693, %v2708
      %v2710 = vsel %vm248, %v2702, %v2703
      %v2711 = vsel %vm579, %v2695, %v2710
      %2716 = vst [vmem:[#allocation2 + $0x100] sm:$0xff] %v2705
      %2717 = vst [vmem:[#allocation2 + $0x108] sm:$0xff] %v2707
      %2718 = vst [vmem:[#allocation2 + $0x110] sm:$0xff] %v2709
      %2719 = vst [vmem:[#allocation2 + $0x118] sm:$0xff] %v2711
      %v2720 = vld [vmem:[%s198 + $0x10] sm:$0xff]
      %v2721 = vld [vmem:[%s198 + $0x18] sm:$0xff]
      %v2722 = vld [vmem:[%s198 + $0x20] sm:$0xf]
      %v2723 = vld [vmem:[%s198 + $0x3c] sm:$0xff]
      %v2724 = vld [vmem:[%s198 + $0x44] sm:$0xff]
      %v2725 = vld [vmem:[%s198 + $0x4c] sm:$0xf]
      %2732 = vrot.lane.b32.xlu0 %v2720, 28
      %v2733 = vpop.permute.xlu0 %2732
      %2734 = vrot.lane.b32.xlu0 %v2721, 28
      %v2735 = vpop.permute.xlu0 %2734
      %2736 = vrot.lane.b32.xlu0 %v2722, 28
      %v2737 = vpop.permute.xlu0 %2736
      %2738 = vrot.lane.b32.xlu0 %v2723, 28
      %v2739 = vpop.permute.xlu0 %2738
      %2740 = vrot.lane.b32.xlu0 %v2724, 28
      %v2741 = vpop.permute.xlu0 %2740
      %2742 = vrot.lane.b32.xlu0 %v2725, 28
      %v2743 = vpop.permute.xlu0 %2742
      %v2744 = vrot.slane %v2733, 4
      %v2745 = vrot.slane %v2735, 4
      %v2746 = vrot.slane %v2737, 4
      %v2747 = vrot.slane %v2739, 4
      %v2748 = vrot.slane %v2741, 4
      %v2749 = vrot.slane %v2743, 4
      %v2750 = vsel %vm248, %v2744, %v2745
      %v2751 = vsel %vm626, %v2733, %v2750
      %v2752 = vsel %vm248, %v2745, %v2746
      %v2753 = vsel %vm626, %v2735, %v2752
      %v2754 = vsel %vm248, %v2747, %v2748
      %v2755 = vsel %vm626, %v2739, %v2754
      %v2756 = vsel %vm248, %v2748, %v2749
      %v2757 = vsel %vm626, %v2741, %v2756
      %2762 = vst [vmem:[#allocation2 + $0x120] sm:$0xff] %v2751
      %2763 = vst [vmem:[#allocation2 + $0x128] sm:$0xff] %v2753
      %2764 = vst [vmem:[#allocation2 + $0x130] sm:$0xff] %v2755
      %2765 = vst [vmem:[#allocation2 + $0x138] sm:$0xff] %v2757
      %v2766 = vld [vmem:[%s198 + $0x10] sm:$0xff]
      %v2767 = vld [vmem:[%s198 + $0x18] sm:$0xff]
      %v2768 = vld [vmem:[%s198 + $0x20] sm:$0xf]
      %v2769 = vld [vmem:[%s198 + $0x3c] sm:$0xff]
      %v2770 = vld [vmem:[%s198 + $0x44] sm:$0xff]
      %v2771 = vld [vmem:[%s198 + $0x4c] sm:$0xf]
      %2778 = vrot.lane.b32.xlu0 %v2766, 27
      %v2779 = vpop.permute.xlu0 %2778
      %2780 = vrot.lane.b32.xlu0 %v2767, 27
      %v2781 = vpop.permute.xlu0 %2780
      %2782 = vrot.lane.b32.xlu0 %v2768, 27
      %v2783 = vpop.permute.xlu0 %2782
      %2784 = vrot.lane.b32.xlu0 %v2769, 27
      %v2785 = vpop.permute.xlu0 %2784
      %2786 = vrot.lane.b32.xlu0 %v2770, 27
      %v2787 = vpop.permute.xlu0 %2786
      %2788 = vrot.lane.b32.xlu0 %v2771, 27
      %v2789 = vpop.permute.xlu0 %2788
      %v2790 = vrot.slane %v2779, 4
      %v2791 = vrot.slane %v2781, 4
      %v2792 = vrot.slane %v2783, 4
      %v2793 = vrot.slane %v2785, 4
      %v2794 = vrot.slane %v2787, 4
      %v2795 = vrot.slane %v2789, 4
      %v2796 = vsel %vm248, %v2790, %v2791
      %v2797 = vsel %vm673, %v2779, %v2796
      %v2798 = vsel %vm248, %v2791, %v2792
      %v2799 = vsel %vm673, %v2781, %v2798
      %v2800 = vsel %vm248, %v2793, %v2794
      %v2801 = vsel %vm673, %v2785, %v2800
      %v2802 = vsel %vm248, %v2794, %v2795
      %v2803 = vsel %vm673, %v2787, %v2802
      %2808 = vst [vmem:[#allocation2 + $0x140] sm:$0xff] %v2797
      %2809 = vst [vmem:[#allocation2 + $0x148] sm:$0xff] %v2799
      %2810 = vst [vmem:[#allocation2 + $0x150] sm:$0xff] %v2801
      %2811 = vst [vmem:[#allocation2 + $0x158] sm:$0xff] %v2803
      %v2812 = vld [vmem:[%s198 + $0x10] sm:$0xff]
      %v2813 = vld [vmem:[%s198 + $0x18] sm:$0xff]
      %v2814 = vld [vmem:[%s198 + $0x20] sm:$0xf]
      %v2815 = vld [vmem:[%s198 + $0x3c] sm:$0xff]
      %v2816 = vld [vmem:[%s198 + $0x44] sm:$0xff]
      %v2817 = vld [vmem:[%s198 + $0x4c] sm:$0xf]
      %2824 = vrot.lane.b32.xlu0 %v2812, 26
      %v2825 = vpop.permute.xlu0 %2824
      %2826 = vrot.lane.b32.xlu0 %v2813, 26
      %v2827 = vpop.permute.xlu0 %2826
      %2828 = vrot.lane.b32.xlu0 %v2814, 26
      %v2829 = vpop.permute.xlu0 %2828
      %2830 = vrot.lane.b32.xlu0 %v2815, 26
      %v2831 = vpop.permute.xlu0 %2830
      %2832 = vrot.lane.b32.xlu0 %v2816, 26
      %v2833 = vpop.permute.xlu0 %2832
      %2834 = vrot.lane.b32.xlu0 %v2817, 26
      %v2835 = vpop.permute.xlu0 %2834
      %v2836 = vrot.slane %v2825, 4
      %v2837 = vrot.slane %v2827, 4
      %v2838 = vrot.slane %v2829, 4
      %v2839 = vrot.slane %v2831, 4
      %v2840 = vrot.slane %v2833, 4
      %v2841 = vrot.slane %v2835, 4
      %v2842 = vsel %vm248, %v2836, %v2837
      %v2843 = vsel %vm720, %v2825, %v2842
      %v2844 = vsel %vm248, %v2837, %v2838
      %v2845 = vsel %vm720, %v2827, %v2844
      %v2846 = vsel %vm248, %v2839, %v2840
      %v2847 = vsel %vm720, %v2831, %v2846
      %v2848 = vsel %vm248, %v2840, %v2841
      %v2849 = vsel %vm720, %v2833, %v2848
      %2854 = vst [vmem:[#allocation2 + $0x160] sm:$0xff] %v2843
      %2855 = vst [vmem:[#allocation2 + $0x168] sm:$0xff] %v2845
      %2856 = vst [vmem:[#allocation2 + $0x170] sm:$0xff] %v2847
      %2857 = vst [vmem:[#allocation2 + $0x178] sm:$0xff] %v2849
      %v2858 = vld [vmem:[%s198 + $0x10] sm:$0xff]
      %v2859 = vld [vmem:[%s198 + $0x18] sm:$0xff]
      %v2860 = vld [vmem:[%s198 + $0x20] sm:$0xf]
      %v2861 = vld [vmem:[%s198 + $0x3c] sm:$0xff]
      %v2862 = vld [vmem:[%s198 + $0x44] sm:$0xff]
      %v2863 = vld [vmem:[%s198 + $0x4c] sm:$0xf]
      %2870 = vrot.lane.b32.xlu0 %v2858, 18
      %v2871 = vpop.permute.xlu0 %2870
      %2872 = vrot.lane.b32.xlu0 %v2859, 18
      %v2873 = vpop.permute.xlu0 %2872
      %2874 = vrot.lane.b32.xlu0 %v2860, 18
      %v2875 = vpop.permute.xlu0 %2874
      %2876 = vrot.lane.b32.xlu0 %v2861, 18
      %v2877 = vpop.permute.xlu0 %2876
      %2878 = vrot.lane.b32.xlu0 %v2862, 18
      %v2879 = vpop.permute.xlu0 %2878
      %2880 = vrot.lane.b32.xlu0 %v2863, 18
      %v2881 = vpop.permute.xlu0 %2880
      %v2882 = vrot.slane %v2871, 4
      %v2883 = vrot.slane %v2873, 4
      %v2884 = vrot.slane %v2875, 4
      %v2885 = vrot.slane %v2877, 4
      %v2886 = vrot.slane %v2879, 4
      %v2887 = vrot.slane %v2881, 4
      %v2888 = vsel %vm248, %v2882, %v2883
      %v2889 = vsel %vm767, %v2871, %v2888
      %v2890 = vsel %vm248, %v2883, %v2884
      %v2891 = vsel %vm767, %v2873, %v2890
      %v2892 = vsel %vm248, %v2885, %v2886
      %v2893 = vsel %vm767, %v2877, %v2892
      %v2894 = vsel %vm248, %v2886, %v2887
      %v2895 = vsel %vm767, %v2879, %v2894
      %2900 = vst [vmem:[#allocation2 + $0x180] sm:$0xff] %v2889
      %2901 = vst [vmem:[#allocation2 + $0x188] sm:$0xff] %v2891
      %2902 = vst [vmem:[#allocation2 + $0x190] sm:$0xff] %v2893
      %2903 = vst [vmem:[#allocation2 + $0x198] sm:$0xff] %v2895
      %v2904 = vld [vmem:[%s198 + $0x10] sm:$0xff]
      %v2905 = vld [vmem:[%s198 + $0x18] sm:$0xff]
      %v2906 = vld [vmem:[%s198 + $0x20] sm:$0xf]
      %v2907 = vld [vmem:[%s198 + $0x3c] sm:$0xff]
      %v2908 = vld [vmem:[%s198 + $0x44] sm:$0xff]
      %v2909 = vld [vmem:[%s198 + $0x4c] sm:$0xf]
      %2916 = vrot.lane.b32.xlu0 %v2904, 17
      %v2917 = vpop.permute.xlu0 %2916
      %2918 = vrot.lane.b32.xlu0 %v2905, 17
      %v2919 = vpop.permute.xlu0 %2918
      %2920 = vrot.lane.b32.xlu0 %v2906, 17
      %v2921 = vpop.permute.xlu0 %2920
      %2922 = vrot.lane.b32.xlu0 %v2907, 17
      %v2923 = vpop.permute.xlu0 %2922
      %2924 = vrot.lane.b32.xlu0 %v2908, 17
      %v2925 = vpop.permute.xlu0 %2924
      %2926 = vrot.lane.b32.xlu0 %v2909, 17
      %v2927 = vpop.permute.xlu0 %2926
      %v2928 = vrot.slane %v2917, 4
      %v2929 = vrot.slane %v2919, 4
      %v2930 = vrot.slane %v2921, 4
      %v2931 = vrot.slane %v2923, 4
      %v2932 = vrot.slane %v2925, 4
      %v2933 = vrot.slane %v2927, 4
      %v2934 = vsel %vm248, %v2928, %v2929
      %v2935 = vsel %vm814, %v2917, %v2934
      %v2936 = vsel %vm248, %v2929, %v2930
      %v2937 = vsel %vm814, %v2919, %v2936
      %v2938 = vsel %vm248, %v2931, %v2932
      %v2939 = vsel %vm814, %v2923, %v2938
      %v2940 = vsel %vm248, %v2932, %v2933
      %v2941 = vsel %vm814, %v2925, %v2940
      %2946 = vst [vmem:[#allocation2 + $0x1a0] sm:$0xff] %v2935
      %2947 = vst [vmem:[#allocation2 + $0x1a8] sm:$0xff] %v2937
      %2948 = vst [vmem:[#allocation2 + $0x1b0] sm:$0xff] %v2939
      %2949 = vst [vmem:[#allocation2 + $0x1b8] sm:$0xff] %v2941
      %v2950 = vld [vmem:[%s198 + $0x10] sm:$0xff]
      %v2951 = vld [vmem:[%s198 + $0x18] sm:$0xff]
      %v2952 = vld [vmem:[%s198 + $0x20] sm:$0xf]
      %v2953 = vld [vmem:[%s198 + $0x3c] sm:$0xff]
      %v2954 = vld [vmem:[%s198 + $0x44] sm:$0xff]
      %v2955 = vld [vmem:[%s198 + $0x4c] sm:$0xf]
      %2962 = vrot.lane.b32.xlu0 %v2950, 16
      %v2963 = vpop.permute.xlu0 %2962
      %2964 = vrot.lane.b32.xlu0 %v2951, 16
      %v2965 = vpop.permute.xlu0 %2964
      %2966 = vrot.lane.b32.xlu0 %v2952, 16
      %v2967 = vpop.permute.xlu0 %2966
      %2968 = vrot.lane.b32.xlu0 %v2953, 16
      %v2969 = vpop.permute.xlu0 %2968
      %2970 = vrot.lane.b32.xlu0 %v2954, 16
      %v2971 = vpop.permute.xlu0 %2970
      %2972 = vrot.lane.b32.xlu0 %v2955, 16
      %v2973 = vpop.permute.xlu0 %2972
      %v2974 = vrot.slane %v2963, 4
      %v2975 = vrot.slane %v2965, 4
      %v2976 = vrot.slane %v2967, 4
      %v2977 = vrot.slane %v2969, 4
      %v2978 = vrot.slane %v2971, 4
      %v2979 = vrot.slane %v2973, 4
      %v2980 = vsel %vm248, %v2974, %v2975
      %v2981 = vsel %vm861, %v2963, %v2980
      %v2982 = vsel %vm248, %v2975, %v2976
      %v2983 = vsel %vm861, %v2965, %v2982
      %v2984 = vsel %vm248, %v2977, %v2978
      %v2985 = vsel %vm861, %v2969, %v2984
      %v2986 = vsel %vm248, %v2978, %v2979
      %v2987 = vsel %vm861, %v2971, %v2986
      %2992 = vst [vmem:[#allocation2 + $0x1c0] sm:$0xff] %v2981
      %2993 = vst [vmem:[#allocation2 + $0x1c8] sm:$0xff] %v2983
      %2994 = vst [vmem:[#allocation2 + $0x1d0] sm:$0xff] %v2985
      %2995 = vst [vmem:[#allocation2 + $0x1d8] sm:$0xff] %v2987
      %v2996 = vld [vmem:[%s198 + $0x10] sm:$0xff]
      %v2997 = vld [vmem:[%s198 + $0x18] sm:$0xff]
      %v2998 = vld [vmem:[%s198 + $0x20] sm:$0xf]
      %v2999 = vld [vmem:[%s198 + $0x3c] sm:$0xff]
      %v3000 = vld [vmem:[%s198 + $0x44] sm:$0xff]
      %v3001 = vld [vmem:[%s198 + $0x4c] sm:$0xf]
      %3008 = vrot.lane.b32.xlu0 %v2996, 8
      %v3009 = vpop.permute.xlu0 %3008
      %3010 = vrot.lane.b32.xlu0 %v2997, 8
      %v3011 = vpop.permute.xlu0 %3010
      %3012 = vrot.lane.b32.xlu0 %v2998, 8
      %v3013 = vpop.permute.xlu0 %3012
      %3014 = vrot.lane.b32.xlu0 %v2999, 8
      %v3015 = vpop.permute.xlu0 %3014
      %3016 = vrot.lane.b32.xlu0 %v3000, 8
      %v3017 = vpop.permute.xlu0 %3016
      %3018 = vrot.lane.b32.xlu0 %v3001, 8
      %v3019 = vpop.permute.xlu0 %3018
      %v3020 = vrot.slane %v3009, 4
      %v3021 = vrot.slane %v3011, 4
      %v3022 = vrot.slane %v3013, 4
      %v3023 = vrot.slane %v3015, 4
      %v3024 = vrot.slane %v3017, 4
      %v3025 = vrot.slane %v3019, 4
      %v3026 = vsel %vm248, %v3020, %v3021
      %v3027 = vsel %vm908, %v3009, %v3026
      %v3028 = vsel %vm248, %v3021, %v3022
      %v3029 = vsel %vm908, %v3011, %v3028
      %v3030 = vsel %vm248, %v3023, %v3024
      %v3031 = vsel %vm908, %v3015, %v3030
      %v3032 = vsel %vm248, %v3024, %v3025
      %v3033 = vsel %vm908, %v3017, %v3032
      %3038 = vst [vmem:[#allocation2 + $0x1e0] sm:$0xff] %v3027
      %3039 = vst [vmem:[#allocation2 + $0x1e8] sm:$0xff] %v3029
      %3040 = vst [vmem:[#allocation2 + $0x1f0] sm:$0xff] %v3031
      %3041 = vst [vmem:[#allocation2 + $0x1f8] sm:$0xff] %v3033
      %v3042 = vld [vmem:[%s198 + $0x10] sm:$0xff]
      %v3043 = vld [vmem:[%s198 + $0x18] sm:$0xff]
      %v3044 = vld [vmem:[%s198 + $0x20] sm:$0xf]
      %v3045 = vld [vmem:[%s198 + $0x3c] sm:$0xff]
      %v3046 = vld [vmem:[%s198 + $0x44] sm:$0xff]
      %v3047 = vld [vmem:[%s198 + $0x4c] sm:$0xf]
      %3054 = vrot.lane.b32.xlu0 %v3042, 7
      %v3055 = vpop.permute.xlu0 %3054
      %3056 = vrot.lane.b32.xlu0 %v3043, 7
      %v3057 = vpop.permute.xlu0 %3056
      %3058 = vrot.lane.b32.xlu0 %v3044, 7
      %v3059 = vpop.permute.xlu0 %3058
      %3060 = vrot.lane.b32.xlu0 %v3045, 7
      %v3061 = vpop.permute.xlu0 %3060
      %3062 = vrot.lane.b32.xlu0 %v3046, 7
      %v3063 = vpop.permute.xlu0 %3062
      %3064 = vrot.lane.b32.xlu0 %v3047, 7
      %v3065 = vpop.permute.xlu0 %3064
      %v3066 = vrot.slane %v3055, 4
      %v3067 = vrot.slane %v3057, 4
      %v3068 = vrot.slane %v3059, 4
      %v3069 = vrot.slane %v3061, 4
      %v3070 = vrot.slane %v3063, 4
      %v3071 = vrot.slane %v3065, 4
      %v3072 = vsel %vm248, %v3066, %v3067
      %v3073 = vsel %vm955, %v3055, %v3072
      %v3074 = vsel %vm248, %v3067, %v3068
      %v3075 = vsel %vm955, %v3057, %v3074
      %v3076 = vsel %vm248, %v3069, %v3070
      %v3077 = vsel %vm955, %v3061, %v3076
      %v3078 = vsel %vm248, %v3070, %v3071
      %v3079 = vsel %vm955, %v3063, %v3078
      %3084 = vst [vmem:[#allocation2 + $0x200] sm:$0xff] %v3073
      %3085 = vst [vmem:[#allocation2 + $0x208] sm:$0xff] %v3075
      %3086 = vst [vmem:[#allocation2 + $0x210] sm:$0xff] %v3077
      %3087 = vst [vmem:[#allocation2 + $0x218] sm:$0xff] %v3079
      %v3088 = vld [vmem:[%s198 + $0x10] sm:$0xff]
      %v3089 = vld [vmem:[%s198 + $0x18] sm:$0xff]
      %v3090 = vld [vmem:[%s198 + $0x20] sm:$0xf]
      %v3091 = vld [vmem:[%s198 + $0x3c] sm:$0xff]
      %v3092 = vld [vmem:[%s198 + $0x44] sm:$0xff]
      %v3093 = vld [vmem:[%s198 + $0x4c] sm:$0xf]
      %3100 = vrot.lane.b32.xlu0 %v3088, 6
      %v3101 = vpop.permute.xlu0 %3100
      %3102 = vrot.lane.b32.xlu0 %v3089, 6
      %v3103 = vpop.permute.xlu0 %3102
      %3104 = vrot.lane.b32.xlu0 %v3090, 6
      %v3105 = vpop.permute.xlu0 %3104
      %3106 = vrot.lane.b32.xlu0 %v3091, 6
      %v3107 = vpop.permute.xlu0 %3106
      %3108 = vrot.lane.b32.xlu0 %v3092, 6
      %v3109 = vpop.permute.xlu0 %3108
      %3110 = vrot.lane.b32.xlu0 %v3093, 6
      %v3111 = vpop.permute.xlu0 %3110
      %v3112 = vrot.slane %v3101, 4
      %v3113 = vrot.slane %v3103, 4
      %v3114 = vrot.slane %v3105, 4
      %v3115 = vrot.slane %v3107, 4
      %v3116 = vrot.slane %v3109, 4
      %v3117 = vrot.slane %v3111, 4
      %v3118 = vsel %vm248, %v3112, %v3113
      %v3119 = vsel %vm1002, %v3101, %v3118
      %v3120 = vsel %vm248, %v3113, %v3114
      %v3121 = vsel %vm1002, %v3103, %v3120
      %v3122 = vsel %vm248, %v3115, %v3116
      %v3123 = vsel %vm1002, %v3107, %v3122
      %v3124 = vsel %vm248, %v3116, %v3117
      %v3125 = vsel %vm1002, %v3109, %v3124
      %3130 = vst [vmem:[#allocation2 + $0x220] sm:$0xff] %v3119
      %3131 = vst [vmem:[#allocation2 + $0x228] sm:$0xff] %v3121
      %3132 = vst [vmem:[#allocation2 + $0x230] sm:$0xff] %v3123
      %3133 = vst [vmem:[#allocation2 + $0x238] sm:$0xff] %v3125
      %v3134 = vld [vmem:[%s198 + $0x14] sm:$0xff]
      %v3135 = vld [vmem:[%s198 + $0x1c] sm:$0xff]
      %v3136 = vld [vmem:[%s198 + $0x24] sm:$0xf]
      %v3137 = vld [vmem:[%s198 + $0x40] sm:$0xff]
      %v3138 = vld [vmem:[%s198 + $0x48] sm:$0xff]
      %v3139 = vld [vmem:[%s198 + $0x50] sm:$0xf]
      %3146 = vrot.lane.b32.xlu0 %v3134, 56
      %v3147 = vpop.permute.xlu0 %3146
      %3148 = vrot.lane.b32.xlu0 %v3135, 56
      %v3149 = vpop.permute.xlu0 %3148
      %3150 = vrot.lane.b32.xlu0 %v3136, 56
      %v3151 = vpop.permute.xlu0 %3150
      %3152 = vrot.lane.b32.xlu0 %v3137, 56
      %v3153 = vpop.permute.xlu0 %3152
      %3154 = vrot.lane.b32.xlu0 %v3138, 56
      %v3155 = vpop.permute.xlu0 %3154
      %3156 = vrot.lane.b32.xlu0 %v3139, 56
      %v3157 = vpop.permute.xlu0 %3156
      %v3158 = vrot.slane %v3147, 4
      %v3159 = vrot.slane %v3149, 4
      %v3160 = vrot.slane %v3151, 4
      %v3161 = vrot.slane %v3153, 4
      %v3162 = vrot.slane %v3155, 4
      %v3163 = vrot.slane %v3157, 4
      %v3164 = vsel %vm248, %v3158, %v3159
      %v3165 = vsel %vm1049, %v3147, %v3164
      %v3166 = vsel %vm248, %v3159, %v3160
      %v3167 = vsel %vm1049, %v3149, %v3166
      %v3168 = vsel %vm248, %v3161, %v3162
      %v3169 = vsel %vm1049, %v3153, %v3168
      %v3170 = vsel %vm248, %v3162, %v3163
      %v3171 = vsel %vm1049, %v3155, %v3170
      %3176 = vst [vmem:[#allocation2 + $0x240] sm:$0xff] %v3165
      %3177 = vst [vmem:[#allocation2 + $0x248] sm:$0xff] %v3167
      %3178 = vst [vmem:[#allocation2 + $0x250] sm:$0xff] %v3169
      %3179 = vst [vmem:[#allocation2 + $0x258] sm:$0xff] %v3171
      %v3180 = vld [vmem:[%s198 + $0x14] sm:$0xff]
      %v3181 = vld [vmem:[%s198 + $0x1c] sm:$0xff]
      %v3182 = vld [vmem:[%s198 + $0x24] sm:$0xf]
      %v3183 = vld [vmem:[%s198 + $0x40] sm:$0xff]
      %v3184 = vld [vmem:[%s198 + $0x48] sm:$0xff]
      %v3185 = vld [vmem:[%s198 + $0x50] sm:$0xf]
      %3192 = vrot.lane.b32.xlu0 %v3180, 55
      %v3193 = vpop.permute.xlu0 %3192
      %3194 = vrot.lane.b32.xlu0 %v3181, 55
      %v3195 = vpop.permute.xlu0 %3194
      %3196 = vrot.lane.b32.xlu0 %v3182, 55
      %v3197 = vpop.permute.xlu0 %3196
      %3198 = vrot.lane.b32.xlu0 %v3183, 55
      %v3199 = vpop.permute.xlu0 %3198
      %3200 = vrot.lane.b32.xlu0 %v3184, 55
      %v3201 = vpop.permute.xlu0 %3200
      %3202 = vrot.lane.b32.xlu0 %v3185, 55
      %v3203 = vpop.permute.xlu0 %3202
      %v3204 = vrot.slane %v3193, 4
      %v3205 = vrot.slane %v3195, 4
      %v3206 = vrot.slane %v3197, 4
      %v3207 = vrot.slane %v3199, 4
      %v3208 = vrot.slane %v3201, 4
      %v3209 = vrot.slane %v3203, 4
      %v3210 = vsel %vm248, %v3204, %v3205
      %v3211 = vsel %vm1096, %v3193, %v3210
      %v3212 = vsel %vm248, %v3205, %v3206
      %v3213 = vsel %vm1096, %v3195, %v3212
      %v3214 = vsel %vm248, %v3207, %v3208
      %v3215 = vsel %vm1096, %v3199, %v3214
      %v3216 = vsel %vm248, %v3208, %v3209
      %v3217 = vsel %vm1096, %v3201, %v3216
      %3222 = vst [vmem:[#allocation2 + $0x260] sm:$0xff] %v3211
      %3223 = vst [vmem:[#allocation2 + $0x268] sm:$0xff] %v3213
      %3224 = vst [vmem:[#allocation2 + $0x270] sm:$0xff] %v3215
      %3225 = vst [vmem:[#allocation2 + $0x278] sm:$0xff] %v3217
      %v3226 = vld [vmem:[%s198 + $0x14] sm:$0xff]
      %v3227 = vld [vmem:[%s198 + $0x1c] sm:$0xff]
      %v3228 = vld [vmem:[%s198 + $0x24] sm:$0xf]
      %v3229 = vld [vmem:[%s198 + $0x40] sm:$0xff]
      %v3230 = vld [vmem:[%s198 + $0x48] sm:$0xff]
      %v3231 = vld [vmem:[%s198 + $0x50] sm:$0xf]
      %3238 = vrot.lane.b32.xlu0 %v3226, 54
      %v3239 = vpop.permute.xlu0 %3238
      %3240 = vrot.lane.b32.xlu0 %v3227, 54
      %v3241 = vpop.permute.xlu0 %3240
      %3242 = vrot.lane.b32.xlu0 %v3228, 54
      %v3243 = vpop.permute.xlu0 %3242
      %3244 = vrot.lane.b32.xlu0 %v3229, 54
      %v3245 = vpop.permute.xlu0 %3244
      %3246 = vrot.lane.b32.xlu0 %v3230, 54
      %v3247 = vpop.permute.xlu0 %3246
      %3248 = vrot.lane.b32.xlu0 %v3231, 54
      %v3249 = vpop.permute.xlu0 %3248
      %v3250 = vrot.slane %v3239, 4
      %v3251 = vrot.slane %v3241, 4
      %v3252 = vrot.slane %v3243, 4
      %v3253 = vrot.slane %v3245, 4
      %v3254 = vrot.slane %v3247, 4
      %v3255 = vrot.slane %v3249, 4
      %v3256 = vsel %vm248, %v3250, %v3251
      %v3257 = vsel %vm1143, %v3239, %v3256
      %v3258 = vsel %vm248, %v3251, %v3252
      %v3259 = vsel %vm1143, %v3241, %v3258
      %v3260 = vsel %vm248, %v3253, %v3254
      %v3261 = vsel %vm1143, %v3245, %v3260
      %v3262 = vsel %vm248, %v3254, %v3255
      %v3263 = vsel %vm1143, %v3247, %v3262
      %3268 = vst [vmem:[#allocation2 + $0x280] sm:$0xff] %v3257
      %3269 = vst [vmem:[#allocation2 + $0x288] sm:$0xff] %v3259
      %3270 = vst [vmem:[#allocation2 + $0x290] sm:$0xff] %v3261
      %3271 = vst [vmem:[#allocation2 + $0x298] sm:$0xff] %v3263
      %v3272 = vld [vmem:[%s198 + $0x14] sm:$0xff]
      %v3273 = vld [vmem:[%s198 + $0x1c] sm:$0xff]
      %v3274 = vld [vmem:[%s198 + $0x24] sm:$0xf]
      %v3275 = vld [vmem:[%s198 + $0x40] sm:$0xff]
      %v3276 = vld [vmem:[%s198 + $0x48] sm:$0xff]
      %v3277 = vld [vmem:[%s198 + $0x50] sm:$0xf]
      %3284 = vrot.lane.b32.xlu0 %v3272, 46
      %v3285 = vpop.permute.xlu0 %3284
      %3286 = vrot.lane.b32.xlu0 %v3273, 46
      %v3287 = vpop.permute.xlu0 %3286
      %3288 = vrot.lane.b32.xlu0 %v3274, 46
      %v3289 = vpop.permute.xlu0 %3288
      %3290 = vrot.lane.b32.xlu0 %v3275, 46
      %v3291 = vpop.permute.xlu0 %3290
      %3292 = vrot.lane.b32.xlu0 %v3276, 46
      %v3293 = vpop.permute.xlu0 %3292
      %3294 = vrot.lane.b32.xlu0 %v3277, 46
      %v3295 = vpop.permute.xlu0 %3294
      %v3296 = vrot.slane %v3285, 4
      %v3297 = vrot.slane %v3287, 4
      %v3298 = vrot.slane %v3289, 4
      %v3299 = vrot.slane %v3291, 4
      %v3300 = vrot.slane %v3293, 4
      %v3301 = vrot.slane %v3295, 4
      %v3302 = vsel %vm248, %v3296, %v3297
      %v3303 = vsel %vm1190, %v3285, %v3302
      %v3304 = vsel %vm248, %v3297, %v3298
      %v3305 = vsel %vm1190, %v3287, %v3304
      %v3306 = vsel %vm248, %v3299, %v3300
      %v3307 = vsel %vm1190, %v3291, %v3306
      %v3308 = vsel %vm248, %v3300, %v3301
      %v3309 = vsel %vm1190, %v3293, %v3308
      %3314 = vst [vmem:[#allocation2 + $0x2a0] sm:$0xff] %v3303
      %3315 = vst [vmem:[#allocation2 + $0x2a8] sm:$0xff] %v3305
      %3316 = vst [vmem:[#allocation2 + $0x2b0] sm:$0xff] %v3307
      %3317 = vst [vmem:[#allocation2 + $0x2b8] sm:$0xff] %v3309
      %v3318 = vld [vmem:[%s198 + $0x14] sm:$0xff]
      %v3319 = vld [vmem:[%s198 + $0x1c] sm:$0xff]
      %v3320 = vld [vmem:[%s198 + $0x24] sm:$0xf]
      %v3321 = vld [vmem:[%s198 + $0x40] sm:$0xff]
      %v3322 = vld [vmem:[%s198 + $0x48] sm:$0xff]
      %v3323 = vld [vmem:[%s198 + $0x50] sm:$0xf]
      %3330 = vrot.lane.b32.xlu0 %v3318, 45
      %v3331 = vpop.permute.xlu0 %3330
      %3332 = vrot.lane.b32.xlu0 %v3319, 45
      %v3333 = vpop.permute.xlu0 %3332
      %3334 = vrot.lane.b32.xlu0 %v3320, 45
      %v3335 = vpop.permute.xlu0 %3334
      %3336 = vrot.lane.b32.xlu0 %v3321, 45
      %v3337 = vpop.permute.xlu0 %3336
      %3338 = vrot.lane.b32.xlu0 %v3322, 45
      %v3339 = vpop.permute.xlu0 %3338
      %3340 = vrot.lane.b32.xlu0 %v3323, 45
      %v3341 = vpop.permute.xlu0 %3340
      %v3342 = vrot.slane %v3331, 4
      %v3343 = vrot.slane %v3333, 4
      %v3344 = vrot.slane %v3335, 4
      %v3345 = vrot.slane %v3337, 4
      %v3346 = vrot.slane %v3339, 4
      %v3347 = vrot.slane %v3341, 4
      %v3348 = vsel %vm248, %v3342, %v3343
      %v3349 = vsel %vm1237, %v3331, %v3348
      %v3350 = vsel %vm248, %v3343, %v3344
      %v3351 = vsel %vm1237, %v3333, %v3350
      %v3352 = vsel %vm248, %v3345, %v3346
      %v3353 = vsel %vm1237, %v3337, %v3352
      %v3354 = vsel %vm248, %v3346, %v3347
      %v3355 = vsel %vm1237, %v3339, %v3354
      %3360 = vst [vmem:[#allocation2 + $0x2c0] sm:$0xff] %v3349
      %3361 = vst [vmem:[#allocation2 + $0x2c8] sm:$0xff] %v3351
      %3362 = vst [vmem:[#allocation2 + $0x2d0] sm:$0xff] %v3353
      %3363 = vst [vmem:[#allocation2 + $0x2d8] sm:$0xff] %v3355
      %v3364 = vld [vmem:[%s198 + $0x14] sm:$0xff]
      %v3365 = vld [vmem:[%s198 + $0x1c] sm:$0xff]
      %v3366 = vld [vmem:[%s198 + $0x24] sm:$0xf]
      %v3367 = vld [vmem:[%s198 + $0x40] sm:$0xff]
      %v3368 = vld [vmem:[%s198 + $0x48] sm:$0xff]
      %v3369 = vld [vmem:[%s198 + $0x50] sm:$0xf]
      %3376 = vrot.lane.b32.xlu0 %v3364, 44
      %v3377 = vpop.permute.xlu0 %3376
      %3378 = vrot.lane.b32.xlu0 %v3365, 44
      %v3379 = vpop.permute.xlu0 %3378
      %3380 = vrot.lane.b32.xlu0 %v3366, 44
      %v3381 = vpop.permute.xlu0 %3380
      %3382 = vrot.lane.b32.xlu0 %v3367, 44
      %v3383 = vpop.permute.xlu0 %3382
      %3384 = vrot.lane.b32.xlu0 %v3368, 44
      %v3385 = vpop.permute.xlu0 %3384
      %3386 = vrot.lane.b32.xlu0 %v3369, 44
      %v3387 = vpop.permute.xlu0 %3386
      %v3388 = vrot.slane %v3377, 4
      %v3389 = vrot.slane %v3379, 4
      %v3390 = vrot.slane %v3381, 4
      %v3391 = vrot.slane %v3383, 4
      %v3392 = vrot.slane %v3385, 4
      %v3393 = vrot.slane %v3387, 4
      %v3394 = vsel %vm248, %v3388, %v3389
      %v3395 = vsel %vm1284, %v3377, %v3394
      %v3396 = vsel %vm248, %v3389, %v3390
      %v3397 = vsel %vm1284, %v3379, %v3396
      %v3398 = vsel %vm248, %v3391, %v3392
      %v3399 = vsel %vm1284, %v3383, %v3398
      %v3400 = vsel %vm248, %v3392, %v3393
      %v3401 = vsel %vm1284, %v3385, %v3400
      %3406 = vst [vmem:[#allocation2 + $0x2e0] sm:$0xff] %v3395
      %3407 = vst [vmem:[#allocation2 + $0x2e8] sm:$0xff] %v3397
      %3408 = vst [vmem:[#allocation2 + $0x2f0] sm:$0xff] %v3399
      %3409 = vst [vmem:[#allocation2 + $0x2f8] sm:$0xff] %v3401
      %v3410 = vld [vmem:[%s198 + $0x14] sm:$0xff]
      %v3411 = vld [vmem:[%s198 + $0x1c] sm:$0xff]
      %v3412 = vld [vmem:[%s198 + $0x24] sm:$0xf]
      %v3413 = vld [vmem:[%s198 + $0x40] sm:$0xff]
      %v3414 = vld [vmem:[%s198 + $0x48] sm:$0xff]
      %v3415 = vld [vmem:[%s198 + $0x50] sm:$0xf]
      %3422 = vrot.lane.b32.xlu0 %v3410, 36
      %v3423 = vpop.permute.xlu0 %3422
      %3424 = vrot.lane.b32.xlu0 %v3411, 36
      %v3425 = vpop.permute.xlu0 %3424
      %3426 = vrot.lane.b32.xlu0 %v3412, 36
      %v3427 = vpop.permute.xlu0 %3426
      %3428 = vrot.lane.b32.xlu0 %v3413, 36
      %v3429 = vpop.permute.xlu0 %3428
      %3430 = vrot.lane.b32.xlu0 %v3414, 36
      %v3431 = vpop.permute.xlu0 %3430
      %3432 = vrot.lane.b32.xlu0 %v3415, 36
      %v3433 = vpop.permute.xlu0 %3432
      %v3434 = vrot.slane %v3423, 4
      %v3435 = vrot.slane %v3425, 4
      %v3436 = vrot.slane %v3427, 4
      %v3437 = vrot.slane %v3429, 4
      %v3438 = vrot.slane %v3431, 4
      %v3439 = vrot.slane %v3433, 4
      %v3440 = vsel %vm248, %v3434, %v3435
      %v3441 = vsel %vm1331, %v3423, %v3440
      %v3442 = vsel %vm248, %v3435, %v3436
      %v3443 = vsel %vm1331, %v3425, %v3442
      %v3444 = vsel %vm248, %v3437, %v3438
      %v3445 = vsel %vm1331, %v3429, %v3444
      %v3446 = vsel %vm248, %v3438, %v3439
      %v3447 = vsel %vm1331, %v3431, %v3446
      %3452 = vst [vmem:[#allocation2 + $0x300] sm:$0xff] %v3441
      %3453 = vst [vmem:[#allocation2 + $0x308] sm:$0xff] %v3443
      %3454 = vst [vmem:[#allocation2 + $0x310] sm:$0xff] %v3445
      %3455 = vst [vmem:[#allocation2 + $0x318] sm:$0xff] %v3447
      %v3456 = vld [vmem:[%s198 + $0x14] sm:$0xff]
      %v3457 = vld [vmem:[%s198 + $0x1c] sm:$0xff]
      %v3458 = vld [vmem:[%s198 + $0x24] sm:$0xf]
      %v3459 = vld [vmem:[%s198 + $0x40] sm:$0xff]
      %v3460 = vld [vmem:[%s198 + $0x48] sm:$0xff]
      %v3461 = vld [vmem:[%s198 + $0x50] sm:$0xf]
      %3468 = vrot.lane.b32.xlu0 %v3456, 35
      %v3469 = vpop.permute.xlu0 %3468
      %3470 = vrot.lane.b32.xlu0 %v3457, 35
      %v3471 = vpop.permute.xlu0 %3470
      %3472 = vrot.lane.b32.xlu0 %v3458, 35
      %v3473 = vpop.permute.xlu0 %3472
      %3474 = vrot.lane.b32.xlu0 %v3459, 35
      %v3475 = vpop.permute.xlu0 %3474
      %3476 = vrot.lane.b32.xlu0 %v3460, 35
      %v3477 = vpop.permute.xlu0 %3476
      %3478 = vrot.lane.b32.xlu0 %v3461, 35
      %v3479 = vpop.permute.xlu0 %3478
      %v3480 = vrot.slane %v3469, 4
      %v3481 = vrot.slane %v3471, 4
      %v3482 = vrot.slane %v3473, 4
      %v3483 = vrot.slane %v3475, 4
      %v3484 = vrot.slane %v3477, 4
      %v3485 = vrot.slane %v3479, 4
      %v3486 = vsel %vm248, %v3480, %v3481
      %v3487 = vsel %vm1378, %v3469, %v3486
      %v3488 = vsel %vm248, %v3481, %v3482
      %v3489 = vsel %vm1378, %v3471, %v3488
      %v3490 = vsel %vm248, %v3483, %v3484
      %v3491 = vsel %vm1378, %v3475, %v3490
      %v3492 = vsel %vm248, %v3484, %v3485
      %v3493 = vsel %vm1378, %v3477, %v3492
      %3498 = vst [vmem:[#allocation2 + $0x320] sm:$0xff] %v3487
      %3499 = vst [vmem:[#allocation2 + $0x328] sm:$0xff] %v3489
      %3500 = vst [vmem:[#allocation2 + $0x330] sm:$0xff] %v3491
      %3501 = vst [vmem:[#allocation2 + $0x338] sm:$0xff] %v3493
      %v3502 = vld [vmem:[%s198 + $0x14] sm:$0xff]
      %v3503 = vld [vmem:[%s198 + $0x1c] sm:$0xff]
      %v3504 = vld [vmem:[%s198 + $0x24] sm:$0xf]
      %v3505 = vld [vmem:[%s198 + $0x40] sm:$0xff]
      %v3506 = vld [vmem:[%s198 + $0x48] sm:$0xff]
      %v3507 = vld [vmem:[%s198 + $0x50] sm:$0xf]
      %3514 = vrot.lane.b32.xlu0 %v3502, 34
      %v3515 = vpop.permute.xlu0 %3514
      %3516 = vrot.lane.b32.xlu0 %v3503, 34
      %v3517 = vpop.permute.xlu0 %3516
      %3518 = vrot.lane.b32.xlu0 %v3504, 34
      %v3519 = vpop.permute.xlu0 %3518
      %3520 = vrot.lane.b32.xlu0 %v3505, 34
      %v3521 = vpop.permute.xlu0 %3520
      %3522 = vrot.lane.b32.xlu0 %v3506, 34
      %v3523 = vpop.permute.xlu0 %3522
      %3524 = vrot.lane.b32.xlu0 %v3507, 34
      %v3525 = vpop.permute.xlu0 %3524
      %v3526 = vrot.slane %v3515, 4
      %v3527 = vrot.slane %v3517, 4
      %v3528 = vrot.slane %v3519, 4
      %v3529 = vrot.slane %v3521, 4
      %v3530 = vrot.slane %v3523, 4
      %v3531 = vrot.slane %v3525, 4
      %v3532 = vsel %vm248, %v3526, %v3527
      %v3533 = vsel %vm1425, %v3515, %v3532
      %v3534 = vsel %vm248, %v3527, %v3528
      %v3535 = vsel %vm1425, %v3517, %v3534
      %v3536 = vsel %vm248, %v3529, %v3530
      %v3537 = vsel %vm1425, %v3521, %v3536
      %v3538 = vsel %vm248, %v3530, %v3531
      %v3539 = vsel %vm1425, %v3523, %v3538
      %3544 = vst [vmem:[#allocation2 + $0x340] sm:$0xff] %v3533
      %3545 = vst [vmem:[#allocation2 + $0x348] sm:$0xff] %v3535
      %3546 = vst [vmem:[#allocation2 + $0x350] sm:$0xff] %v3537
      %3547 = vst [vmem:[#allocation2 + $0x358] sm:$0xff] %v3539
      %v3548 = vld [vmem:[#allocation2] sm:$0xff]
      %v3549 = vld [vmem:[#allocation2 + $0x8] sm:$0xff]
      %v3550 = vld [vmem:[#allocation2 + $0x10] sm:$0xff]
      %v3551 = vld [vmem:[#allocation2 + $0x18] sm:$0xff]
      %v3552 = vld [vmem:[#allocation2 + $0x20] sm:$0xff]
      %v3553 = vld [vmem:[#allocation2 + $0x28] sm:$0xff]
      %v3554 = vld [vmem:[#allocation2 + $0x30] sm:$0xff]
      %v3555 = vld [vmem:[#allocation2 + $0x38] sm:$0xff]
      %v3556 = vld [vmem:[#allocation2 + $0x40] sm:$0xff]
      %v3557 = vld [vmem:[#allocation2 + $0x48] sm:$0xff]
      %v3558 = vld [vmem:[#allocation2 + $0x50] sm:$0xff]
      %v3559 = vld [vmem:[#allocation2 + $0x58] sm:$0xff]
      %v3560 = vld [vmem:[#allocation2 + $0x60] sm:$0xff]
      %v3561 = vld [vmem:[#allocation2 + $0x68] sm:$0xff]
      %v3562 = vld [vmem:[#allocation2 + $0x70] sm:$0xff]
      %v3563 = vld [vmem:[#allocation2 + $0x78] sm:$0xff]
      %v3564 = vld [vmem:[#allocation2 + $0x80] sm:$0xff]
      %v3565 = vld [vmem:[#allocation2 + $0x88] sm:$0xff]
      %v3566 = vld [vmem:[#allocation2 + $0x90] sm:$0xff]
      %v3567 = vld [vmem:[#allocation2 + $0x98] sm:$0xff]
      %v3568 = vld [vmem:[#allocation2 + $0xa0] sm:$0xff]
      %v3569 = vld [vmem:[#allocation2 + $0xa8] sm:$0xff]
      %v3570 = vld [vmem:[#allocation2 + $0xb0] sm:$0xff]
      %v3571 = vld [vmem:[#allocation2 + $0xb8] sm:$0xff]
      %v3572 = vld [vmem:[#allocation2 + $0xc0] sm:$0xff]
      %v3573 = vld [vmem:[#allocation2 + $0xc8] sm:$0xff]
      %v3574 = vld [vmem:[#allocation2 + $0xd0] sm:$0xff]
      %v3575 = vld [vmem:[#allocation2 + $0xd8] sm:$0xff]
      %v3576 = vld [vmem:[#allocation2 + $0xe0] sm:$0xff]
      %v3577 = vld [vmem:[#allocation2 + $0xe8] sm:$0xff]
      %v3578 = vld [vmem:[#allocation2 + $0xf0] sm:$0xff]
      %v3579 = vld [vmem:[#allocation2 + $0xf8] sm:$0xff]
      %v3580 = vld [vmem:[#allocation2 + $0x100] sm:$0xff]
      %v3581 = vld [vmem:[#allocation2 + $0x108] sm:$0xff]
      %v3582 = vld [vmem:[#allocation2 + $0x110] sm:$0xff]
      %v3583 = vld [vmem:[#allocation2 + $0x118] sm:$0xff]
      %v3584 = vld [vmem:[#allocation2 + $0x120] sm:$0xff]
      %v3585 = vld [vmem:[#allocation2 + $0x128] sm:$0xff]
      %v3586 = vld [vmem:[#allocation2 + $0x130] sm:$0xff]
      %v3587 = vld [vmem:[#allocation2 + $0x138] sm:$0xff]
      %v3588 = vld [vmem:[#allocation2 + $0x140] sm:$0xff]
      %v3589 = vld [vmem:[#allocation2 + $0x148] sm:$0xff]
      %v3590 = vld [vmem:[#allocation2 + $0x150] sm:$0xff]
      %v3591 = vld [vmem:[#allocation2 + $0x158] sm:$0xff]
      %v3592 = vld [vmem:[#allocation2 + $0x160] sm:$0xff]
      %v3593 = vld [vmem:[#allocation2 + $0x168] sm:$0xff]
      %v3594 = vld [vmem:[#allocation2 + $0x170] sm:$0xff]
      %v3595 = vld [vmem:[#allocation2 + $0x178] sm:$0xff]
      %v3596 = vld [vmem:[#allocation2 + $0x180] sm:$0xff]
      %v3597 = vld [vmem:[#allocation2 + $0x188] sm:$0xff]
      %v3598 = vld [vmem:[#allocation2 + $0x190] sm:$0xff]
      %v3599 = vld [vmem:[#allocation2 + $0x198] sm:$0xff]
      %v3600 = vld [vmem:[#allocation2 + $0x1a0] sm:$0xff]
      %v3601 = vld [vmem:[#allocation2 + $0x1a8] sm:$0xff]
      %v3602 = vld [vmem:[#allocation2 + $0x1b0] sm:$0xff]
      %v3603 = vld [vmem:[#allocation2 + $0x1b8] sm:$0xff]
      %v3604 = vld [vmem:[#allocation2 + $0x1c0] sm:$0xff]
      %v3605 = vld [vmem:[#allocation2 + $0x1c8] sm:$0xff]
      %v3606 = vld [vmem:[#allocation2 + $0x1d0] sm:$0xff]
      %v3607 = vld [vmem:[#allocation2 + $0x1d8] sm:$0xff]
      %v3608 = vld [vmem:[#allocation2 + $0x1e0] sm:$0xff]
      %v3609 = vld [vmem:[#allocation2 + $0x1e8] sm:$0xff]
      %v3610 = vld [vmem:[#allocation2 + $0x1f0] sm:$0xff]
      %v3611 = vld [vmem:[#allocation2 + $0x1f8] sm:$0xff]
      %v3612 = vld [vmem:[#allocation2 + $0x200] sm:$0xff]
      %v3613 = vld [vmem:[#allocation2 + $0x208] sm:$0xff]
      %v3614 = vld [vmem:[#allocation2 + $0x210] sm:$0xff]
      %v3615 = vld [vmem:[#allocation2 + $0x218] sm:$0xff]
      %v3616 = vld [vmem:[#allocation2 + $0x220] sm:$0xff]
      %v3617 = vld [vmem:[#allocation2 + $0x228] sm:$0xff]
      %v3618 = vld [vmem:[#allocation2 + $0x230] sm:$0xff]
      %v3619 = vld [vmem:[#allocation2 + $0x238] sm:$0xff]
      %v3620 = vld [vmem:[#allocation2 + $0x240] sm:$0xff]
      %v3621 = vld [vmem:[#allocation2 + $0x248] sm:$0xff]
      %v3622 = vld [vmem:[#allocation2 + $0x250] sm:$0xff]
      %v3623 = vld [vmem:[#allocation2 + $0x258] sm:$0xff]
      %v3624 = vld [vmem:[#allocation2 + $0x260] sm:$0xff]
      %v3625 = vld [vmem:[#allocation2 + $0x268] sm:$0xff]
      %v3626 = vld [vmem:[#allocation2 + $0x270] sm:$0xff]
      %v3627 = vld [vmem:[#allocation2 + $0x278] sm:$0xff]
      %v3628 = vld [vmem:[#allocation2 + $0x280] sm:$0xff]
      %v3629 = vld [vmem:[#allocation2 + $0x288] sm:$0xff]
      %v3630 = vld [vmem:[#allocation2 + $0x290] sm:$0xff]
      %v3631 = vld [vmem:[#allocation2 + $0x298] sm:$0xff]
      %v3632 = vld [vmem:[#allocation2 + $0x2a0] sm:$0xff]
      %v3633 = vld [vmem:[#allocation2 + $0x2a8] sm:$0xff]
      %v3634 = vld [vmem:[#allocation2 + $0x2b0] sm:$0xff]
      %v3635 = vld [vmem:[#allocation2 + $0x2b8] sm:$0xff]
      %v3636 = vld [vmem:[#allocation2 + $0x2c0] sm:$0xff]
      %v3637 = vld [vmem:[#allocation2 + $0x2c8] sm:$0xff]
      %v3638 = vld [vmem:[#allocation2 + $0x2d0] sm:$0xff]
      %v3639 = vld [vmem:[#allocation2 + $0x2d8] sm:$0xff]
      %v3640 = vld [vmem:[#allocation2 + $0x2e0] sm:$0xff]
      %v3641 = vld [vmem:[#allocation2 + $0x2e8] sm:$0xff]
      %v3642 = vld [vmem:[#allocation2 + $0x2f0] sm:$0xff]
      %v3643 = vld [vmem:[#allocation2 + $0x2f8] sm:$0xff]
      %v3644 = vld [vmem:[#allocation2 + $0x300] sm:$0xff]
      %v3645 = vld [vmem:[#allocation2 + $0x308] sm:$0xff]
      %v3646 = vld [vmem:[#allocation2 + $0x310] sm:$0xff]
      %v3647 = vld [vmem:[#allocation2 + $0x318] sm:$0xff]
      %v3648 = vld [vmem:[#allocation2 + $0x320] sm:$0xff]
      %v3649 = vld [vmem:[#allocation2 + $0x328] sm:$0xff]
      %v3650 = vld [vmem:[#allocation2 + $0x330] sm:$0xff]
      %v3651 = vld [vmem:[#allocation2 + $0x338] sm:$0xff]
      %v3652 = vld [vmem:[#allocation2 + $0x340] sm:$0xff]
      %v3653 = vld [vmem:[#allocation2 + $0x348] sm:$0xff]
      %v3654 = vld [vmem:[#allocation2 + $0x350] sm:$0xff]
      %v3655 = vld [vmem:[#allocation2 + $0x358] sm:$0xff]
      %v3764 = vunpack.c.l.b16 %v3548
      %v3765 = vunpack.c.h.b16 %v3548
      %v3766 = vunpack.c.l.b16 %v3549
      %v3767 = vunpack.c.h.b16 %v3549
      %v3768 = vunpack.c.l.b16 %v3550
      %v3769 = vunpack.c.h.b16 %v3550
      %v3770 = vunpack.c.l.b16 %v3551
      %v3771 = vunpack.c.h.b16 %v3551
      %v3772 = vunpack.c.l.b16 %v3552
      %v3773 = vunpack.c.h.b16 %v3552
      %v3774 = vunpack.c.l.b16 %v3553
      %v3775 = vunpack.c.h.b16 %v3553
      %v3776 = vunpack.c.l.b16 %v3554
      %v3777 = vunpack.c.h.b16 %v3554
      %v3778 = vunpack.c.l.b16 %v3555
      %v3779 = vunpack.c.h.b16 %v3555
      %v3780 = vunpack.c.l.b16 %v3556
      %v3781 = vunpack.c.h.b16 %v3556
      %v3782 = vunpack.c.l.b16 %v3557
      %v3783 = vunpack.c.h.b16 %v3557
      %v3784 = vunpack.c.l.b16 %v3558
      %v3785 = vunpack.c.h.b16 %v3558
      %v3786 = vunpack.c.l.b16 %v3559
      %v3787 = vunpack.c.h.b16 %v3559
      %v3788 = vunpack.c.l.b16 %v3560
      %v3789 = vunpack.c.h.b16 %v3560
      %v3790 = vunpack.c.l.b16 %v3561
      %v3791 = vunpack.c.h.b16 %v3561
      %v3792 = vunpack.c.l.b16 %v3562
      %v3793 = vunpack.c.h.b16 %v3562
      %v3794 = vunpack.c.l.b16 %v3563
      %v3795 = vunpack.c.h.b16 %v3563
      %v3796 = vunpack.c.l.b16 %v3564
      %v3797 = vunpack.c.h.b16 %v3564
      %v3798 = vunpack.c.l.b16 %v3565
      %v3799 = vunpack.c.h.b16 %v3565
      %v3800 = vunpack.c.l.b16 %v3566
      %v3801 = vunpack.c.h.b16 %v3566
      %v3802 = vunpack.c.l.b16 %v3567
      %v3803 = vunpack.c.h.b16 %v3567
      %v3804 = vunpack.c.l.b16 %v3568
      %v3805 = vunpack.c.h.b16 %v3568
      %v3806 = vunpack.c.l.b16 %v3569
      %v3807 = vunpack.c.h.b16 %v3569
      %v3808 = vunpack.c.l.b16 %v3570
      %v3809 = vunpack.c.h.b16 %v3570
      %v3810 = vunpack.c.l.b16 %v3571
      %v3811 = vunpack.c.h.b16 %v3571
      %v3812 = vunpack.c.l.b16 %v3572
      %v3813 = vunpack.c.h.b16 %v3572
      %v3814 = vunpack.c.l.b16 %v3573
      %v3815 = vunpack.c.h.b16 %v3573
      %v3816 = vunpack.c.l.b16 %v3574
      %v3817 = vunpack.c.h.b16 %v3574
      %v3818 = vunpack.c.l.b16 %v3575
      %v3819 = vunpack.c.h.b16 %v3575
      %v3820 = vunpack.c.l.b16 %v3576
      %v3821 = vunpack.c.h.b16 %v3576
      %v3822 = vunpack.c.l.b16 %v3577
      %v3823 = vunpack.c.h.b16 %v3577
      %v3824 = vunpack.c.l.b16 %v3578
      %v3825 = vunpack.c.h.b16 %v3578
      %v3826 = vunpack.c.l.b16 %v3579
      %v3827 = vunpack.c.h.b16 %v3579
      %v3828 = vunpack.c.l.b16 %v3580
      %v3829 = vunpack.c.h.b16 %v3580
      %v3830 = vunpack.c.l.b16 %v3581
      %v3831 = vunpack.c.h.b16 %v3581
      %v3832 = vunpack.c.l.b16 %v3582
      %v3833 = vunpack.c.h.b16 %v3582
      %v3834 = vunpack.c.l.b16 %v3583
      %v3835 = vunpack.c.h.b16 %v3583
      %v3836 = vunpack.c.l.b16 %v3584
      %v3837 = vunpack.c.h.b16 %v3584
      %v3838 = vunpack.c.l.b16 %v3585
      %v3839 = vunpack.c.h.b16 %v3585
      %v3840 = vunpack.c.l.b16 %v3586
      %v3841 = vunpack.c.h.b16 %v3586
      %v3842 = vunpack.c.l.b16 %v3587
      %v3843 = vunpack.c.h.b16 %v3587
      %v3844 = vunpack.c.l.b16 %v3588
      %v3845 = vunpack.c.h.b16 %v3588
      %v3846 = vunpack.c.l.b16 %v3589
      %v3847 = vunpack.c.h.b16 %v3589
      %v3848 = vunpack.c.l.b16 %v3590
      %v3849 = vunpack.c.h.b16 %v3590
      %v3850 = vunpack.c.l.b16 %v3591
      %v3851 = vunpack.c.h.b16 %v3591
      %v3852 = vunpack.c.l.b16 %v3592
      %v3853 = vunpack.c.h.b16 %v3592
      %v3854 = vunpack.c.l.b16 %v3593
      %v3855 = vunpack.c.h.b16 %v3593
      %v3856 = vunpack.c.l.b16 %v3594
      %v3857 = vunpack.c.h.b16 %v3594
      %v3858 = vunpack.c.l.b16 %v3595
      %v3859 = vunpack.c.h.b16 %v3595
      %v3860 = vunpack.c.l.b16 %v3596
      %v3861 = vunpack.c.h.b16 %v3596
      %v3862 = vunpack.c.l.b16 %v3597
      %v3863 = vunpack.c.h.b16 %v3597
      %v3864 = vunpack.c.l.b16 %v3598
      %v3865 = vunpack.c.h.b16 %v3598
      %v3866 = vunpack.c.l.b16 %v3599
      %v3867 = vunpack.c.h.b16 %v3599
      %v3868 = vunpack.c.l.b16 %v3600
      %v3869 = vunpack.c.h.b16 %v3600
      %v3870 = vunpack.c.l.b16 %v3601
      %v3871 = vunpack.c.h.b16 %v3601
      %v3872 = vunpack.c.l.b16 %v3602
      %v3873 = vunpack.c.h.b16 %v3602
      %v3874 = vunpack.c.l.b16 %v3603
      %v3875 = vunpack.c.h.b16 %v3603
      %v3876 = vunpack.c.l.b16 %v3604
      %v3877 = vunpack.c.h.b16 %v3604
      %v3878 = vunpack.c.l.b16 %v3605
      %v3879 = vunpack.c.h.b16 %v3605
      %v3880 = vunpack.c.l.b16 %v3606
      %v3881 = vunpack.c.h.b16 %v3606
      %v3882 = vunpack.c.l.b16 %v3607
      %v3883 = vunpack.c.h.b16 %v3607
      %v3884 = vunpack.c.l.b16 %v3608
      %v3885 = vunpack.c.h.b16 %v3608
      %v3886 = vunpack.c.l.b16 %v3609
      %v3887 = vunpack.c.h.b16 %v3609
      %v3888 = vunpack.c.l.b16 %v3610
      %v3889 = vunpack.c.h.b16 %v3610
      %v3890 = vunpack.c.l.b16 %v3611
      %v3891 = vunpack.c.h.b16 %v3611
      %v3892 = vunpack.c.l.b16 %v3612
      %v3893 = vunpack.c.h.b16 %v3612
      %v3894 = vunpack.c.l.b16 %v3613
      %v3895 = vunpack.c.h.b16 %v3613
      %v3896 = vunpack.c.l.b16 %v3614
      %v3897 = vunpack.c.h.b16 %v3614
      %v3898 = vunpack.c.l.b16 %v3615
      %v3899 = vunpack.c.h.b16 %v3615
      %v3900 = vunpack.c.l.b16 %v3616
      %v3901 = vunpack.c.h.b16 %v3616
      %v3902 = vunpack.c.l.b16 %v3617
      %v3903 = vunpack.c.h.b16 %v3617
      %v3904 = vunpack.c.l.b16 %v3618
      %v3905 = vunpack.c.h.b16 %v3618
      %v3906 = vunpack.c.l.b16 %v3619
      %v3907 = vunpack.c.h.b16 %v3619
      %v3908 = vunpack.c.l.b16 %v3620
      %v3909 = vunpack.c.h.b16 %v3620
      %v3910 = vunpack.c.l.b16 %v3621
      %v3911 = vunpack.c.h.b16 %v3621
      %v3912 = vunpack.c.l.b16 %v3622
      %v3913 = vunpack.c.h.b16 %v3622
      %v3914 = vunpack.c.l.b16 %v3623
      %v3915 = vunpack.c.h.b16 %v3623
      %v3916 = vunpack.c.l.b16 %v3624
      %v3917 = vunpack.c.h.b16 %v3624
      %v3918 = vunpack.c.l.b16 %v3625
      %v3919 = vunpack.c.h.b16 %v3625
      %v3920 = vunpack.c.l.b16 %v3626
      %v3921 = vunpack.c.h.b16 %v3626
      %v3922 = vunpack.c.l.b16 %v3627
      %v3923 = vunpack.c.h.b16 %v3627
      %v3924 = vunpack.c.l.b16 %v3628
      %v3925 = vunpack.c.h.b16 %v3628
      %v3926 = vunpack.c.l.b16 %v3629
      %v3927 = vunpack.c.h.b16 %v3629
      %v3928 = vunpack.c.l.b16 %v3630
      %v3929 = vunpack.c.h.b16 %v3630
      %v3930 = vunpack.c.l.b16 %v3631
      %v3931 = vunpack.c.h.b16 %v3631
      %v3932 = vunpack.c.l.b16 %v3632
      %v3933 = vunpack.c.h.b16 %v3632
      %v3934 = vunpack.c.l.b16 %v3633
      %v3935 = vunpack.c.h.b16 %v3633
      %v3936 = vunpack.c.l.b16 %v3634
      %v3937 = vunpack.c.h.b16 %v3634
      %v3938 = vunpack.c.l.b16 %v3635
      %v3939 = vunpack.c.h.b16 %v3635
      %v3940 = vunpack.c.l.b16 %v3636
      %v3941 = vunpack.c.h.b16 %v3636
      %v3942 = vunpack.c.l.b16 %v3637
      %v3943 = vunpack.c.h.b16 %v3637
      %v3944 = vunpack.c.l.b16 %v3638
      %v3945 = vunpack.c.h.b16 %v3638
      %v3946 = vunpack.c.l.b16 %v3639
      %v3947 = vunpack.c.h.b16 %v3639
      %v3948 = vunpack.c.l.b16 %v3640
      %v3949 = vunpack.c.h.b16 %v3640
      %v3950 = vunpack.c.l.b16 %v3641
      %v3951 = vunpack.c.h.b16 %v3641
      %v3952 = vunpack.c.l.b16 %v3642
      %v3953 = vunpack.c.h.b16 %v3642
      %v3954 = vunpack.c.l.b16 %v3643
      %v3955 = vunpack.c.h.b16 %v3643
      %v3956 = vunpack.c.l.b16 %v3644
      %v3957 = vunpack.c.h.b16 %v3644
      %v3958 = vunpack.c.l.b16 %v3645
      %v3959 = vunpack.c.h.b16 %v3645
      %v3960 = vunpack.c.l.b16 %v3646
      %v3961 = vunpack.c.h.b16 %v3646
      %v3962 = vunpack.c.l.b16 %v3647
      %v3963 = vunpack.c.h.b16 %v3647
      %v3964 = vunpack.c.l.b16 %v3648
      %v3965 = vunpack.c.h.b16 %v3648
      %v3966 = vunpack.c.l.b16 %v3649
      %v3967 = vunpack.c.h.b16 %v3649
      %v3968 = vunpack.c.l.b16 %v3650
      %v3969 = vunpack.c.h.b16 %v3650
      %v3970 = vunpack.c.l.b16 %v3651
      %v3971 = vunpack.c.h.b16 %v3651
      %v3972 = vunpack.c.l.b16 %v3652
      %v3973 = vunpack.c.h.b16 %v3652
      %v3974 = vunpack.c.l.b16 %v3653
      %v3975 = vunpack.c.h.b16 %v3653
      %v3976 = vunpack.c.l.b16 %v3654
      %v3977 = vunpack.c.h.b16 %v3654
      %v3978 = vunpack.c.l.b16 %v3655
      %v3979 = vunpack.c.h.b16 %v3655
      %v3980 = vpack.c.b16 %v3768, %v3764
      %v3981 = vpack.c.b16 %v3769, %v3765
      %v3982 = vpack.c.b16 %v3770, %v3766
      %v3983 = vpack.c.b16 %v3771, %v3767
      %v3984 = vpack.c.b16 %v3776, %v3772
      %v3985 = vpack.c.b16 %v3777, %v3773
      %v3986 = vpack.c.b16 %v3778, %v3774
      %v3987 = vpack.c.b16 %v3779, %v3775
      %v3988 = vpack.c.b16 %v3784, %v3780
      %v3989 = vpack.c.b16 %v3785, %v3781
      %v3990 = vpack.c.b16 %v3786, %v3782
      %v3991 = vpack.c.b16 %v3787, %v3783
      %v3992 = vpack.c.b16 %v3792, %v3788
      %v3993 = vpack.c.b16 %v3793, %v3789
      %v3994 = vpack.c.b16 %v3794, %v3790
      %v3995 = vpack.c.b16 %v3795, %v3791
      %v3996 = vpack.c.b16 %v3800, %v3796
      %v3997 = vpack.c.b16 %v3801, %v3797
      %v3998 = vpack.c.b16 %v3802, %v3798
      %v3999 = vpack.c.b16 %v3803, %v3799
      %v4000 = vpack.c.b16 %v3808, %v3804
      %v4001 = vpack.c.b16 %v3809, %v3805
      %v4002 = vpack.c.b16 %v3810, %v3806
      %v4003 = vpack.c.b16 %v3811, %v3807
      %v4004 = vpack.c.b16 %v3816, %v3812
      %v4005 = vpack.c.b16 %v3817, %v3813
      %v4006 = vpack.c.b16 %v3818, %v3814
      %v4007 = vpack.c.b16 %v3819, %v3815
      %v4008 = vpack.c.b16 %v3824, %v3820
      %v4009 = vpack.c.b16 %v3825, %v3821
      %v4010 = vpack.c.b16 %v3826, %v3822
      %v4011 = vpack.c.b16 %v3827, %v3823
      %v4012 = vpack.c.b16 %v3832, %v3828
      %v4013 = vpack.c.b16 %v3833, %v3829
      %v4014 = vpack.c.b16 %v3834, %v3830
      %v4015 = vpack.c.b16 %v3835, %v3831
      %v4016 = vpack.c.b16 %v3840, %v3836
      %v4017 = vpack.c.b16 %v3841, %v3837
      %v4018 = vpack.c.b16 %v3842, %v3838
      %v4019 = vpack.c.b16 %v3843, %v3839
      %v4020 = vpack.c.b16 %v3848, %v3844
      %v4021 = vpack.c.b16 %v3849, %v3845
      %v4022 = vpack.c.b16 %v3850, %v3846
      %v4023 = vpack.c.b16 %v3851, %v3847
      %v4024 = vpack.c.b16 %v3856, %v3852
      %v4025 = vpack.c.b16 %v3857, %v3853
      %v4026 = vpack.c.b16 %v3858, %v3854
      %v4027 = vpack.c.b16 %v3859, %v3855
      %v4028 = vpack.c.b16 %v3864, %v3860
      %v4029 = vpack.c.b16 %v3865, %v3861
      %v4030 = vpack.c.b16 %v3866, %v3862
      %v4031 = vpack.c.b16 %v3867, %v3863
      %v4032 = vpack.c.b16 %v3872, %v3868
      %v4033 = vpack.c.b16 %v3873, %v3869
      %v4034 = vpack.c.b16 %v3874, %v3870
      %v4035 = vpack.c.b16 %v3875, %v3871
      %v4036 = vpack.c.b16 %v3880, %v3876
      %v4037 = vpack.c.b16 %v3881, %v3877
      %v4038 = vpack.c.b16 %v3882, %v3878
      %v4039 = vpack.c.b16 %v3883, %v3879
      %v4040 = vpack.c.b16 %v3888, %v3884
      %v4041 = vpack.c.b16 %v3889, %v3885
      %v4042 = vpack.c.b16 %v3890, %v3886
      %v4043 = vpack.c.b16 %v3891, %v3887
      %v4044 = vpack.c.b16 %v3896, %v3892
      %v4045 = vpack.c.b16 %v3897, %v3893
      %v4046 = vpack.c.b16 %v3898, %v3894
      %v4047 = vpack.c.b16 %v3899, %v3895
      %v4048 = vpack.c.b16 %v3904, %v3900
      %v4049 = vpack.c.b16 %v3905, %v3901
      %v4050 = vpack.c.b16 %v3906, %v3902
      %v4051 = vpack.c.b16 %v3907, %v3903
      %v4052 = vpack.c.b16 %v3912, %v3908
      %v4053 = vpack.c.b16 %v3913, %v3909
      %v4054 = vpack.c.b16 %v3914, %v3910
      %v4055 = vpack.c.b16 %v3915, %v3911
      %v4056 = vpack.c.b16 %v3920, %v3916
      %v4057 = vpack.c.b16 %v3921, %v3917
      %v4058 = vpack.c.b16 %v3922, %v3918
      %v4059 = vpack.c.b16 %v3923, %v3919
      %v4060 = vpack.c.b16 %v3928, %v3924
      %v4061 = vpack.c.b16 %v3929, %v3925
      %v4062 = vpack.c.b16 %v3930, %v3926
      %v4063 = vpack.c.b16 %v3931, %v3927
      %v4064 = vpack.c.b16 %v3936, %v3932
      %v4065 = vpack.c.b16 %v3937, %v3933
      %v4066 = vpack.c.b16 %v3938, %v3934
      %v4067 = vpack.c.b16 %v3939, %v3935
      %v4068 = vpack.c.b16 %v3944, %v3940
      %v4069 = vpack.c.b16 %v3945, %v3941
      %v4070 = vpack.c.b16 %v3946, %v3942
      %v4071 = vpack.c.b16 %v3947, %v3943
      %v4072 = vpack.c.b16 %v3952, %v3948
      %v4073 = vpack.c.b16 %v3953, %v3949
      %v4074 = vpack.c.b16 %v3954, %v3950
      %v4075 = vpack.c.b16 %v3955, %v3951
      %v4076 = vpack.c.b16 %v3960, %v3956
      %v4077 = vpack.c.b16 %v3961, %v3957
      %v4078 = vpack.c.b16 %v3962, %v3958
      %v4079 = vpack.c.b16 %v3963, %v3959
      %v4080 = vpack.c.b16 %v3968, %v3964
      %v4081 = vpack.c.b16 %v3969, %v3965
      %v4082 = vpack.c.b16 %v3970, %v3966
      %v4083 = vpack.c.b16 %v3971, %v3967
      %v4084 = vpack.c.b16 %v3976, %v3972
      %v4085 = vpack.c.b16 %v3977, %v3973
      %v4086 = vpack.c.b16 %v3978, %v3974
      %v4087 = vpack.c.b16 %v3979, %v3975
      %4196 = vmatpush.bf16.msra.mxu0 %v4008
      %4197 = vmatpush.bf16.msra.mxu0 %v4004
      %4198 = vmatpush.bf16.msra.mxu0 %v4000
      %4199 = vmatpush.bf16.msra.mxu0 %v3996
      %4200 = vmatpush.bf16.msra.mxu0 %v3992
      %4201 = vmatpush.bf16.msra.mxu0 %v3988
      %4202 = vmatpush.bf16.msra.mxu0 %v3984
      %4203 = vmatpush.bf16.msra.mxu0 %v3980
      %4204 = vmatmul.bf16.gmra.mxu0 %v1555
      %v4205 = vpop.f32.mrf.mxu0
      %v4206 = vadd.f32 0.0, %v4205
      %v4207 = vpop.f32.mrf.mxu0
      %4208 = vdwg.mxu0
      %4209 = vmatpush.bf16.msra.mxu0 %v4040
      %4210 = vmatpush.bf16.msra.mxu0 %v4036
      %4211 = vmatpush.bf16.msra.mxu0 %v4032
      %4212 = vmatpush.bf16.msra.mxu0 %v4028
      %4213 = vmatpush.bf16.msra.mxu0 %v4024
      %4214 = vmatpush.bf16.msra.mxu0 %v4020
      %4215 = vmatpush.bf16.msra.mxu0 %v4016
      %4216 = vmatpush.bf16.msra.mxu0 %v4012
      %4217 = vmatmul.bf16.gmra.mxu0 %v1556
      %v4218 = vpop.f32.mrf.mxu0
      %v4219 = vadd.f32 %v4206, %v4218
      %v4220 = vpop.f32.mrf.mxu0
      %4221 = vdwg.mxu0
      %4222 = vmatpush.bf16.msra.mxu0 %v4072
      %4223 = vmatpush.bf16.msra.mxu0 %v4068
      %4224 = vmatpush.bf16.msra.mxu0 %v4064
      %4225 = vmatpush.bf16.msra.mxu0 %v4060
      %4226 = vmatpush.bf16.msra.mxu0 %v4056
      %4227 = vmatpush.bf16.msra.mxu0 %v4052
      %4228 = vmatpush.bf16.msra.mxu0 %v4048
      %4229 = vmatpush.bf16.msra.mxu0 %v4044
      %4230 = vmatmul.bf16.gmra.mxu0 %v1557
      %v4231 = vpop.f32.mrf.mxu0
      %v4232 = vadd.f32 %v4219, %v4231
      %v4233 = vpop.f32.mrf.mxu0
      %4234 = vdwg.mxu0
      %4235 = vmatpush.bf16.msra.mxu0 0
      %4236 = vmatpush.bf16.msra.mxu0 0
      %4237 = vmatpush.bf16.msra.mxu0 0
      %4238 = vmatpush.bf16.msra.mxu0 0
      %4239 = vmatpush.bf16.msra.mxu0 0
      %4240 = vmatpush.bf16.msra.mxu0 %v4084
      %4241 = vmatpush.bf16.msra.mxu0 %v4080
      %4242 = vmatpush.bf16.msra.mxu0 %v4076
      %4243 = vmatmul.bf16.gmra.mxu0 %v2104
      %v4244 = vpop.f32.mrf.mxu0
      %v4245 = vadd.f32 %v4232, %v4244
      %v4246 = vpop.f32.mrf.mxu0
      %4247 = vdwg.mxu0
      %4248 = vmatpush.bf16.msra.mxu0 %v4009
      %4249 = vmatpush.bf16.msra.mxu0 %v4005
      %4250 = vmatpush.bf16.msra.mxu0 %v4001
      %4251 = vmatpush.bf16.msra.mxu0 %v3997
      %4252 = vmatpush.bf16.msra.mxu0 %v3993
      %4253 = vmatpush.bf16.msra.mxu0 %v3989
      %4254 = vmatpush.bf16.msra.mxu0 %v3985
      %4255 = vmatpush.bf16.msra.mxu0 %v3981
      %4256 = vmatmul.bf16.gmra.mxu0 %v1555
      %v4257 = vpop.f32.mrf.mxu0
      %v4258 = vadd.f32 0.0, %v4257
      %v4259 = vpop.f32.mrf.mxu0
      %4260 = vdwg.mxu0
      %4261 = vmatpush.bf16.msra.mxu0 %v4041
      %4262 = vmatpush.bf16.msra.mxu0 %v4037
      %4263 = vmatpush.bf16.msra.mxu0 %v4033
      %4264 = vmatpush.bf16.msra.mxu0 %v4029
      %4265 = vmatpush.bf16.msra.mxu0 %v4025
      %4266 = vmatpush.bf16.msra.mxu0 %v4021
      %4267 = vmatpush.bf16.msra.mxu0 %v4017
      %4268 = vmatpush.bf16.msra.mxu0 %v4013
      %4269 = vmatmul.bf16.gmra.mxu0 %v1556
      %v4270 = vpop.f32.mrf.mxu0
      %v4271 = vadd.f32 %v4258, %v4270
      %v4272 = vpop.f32.mrf.mxu0
      %4273 = vdwg.mxu0
      %4274 = vmatpush.bf16.msra.mxu0 %v4073
      %4275 = vmatpush.bf16.msra.mxu0 %v4069
      %4276 = vmatpush.bf16.msra.mxu0 %v4065
      %4277 = vmatpush.bf16.msra.mxu0 %v4061
      %4278 = vmatpush.bf16.msra.mxu0 %v4057
      %4279 = vmatpush.bf16.msra.mxu0 %v4053
      %4280 = vmatpush.bf16.msra.mxu0 %v4049
      %4281 = vmatpush.bf16.msra.mxu0 %v4045
      %4282 = vmatmul.bf16.gmra.mxu0 %v1557
      %v4283 = vpop.f32.mrf.mxu0
      %v4284 = vadd.f32 %v4271, %v4283
      %v4285 = vpop.f32.mrf.mxu0
      %4286 = vdwg.mxu0
      %4287 = vmatpush.bf16.msra.mxu0 0
      %4288 = vmatpush.bf16.msra.mxu0 0
      %4289 = vmatpush.bf16.msra.mxu0 0
      %4290 = vmatpush.bf16.msra.mxu0 0
      %4291 = vmatpush.bf16.msra.mxu0 0
      %4292 = vmatpush.bf16.msra.mxu0 %v4085
      %4293 = vmatpush.bf16.msra.mxu0 %v4081
      %4294 = vmatpush.bf16.msra.mxu0 %v4077
      %4295 = vmatmul.bf16.gmra.mxu0 %v2104
      %v4296 = vpop.f32.mrf.mxu0
      %v4297 = vadd.f32 %v4284, %v4296
      %v4298 = vpop.f32.mrf.mxu0
      %4299 = vdwg.mxu0
      %4300 = vmatpush.bf16.msra.mxu0 %v4010
      %4301 = vmatpush.bf16.msra.mxu0 %v4006
      %4302 = vmatpush.bf16.msra.mxu0 %v4002
      %4303 = vmatpush.bf16.msra.mxu0 %v3998
      %4304 = vmatpush.bf16.msra.mxu0 %v3994
      %4305 = vmatpush.bf16.msra.mxu0 %v3990
      %4306 = vmatpush.bf16.msra.mxu0 %v3986
      %4307 = vmatpush.bf16.msra.mxu0 %v3982
      %4308 = vmatmul.bf16.gmra.mxu0 %v1555
      %v4309 = vpop.f32.mrf.mxu0
      %v4310 = vadd.f32 0.0, %v4309
      %v4311 = vpop.f32.mrf.mxu0
      %4312 = vdwg.mxu0
      %4313 = vmatpush.bf16.msra.mxu0 %v4042
      %4314 = vmatpush.bf16.msra.mxu0 %v4038
      %4315 = vmatpush.bf16.msra.mxu0 %v4034
      %4316 = vmatpush.bf16.msra.mxu0 %v4030
      %4317 = vmatpush.bf16.msra.mxu0 %v4026
      %4318 = vmatpush.bf16.msra.mxu0 %v4022
      %4319 = vmatpush.bf16.msra.mxu0 %v4018
      %4320 = vmatpush.bf16.msra.mxu0 %v4014
      %4321 = vmatmul.bf16.gmra.mxu0 %v1556
      %v4322 = vpop.f32.mrf.mxu0
      %v4323 = vadd.f32 %v4310, %v4322
      %v4324 = vpop.f32.mrf.mxu0
      %4325 = vdwg.mxu0
      %4326 = vmatpush.bf16.msra.mxu0 %v4074
      %4327 = vmatpush.bf16.msra.mxu0 %v4070
      %4328 = vmatpush.bf16.msra.mxu0 %v4066
      %4329 = vmatpush.bf16.msra.mxu0 %v4062
      %4330 = vmatpush.bf16.msra.mxu0 %v4058
      %4331 = vmatpush.bf16.msra.mxu0 %v4054
      %4332 = vmatpush.bf16.msra.mxu0 %v4050
      %4333 = vmatpush.bf16.msra.mxu0 %v4046
      %4334 = vmatmul.bf16.gmra.mxu0 %v1557
      %v4335 = vpop.f32.mrf.mxu0
      %v4336 = vadd.f32 %v4323, %v4335
      %v4337 = vpop.f32.mrf.mxu0
      %4338 = vdwg.mxu0
      %4339 = vmatpush.bf16.msra.mxu0 0
      %4340 = vmatpush.bf16.msra.mxu0 0
      %4341 = vmatpush.bf16.msra.mxu0 0
      %4342 = vmatpush.bf16.msra.mxu0 0
      %4343 = vmatpush.bf16.msra.mxu0 0
      %4344 = vmatpush.bf16.msra.mxu0 %v4086
      %4345 = vmatpush.bf16.msra.mxu0 %v4082
      %4346 = vmatpush.bf16.msra.mxu0 %v4078
      %4347 = vmatmul.bf16.gmra.mxu0 %v2104
      %v4348 = vpop.f32.mrf.mxu0
      %v4349 = vadd.f32 %v4336, %v4348
      %v4350 = vpop.f32.mrf.mxu0
      %4351 = vdwg.mxu0
      %4352 = vmatpush.bf16.msra.mxu0 %v4011
      %4353 = vmatpush.bf16.msra.mxu0 %v4007
      %4354 = vmatpush.bf16.msra.mxu0 %v4003
      %4355 = vmatpush.bf16.msra.mxu0 %v3999
      %4356 = vmatpush.bf16.msra.mxu0 %v3995
      %4357 = vmatpush.bf16.msra.mxu0 %v3991
      %4358 = vmatpush.bf16.msra.mxu0 %v3987
      %4359 = vmatpush.bf16.msra.mxu0 %v3983
      %4360 = vmatmul.bf16.gmra.mxu0 %v1555
      %v4361 = vpop.f32.mrf.mxu0
      %v4362 = vadd.f32 0.0, %v4361
      %v4363 = vpop.f32.mrf.mxu0
      %4364 = vdwg.mxu0
      %4365 = vmatpush.bf16.msra.mxu0 %v4043
      %4366 = vmatpush.bf16.msra.mxu0 %v4039
      %4367 = vmatpush.bf16.msra.mxu0 %v4035
      %4368 = vmatpush.bf16.msra.mxu0 %v4031
      %4369 = vmatpush.bf16.msra.mxu0 %v4027
      %4370 = vmatpush.bf16.msra.mxu0 %v4023
      %4371 = vmatpush.bf16.msra.mxu0 %v4019
      %4372 = vmatpush.bf16.msra.mxu0 %v4015
      %4373 = vmatmul.bf16.gmra.mxu0 %v1556
      %v4374 = vpop.f32.mrf.mxu0
      %v4375 = vadd.f32 %v4362, %v4374
      %v4376 = vpop.f32.mrf.mxu0
      %4377 = vdwg.mxu0
      %4378 = vmatpush.bf16.msra.mxu0 %v4075
      %4379 = vmatpush.bf16.msra.mxu0 %v4071
      %4380 = vmatpush.bf16.msra.mxu0 %v4067
      %4381 = vmatpush.bf16.msra.mxu0 %v4063
      %4382 = vmatpush.bf16.msra.mxu0 %v4059
      %4383 = vmatpush.bf16.msra.mxu0 %v4055
      %4384 = vmatpush.bf16.msra.mxu0 %v4051
      %4385 = vmatpush.bf16.msra.mxu0 %v4047
      %4386 = vmatmul.bf16.gmra.mxu0 %v1557
      %v4387 = vpop.f32.mrf.mxu0
      %v4388 = vadd.f32 %v4375, %v4387
      %v4389 = vpop.f32.mrf.mxu0
      %4390 = vdwg.mxu0
      %4391 = vmatpush.bf16.msra.mxu0 0
      %4392 = vmatpush.bf16.msra.mxu0 0
      %4393 = vmatpush.bf16.msra.mxu0 0
      %4394 = vmatpush.bf16.msra.mxu0 0
      %4395 = vmatpush.bf16.msra.mxu0 0
      %4396 = vmatpush.bf16.msra.mxu0 %v4087
      %4397 = vmatpush.bf16.msra.mxu0 %v4083
      %4398 = vmatpush.bf16.msra.mxu0 %v4079
      %4399 = vmatmul.bf16.gmra.mxu0 %v2104
      %v4400 = vpop.f32.mrf.mxu0
      %v4401 = vadd.f32 %v4388, %v4400
      %v4402 = vpop.f32.mrf.mxu0
      %4403 = vdwg.mxu0
      %v4404 = vld [vmem:[%s2 + $0x4] sm:$0xf]
      %v4406 = vperm.slane %v4404, 0
      %v4407 = vperm.slane %v4404, 1
      %v4408 = vperm.slane %v4404, 2
      %v4409 = vperm.slane %v4404, 3
      %v4414 = vmul.f32 %v4245, %v4406
      %v4415 = vmul.f32 %v4297, %v4407
      %v4416 = vmul.f32 %v4349, %v4408
      %v4417 = vmul.f32 %v4401, %v4409
      %v4418 = vadd.f32 %v4414, %v4415
      %v4419 = vadd.f32 %v4418, %v4416
      %v4420 = vadd.f32 %v4419, %v4417
      %4421 = vadd.xlane.f32.xlu0 %v4420
      %v4422 = vpop.xlane.xlu0 %4421
      %v4423 = vadd.f32 %v2333, %v4422
      %v4424 = vmul.f32 %v4414, %v4245
      %v4425 = vmul.f32 %v4415, %v4297
      %v4426 = vmul.f32 %v4416, %v4349
      %v4427 = vmul.f32 %v4417, %v4401
      %v4428 = vadd.f32 %v4424, %v4425
      %v4429 = vadd.f32 %v4428, %v4426
      %v4430 = vadd.f32 %v4429, %v4427
      %4431 = vadd.xlane.f32.xlu0 %v4430
      %v4432 = vpop.xlane.xlu0 %4431
      %v4433 = vadd.f32 %v2343, %v4432
      %vm4434 = vcmask 7168
      %4435 = vst.msk [vmem:[%s202] sm:$0xff] %vm4434, %v4423
      %4436 = vst.msk [vmem:[%s206] sm:$0xff] %vm4434, %v4433
      %p4437 = scmp.lt.s32.totalorder %s16, 1
      %s4438 = scalar_select %p4437, %s16, 1
      %s4439 = smul.addr %s4438, 8
      %s4440 = scalar_lea.vmem %s3, %s4439
      %p4441 = scmp.lt.s32.totalorder %s16, 1
      %s4442 = scalar_select %p4441, %s16, 1
      %s4443 = smul.addr %s4442, 8
      %s4444 = scalar_lea.vmem %s4, %s4443
      // Predicated region
      $region33: #{conv_block_forward.2} parent=31 // pred_check
        %p4445 = pneg %p102
      $region34: #{conv_block_forward.2} parent=31 // pred_check_branch
        %4447 = sbr.rel (%p4445) target = $region36
      $region35: #{conv_block_forward.2} parent=31 // pred_region
        _
      $region36: #{conv_block_forward.2} parent=31 // pred_fallthru
        _
      // Predicated region
      $region37: #{conv_block_forward.2} parent=31 // pred_check
        %p4448 = pneg %p128
      $region38: #{conv_block_forward.2} parent=31 // pred_check_branch
        %4450 = sbr.rel (%p4448) target = $region40
      $region39: #{conv_block_forward.2} parent=31 // pred_region
        _
      $region40: #{conv_block_forward.2} parent=31 // pred_fallthru
        _
    $region32: #{conv_block_forward.2} parent=5 // pred_fallthru
      _
    %p4451 = scmp.le.s32.totalorder 2, %s11
    // Predicated region
    $region41: #{conv_block_forward.2} parent=5 // pred_check
      %p4452 = pneg %p4451
    $region42: #{conv_block_forward.2} parent=5 // pred_check_branch
      %4454 = sbr.rel (%p4452) target = $region44
    $region43: #{conv_block_forward.2} parent=5 // pred_region
      %s4455 = ssub.s32 %s11, 2
      // Predicated region
      $region45: #{conv_block_forward.2} parent=43 // pred_check
        %p4456 = pneg %p108
      $region46: #{conv_block_forward.2} parent=43 // pred_check_branch
        %4458 = sbr.rel (%p4456) target = $region48
      $region47: #{conv_block_forward.2} parent=43 // pred_region
        %p4459 = scmp.lt.s32.totalorder %s17, 1
        %s4460 = scalar_select %p4459, %s17, 1
        %s4461 = smul.addr %s4460, 8
        %s4462 = scalar_lea.vmem %s3, %s4461
      $region48: #{conv_block_forward.2} parent=43 // pred_fallthru
        _
      // Predicated region
      $region49: #{conv_block_forward.2} parent=43 // pred_check
        %p4463 = pneg %p134
      $region50: #{conv_block_forward.2} parent=43 // pred_check_branch
        %4465 = sbr.rel (%p4463) target = $region52
      $region51: #{conv_block_forward.2} parent=43 // pred_region
        %p4466 = scmp.lt.s32.totalorder %s17, 1
        %s4467 = scalar_select %p4466, %s17, 1
        %s4468 = smul.addr %s4467, 8
        %s4469 = scalar_lea.vmem %s4, %s4468
      $region52: #{conv_block_forward.2} parent=43 // pred_fallthru
        _
    $region44: #{conv_block_forward.2} parent=5 // pred_fallthru
      _
  $region6: #{conv_block_forward.2} parent=0 // loop_footer
    %s15 = sadd.s32 1, %s11
  $region7: #{conv_block_forward.2} parent=0 // loop_footer_branch
    %10 = sbr.rel target = $region3
  $region8: #{conv_block_forward.2} parent=0 // loop_exit
    _

// kernel: conv_block_forward.3
$region0: #{conv_block_forward.3}
  #allocation0 [shape = 'u32[]', space=smem, size = 0x4, offset = 0x4, fixed_abs, tag = 'smem constant byte address 0x4 - core index']
  #allocation1 [shape = 'u32[72,128]{1,0:T(1,128)}', space=vmem, size = 0x9000, scoped, tag = 'internal scratch']
  #allocation2 [shape = 'bf16[432,512]{1,0:T(8,128)(2,1)}', space=vmem, size = 0x6c000, scoped, tag = 'scratch operand']
  %s0 = inlined_call_operand.vmem [shape: bf16[2,16,1300], index: 0, kind: input, shape index: {}]
  %s1 = inlined_call_operand.vmem [shape: bf16[8,432], index: 1, kind: input, shape index: {}]
  %s2 = inlined_call_operand.vmem [shape: f32[8,1], index: 2, kind: input, shape index: {}]
  %s3 = inlined_call_operand.vmem [shape: f32[8,1], index: 3, kind: input, shape index: {}]
  %s4 = inlined_call_operand.vmem [shape: f32[2,8,1024], index: 4, kind: output, shape index: {}]
  %s5 = sld [smem:[#allocation0]]
  $region49: #{conv_block_forward.3} parent=0
    _
  %s7 = ssub.s32 1, %s5
  %s8 = scalar_select 0, %s7, %s5
  loop: start=0, step=1, limit=4
  $region2: #{conv_block_forward.3} parent=0 // loop_pre_header
    _
  $region3: #{conv_block_forward.3} parent=0 // loop_header
    %s10 = sphi 0, %s14
    %p11 = scmp.ge.s32.totalorder %s10, 4
    %s20 = sphi 0, %s22
    %s23 = sphi 0, %s20
    %s24 = sphi 0, %s23
    %s40 = sphi 0, %s24
    %s44 = sphi 0, %s44
    %s46 = sphi 0, %s44
    %s47 = sphi 0, %s46
    %s61 = sphi 0, %s47
    %s65 = sphi 0, %s65
    %s67 = sphi 0, %s65
    %s68 = sphi 0, %s67
    %s82 = sphi 0, %s68
    %s86 = sphi 0, %s86
    %s88 = sphi 0, %s86
    %s89 = sphi 0, %s88
    %s103 = sphi 0, %s89
    %s109 = sphi 0, %s111
    %s112 = sphi 0, %s109
    %s113 = sphi 0, %s112
    %s129 = sphi 0, %s113
  $region4: #{conv_block_forward.3} parent=0 // loop_header_branch
    %13 = sbr.rel (%p11) target = $region8
  $region5: #{conv_block_forward.3} parent=0 // loop_body
    %s15 = ssub.s32 %s10, 1
    %s16 = ssub.s32 %s10, 2
    %s17 = sadd.s32 %s10, 1
    %s18 = ssub.s32 %s10, %s17
    %p19 = scmp.eq.s32.totalorder %s18, 0
    %s21 = sadd.s32 %s20, 1
    %s22 = scalar_select %p19, %s20, %s21
    %p25 = pneg %p19
    %p26 = scmp.eq.s32.totalorder %s10, 1
    %p27 = por %p25, %p26
    %p28 = scmp.ne.s32.totalorder %s20, %s23
    %p29 = scmp.eq.s32.totalorder %s10, 0
    %p30 = por %p28, %p29
    %p31 = scmp.ne.s32.totalorder %s20, %s23
    %p32 = scmp.eq.s32.totalorder %s15, 1
    %p33 = por %p31, %p32
    %p34 = scmp.ne.s32.totalorder %s23, %s24
    %p35 = scmp.eq.s32.totalorder %s15, 0
    %p36 = por %p34, %p35
    %p37 = scmp.ne.s32.totalorder %s23, %s24
    %p38 = scmp.eq.s32.totalorder %s16, 1
    %p39 = por %p37, %p38
    %p41 = scmp.ne.s32.totalorder %s24, %s40
    %p42 = scmp.eq.s32.totalorder %s16, 0
    %p43 = por %p41, %p42
    %s45 = sadd.s32 %s44, 1
    %p48 = scmp.eq.s32.totalorder %s10, 1
    %p49 = scmp.ne.s32.totalorder %s44, %s46
    %p50 = scmp.eq.s32.totalorder %s10, 0
    %p51 = por %p49, %p50
    %p52 = scmp.ne.s32.totalorder %s44, %s46
    %p53 = scmp.eq.s32.totalorder %s15, 1
    %p54 = por %p52, %p53
    %p55 = scmp.ne.s32.totalorder %s46, %s47
    %p56 = scmp.eq.s32.totalorder %s15, 0
    %p57 = por %p55, %p56
    %p58 = scmp.ne.s32.totalorder %s46, %s47
    %p59 = scmp.eq.s32.totalorder %s16, 1
    %p60 = por %p58, %p59
    %p62 = scmp.ne.s32.totalorder %s47, %s61
    %p63 = scmp.eq.s32.totalorder %s16, 0
    %p64 = por %p62, %p63
    %s66 = sadd.s32 %s65, 1
    %p69 = scmp.eq.s32.totalorder %s10, 1
    %p70 = scmp.ne.s32.totalorder %s65, %s67
    %p71 = scmp.eq.s32.totalorder %s10, 0
    %p72 = por %p70, %p71
    %p73 = scmp.ne.s32.totalorder %s65, %s67
    %p74 = scmp.eq.s32.totalorder %s15, 1
    %p75 = por %p73, %p74
    %p76 = scmp.ne.s32.totalorder %s67, %s68
    %p77 = scmp.eq.s32.totalorder %s15, 0
    %p78 = por %p76, %p77
    %p79 = scmp.ne.s32.totalorder %s67, %s68
    %p80 = scmp.eq.s32.totalorder %s16, 1
    %p81 = por %p79, %p80
    %p83 = scmp.ne.s32.totalorder %s68, %s82
    %p84 = scmp.eq.s32.totalorder %s16, 0
    %p85 = por %p83, %p84
    %s87 = sadd.s32 %s86, 1
    %p90 = scmp.eq.s32.totalorder %s10, 1
    %p91 = scmp.ne.s32.totalorder %s86, %s88
    %p92 = scmp.eq.s32.totalorder %s10, 0
    %p93 = por %p91, %p92
    %p94 = scmp.ne.s32.totalorder %s86, %s88
    %p95 = scmp.eq.s32.totalorder %s15, 1
    %p96 = por %p94, %p95
    %p97 = scmp.ne.s32.totalorder %s88, %s89
    %p98 = scmp.eq.s32.totalorder %s15, 0
    %p99 = por %p97, %p98
    %p100 = scmp.ne.s32.totalorder %s88, %s89
    %p101 = scmp.eq.s32.totalorder %s16, 1
    %p102 = por %p100, %p101
    %p104 = scmp.ne.s32.totalorder %s89, %s103
    %p105 = scmp.eq.s32.totalorder %s16, 0
    %p106 = por %p104, %p105
    %s107 = ssub.s32 %s10, %s17
    %p108 = scmp.eq.s32.totalorder %s107, 0
    %s110 = sadd.s32 %s109, 1
    %s111 = scalar_select %p108, %s109, %s110
    %p114 = pneg %p108
    %p115 = scmp.eq.s32.totalorder %s10, 1
    %p116 = por %p114, %p115
    %p117 = scmp.ne.s32.totalorder %s109, %s112
    %p118 = scmp.eq.s32.totalorder %s10, 0
    %p119 = por %p117, %p118
    %p120 = scmp.ne.s32.totalorder %s109, %s112
    %p121 = scmp.eq.s32.totalorder %s15, 1
    %p122 = por %p120, %p121
    %p123 = scmp.ne.s32.totalorder %s112, %s113
    %p124 = scmp.eq.s32.totalorder %s15, 0
    %p125 = por %p123, %p124
    %p126 = scmp.ne.s32.totalorder %s112, %s113
    %p127 = scmp.eq.s32.totalorder %s16, 1
    %p128 = por %p126, %p127
    %p130 = scmp.ne.s32.totalorder %s113, %s129
    %p131 = scmp.eq.s32.totalorder %s16, 0
    %p132 = por %p130, %p131
    %p133 = scmp.le.s32.totalorder 1, %s10
    %p134 = scmp.lt.s32.totalorder %s10, 3
    %p135 = pnand %p133, %p134
    %p136 = pneg %p135
    // Predicated region
    $region9: #{conv_block_forward.3} parent=5 // pred_check
      _
    $region10: #{conv_block_forward.3} parent=5 // pred_check_branch
      %138 = sbr.rel (%p135) target = $region12
    $region11: #{conv_block_forward.3} parent=5 // pred_region
      %s139 = ssub.s32 %s10, 1
      // Predicated region
      $region13: #{conv_block_forward.3} parent=11 // pred_check
        %p140 = pneg %p57
      $region14: #{conv_block_forward.3} parent=11 // pred_check_branch
        %142 = sbr.rel (%p140) target = $region16
      $region15: #{conv_block_forward.3} parent=11 // pred_region
        _
      $region16: #{conv_block_forward.3} parent=11 // pred_fallthru
        _
      // Predicated region
      $region17: #{conv_block_forward.3} parent=11 // pred_check
        %p143 = pneg %p78
      $region18: #{conv_block_forward.3} parent=11 // pred_check_branch
        %145 = sbr.rel (%p143) target = $region20
      $region19: #{conv_block_forward.3} parent=11 // pred_region
        _
      $region20: #{conv_block_forward.3} parent=11 // pred_fallthru
        _
      // Predicated region
      $region21: #{conv_block_forward.3} parent=11 // pred_check
        %p146 = pneg %p99
      $region22: #{conv_block_forward.3} parent=11 // pred_check_branch
        %148 = sbr.rel (%p146) target = $region24
      $region23: #{conv_block_forward.3} parent=11 // pred_region
        _
      $region24: #{conv_block_forward.3} parent=11 // pred_fallthru
        _
    $region12: #{conv_block_forward.3} parent=5 // pred_fallthru
      _
    %p149 = scmp.lt.s32.totalorder %s10, 2
    // Predicated region
    $region25: #{conv_block_forward.3} parent=5 // pred_check
      %p150 = pneg %p149
    $region26: #{conv_block_forward.3} parent=5 // pred_check_branch
      %152 = sbr.rel (%p150) target = $region28
    $region27: #{conv_block_forward.3} parent=5 // pred_region
      // Predicated region
      $region29: #{conv_block_forward.3} parent=27 // pred_check
        %p153 = pneg %p30
      $region30: #{conv_block_forward.3} parent=27 // pred_check_branch
        %155 = sbr.rel (%p153) target = $region32
      $region31: #{conv_block_forward.3} parent=27 // pred_region
        %p156 = scmp.lt.s32.totalorder %s10, 1
        %s157 = scalar_select %p156, %s10, 1
        %s158 = smul.addr %s157, 22
        %s159 = smul.addr %s158, 4
        %s160 = scalar_lea.vmem %s0, %s159
      $region32: #{conv_block_forward.3} parent=27 // pred_fallthru
        _
    $region28: #{conv_block_forward.3} parent=5 // pred_fallthru
      _
    %p161 = scmp.le.s32.totalorder 1, %s10
    %p162 = scmp.lt.s32.totalorder %s10, 3
    %p163 = pnand %p161, %p162
    %p164 = pneg %p163
    // Predicated region
    $region33: #{conv_block_forward.3} parent=5 // pred_check
      _
    $region34: #{conv_block_forward.3} parent=5 // pred_check_branch
      %166 = sbr.rel (%p163) target = $region36
    $region35: #{conv_block_forward.3} parent=5 // pred_region
      %s167 = ssub.s32 %s10, 1
      %p168 = scmp.lt.s32.totalorder %s15, 1
      %s169 = scalar_select %p168, %s15, 1
      %s170 = smul.addr %s169, 22
      %s171 = smul.addr %s170, 4
      %s172 = scalar_lea.vmem %s0, %s171
      %p173 = pneg %p36
      %p174 = pneg %p33
      %p175 = pneg %p57
      %p176 = pneg %p54
      %p177 = pneg %p78
      %p178 = pneg %p75
      %p179 = pneg %p99
      %p180 = pneg %p96
      %p181 = pneg %p125
      %p182 = pneg %p122
      %p183 = scmp.lt.s32.totalorder %s15, 1
      %s184 = scalar_select %p183, %s15, 1
      %s185 = smul.addr %s184, 8
      %s186 = smul.addr %s185, 8
      %s187 = scalar_lea.vmem %s4, %s186
      %p188 = scmp.lt.s32.totalorder %s15, 1
      %s189 = scalar_select %p188, %s15, 1
      %s190 = smul.addr %s189, 22
      %s191 = smul.addr %s190, 4
      %s192 = scalar_lea.vmem %s0, %s191
      %p193 = scmp.lt.s32.totalorder %s15, 1
      %s194 = scalar_select %p193, %s15, 1
      %s195 = smul.addr %s194, 8
      %s196 = smul.addr %s195, 8
      %s197 = scalar_lea.vmem %s4, %s196
      %v199 = vld [vmem:[%s1] sm:$0xff]
      %v200 = vld [vmem:[%s1 + $0x8] sm:$0xff]
      %v201 = vld [vmem:[%s2] sm:$0xff]
      %v202 = vld [vmem:[%s3] sm:$0xff]
      %v203 = vld [vmem:[%s192] sm:$0xff]
      %v204 = vld [vmem:[%s192 + $0x8] sm:$0xff]
      %v205 = vld [vmem:[%s192 + $0x2c] sm:$0xff]
      %v206 = vld [vmem:[%s192 + $0x34] sm:$0xff]
      %207 = vst [vmem:[#allocation2] sm:$0xff] %v203
      %208 = vst [vmem:[#allocation2 + $0x8] sm:$0xff] %v204
      %209 = vst [vmem:[#allocation2 + $0x10] sm:$0xff] %v205
      %210 = vst [vmem:[#allocation2 + $0x18] sm:$0xff] %v206
      %v211 = vld [vmem:[%s192] sm:$0xff]
      %v212 = vld [vmem:[%s192 + $0x8] sm:$0xff]
      %v213 = vld [vmem:[%s192 + $0x10] sm:$0xf]
      %v214 = vld [vmem:[%s192 + $0x2c] sm:$0xff]
      %v215 = vld [vmem:[%s192 + $0x34] sm:$0xff]
      %v216 = vld [vmem:[%s192 + $0x3c] sm:$0xf]
      %223 = vrot.lane.b32.xlu0 %v211, 127
      %v224 = vpop.permute.xlu0 %223
      %225 = vrot.lane.b32.xlu0 %v212, 127
      %v226 = vpop.permute.xlu0 %225
      %227 = vrot.lane.b32.xlu0 %v213, 127
      %v228 = vpop.permute.xlu0 %227
      %229 = vrot.lane.b32.xlu0 %v214, 127
      %v230 = vpop.permute.xlu0 %229
      %231 = vrot.lane.b32.xlu0 %v215, 127
      %v232 = vpop.permute.xlu0 %231
      %233 = vrot.lane.b32.xlu0 %v216, 127
      %v234 = vpop.permute.xlu0 %233
      %v235 = vrot.slane %v224, 4
      %v236 = vrot.slane %v226, 4
      %v237 = vrot.slane %v228, 4
      %v238 = vrot.slane %v230, 4
      %v239 = vrot.slane %v232, 4
      %v240 = vrot.slane %v234, 4
      %vm241 = vcmask 1043456
      %v242 = vsel %vm241, %v235, %v236
      %vm243 = vcmask 1039360
      %v244 = vsel %vm243, %v224, %v242
      %v245 = vsel %vm241, %v236, %v237
      %v246 = vsel %vm243, %v226, %v245
      %v247 = vsel %vm241, %v238, %v239
      %v248 = vsel %vm243, %v230, %v247
      %v249 = vsel %vm241, %v239, %v240
      %v250 = vsel %vm243, %v232, %v249
      %255 = vst [vmem:[#allocation2 + $0x20] sm:$0xff] %v244
      %256 = vst [vmem:[#allocation2 + $0x28] sm:$0xff] %v246
      %257 = vst [vmem:[#allocation2 + $0x30] sm:$0xff] %v248
      %258 = vst [vmem:[#allocation2 + $0x38] sm:$0xff] %v250
      %v259 = vld [vmem:[%s192] sm:$0xff]
      %v260 = vld [vmem:[%s192 + $0x8] sm:$0xff]
      %v261 = vld [vmem:[%s192 + $0x10] sm:$0xf]
      %v262 = vld [vmem:[%s192 + $0x2c] sm:$0xff]
      %v263 = vld [vmem:[%s192 + $0x34] sm:$0xff]
      %v264 = vld [vmem:[%s192 + $0x3c] sm:$0xf]
      %271 = vrot.lane.b32.xlu0 %v259, 126
      %v272 = vpop.permute.xlu0 %271
      %273 = vrot.lane.b32.xlu0 %v260, 126
      %v274 = vpop.permute.xlu0 %273
      %275 = vrot.lane.b32.xlu0 %v261, 126
      %v276 = vpop.permute.xlu0 %275
      %277 = vrot.lane.b32.xlu0 %v262, 126
      %v278 = vpop.permute.xlu0 %277
      %279 = vrot.lane.b32.xlu0 %v263, 126
      %v280 = vpop.permute.xlu0 %279
      %281 = vrot.lane.b32.xlu0 %v264, 126
      %v282 = vpop.permute.xlu0 %281
      %v283 = vrot.slane %v272, 4
      %v284 = vrot.slane %v274, 4
      %v285 = vrot.slane %v276, 4
      %v286 = vrot.slane %v278, 4
      %v287 = vrot.slane %v280, 4
      %v288 = vrot.slane %v282, 4
      %v289 = vsel %vm241, %v283, %v284
      %vm290 = vcmask 1031168
      %v291 = vsel %vm290, %v272, %v289
      %v292 = vsel %vm241, %v284, %v285
      %v293 = vsel %vm290, %v274, %v292
      %v294 = vsel %vm241, %v286, %v287
      %v295 = vsel %vm290, %v278, %v294
      %v296 = vsel %vm241, %v287, %v288
      %v297 = vsel %vm290, %v280, %v296
      %302 = vst [vmem:[#allocation2 + $0x40] sm:$0xff] %v291
      %303 = vst [vmem:[#allocation2 + $0x48] sm:$0xff] %v293
      %304 = vst [vmem:[#allocation2 + $0x50] sm:$0xff] %v295
      %305 = vst [vmem:[#allocation2 + $0x58] sm:$0xff] %v297
      %v306 = vld [vmem:[%s192] sm:$0xff]
      %v307 = vld [vmem:[%s192 + $0x8] sm:$0xff]
      %v308 = vld [vmem:[%s192 + $0x10] sm:$0xf]
      %v309 = vld [vmem:[%s192 + $0x2c] sm:$0xff]
      %v310 = vld [vmem:[%s192 + $0x34] sm:$0xff]
      %v311 = vld [vmem:[%s192 + $0x3c] sm:$0xf]
      %318 = vrot.lane.b32.xlu0 %v306, 118
      %v319 = vpop.permute.xlu0 %318
      %320 = vrot.lane.b32.xlu0 %v307, 118
      %v321 = vpop.permute.xlu0 %320
      %322 = vrot.lane.b32.xlu0 %v308, 118
      %v323 = vpop.permute.xlu0 %322
      %324 = vrot.lane.b32.xlu0 %v309, 118
      %v325 = vpop.permute.xlu0 %324
      %326 = vrot.lane.b32.xlu0 %v310, 118
      %v327 = vpop.permute.xlu0 %326
      %328 = vrot.lane.b32.xlu0 %v311, 118
      %v329 = vpop.permute.xlu0 %328
      %v330 = vrot.slane %v319, 4
      %v331 = vrot.slane %v321, 4
      %v332 = vrot.slane %v323, 4
      %v333 = vrot.slane %v325, 4
      %v334 = vrot.slane %v327, 4
      %v335 = vrot.slane %v329, 4
      %v336 = vsel %vm241, %v330, %v331
      %vm337 = vcmask 965632
      %v338 = vsel %vm337, %v319, %v336
      %v339 = vsel %vm241, %v331, %v332
      %v340 = vsel %vm337, %v321, %v339
      %v341 = vsel %vm241, %v333, %v334
      %v342 = vsel %vm337, %v325, %v341
      %v343 = vsel %vm241, %v334, %v335
      %v344 = vsel %vm337, %v327, %v343
      %349 = vst [vmem:[#allocation2 + $0x60] sm:$0xff] %v338
      %350 = vst [vmem:[#allocation2 + $0x68] sm:$0xff] %v340
      %351 = vst [vmem:[#allocation2 + $0x70] sm:$0xff] %v342
      %352 = vst [vmem:[#allocation2 + $0x78] sm:$0xff] %v344
      %v353 = vld [vmem:[%s192] sm:$0xff]
      %v354 = vld [vmem:[%s192 + $0x8] sm:$0xff]
      %v355 = vld [vmem:[%s192 + $0x10] sm:$0xf]
      %v356 = vld [vmem:[%s192 + $0x2c] sm:$0xff]
      %v357 = vld [vmem:[%s192 + $0x34] sm:$0xff]
      %v358 = vld [vmem:[%s192 + $0x3c] sm:$0xf]
      %365 = vrot.lane.b32.xlu0 %v353, 117
      %v366 = vpop.permute.xlu0 %365
      %367 = vrot.lane.b32.xlu0 %v354, 117
      %v368 = vpop.permute.xlu0 %367
      %369 = vrot.lane.b32.xlu0 %v355, 117
      %v370 = vpop.permute.xlu0 %369
      %371 = vrot.lane.b32.xlu0 %v356, 117
      %v372 = vpop.permute.xlu0 %371
      %373 = vrot.lane.b32.xlu0 %v357, 117
      %v374 = vpop.permute.xlu0 %373
      %375 = vrot.lane.b32.xlu0 %v358, 117
      %v376 = vpop.permute.xlu0 %375
      %v377 = vrot.slane %v366, 4
      %v378 = vrot.slane %v368, 4
      %v379 = vrot.slane %v370, 4
      %v380 = vrot.slane %v372, 4
      %v381 = vrot.slane %v374, 4
      %v382 = vrot.slane %v376, 4
      %v383 = vsel %vm241, %v377, %v378
      %vm384 = vcmask 957440
      %v385 = vsel %vm384, %v366, %v383
      %v386 = vsel %vm241, %v378, %v379
      %v387 = vsel %vm384, %v368, %v386
      %v388 = vsel %vm241, %v380, %v381
      %v389 = vsel %vm384, %v372, %v388
      %v390 = vsel %vm241, %v381, %v382
      %v391 = vsel %vm384, %v374, %v390
      %396 = vst [vmem:[#allocation2 + $0x80] sm:$0xff] %v385
      %397 = vst [vmem:[#allocation2 + $0x88] sm:$0xff] %v387
      %398 = vst [vmem:[#allocation2 + $0x90] sm:$0xff] %v389
      %399 = vst [vmem:[#allocation2 + $0x98] sm:$0xff] %v391
      %v400 = vld [vmem:[%s192] sm:$0xff]
      %v401 = vld [vmem:[%s192 + $0x8] sm:$0xff]
      %v402 = vld [vmem:[%s192 + $0x10] sm:$0xf]
      %v403 = vld [vmem:[%s192 + $0x2c] sm:$0xff]
      %v404 = vld [vmem:[%s192 + $0x34] sm:$0xff]
      %v405 = vld [vmem:[%s192 + $0x3c] sm:$0xf]
      %412 = vrot.lane.b32.xlu0 %v400, 116
      %v413 = vpop.permute.xlu0 %412
      %414 = vrot.lane.b32.xlu0 %v401, 116
      %v415 = vpop.permute.xlu0 %414
      %416 = vrot.lane.b32.xlu0 %v402, 116
      %v417 = vpop.permute.xlu0 %416
      %418 = vrot.lane.b32.xlu0 %v403, 116
      %v419 = vpop.permute.xlu0 %418
      %420 = vrot.lane.b32.xlu0 %v404, 116
      %v421 = vpop.permute.xlu0 %420
      %422 = vrot.lane.b32.xlu0 %v405, 116
      %v423 = vpop.permute.xlu0 %422
      %v424 = vrot.slane %v413, 4
      %v425 = vrot.slane %v415, 4
      %v426 = vrot.slane %v417, 4
      %v427 = vrot.slane %v419, 4
      %v428 = vrot.slane %v421, 4
      %v429 = vrot.slane %v423, 4
      %v430 = vsel %vm241, %v424, %v425
      %vm431 = vcmask 949248
      %v432 = vsel %vm431, %v413, %v430
      %v433 = vsel %vm241, %v425, %v426
      %v434 = vsel %vm431, %v415, %v433
      %v435 = vsel %vm241, %v427, %v428
      %v436 = vsel %vm431, %v419, %v435
      %v437 = vsel %vm241, %v428, %v429
      %v438 = vsel %vm431, %v421, %v437
      %443 = vst [vmem:[#allocation2 + $0xa0] sm:$0xff] %v432
      %444 = vst [vmem:[#allocation2 + $0xa8] sm:$0xff] %v434
      %445 = vst [vmem:[#allocation2 + $0xb0] sm:$0xff] %v436
      %446 = vst [vmem:[#allocation2 + $0xb8] sm:$0xff] %v438
      %v447 = vld [vmem:[%s192] sm:$0xff]
      %v448 = vld [vmem:[%s192 + $0x8] sm:$0xff]
      %v449 = vld [vmem:[%s192 + $0x10] sm:$0xf]
      %v450 = vld [vmem:[%s192 + $0x2c] sm:$0xff]
      %v451 = vld [vmem:[%s192 + $0x34] sm:$0xff]
      %v452 = vld [vmem:[%s192 + $0x3c] sm:$0xf]
      %459 = vrot.lane.b32.xlu0 %v447, 108
      %v460 = vpop.permute.xlu0 %459
      %461 = vrot.lane.b32.xlu0 %v448, 108
      %v462 = vpop.permute.xlu0 %461
      %463 = vrot.lane.b32.xlu0 %v449, 108
      %v464 = vpop.permute.xlu0 %463
      %465 = vrot.lane.b32.xlu0 %v450, 108
      %v466 = vpop.permute.xlu0 %465
      %467 = vrot.lane.b32.xlu0 %v451, 108
      %v468 = vpop.permute.xlu0 %467
      %469 = vrot.lane.b32.xlu0 %v452, 108
      %v470 = vpop.permute.xlu0 %469
      %v471 = vrot.slane %v460, 4
      %v472 = vrot.slane %v462, 4
      %v473 = vrot.slane %v464, 4
      %v474 = vrot.slane %v466, 4
      %v475 = vrot.slane %v468, 4
      %v476 = vrot.slane %v470, 4
      %v477 = vsel %vm241, %v471, %v472
      %vm478 = vcmask 883712
      %v479 = vsel %vm478, %v460, %v477
      %v480 = vsel %vm241, %v472, %v473
      %v481 = vsel %vm478, %v462, %v480
      %v482 = vsel %vm241, %v474, %v475
      %v483 = vsel %vm478, %v466, %v482
      %v484 = vsel %vm241, %v475, %v476
      %v485 = vsel %vm478, %v468, %v484
      %490 = vst [vmem:[#allocation2 + $0xc0] sm:$0xff] %v479
      %491 = vst [vmem:[#allocation2 + $0xc8] sm:$0xff] %v481
      %492 = vst [vmem:[#allocation2 + $0xd0] sm:$0xff] %v483
      %493 = vst [vmem:[#allocation2 + $0xd8] sm:$0xff] %v485
      %v494 = vld [vmem:[%s192] sm:$0xff]
      %v495 = vld [vmem:[%s192 + $0x8] sm:$0xff]
      %v496 = vld [vmem:[%s192 + $0x10] sm:$0xf]
      %v497 = vld [vmem:[%s192 + $0x2c] sm:$0xff]
      %v498 = vld [vmem:[%s192 + $0x34] sm:$0xff]
      %v499 = vld [vmem:[%s192 + $0x3c] sm:$0xf]
      %506 = vrot.lane.b32.xlu0 %v494, 107
      %v507 = vpop.permute.xlu0 %506
      %508 = vrot.lane.b32.xlu0 %v495, 107
      %v509 = vpop.permute.xlu0 %508
      %510 = vrot.lane.b32.xlu0 %v496, 107
      %v511 = vpop.permute.xlu0 %510
      %512 = vrot.lane.b32.xlu0 %v497, 107
      %v513 = vpop.permute.xlu0 %512
      %514 = vrot.lane.b32.xlu0 %v498, 107
      %v515 = vpop.permute.xlu0 %514
      %516 = vrot.lane.b32.xlu0 %v499, 107
      %v517 = vpop.permute.xlu0 %516
      %v518 = vrot.slane %v507, 4
      %v519 = vrot.slane %v509, 4
      %v520 = vrot.slane %v511, 4
      %v521 = vrot.slane %v513, 4
      %v522 = vrot.slane %v515, 4
      %v523 = vrot.slane %v517, 4
      %v524 = vsel %vm241, %v518, %v519
      %vm525 = vcmask 875520
      %v526 = vsel %vm525, %v507, %v524
      %v527 = vsel %vm241, %v519, %v520
      %v528 = vsel %vm525, %v509, %v527
      %v529 = vsel %vm241, %v521, %v522
      %v530 = vsel %vm525, %v513, %v529
      %v531 = vsel %vm241, %v522, %v523
      %v532 = vsel %vm525, %v515, %v531
      %537 = vst [vmem:[#allocation2 + $0xe0] sm:$0xff] %v526
      %538 = vst [vmem:[#allocation2 + $0xe8] sm:$0xff] %v528
      %539 = vst [vmem:[#allocation2 + $0xf0] sm:$0xff] %v530
      %540 = vst [vmem:[#allocation2 + $0xf8] sm:$0xff] %v532
      %v541 = vld [vmem:[%s192] sm:$0xff]
      %v542 = vld [vmem:[%s192 + $0x8] sm:$0xff]
      %v543 = vld [vmem:[%s192 + $0x10] sm:$0xf]
      %v544 = vld [vmem:[%s192 + $0x2c] sm:$0xff]
      %v545 = vld [vmem:[%s192 + $0x34] sm:$0xff]
      %v546 = vld [vmem:[%s192 + $0x3c] sm:$0xf]
      %553 = vrot.lane.b32.xlu0 %v541, 106
      %v554 = vpop.permute.xlu0 %553
      %555 = vrot.lane.b32.xlu0 %v542, 106
      %v556 = vpop.permute.xlu0 %555
      %557 = vrot.lane.b32.xlu0 %v543, 106
      %v558 = vpop.permute.xlu0 %557
      %559 = vrot.lane.b32.xlu0 %v544, 106
      %v560 = vpop.permute.xlu0 %559
      %561 = vrot.lane.b32.xlu0 %v545, 106
      %v562 = vpop.permute.xlu0 %561
      %563 = vrot.lane.b32.xlu0 %v546, 106
      %v564 = vpop.permute.xlu0 %563
      %v565 = vrot.slane %v554, 4
      %v566 = vrot.slane %v556, 4
      %v567 = vrot.slane %v558, 4
      %v568 = vrot.slane %v560, 4
      %v569 = vrot.slane %v562, 4
      %v570 = vrot.slane %v564, 4
      %v571 = vsel %vm241, %v565, %v566
      %vm572 = vcmask 867328
      %v573 = vsel %vm572, %v554, %v571
      %v574 = vsel %vm241, %v566, %v567
      %v575 = vsel %vm572, %v556, %v574
      %v576 = vsel %vm241, %v568, %v569
      %v577 = vsel %vm572, %v560, %v576
      %v578 = vsel %vm241, %v569, %v570
      %v579 = vsel %vm572, %v562, %v578
      %584 = vst [vmem:[#allocation2 + $0x100] sm:$0xff] %v573
      %585 = vst [vmem:[#allocation2 + $0x108] sm:$0xff] %v575
      %586 = vst [vmem:[#allocation2 + $0x110] sm:$0xff] %v577
      %587 = vst [vmem:[#allocation2 + $0x118] sm:$0xff] %v579
      %v588 = vld [vmem:[%s192] sm:$0xff]
      %v589 = vld [vmem:[%s192 + $0x8] sm:$0xff]
      %v590 = vld [vmem:[%s192 + $0x10] sm:$0xf]
      %v591 = vld [vmem:[%s192 + $0x2c] sm:$0xff]
      %v592 = vld [vmem:[%s192 + $0x34] sm:$0xff]
      %v593 = vld [vmem:[%s192 + $0x3c] sm:$0xf]
      %600 = vrot.lane.b32.xlu0 %v588, 28
      %v601 = vpop.permute.xlu0 %600
      %602 = vrot.lane.b32.xlu0 %v589, 28
      %v603 = vpop.permute.xlu0 %602
      %604 = vrot.lane.b32.xlu0 %v590, 28
      %v605 = vpop.permute.xlu0 %604
      %606 = vrot.lane.b32.xlu0 %v591, 28
      %v607 = vpop.permute.xlu0 %606
      %608 = vrot.lane.b32.xlu0 %v592, 28
      %v609 = vpop.permute.xlu0 %608
      %610 = vrot.lane.b32.xlu0 %v593, 28
      %v611 = vpop.permute.xlu0 %610
      %v612 = vrot.slane %v601, 4
      %v613 = vrot.slane %v603, 4
      %v614 = vrot.slane %v605, 4
      %v615 = vrot.slane %v607, 4
      %v616 = vrot.slane %v609, 4
      %v617 = vrot.slane %v611, 4
      %v618 = vsel %vm241, %v612, %v613
      %vm619 = vcmask 228352
      %v620 = vsel %vm619, %v601, %v618
      %v621 = vsel %vm241, %v613, %v614
      %v622 = vsel %vm619, %v603, %v621
      %v623 = vsel %vm241, %v615, %v616
      %v624 = vsel %vm619, %v607, %v623
      %v625 = vsel %vm241, %v616, %v617
      %v626 = vsel %vm619, %v609, %v625
      %631 = vst [vmem:[#allocation2 + $0x120] sm:$0xff] %v620
      %632 = vst [vmem:[#allocation2 + $0x128] sm:$0xff] %v622
      %633 = vst [vmem:[#allocation2 + $0x130] sm:$0xff] %v624
      %634 = vst [vmem:[#allocation2 + $0x138] sm:$0xff] %v626
      %v635 = vld [vmem:[%s192] sm:$0xff]
      %v636 = vld [vmem:[%s192 + $0x8] sm:$0xff]
      %v637 = vld [vmem:[%s192 + $0x10] sm:$0xf]
      %v638 = vld [vmem:[%s192 + $0x2c] sm:$0xff]
      %v639 = vld [vmem:[%s192 + $0x34] sm:$0xff]
      %v640 = vld [vmem:[%s192 + $0x3c] sm:$0xf]
      %647 = vrot.lane.b32.xlu0 %v635, 27
      %v648 = vpop.permute.xlu0 %647
      %649 = vrot.lane.b32.xlu0 %v636, 27
      %v650 = vpop.permute.xlu0 %649
      %651 = vrot.lane.b32.xlu0 %v637, 27
      %v652 = vpop.permute.xlu0 %651
      %653 = vrot.lane.b32.xlu0 %v638, 27
      %v654 = vpop.permute.xlu0 %653
      %655 = vrot.lane.b32.xlu0 %v639, 27
      %v656 = vpop.permute.xlu0 %655
      %657 = vrot.lane.b32.xlu0 %v640, 27
      %v658 = vpop.permute.xlu0 %657
      %v659 = vrot.slane %v648, 4
      %v660 = vrot.slane %v650, 4
      %v661 = vrot.slane %v652, 4
      %v662 = vrot.slane %v654, 4
      %v663 = vrot.slane %v656, 4
      %v664 = vrot.slane %v658, 4
      %v665 = vsel %vm241, %v659, %v660
      %vm666 = vcmask 220160
      %v667 = vsel %vm666, %v648, %v665
      %v668 = vsel %vm241, %v660, %v661
      %v669 = vsel %vm666, %v650, %v668
      %v670 = vsel %vm241, %v662, %v663
      %v671 = vsel %vm666, %v654, %v670
      %v672 = vsel %vm241, %v663, %v664
      %v673 = vsel %vm666, %v656, %v672
      %678 = vst [vmem:[#allocation2 + $0x140] sm:$0xff] %v667
      %679 = vst [vmem:[#allocation2 + $0x148] sm:$0xff] %v669
      %680 = vst [vmem:[#allocation2 + $0x150] sm:$0xff] %v671
      %681 = vst [vmem:[#allocation2 + $0x158] sm:$0xff] %v673
      %v682 = vld [vmem:[%s192] sm:$0xff]
      %v683 = vld [vmem:[%s192 + $0x8] sm:$0xff]
      %v684 = vld [vmem:[%s192 + $0x10] sm:$0xf]
      %v685 = vld [vmem:[%s192 + $0x2c] sm:$0xff]
      %v686 = vld [vmem:[%s192 + $0x34] sm:$0xff]
      %v687 = vld [vmem:[%s192 + $0x3c] sm:$0xf]
      %694 = vrot.lane.b32.xlu0 %v682, 26
      %v695 = vpop.permute.xlu0 %694
      %696 = vrot.lane.b32.xlu0 %v683, 26
      %v697 = vpop.permute.xlu0 %696
      %698 = vrot.lane.b32.xlu0 %v684, 26
      %v699 = vpop.permute.xlu0 %698
      %700 = vrot.lane.b32.xlu0 %v685, 26
      %v701 = vpop.permute.xlu0 %700
      %702 = vrot.lane.b32.xlu0 %v686, 26
      %v703 = vpop.permute.xlu0 %702
      %704 = vrot.lane.b32.xlu0 %v687, 26
      %v705 = vpop.permute.xlu0 %704
      %v706 = vrot.slane %v695, 4
      %v707 = vrot.slane %v697, 4
      %v708 = vrot.slane %v699, 4
      %v709 = vrot.slane %v701, 4
      %v710 = vrot.slane %v703, 4
      %v711 = vrot.slane %v705, 4
      %v712 = vsel %vm241, %v706, %v707
      %vm713 = vcmask 211968
      %v714 = vsel %vm713, %v695, %v712
      %v715 = vsel %vm241, %v707, %v708
      %v716 = vsel %vm713, %v697, %v715
      %v717 = vsel %vm241, %v709, %v710
      %v718 = vsel %vm713, %v701, %v717
      %v719 = vsel %vm241, %v710, %v711
      %v720 = vsel %vm713, %v703, %v719
      %725 = vst [vmem:[#allocation2 + $0x160] sm:$0xff] %v714
      %726 = vst [vmem:[#allocation2 + $0x168] sm:$0xff] %v716
      %727 = vst [vmem:[#allocation2 + $0x170] sm:$0xff] %v718
      %728 = vst [vmem:[#allocation2 + $0x178] sm:$0xff] %v720
      %v729 = vld [vmem:[%s192] sm:$0xff]
      %v730 = vld [vmem:[%s192 + $0x8] sm:$0xff]
      %v731 = vld [vmem:[%s192 + $0x10] sm:$0xf]
      %v732 = vld [vmem:[%s192 + $0x2c] sm:$0xff]
      %v733 = vld [vmem:[%s192 + $0x34] sm:$0xff]
      %v734 = vld [vmem:[%s192 + $0x3c] sm:$0xf]
      %741 = vrot.lane.b32.xlu0 %v729, 18
      %v742 = vpop.permute.xlu0 %741
      %743 = vrot.lane.b32.xlu0 %v730, 18
      %v744 = vpop.permute.xlu0 %743
      %745 = vrot.lane.b32.xlu0 %v731, 18
      %v746 = vpop.permute.xlu0 %745
      %747 = vrot.lane.b32.xlu0 %v732, 18
      %v748 = vpop.permute.xlu0 %747
      %749 = vrot.lane.b32.xlu0 %v733, 18
      %v750 = vpop.permute.xlu0 %749
      %751 = vrot.lane.b32.xlu0 %v734, 18
      %v752 = vpop.permute.xlu0 %751
      %v753 = vrot.slane %v742, 4
      %v754 = vrot.slane %v744, 4
      %v755 = vrot.slane %v746, 4
      %v756 = vrot.slane %v748, 4
      %v757 = vrot.slane %v750, 4
      %v758 = vrot.slane %v752, 4
      %v759 = vsel %vm241, %v753, %v754
      %vm760 = vcmask 146432
      %v761 = vsel %vm760, %v742, %v759
      %v762 = vsel %vm241, %v754, %v755
      %v763 = vsel %vm760, %v744, %v762
      %v764 = vsel %vm241, %v756, %v757
      %v765 = vsel %vm760, %v748, %v764
      %v766 = vsel %vm241, %v757, %v758
      %v767 = vsel %vm760, %v750, %v766
      %772 = vst [vmem:[#allocation2 + $0x180] sm:$0xff] %v761
      %773 = vst [vmem:[#allocation2 + $0x188] sm:$0xff] %v763
      %774 = vst [vmem:[#allocation2 + $0x190] sm:$0xff] %v765
      %775 = vst [vmem:[#allocation2 + $0x198] sm:$0xff] %v767
      %v776 = vld [vmem:[%s192] sm:$0xff]
      %v777 = vld [vmem:[%s192 + $0x8] sm:$0xff]
      %v778 = vld [vmem:[%s192 + $0x10] sm:$0xf]
      %v779 = vld [vmem:[%s192 + $0x2c] sm:$0xff]
      %v780 = vld [vmem:[%s192 + $0x34] sm:$0xff]
      %v781 = vld [vmem:[%s192 + $0x3c] sm:$0xf]
      %788 = vrot.lane.b32.xlu0 %v776, 17
      %v789 = vpop.permute.xlu0 %788
      %790 = vrot.lane.b32.xlu0 %v777, 17
      %v791 = vpop.permute.xlu0 %790
      %792 = vrot.lane.b32.xlu0 %v778, 17
      %v793 = vpop.permute.xlu0 %792
      %794 = vrot.lane.b32.xlu0 %v779, 17
      %v795 = vpop.permute.xlu0 %794
      %796 = vrot.lane.b32.xlu0 %v780, 17
      %v797 = vpop.permute.xlu0 %796
      %798 = vrot.lane.b32.xlu0 %v781, 17
      %v799 = vpop.permute.xlu0 %798
      %v800 = vrot.slane %v789, 4
      %v801 = vrot.slane %v791, 4
      %v802 = vrot.slane %v793, 4
      %v803 = vrot.slane %v795, 4
      %v804 = vrot.slane %v797, 4
      %v805 = vrot.slane %v799, 4
      %v806 = vsel %vm241, %v800, %v801
      %vm807 = vcmask 138240
      %v808 = vsel %vm807, %v789, %v806
      %v809 = vsel %vm241, %v801, %v802
      %v810 = vsel %vm807, %v791, %v809
      %v811 = vsel %vm241, %v803, %v804
      %v812 = vsel %vm807, %v795, %v811
      %v813 = vsel %vm241, %v804, %v805
      %v814 = vsel %vm807, %v797, %v813
      %819 = vst [vmem:[#allocation2 + $0x1a0] sm:$0xff] %v808
      %820 = vst [vmem:[#allocation2 + $0x1a8] sm:$0xff] %v810
      %821 = vst [vmem:[#allocation2 + $0x1b0] sm:$0xff] %v812
      %822 = vst [vmem:[#allocation2 + $0x1b8] sm:$0xff] %v814
      %v823 = vld [vmem:[%s192] sm:$0xff]
      %v824 = vld [vmem:[%s192 + $0x8] sm:$0xff]
      %v825 = vld [vmem:[%s192 + $0x10] sm:$0xf]
      %v826 = vld [vmem:[%s192 + $0x2c] sm:$0xff]
      %v827 = vld [vmem:[%s192 + $0x34] sm:$0xff]
      %v828 = vld [vmem:[%s192 + $0x3c] sm:$0xf]
      %835 = vrot.lane.b32.xlu0 %v823, 16
      %v836 = vpop.permute.xlu0 %835
      %837 = vrot.lane.b32.xlu0 %v824, 16
      %v838 = vpop.permute.xlu0 %837
      %839 = vrot.lane.b32.xlu0 %v825, 16
      %v840 = vpop.permute.xlu0 %839
      %841 = vrot.lane.b32.xlu0 %v826, 16
      %v842 = vpop.permute.xlu0 %841
      %843 = vrot.lane.b32.xlu0 %v827, 16
      %v844 = vpop.permute.xlu0 %843
      %845 = vrot.lane.b32.xlu0 %v828, 16
      %v846 = vpop.permute.xlu0 %845
      %v847 = vrot.slane %v836, 4
      %v848 = vrot.slane %v838, 4
      %v849 = vrot.slane %v840, 4
      %v850 = vrot.slane %v842, 4
      %v851 = vrot.slane %v844, 4
      %v852 = vrot.slane %v846, 4
      %v853 = vsel %vm241, %v847, %v848
      %vm854 = vcmask 130048
      %v855 = vsel %vm854, %v836, %v853
      %v856 = vsel %vm241, %v848, %v849
      %v857 = vsel %vm854, %v838, %v856
      %v858 = vsel %vm241, %v850, %v851
      %v859 = vsel %vm854, %v842, %v858
      %v860 = vsel %vm241, %v851, %v852
      %v861 = vsel %vm854, %v844, %v860
      %866 = vst [vmem:[#allocation2 + $0x1c0] sm:$0xff] %v855
      %867 = vst [vmem:[#allocation2 + $0x1c8] sm:$0xff] %v857
      %868 = vst [vmem:[#allocation2 + $0x1d0] sm:$0xff] %v859
      %869 = vst [vmem:[#allocation2 + $0x1d8] sm:$0xff] %v861
      %v870 = vld [vmem:[%s192] sm:$0xff]
      %v871 = vld [vmem:[%s192 + $0x8] sm:$0xff]
      %v872 = vld [vmem:[%s192 + $0x10] sm:$0xf]
      %v873 = vld [vmem:[%s192 + $0x2c] sm:$0xff]
      %v874 = vld [vmem:[%s192 + $0x34] sm:$0xff]
      %v875 = vld [vmem:[%s192 + $0x3c] sm:$0xf]
      %882 = vrot.lane.b32.xlu0 %v870, 8
      %v883 = vpop.permute.xlu0 %882
      %884 = vrot.lane.b32.xlu0 %v871, 8
      %v885 = vpop.permute.xlu0 %884
      %886 = vrot.lane.b32.xlu0 %v872, 8
      %v887 = vpop.permute.xlu0 %886
      %888 = vrot.lane.b32.xlu0 %v873, 8
      %v889 = vpop.permute.xlu0 %888
      %890 = vrot.lane.b32.xlu0 %v874, 8
      %v891 = vpop.permute.xlu0 %890
      %892 = vrot.lane.b32.xlu0 %v875, 8
      %v893 = vpop.permute.xlu0 %892
      %v894 = vrot.slane %v883, 4
      %v895 = vrot.slane %v885, 4
      %v896 = vrot.slane %v887, 4
      %v897 = vrot.slane %v889, 4
      %v898 = vrot.slane %v891, 4
      %v899 = vrot.slane %v893, 4
      %v900 = vsel %vm241, %v894, %v895
      %vm901 = vcmask 64512
      %v902 = vsel %vm901, %v883, %v900
      %v903 = vsel %vm241, %v895, %v896
      %v904 = vsel %vm901, %v885, %v903
      %v905 = vsel %vm241, %v897, %v898
      %v906 = vsel %vm901, %v889, %v905
      %v907 = vsel %vm241, %v898, %v899
      %v908 = vsel %vm901, %v891, %v907
      %913 = vst [vmem:[#allocation2 + $0x1e0] sm:$0xff] %v902
      %914 = vst [vmem:[#allocation2 + $0x1e8] sm:$0xff] %v904
      %915 = vst [vmem:[#allocation2 + $0x1f0] sm:$0xff] %v906
      %916 = vst [vmem:[#allocation2 + $0x1f8] sm:$0xff] %v908
      %v917 = vld [vmem:[%s192] sm:$0xff]
      %v918 = vld [vmem:[%s192 + $0x8] sm:$0xff]
      %v919 = vld [vmem:[%s192 + $0x10] sm:$0xf]
      %v920 = vld [vmem:[%s192 + $0x2c] sm:$0xff]
      %v921 = vld [vmem:[%s192 + $0x34] sm:$0xff]
      %v922 = vld [vmem:[%s192 + $0x3c] sm:$0xf]
      %929 = vrot.lane.b32.xlu0 %v917, 7
      %v930 = vpop.permute.xlu0 %929
      %931 = vrot.lane.b32.xlu0 %v918, 7
      %v932 = vpop.permute.xlu0 %931
      %933 = vrot.lane.b32.xlu0 %v919, 7
      %v934 = vpop.permute.xlu0 %933
      %935 = vrot.lane.b32.xlu0 %v920, 7
      %v936 = vpop.permute.xlu0 %935
      %937 = vrot.lane.b32.xlu0 %v921, 7
      %v938 = vpop.permute.xlu0 %937
      %939 = vrot.lane.b32.xlu0 %v922, 7
      %v940 = vpop.permute.xlu0 %939
      %v941 = vrot.slane %v930, 4
      %v942 = vrot.slane %v932, 4
      %v943 = vrot.slane %v934, 4
      %v944 = vrot.slane %v936, 4
      %v945 = vrot.slane %v938, 4
      %v946 = vrot.slane %v940, 4
      %v947 = vsel %vm241, %v941, %v942
      %vm948 = vcmask 56320
      %v949 = vsel %vm948, %v930, %v947
      %v950 = vsel %vm241, %v942, %v943
      %v951 = vsel %vm948, %v932, %v950
      %v952 = vsel %vm241, %v944, %v945
      %v953 = vsel %vm948, %v936, %v952
      %v954 = vsel %vm241, %v945, %v946
      %v955 = vsel %vm948, %v938, %v954
      %960 = vst [vmem:[#allocation2 + $0x200] sm:$0xff] %v949
      %961 = vst [vmem:[#allocation2 + $0x208] sm:$0xff] %v951
      %962 = vst [vmem:[#allocation2 + $0x210] sm:$0xff] %v953
      %963 = vst [vmem:[#allocation2 + $0x218] sm:$0xff] %v955
      %v964 = vld [vmem:[%s192] sm:$0xff]
      %v965 = vld [vmem:[%s192 + $0x8] sm:$0xff]
      %v966 = vld [vmem:[%s192 + $0x10] sm:$0xf]
      %v967 = vld [vmem:[%s192 + $0x2c] sm:$0xff]
      %v968 = vld [vmem:[%s192 + $0x34] sm:$0xff]
      %v969 = vld [vmem:[%s192 + $0x3c] sm:$0xf]
      %976 = vrot.lane.b32.xlu0 %v964, 6
      %v977 = vpop.permute.xlu0 %976
      %978 = vrot.lane.b32.xlu0 %v965, 6
      %v979 = vpop.permute.xlu0 %978
      %980 = vrot.lane.b32.xlu0 %v966, 6
      %v981 = vpop.permute.xlu0 %980
      %982 = vrot.lane.b32.xlu0 %v967, 6
      %v983 = vpop.permute.xlu0 %982
      %984 = vrot.lane.b32.xlu0 %v968, 6
      %v985 = vpop.permute.xlu0 %984
      %986 = vrot.lane.b32.xlu0 %v969, 6
      %v987 = vpop.permute.xlu0 %986
      %v988 = vrot.slane %v977, 4
      %v989 = vrot.slane %v979, 4
      %v990 = vrot.slane %v981, 4
      %v991 = vrot.slane %v983, 4
      %v992 = vrot.slane %v985, 4
      %v993 = vrot.slane %v987, 4
      %v994 = vsel %vm241, %v988, %v989
      %vm995 = vcmask 48128
      %v996 = vsel %vm995, %v977, %v994
      %v997 = vsel %vm241, %v989, %v990
      %v998 = vsel %vm995, %v979, %v997
      %v999 = vsel %vm241, %v991, %v992
      %v1000 = vsel %vm995, %v983, %v999
      %v1001 = vsel %vm241, %v992, %v993
      %v1002 = vsel %vm995, %v985, %v1001
      %1007 = vst [vmem:[#allocation2 + $0x220] sm:$0xff] %v996
      %1008 = vst [vmem:[#allocation2 + $0x228] sm:$0xff] %v998
      %1009 = vst [vmem:[#allocation2 + $0x230] sm:$0xff] %v1000
      %1010 = vst [vmem:[#allocation2 + $0x238] sm:$0xff] %v1002
      %v1011 = vld [vmem:[%s192 + $0x4] sm:$0xff]
      %v1012 = vld [vmem:[%s192 + $0xc] sm:$0xff]
      %v1013 = vld [vmem:[%s192 + $0x14] sm:$0xf]
      %v1014 = vld [vmem:[%s192 + $0x30] sm:$0xff]
      %v1015 = vld [vmem:[%s192 + $0x38] sm:$0xff]
      %v1016 = vld [vmem:[%s192 + $0x40] sm:$0xf]
      %1023 = vrot.lane.b32.xlu0 %v1011, 56
      %v1024 = vpop.permute.xlu0 %1023
      %1025 = vrot.lane.b32.xlu0 %v1012, 56
      %v1026 = vpop.permute.xlu0 %1025
      %1027 = vrot.lane.b32.xlu0 %v1013, 56
      %v1028 = vpop.permute.xlu0 %1027
      %1029 = vrot.lane.b32.xlu0 %v1014, 56
      %v1030 = vpop.permute.xlu0 %1029
      %1031 = vrot.lane.b32.xlu0 %v1015, 56
      %v1032 = vpop.permute.xlu0 %1031
      %1033 = vrot.lane.b32.xlu0 %v1016, 56
      %v1034 = vpop.permute.xlu0 %1033
      %v1035 = vrot.slane %v1024, 4
      %v1036 = vrot.slane %v1026, 4
      %v1037 = vrot.slane %v1028, 4
      %v1038 = vrot.slane %v1030, 4
      %v1039 = vrot.slane %v1032, 4
      %v1040 = vrot.slane %v1034, 4
      %v1041 = vsel %vm241, %v1035, %v1036
      %vm1042 = vcmask 457728
      %v1043 = vsel %vm1042, %v1024, %v1041
      %v1044 = vsel %vm241, %v1036, %v1037
      %v1045 = vsel %vm1042, %v1026, %v1044
      %v1046 = vsel %vm241, %v1038, %v1039
      %v1047 = vsel %vm1042, %v1030, %v1046
      %v1048 = vsel %vm241, %v1039, %v1040
      %v1049 = vsel %vm1042, %v1032, %v1048
      %1054 = vst [vmem:[#allocation2 + $0x240] sm:$0xff] %v1043
      %1055 = vst [vmem:[#allocation2 + $0x248] sm:$0xff] %v1045
      %1056 = vst [vmem:[#allocation2 + $0x250] sm:$0xff] %v1047
      %1057 = vst [vmem:[#allocation2 + $0x258] sm:$0xff] %v1049
      %v1058 = vld [vmem:[%s192 + $0x4] sm:$0xff]
      %v1059 = vld [vmem:[%s192 + $0xc] sm:$0xff]
      %v1060 = vld [vmem:[%s192 + $0x14] sm:$0xf]
      %v1061 = vld [vmem:[%s192 + $0x30] sm:$0xff]
      %v1062 = vld [vmem:[%s192 + $0x38] sm:$0xff]
      %v1063 = vld [vmem:[%s192 + $0x40] sm:$0xf]
      %1070 = vrot.lane.b32.xlu0 %v1058, 55
      %v1071 = vpop.permute.xlu0 %1070
      %1072 = vrot.lane.b32.xlu0 %v1059, 55
      %v1073 = vpop.permute.xlu0 %1072
      %1074 = vrot.lane.b32.xlu0 %v1060, 55
      %v1075 = vpop.permute.xlu0 %1074
      %1076 = vrot.lane.b32.xlu0 %v1061, 55
      %v1077 = vpop.permute.xlu0 %1076
      %1078 = vrot.lane.b32.xlu0 %v1062, 55
      %v1079 = vpop.permute.xlu0 %1078
      %1080 = vrot.lane.b32.xlu0 %v1063, 55
      %v1081 = vpop.permute.xlu0 %1080
      %v1082 = vrot.slane %v1071, 4
      %v1083 = vrot.slane %v1073, 4
      %v1084 = vrot.slane %v1075, 4
      %v1085 = vrot.slane %v1077, 4
      %v1086 = vrot.slane %v1079, 4
      %v1087 = vrot.slane %v1081, 4
      %v1088 = vsel %vm241, %v1082, %v1083
      %vm1089 = vcmask 449536
      %v1090 = vsel %vm1089, %v1071, %v1088
      %v1091 = vsel %vm241, %v1083, %v1084
      %v1092 = vsel %vm1089, %v1073, %v1091
      %v1093 = vsel %vm241, %v1085, %v1086
      %v1094 = vsel %vm1089, %v1077, %v1093
      %v1095 = vsel %vm241, %v1086, %v1087
      %v1096 = vsel %vm1089, %v1079, %v1095
      %1101 = vst [vmem:[#allocation2 + $0x260] sm:$0xff] %v1090
      %1102 = vst [vmem:[#allocation2 + $0x268] sm:$0xff] %v1092
      %1103 = vst [vmem:[#allocation2 + $0x270] sm:$0xff] %v1094
      %1104 = vst [vmem:[#allocation2 + $0x278] sm:$0xff] %v1096
      %v1105 = vld [vmem:[%s192 + $0x4] sm:$0xff]
      %v1106 = vld [vmem:[%s192 + $0xc] sm:$0xff]
      %v1107 = vld [vmem:[%s192 + $0x14] sm:$0xf]
      %v1108 = vld [vmem:[%s192 + $0x30] sm:$0xff]
      %v1109 = vld [vmem:[%s192 + $0x38] sm:$0xff]
      %v1110 = vld [vmem:[%s192 + $0x40] sm:$0xf]
      %1117 = vrot.lane.b32.xlu0 %v1105, 54
      %v1118 = vpop.permute.xlu0 %1117
      %1119 = vrot.lane.b32.xlu0 %v1106, 54
      %v1120 = vpop.permute.xlu0 %1119
      %1121 = vrot.lane.b32.xlu0 %v1107, 54
      %v1122 = vpop.permute.xlu0 %1121
      %1123 = vrot.lane.b32.xlu0 %v1108, 54
      %v1124 = vpop.permute.xlu0 %1123
      %1125 = vrot.lane.b32.xlu0 %v1109, 54
      %v1126 = vpop.permute.xlu0 %1125
      %1127 = vrot.lane.b32.xlu0 %v1110, 54
      %v1128 = vpop.permute.xlu0 %1127
      %v1129 = vrot.slane %v1118, 4
      %v1130 = vrot.slane %v1120, 4
      %v1131 = vrot.slane %v1122, 4
      %v1132 = vrot.slane %v1124, 4
      %v1133 = vrot.slane %v1126, 4
      %v1134 = vrot.slane %v1128, 4
      %v1135 = vsel %vm241, %v1129, %v1130
      %vm1136 = vcmask 441344
      %v1137 = vsel %vm1136, %v1118, %v1135
      %v1138 = vsel %vm241, %v1130, %v1131
      %v1139 = vsel %vm1136, %v1120, %v1138
      %v1140 = vsel %vm241, %v1132, %v1133
      %v1141 = vsel %vm1136, %v1124, %v1140
      %v1142 = vsel %vm241, %v1133, %v1134
      %v1143 = vsel %vm1136, %v1126, %v1142
      %1148 = vst [vmem:[#allocation2 + $0x280] sm:$0xff] %v1137
      %1149 = vst [vmem:[#allocation2 + $0x288] sm:$0xff] %v1139
      %1150 = vst [vmem:[#allocation2 + $0x290] sm:$0xff] %v1141
      %1151 = vst [vmem:[#allocation2 + $0x298] sm:$0xff] %v1143
      %v1152 = vld [vmem:[%s192 + $0x4] sm:$0xff]
      %v1153 = vld [vmem:[%s192 + $0xc] sm:$0xff]
      %v1154 = vld [vmem:[%s192 + $0x14] sm:$0xf]
      %v1155 = vld [vmem:[%s192 + $0x30] sm:$0xff]
      %v1156 = vld [vmem:[%s192 + $0x38] sm:$0xff]
      %v1157 = vld [vmem:[%s192 + $0x40] sm:$0xf]
      %1164 = vrot.lane.b32.xlu0 %v1152, 46
      %v1165 = vpop.permute.xlu0 %1164
      %1166 = vrot.lane.b32.xlu0 %v1153, 46
      %v1167 = vpop.permute.xlu0 %1166
      %1168 = vrot.lane.b32.xlu0 %v1154, 46
      %v1169 = vpop.permute.xlu0 %1168
      %1170 = vrot.lane.b32.xlu0 %v1155, 46
      %v1171 = vpop.permute.xlu0 %1170
      %1172 = vrot.lane.b32.xlu0 %v1156, 46
      %v1173 = vpop.permute.xlu0 %1172
      %1174 = vrot.lane.b32.xlu0 %v1157, 46
      %v1175 = vpop.permute.xlu0 %1174
      %v1176 = vrot.slane %v1165, 4
      %v1177 = vrot.slane %v1167, 4
      %v1178 = vrot.slane %v1169, 4
      %v1179 = vrot.slane %v1171, 4
      %v1180 = vrot.slane %v1173, 4
      %v1181 = vrot.slane %v1175, 4
      %v1182 = vsel %vm241, %v1176, %v1177
      %vm1183 = vcmask 375808
      %v1184 = vsel %vm1183, %v1165, %v1182
      %v1185 = vsel %vm241, %v1177, %v1178
      %v1186 = vsel %vm1183, %v1167, %v1185
      %v1187 = vsel %vm241, %v1179, %v1180
      %v1188 = vsel %vm1183, %v1171, %v1187
      %v1189 = vsel %vm241, %v1180, %v1181
      %v1190 = vsel %vm1183, %v1173, %v1189
      %1195 = vst [vmem:[#allocation2 + $0x2a0] sm:$0xff] %v1184
      %1196 = vst [vmem:[#allocation2 + $0x2a8] sm:$0xff] %v1186
      %1197 = vst [vmem:[#allocation2 + $0x2b0] sm:$0xff] %v1188
      %1198 = vst [vmem:[#allocation2 + $0x2b8] sm:$0xff] %v1190
      %v1199 = vld [vmem:[%s192 + $0x4] sm:$0xff]
      %v1200 = vld [vmem:[%s192 + $0xc] sm:$0xff]
      %v1201 = vld [vmem:[%s192 + $0x14] sm:$0xf]
      %v1202 = vld [vmem:[%s192 + $0x30] sm:$0xff]
      %v1203 = vld [vmem:[%s192 + $0x38] sm:$0xff]
      %v1204 = vld [vmem:[%s192 + $0x40] sm:$0xf]
      %1211 = vrot.lane.b32.xlu0 %v1199, 45
      %v1212 = vpop.permute.xlu0 %1211
      %1213 = vrot.lane.b32.xlu0 %v1200, 45
      %v1214 = vpop.permute.xlu0 %1213
      %1215 = vrot.lane.b32.xlu0 %v1201, 45
      %v1216 = vpop.permute.xlu0 %1215
      %1217 = vrot.lane.b32.xlu0 %v1202, 45
      %v1218 = vpop.permute.xlu0 %1217
      %1219 = vrot.lane.b32.xlu0 %v1203, 45
      %v1220 = vpop.permute.xlu0 %1219
      %1221 = vrot.lane.b32.xlu0 %v1204, 45
      %v1222 = vpop.permute.xlu0 %1221
      %v1223 = vrot.slane %v1212, 4
      %v1224 = vrot.slane %v1214, 4
      %v1225 = vrot.slane %v1216, 4
      %v1226 = vrot.slane %v1218, 4
      %v1227 = vrot.slane %v1220, 4
      %v1228 = vrot.slane %v1222, 4
      %v1229 = vsel %vm241, %v1223, %v1224
      %vm1230 = vcmask 367616
      %v1231 = vsel %vm1230, %v1212, %v1229
      %v1232 = vsel %vm241, %v1224, %v1225
      %v1233 = vsel %vm1230, %v1214, %v1232
      %v1234 = vsel %vm241, %v1226, %v1227
      %v1235 = vsel %vm1230, %v1218, %v1234
      %v1236 = vsel %vm241, %v1227, %v1228
      %v1237 = vsel %vm1230, %v1220, %v1236
      %1242 = vst [vmem:[#allocation2 + $0x2c0] sm:$0xff] %v1231
      %1243 = vst [vmem:[#allocation2 + $0x2c8] sm:$0xff] %v1233
      %1244 = vst [vmem:[#allocation2 + $0x2d0] sm:$0xff] %v1235
      %1245 = vst [vmem:[#allocation2 + $0x2d8] sm:$0xff] %v1237
      %v1246 = vld [vmem:[%s192 + $0x4] sm:$0xff]
      %v1247 = vld [vmem:[%s192 + $0xc] sm:$0xff]
      %v1248 = vld [vmem:[%s192 + $0x14] sm:$0xf]
      %v1249 = vld [vmem:[%s192 + $0x30] sm:$0xff]
      %v1250 = vld [vmem:[%s192 + $0x38] sm:$0xff]
      %v1251 = vld [vmem:[%s192 + $0x40] sm:$0xf]
      %1258 = vrot.lane.b32.xlu0 %v1246, 44
      %v1259 = vpop.permute.xlu0 %1258
      %1260 = vrot.lane.b32.xlu0 %v1247, 44
      %v1261 = vpop.permute.xlu0 %1260
      %1262 = vrot.lane.b32.xlu0 %v1248, 44
      %v1263 = vpop.permute.xlu0 %1262
      %1264 = vrot.lane.b32.xlu0 %v1249, 44
      %v1265 = vpop.permute.xlu0 %1264
      %1266 = vrot.lane.b32.xlu0 %v1250, 44
      %v1267 = vpop.permute.xlu0 %1266
      %1268 = vrot.lane.b32.xlu0 %v1251, 44
      %v1269 = vpop.permute.xlu0 %1268
      %v1270 = vrot.slane %v1259, 4
      %v1271 = vrot.slane %v1261, 4
      %v1272 = vrot.slane %v1263, 4
      %v1273 = vrot.slane %v1265, 4
      %v1274 = vrot.slane %v1267, 4
      %v1275 = vrot.slane %v1269, 4
      %v1276 = vsel %vm241, %v1270, %v1271
      %vm1277 = vcmask 359424
      %v1278 = vsel %vm1277, %v1259, %v1276
      %v1279 = vsel %vm241, %v1271, %v1272
      %v1280 = vsel %vm1277, %v1261, %v1279
      %v1281 = vsel %vm241, %v1273, %v1274
      %v1282 = vsel %vm1277, %v1265, %v1281
      %v1283 = vsel %vm241, %v1274, %v1275
      %v1284 = vsel %vm1277, %v1267, %v1283
      %1289 = vst [vmem:[#allocation2 + $0x2e0] sm:$0xff] %v1278
      %1290 = vst [vmem:[#allocation2 + $0x2e8] sm:$0xff] %v1280
      %1291 = vst [vmem:[#allocation2 + $0x2f0] sm:$0xff] %v1282
      %1292 = vst [vmem:[#allocation2 + $0x2f8] sm:$0xff] %v1284
      %v1293 = vld [vmem:[%s192 + $0x4] sm:$0xff]
      %v1294 = vld [vmem:[%s192 + $0xc] sm:$0xff]
      %v1295 = vld [vmem:[%s192 + $0x14] sm:$0xf]
      %v1296 = vld [vmem:[%s192 + $0x30] sm:$0xff]
      %v1297 = vld [vmem:[%s192 + $0x38] sm:$0xff]
      %v1298 = vld [vmem:[%s192 + $0x40] sm:$0xf]
      %1305 = vrot.lane.b32.xlu0 %v1293, 36
      %v1306 = vpop.permute.xlu0 %1305
      %1307 = vrot.lane.b32.xlu0 %v1294, 36
      %v1308 = vpop.permute.xlu0 %1307
      %1309 = vrot.lane.b32.xlu0 %v1295, 36
      %v1310 = vpop.permute.xlu0 %1309
      %1311 = vrot.lane.b32.xlu0 %v1296, 36
      %v1312 = vpop.permute.xlu0 %1311
      %1313 = vrot.lane.b32.xlu0 %v1297, 36
      %v1314 = vpop.permute.xlu0 %1313
      %1315 = vrot.lane.b32.xlu0 %v1298, 36
      %v1316 = vpop.permute.xlu0 %1315
      %v1317 = vrot.slane %v1306, 4
      %v1318 = vrot.slane %v1308, 4
      %v1319 = vrot.slane %v1310, 4
      %v1320 = vrot.slane %v1312, 4
      %v1321 = vrot.slane %v1314, 4
      %v1322 = vrot.slane %v1316, 4
      %v1323 = vsel %vm241, %v1317, %v1318
      %vm1324 = vcmask 293888
      %v1325 = vsel %vm1324, %v1306, %v1323
      %v1326 = vsel %vm241, %v1318, %v1319
      %v1327 = vsel %vm1324, %v1308, %v1326
      %v1328 = vsel %vm241, %v1320, %v1321
      %v1329 = vsel %vm1324, %v1312, %v1328
      %v1330 = vsel %vm241, %v1321, %v1322
      %v1331 = vsel %vm1324, %v1314, %v1330
      %1336 = vst [vmem:[#allocation2 + $0x300] sm:$0xff] %v1325
      %1337 = vst [vmem:[#allocation2 + $0x308] sm:$0xff] %v1327
      %1338 = vst [vmem:[#allocation2 + $0x310] sm:$0xff] %v1329
      %1339 = vst [vmem:[#allocation2 + $0x318] sm:$0xff] %v1331
      %v1340 = vld [vmem:[%s192 + $0x4] sm:$0xff]
      %v1341 = vld [vmem:[%s192 + $0xc] sm:$0xff]
      %v1342 = vld [vmem:[%s192 + $0x14] sm:$0xf]
      %v1343 = vld [vmem:[%s192 + $0x30] sm:$0xff]
      %v1344 = vld [vmem:[%s192 + $0x38] sm:$0xff]
      %v1345 = vld [vmem:[%s192 + $0x40] sm:$0xf]
      %1352 = vrot.lane.b32.xlu0 %v1340, 35
      %v1353 = vpop.permute.xlu0 %1352
      %1354 = vrot.lane.b32.xlu0 %v1341, 35
      %v1355 = vpop.permute.xlu0 %1354
      %1356 = vrot.lane.b32.xlu0 %v1342, 35
      %v1357 = vpop.permute.xlu0 %1356
      %1358 = vrot.lane.b32.xlu0 %v1343, 35
      %v1359 = vpop.permute.xlu0 %1358
      %1360 = vrot.lane.b32.xlu0 %v1344, 35
      %v1361 = vpop.permute.xlu0 %1360
      %1362 = vrot.lane.b32.xlu0 %v1345, 35
      %v1363 = vpop.permute.xlu0 %1362
      %v1364 = vrot.slane %v1353, 4
      %v1365 = vrot.slane %v1355, 4
      %v1366 = vrot.slane %v1357, 4
      %v1367 = vrot.slane %v1359, 4
      %v1368 = vrot.slane %v1361, 4
      %v1369 = vrot.slane %v1363, 4
      %v1370 = vsel %vm241, %v1364, %v1365
      %vm1371 = vcmask 285696
      %v1372 = vsel %vm1371, %v1353, %v1370
      %v1373 = vsel %vm241, %v1365, %v1366
      %v1374 = vsel %vm1371, %v1355, %v1373
      %v1375 = vsel %vm241, %v1367, %v1368
      %v1376 = vsel %vm1371, %v1359, %v1375
      %v1377 = vsel %vm241, %v1368, %v1369
      %v1378 = vsel %vm1371, %v1361, %v1377
      %1383 = vst [vmem:[#allocation2 + $0x320] sm:$0xff] %v1372
      %1384 = vst [vmem:[#allocation2 + $0x328] sm:$0xff] %v1374
      %1385 = vst [vmem:[#allocation2 + $0x330] sm:$0xff] %v1376
      %1386 = vst [vmem:[#allocation2 + $0x338] sm:$0xff] %v1378
      %v1387 = vld [vmem:[%s192 + $0x4] sm:$0xff]
      %v1388 = vld [vmem:[%s192 + $0xc] sm:$0xff]
      %v1389 = vld [vmem:[%s192 + $0x14] sm:$0xf]
      %v1390 = vld [vmem:[%s192 + $0x30] sm:$0xff]
      %v1391 = vld [vmem:[%s192 + $0x38] sm:$0xff]
      %v1392 = vld [vmem:[%s192 + $0x40] sm:$0xf]
      %1399 = vrot.lane.b32.xlu0 %v1387, 34
      %v1400 = vpop.permute.xlu0 %1399
      %1401 = vrot.lane.b32.xlu0 %v1388, 34
      %v1402 = vpop.permute.xlu0 %1401
      %1403 = vrot.lane.b32.xlu0 %v1389, 34
      %v1404 = vpop.permute.xlu0 %1403
      %1405 = vrot.lane.b32.xlu0 %v1390, 34
      %v1406 = vpop.permute.xlu0 %1405
      %1407 = vrot.lane.b32.xlu0 %v1391, 34
      %v1408 = vpop.permute.xlu0 %1407
      %1409 = vrot.lane.b32.xlu0 %v1392, 34
      %v1410 = vpop.permute.xlu0 %1409
      %v1411 = vrot.slane %v1400, 4
      %v1412 = vrot.slane %v1402, 4
      %v1413 = vrot.slane %v1404, 4
      %v1414 = vrot.slane %v1406, 4
      %v1415 = vrot.slane %v1408, 4
      %v1416 = vrot.slane %v1410, 4
      %v1417 = vsel %vm241, %v1411, %v1412
      %vm1418 = vcmask 277504
      %v1419 = vsel %vm1418, %v1400, %v1417
      %v1420 = vsel %vm241, %v1412, %v1413
      %v1421 = vsel %vm1418, %v1402, %v1420
      %v1422 = vsel %vm241, %v1414, %v1415
      %v1423 = vsel %vm1418, %v1406, %v1422
      %v1424 = vsel %vm241, %v1415, %v1416
      %v1425 = vsel %vm1418, %v1408, %v1424
      %1430 = vst [vmem:[#allocation2 + $0x340] sm:$0xff] %v1419
      %1431 = vst [vmem:[#allocation2 + $0x348] sm:$0xff] %v1421
      %1432 = vst [vmem:[#allocation2 + $0x350] sm:$0xff] %v1423
      %1433 = vst [vmem:[#allocation2 + $0x358] sm:$0xff] %v1425
      %v1434 = vld [vmem:[#allocation2] sm:$0xff]
      %v1435 = vld [vmem:[#allocation2 + $0x8] sm:$0xff]
      %v1436 = vld [vmem:[#allocation2 + $0x10] sm:$0xff]
      %v1437 = vld [vmem:[#allocation2 + $0x18] sm:$0xff]
      %v1438 = vld [vmem:[#allocation2 + $0x20] sm:$0xff]
      %v1439 = vld [vmem:[#allocation2 + $0x28] sm:$0xff]
      %v1440 = vld [vmem:[#allocation2 + $0x30] sm:$0xff]
      %v1441 = vld [vmem:[#allocation2 + $0x38] sm:$0xff]
      %v1442 = vld [vmem:[#allocation2 + $0x40] sm:$0xff]
      %v1443 = vld [vmem:[#allocation2 + $0x48] sm:$0xff]
      %v1444 = vld [vmem:[#allocation2 + $0x50] sm:$0xff]
      %v1445 = vld [vmem:[#allocation2 + $0x58] sm:$0xff]
      %v1446 = vld [vmem:[#allocation2 + $0x60] sm:$0xff]
      %v1447 = vld [vmem:[#allocation2 + $0x68] sm:$0xff]
      %v1448 = vld [vmem:[#allocation2 + $0x70] sm:$0xff]
      %v1449 = vld [vmem:[#allocation2 + $0x78] sm:$0xff]
      %v1450 = vld [vmem:[#allocation2 + $0x80] sm:$0xff]
      %v1451 = vld [vmem:[#allocation2 + $0x88] sm:$0xff]
      %v1452 = vld [vmem:[#allocation2 + $0x90] sm:$0xff]
      %v1453 = vld [vmem:[#allocation2 + $0x98] sm:$0xff]
      %v1454 = vld [vmem:[#allocation2 + $0xa0] sm:$0xff]
      %v1455 = vld [vmem:[#allocation2 + $0xa8] sm:$0xff]
      %v1456 = vld [vmem:[#allocation2 + $0xb0] sm:$0xff]
      %v1457 = vld [vmem:[#allocation2 + $0xb8] sm:$0xff]
      %v1458 = vld [vmem:[#allocation2 + $0xc0] sm:$0xff]
      %v1459 = vld [vmem:[#allocation2 + $0xc8] sm:$0xff]
      %v1460 = vld [vmem:[#allocation2 + $0xd0] sm:$0xff]
      %v1461 = vld [vmem:[#allocation2 + $0xd8] sm:$0xff]
      %v1462 = vld [vmem:[#allocation2 + $0xe0] sm:$0xff]
      %v1463 = vld [vmem:[#allocation2 + $0xe8] sm:$0xff]
      %v1464 = vld [vmem:[#allocation2 + $0xf0] sm:$0xff]
      %v1465 = vld [vmem:[#allocation2 + $0xf8] sm:$0xff]
      %v1466 = vld [vmem:[#allocation2 + $0x100] sm:$0xff]
      %v1467 = vld [vmem:[#allocation2 + $0x108] sm:$0xff]
      %v1468 = vld [vmem:[#allocation2 + $0x110] sm:$0xff]
      %v1469 = vld [vmem:[#allocation2 + $0x118] sm:$0xff]
      %v1470 = vld [vmem:[#allocation2 + $0x120] sm:$0xff]
      %v1471 = vld [vmem:[#allocation2 + $0x128] sm:$0xff]
      %v1472 = vld [vmem:[#allocation2 + $0x130] sm:$0xff]
      %v1473 = vld [vmem:[#allocation2 + $0x138] sm:$0xff]
      %v1474 = vld [vmem:[#allocation2 + $0x140] sm:$0xff]
      %v1475 = vld [vmem:[#allocation2 + $0x148] sm:$0xff]
      %v1476 = vld [vmem:[#allocation2 + $0x150] sm:$0xff]
      %v1477 = vld [vmem:[#allocation2 + $0x158] sm:$0xff]
      %v1478 = vld [vmem:[#allocation2 + $0x160] sm:$0xff]
      %v1479 = vld [vmem:[#allocation2 + $0x168] sm:$0xff]
      %v1480 = vld [vmem:[#allocation2 + $0x170] sm:$0xff]
      %v1481 = vld [vmem:[#allocation2 + $0x178] sm:$0xff]
      %v1482 = vld [vmem:[#allocation2 + $0x180] sm:$0xff]
      %v1483 = vld [vmem:[#allocation2 + $0x188] sm:$0xff]
      %v1484 = vld [vmem:[#allocation2 + $0x190] sm:$0xff]
      %v1485 = vld [vmem:[#allocation2 + $0x198] sm:$0xff]
      %v1486 = vld [vmem:[#allocation2 + $0x1a0] sm:$0xff]
      %v1487 = vld [vmem:[#allocation2 + $0x1a8] sm:$0xff]
      %v1488 = vld [vmem:[#allocation2 + $0x1b0] sm:$0xff]
      %v1489 = vld [vmem:[#allocation2 + $0x1b8] sm:$0xff]
      %v1490 = vld [vmem:[#allocation2 + $0x1c0] sm:$0xff]
      %v1491 = vld [vmem:[#allocation2 + $0x1c8] sm:$0xff]
      %v1492 = vld [vmem:[#allocation2 + $0x1d0] sm:$0xff]
      %v1493 = vld [vmem:[#allocation2 + $0x1d8] sm:$0xff]
      %v1494 = vld [vmem:[#allocation2 + $0x1e0] sm:$0xff]
      %v1495 = vld [vmem:[#allocation2 + $0x1e8] sm:$0xff]
      %v1496 = vld [vmem:[#allocation2 + $0x1f0] sm:$0xff]
      %v1497 = vld [vmem:[#allocation2 + $0x1f8] sm:$0xff]
      %v1498 = vld [vmem:[#allocation2 + $0x200] sm:$0xff]
      %v1499 = vld [vmem:[#allocation2 + $0x208] sm:$0xff]
      %v1500 = vld [vmem:[#allocation2 + $0x210] sm:$0xff]
      %v1501 = vld [vmem:[#allocation2 + $0x218] sm:$0xff]
      %v1502 = vld [vmem:[#allocation2 + $0x220] sm:$0xff]
      %v1503 = vld [vmem:[#allocation2 + $0x228] sm:$0xff]
      %v1504 = vld [vmem:[#allocation2 + $0x230] sm:$0xff]
      %v1505 = vld [vmem:[#allocation2 + $0x238] sm:$0xff]
      %v1506 = vld [vmem:[#allocation2 + $0x240] sm:$0xff]
      %v1507 = vld [vmem:[#allocation2 + $0x248] sm:$0xff]
      %v1508 = vld [vmem:[#allocation2 + $0x250] sm:$0xff]
      %v1509 = vld [vmem:[#allocation2 + $0x258] sm:$0xff]
      %v1510 = vld [vmem:[#allocation2 + $0x260] sm:$0xff]
      %v1511 = vld [vmem:[#allocation2 + $0x268] sm:$0xff]
      %v1512 = vld [vmem:[#allocation2 + $0x270] sm:$0xff]
      %v1513 = vld [vmem:[#allocation2 + $0x278] sm:$0xff]
      %v1514 = vld [vmem:[#allocation2 + $0x280] sm:$0xff]
      %v1515 = vld [vmem:[#allocation2 + $0x288] sm:$0xff]
      %v1516 = vld [vmem:[#allocation2 + $0x290] sm:$0xff]
      %v1517 = vld [vmem:[#allocation2 + $0x298] sm:$0xff]
      %v1518 = vld [vmem:[#allocation2 + $0x2a0] sm:$0xff]
      %v1519 = vld [vmem:[#allocation2 + $0x2a8] sm:$0xff]
      %v1520 = vld [vmem:[#allocation2 + $0x2b0] sm:$0xff]
      %v1521 = vld [vmem:[#allocation2 + $0x2b8] sm:$0xff]
      %v1522 = vld [vmem:[#allocation2 + $0x2c0] sm:$0xff]
      %v1523 = vld [vmem:[#allocation2 + $0x2c8] sm:$0xff]
      %v1524 = vld [vmem:[#allocation2 + $0x2d0] sm:$0xff]
      %v1525 = vld [vmem:[#allocation2 + $0x2d8] sm:$0xff]
      %v1526 = vld [vmem:[#allocation2 + $0x2e0] sm:$0xff]
      %v1527 = vld [vmem:[#allocation2 + $0x2e8] sm:$0xff]
      %v1528 = vld [vmem:[#allocation2 + $0x2f0] sm:$0xff]
      %v1529 = vld [vmem:[#allocation2 + $0x2f8] sm:$0xff]
      %v1530 = vld [vmem:[#allocation2 + $0x300] sm:$0xff]
      %v1531 = vld [vmem:[#allocation2 + $0x308] sm:$0xff]
      %v1532 = vld [vmem:[#allocation2 + $0x310] sm:$0xff]
      %v1533 = vld [vmem:[#allocation2 + $0x318] sm:$0xff]
      %v1534 = vld [vmem:[#allocation2 + $0x320] sm:$0xff]
      %v1535 = vld [vmem:[#allocation2 + $0x328] sm:$0xff]
      %v1536 = vld [vmem:[#allocation2 + $0x330] sm:$0xff]
      %v1537 = vld [vmem:[#allocation2 + $0x338] sm:$0xff]
      %v1538 = vld [vmem:[#allocation2 + $0x340] sm:$0xff]
      %v1539 = vld [vmem:[#allocation2 + $0x348] sm:$0xff]
      %v1540 = vld [vmem:[#allocation2 + $0x350] sm:$0xff]
      %v1541 = vld [vmem:[#allocation2 + $0x358] sm:$0xff]
      %v1544 = vunpack.c.l.b16 %v199
      %v1545 = vunpack.c.h.b16 %v199
      %v1546 = vunpack.c.l.b16 %v200
      %v1547 = vunpack.c.h.b16 %v200
      %v1548 = vpack.c.b16 %v1544, %v1544
      %v1549 = vpack.c.b16 %v1545, %v1545
      %v1550 = vpack.c.b16 %v1546, %v1546
      %v1551 = vpack.c.b16 %v1547, %v1547
      %v1663 = vunpack.c.l.b16 %v1434
      %v1664 = vunpack.c.h.b16 %v1434
      %v1665 = vunpack.c.l.b16 %v1435
      %v1666 = vunpack.c.h.b16 %v1435
      %v1667 = vunpack.c.l.b16 %v1436
      %v1668 = vunpack.c.h.b16 %v1436
      %v1669 = vunpack.c.l.b16 %v1437
      %v1670 = vunpack.c.h.b16 %v1437
      %v1671 = vunpack.c.l.b16 %v1438
      %v1672 = vunpack.c.h.b16 %v1438
      %v1673 = vunpack.c.l.b16 %v1439
      %v1674 = vunpack.c.h.b16 %v1439
      %v1675 = vunpack.c.l.b16 %v1440
      %v1676 = vunpack.c.h.b16 %v1440
      %v1677 = vunpack.c.l.b16 %v1441
      %v1678 = vunpack.c.h.b16 %v1441
      %v1679 = vunpack.c.l.b16 %v1442
      %v1680 = vunpack.c.h.b16 %v1442
      %v1681 = vunpack.c.l.b16 %v1443
      %v1682 = vunpack.c.h.b16 %v1443
      %v1683 = vunpack.c.l.b16 %v1444
      %v1684 = vunpack.c.h.b16 %v1444
      %v1685 = vunpack.c.l.b16 %v1445
      %v1686 = vunpack.c.h.b16 %v1445
      %v1687 = vunpack.c.l.b16 %v1446
      %v1688 = vunpack.c.h.b16 %v1446
      %v1689 = vunpack.c.l.b16 %v1447
      %v1690 = vunpack.c.h.b16 %v1447
      %v1691 = vunpack.c.l.b16 %v1448
      %v1692 = vunpack.c.h.b16 %v1448
      %v1693 = vunpack.c.l.b16 %v1449
      %v1694 = vunpack.c.h.b16 %v1449
      %v1695 = vunpack.c.l.b16 %v1450
      %v1696 = vunpack.c.h.b16 %v1450
      %v1697 = vunpack.c.l.b16 %v1451
      %v1698 = vunpack.c.h.b16 %v1451
      %v1699 = vunpack.c.l.b16 %v1452
      %v1700 = vunpack.c.h.b16 %v1452
      %v1701 = vunpack.c.l.b16 %v1453
      %v1702 = vunpack.c.h.b16 %v1453
      %v1703 = vunpack.c.l.b16 %v1454
      %v1704 = vunpack.c.h.b16 %v1454
      %v1705 = vunpack.c.l.b16 %v1455
      %v1706 = vunpack.c.h.b16 %v1455
      %v1707 = vunpack.c.l.b16 %v1456
      %v1708 = vunpack.c.h.b16 %v1456
      %v1709 = vunpack.c.l.b16 %v1457
      %v1710 = vunpack.c.h.b16 %v1457
      %v1711 = vunpack.c.l.b16 %v1458
      %v1712 = vunpack.c.h.b16 %v1458
      %v1713 = vunpack.c.l.b16 %v1459
      %v1714 = vunpack.c.h.b16 %v1459
      %v1715 = vunpack.c.l.b16 %v1460
      %v1716 = vunpack.c.h.b16 %v1460
      %v1717 = vunpack.c.l.b16 %v1461
      %v1718 = vunpack.c.h.b16 %v1461
      %v1719 = vunpack.c.l.b16 %v1462
      %v1720 = vunpack.c.h.b16 %v1462
      %v1721 = vunpack.c.l.b16 %v1463
      %v1722 = vunpack.c.h.b16 %v1463
      %v1723 = vunpack.c.l.b16 %v1464
      %v1724 = vunpack.c.h.b16 %v1464
      %v1725 = vunpack.c.l.b16 %v1465
      %v1726 = vunpack.c.h.b16 %v1465
      %v1727 = vunpack.c.l.b16 %v1466
      %v1728 = vunpack.c.h.b16 %v1466
      %v1729 = vunpack.c.l.b16 %v1467
      %v1730 = vunpack.c.h.b16 %v1467
      %v1731 = vunpack.c.l.b16 %v1468
      %v1732 = vunpack.c.h.b16 %v1468
      %v1733 = vunpack.c.l.b16 %v1469
      %v1734 = vunpack.c.h.b16 %v1469
      %v1735 = vunpack.c.l.b16 %v1470
      %v1736 = vunpack.c.h.b16 %v1470
      %v1737 = vunpack.c.l.b16 %v1471
      %v1738 = vunpack.c.h.b16 %v1471
      %v1739 = vunpack.c.l.b16 %v1472
      %v1740 = vunpack.c.h.b16 %v1472
      %v1741 = vunpack.c.l.b16 %v1473
      %v1742 = vunpack.c.h.b16 %v1473
      %v1743 = vunpack.c.l.b16 %v1474
      %v1744 = vunpack.c.h.b16 %v1474
      %v1745 = vunpack.c.l.b16 %v1475
      %v1746 = vunpack.c.h.b16 %v1475
      %v1747 = vunpack.c.l.b16 %v1476
      %v1748 = vunpack.c.h.b16 %v1476
      %v1749 = vunpack.c.l.b16 %v1477
      %v1750 = vunpack.c.h.b16 %v1477
      %v1751 = vunpack.c.l.b16 %v1478
      %v1752 = vunpack.c.h.b16 %v1478
      %v1753 = vunpack.c.l.b16 %v1479
      %v1754 = vunpack.c.h.b16 %v1479
      %v1755 = vunpack.c.l.b16 %v1480
      %v1756 = vunpack.c.h.b16 %v1480
      %v1757 = vunpack.c.l.b16 %v1481
      %v1758 = vunpack.c.h.b16 %v1481
      %v1759 = vunpack.c.l.b16 %v1482
      %v1760 = vunpack.c.h.b16 %v1482
      %v1761 = vunpack.c.l.b16 %v1483
      %v1762 = vunpack.c.h.b16 %v1483
      %v1763 = vunpack.c.l.b16 %v1484
      %v1764 = vunpack.c.h.b16 %v1484
      %v1765 = vunpack.c.l.b16 %v1485
      %v1766 = vunpack.c.h.b16 %v1485
      %v1767 = vunpack.c.l.b16 %v1486
      %v1768 = vunpack.c.h.b16 %v1486
      %v1769 = vunpack.c.l.b16 %v1487
      %v1770 = vunpack.c.h.b16 %v1487
      %v1771 = vunpack.c.l.b16 %v1488
      %v1772 = vunpack.c.h.b16 %v1488
      %v1773 = vunpack.c.l.b16 %v1489
      %v1774 = vunpack.c.h.b16 %v1489
      %v1775 = vunpack.c.l.b16 %v1490
      %v1776 = vunpack.c.h.b16 %v1490
      %v1777 = vunpack.c.l.b16 %v1491
      %v1778 = vunpack.c.h.b16 %v1491
      %v1779 = vunpack.c.l.b16 %v1492
      %v1780 = vunpack.c.h.b16 %v1492
      %v1781 = vunpack.c.l.b16 %v1493
      %v1782 = vunpack.c.h.b16 %v1493
      %v1783 = vunpack.c.l.b16 %v1494
      %v1784 = vunpack.c.h.b16 %v1494
      %v1785 = vunpack.c.l.b16 %v1495
      %v1786 = vunpack.c.h.b16 %v1495
      %v1787 = vunpack.c.l.b16 %v1496
      %v1788 = vunpack.c.h.b16 %v1496
      %v1789 = vunpack.c.l.b16 %v1497
      %v1790 = vunpack.c.h.b16 %v1497
      %v1791 = vunpack.c.l.b16 %v1498
      %v1792 = vunpack.c.h.b16 %v1498
      %v1793 = vunpack.c.l.b16 %v1499
      %v1794 = vunpack.c.h.b16 %v1499
      %v1795 = vunpack.c.l.b16 %v1500
      %v1796 = vunpack.c.h.b16 %v1500
      %v1797 = vunpack.c.l.b16 %v1501
      %v1798 = vunpack.c.h.b16 %v1501
      %v1799 = vunpack.c.l.b16 %v1502
      %v1800 = vunpack.c.h.b16 %v1502
      %v1801 = vunpack.c.l.b16 %v1503
      %v1802 = vunpack.c.h.b16 %v1503
      %v1803 = vunpack.c.l.b16 %v1504
      %v1804 = vunpack.c.h.b16 %v1504
      %v1805 = vunpack.c.l.b16 %v1505
      %v1806 = vunpack.c.h.b16 %v1505
      %v1807 = vunpack.c.l.b16 %v1506
      %v1808 = vunpack.c.h.b16 %v1506
      %v1809 = vunpack.c.l.b16 %v1507
      %v1810 = vunpack.c.h.b16 %v1507
      %v1811 = vunpack.c.l.b16 %v1508
      %v1812 = vunpack.c.h.b16 %v1508
      %v1813 = vunpack.c.l.b16 %v1509
      %v1814 = vunpack.c.h.b16 %v1509
      %v1815 = vunpack.c.l.b16 %v1510
      %v1816 = vunpack.c.h.b16 %v1510
      %v1817 = vunpack.c.l.b16 %v1511
      %v1818 = vunpack.c.h.b16 %v1511
      %v1819 = vunpack.c.l.b16 %v1512
      %v1820 = vunpack.c.h.b16 %v1512
      %v1821 = vunpack.c.l.b16 %v1513
      %v1822 = vunpack.c.h.b16 %v1513
      %v1823 = vunpack.c.l.b16 %v1514
      %v1824 = vunpack.c.h.b16 %v1514
      %v1825 = vunpack.c.l.b16 %v1515
      %v1826 = vunpack.c.h.b16 %v1515
      %v1827 = vunpack.c.l.b16 %v1516
      %v1828 = vunpack.c.h.b16 %v1516
      %v1829 = vunpack.c.l.b16 %v1517
      %v1830 = vunpack.c.h.b16 %v1517
      %v1831 = vunpack.c.l.b16 %v1518
      %v1832 = vunpack.c.h.b16 %v1518
      %v1833 = vunpack.c.l.b16 %v1519
      %v1834 = vunpack.c.h.b16 %v1519
      %v1835 = vunpack.c.l.b16 %v1520
      %v1836 = vunpack.c.h.b16 %v1520
      %v1837 = vunpack.c.l.b16 %v1521
      %v1838 = vunpack.c.h.b16 %v1521
      %v1839 = vunpack.c.l.b16 %v1522
      %v1840 = vunpack.c.h.b16 %v1522
      %v1841 = vunpack.c.l.b16 %v1523
      %v1842 = vunpack.c.h.b16 %v1523
      %v1843 = vunpack.c.l.b16 %v1524
      %v1844 = vunpack.c.h.b16 %v1524
      %v1845 = vunpack.c.l.b16 %v1525
      %v1846 = vunpack.c.h.b16 %v1525
      %v1847 = vunpack.c.l.b16 %v1526
      %v1848 = vunpack.c.h.b16 %v1526
      %v1849 = vunpack.c.l.b16 %v1527
      %v1850 = vunpack.c.h.b16 %v1527
      %v1851 = vunpack.c.l.b16 %v1528
      %v1852 = vunpack.c.h.b16 %v1528
      %v1853 = vunpack.c.l.b16 %v1529
      %v1854 = vunpack.c.h.b16 %v1529
      %v1855 = vunpack.c.l.b16 %v1530
      %v1856 = vunpack.c.h.b16 %v1530
      %v1857 = vunpack.c.l.b16 %v1531
      %v1858 = vunpack.c.h.b16 %v1531
      %v1859 = vunpack.c.l.b16 %v1532
      %v1860 = vunpack.c.h.b16 %v1532
      %v1861 = vunpack.c.l.b16 %v1533
      %v1862 = vunpack.c.h.b16 %v1533
      %v1863 = vunpack.c.l.b16 %v1534
      %v1864 = vunpack.c.h.b16 %v1534
      %v1865 = vunpack.c.l.b16 %v1535
      %v1866 = vunpack.c.h.b16 %v1535
      %v1867 = vunpack.c.l.b16 %v1536
      %v1868 = vunpack.c.h.b16 %v1536
      %v1869 = vunpack.c.l.b16 %v1537
      %v1870 = vunpack.c.h.b16 %v1537
      %v1871 = vunpack.c.l.b16 %v1538
      %v1872 = vunpack.c.h.b16 %v1538
      %v1873 = vunpack.c.l.b16 %v1539
      %v1874 = vunpack.c.h.b16 %v1539
      %v1875 = vunpack.c.l.b16 %v1540
      %v1876 = vunpack.c.h.b16 %v1540
      %v1877 = vunpack.c.l.b16 %v1541
      %v1878 = vunpack.c.h.b16 %v1541
      %v1879 = vpack.c.b16 %v1667, %v1663
      %v1880 = vpack.c.b16 %v1668, %v1664
      %v1881 = vpack.c.b16 %v1669, %v1665
      %v1882 = vpack.c.b16 %v1670, %v1666
      %v1883 = vpack.c.b16 %v1675, %v1671
      %v1884 = vpack.c.b16 %v1676, %v1672
      %v1885 = vpack.c.b16 %v1677, %v1673
      %v1886 = vpack.c.b16 %v1678, %v1674
      %v1887 = vpack.c.b16 %v1683, %v1679
      %v1888 = vpack.c.b16 %v1684, %v1680
      %v1889 = vpack.c.b16 %v1685, %v1681
      %v1890 = vpack.c.b16 %v1686, %v1682
      %v1891 = vpack.c.b16 %v1691, %v1687
      %v1892 = vpack.c.b16 %v1692, %v1688
      %v1893 = vpack.c.b16 %v1693, %v1689
      %v1894 = vpack.c.b16 %v1694, %v1690
      %v1895 = vpack.c.b16 %v1699, %v1695
      %v1896 = vpack.c.b16 %v1700, %v1696
      %v1897 = vpack.c.b16 %v1701, %v1697
      %v1898 = vpack.c.b16 %v1702, %v1698
      %v1899 = vpack.c.b16 %v1707, %v1703
      %v1900 = vpack.c.b16 %v1708, %v1704
      %v1901 = vpack.c.b16 %v1709, %v1705
      %v1902 = vpack.c.b16 %v1710, %v1706
      %v1903 = vpack.c.b16 %v1715, %v1711
      %v1904 = vpack.c.b16 %v1716, %v1712
      %v1905 = vpack.c.b16 %v1717, %v1713
      %v1906 = vpack.c.b16 %v1718, %v1714
      %v1907 = vpack.c.b16 %v1723, %v1719
      %v1908 = vpack.c.b16 %v1724, %v1720
      %v1909 = vpack.c.b16 %v1725, %v1721
      %v1910 = vpack.c.b16 %v1726, %v1722
      %v1911 = vpack.c.b16 %v1731, %v1727
      %v1912 = vpack.c.b16 %v1732, %v1728
      %v1913 = vpack.c.b16 %v1733, %v1729
      %v1914 = vpack.c.b16 %v1734, %v1730
      %v1915 = vpack.c.b16 %v1739, %v1735
      %v1916 = vpack.c.b16 %v1740, %v1736
      %v1917 = vpack.c.b16 %v1741, %v1737
      %v1918 = vpack.c.b16 %v1742, %v1738
      %v1919 = vpack.c.b16 %v1747, %v1743
      %v1920 = vpack.c.b16 %v1748, %v1744
      %v1921 = vpack.c.b16 %v1749, %v1745
      %v1922 = vpack.c.b16 %v1750, %v1746
      %v1923 = vpack.c.b16 %v1755, %v1751
      %v1924 = vpack.c.b16 %v1756, %v1752
      %v1925 = vpack.c.b16 %v1757, %v1753
      %v1926 = vpack.c.b16 %v1758, %v1754
      %v1927 = vpack.c.b16 %v1763, %v1759
      %v1928 = vpack.c.b16 %v1764, %v1760
      %v1929 = vpack.c.b16 %v1765, %v1761
      %v1930 = vpack.c.b16 %v1766, %v1762
      %v1931 = vpack.c.b16 %v1771, %v1767
      %v1932 = vpack.c.b16 %v1772, %v1768
      %v1933 = vpack.c.b16 %v1773, %v1769
      %v1934 = vpack.c.b16 %v1774, %v1770
      %v1935 = vpack.c.b16 %v1779, %v1775
      %v1936 = vpack.c.b16 %v1780, %v1776
      %v1937 = vpack.c.b16 %v1781, %v1777
      %v1938 = vpack.c.b16 %v1782, %v1778
      %v1939 = vpack.c.b16 %v1787, %v1783
      %v1940 = vpack.c.b16 %v1788, %v1784
      %v1941 = vpack.c.b16 %v1789, %v1785
      %v1942 = vpack.c.b16 %v1790, %v1786
      %v1943 = vpack.c.b16 %v1795, %v1791
      %v1944 = vpack.c.b16 %v1796, %v1792
      %v1945 = vpack.c.b16 %v1797, %v1793
      %v1946 = vpack.c.b16 %v1798, %v1794
      %v1947 = vpack.c.b16 %v1803, %v1799
      %v1948 = vpack.c.b16 %v1804, %v1800
      %v1949 = vpack.c.b16 %v1805, %v1801
      %v1950 = vpack.c.b16 %v1806, %v1802
      %v1951 = vpack.c.b16 %v1811, %v1807
      %v1952 = vpack.c.b16 %v1812, %v1808
      %v1953 = vpack.c.b16 %v1813, %v1809
      %v1954 = vpack.c.b16 %v1814, %v1810
      %v1955 = vpack.c.b16 %v1819, %v1815
      %v1956 = vpack.c.b16 %v1820, %v1816
      %v1957 = vpack.c.b16 %v1821, %v1817
      %v1958 = vpack.c.b16 %v1822, %v1818
      %v1959 = vpack.c.b16 %v1827, %v1823
      %v1960 = vpack.c.b16 %v1828, %v1824
      %v1961 = vpack.c.b16 %v1829, %v1825
      %v1962 = vpack.c.b16 %v1830, %v1826
      %v1963 = vpack.c.b16 %v1835, %v1831
      %v1964 = vpack.c.b16 %v1836, %v1832
      %v1965 = vpack.c.b16 %v1837, %v1833
      %v1966 = vpack.c.b16 %v1838, %v1834
      %v1967 = vpack.c.b16 %v1843, %v1839
      %v1968 = vpack.c.b16 %v1844, %v1840
      %v1969 = vpack.c.b16 %v1845, %v1841
      %v1970 = vpack.c.b16 %v1846, %v1842
      %v1971 = vpack.c.b16 %v1851, %v1847
      %v1972 = vpack.c.b16 %v1852, %v1848
      %v1973 = vpack.c.b16 %v1853, %v1849
      %v1974 = vpack.c.b16 %v1854, %v1850
      %v1975 = vpack.c.b16 %v1859, %v1855
      %v1976 = vpack.c.b16 %v1860, %v1856
      %v1977 = vpack.c.b16 %v1861, %v1857
      %v1978 = vpack.c.b16 %v1862, %v1858
      %v1979 = vpack.c.b16 %v1867, %v1863
      %v1980 = vpack.c.b16 %v1868, %v1864
      %v1981 = vpack.c.b16 %v1869, %v1865
      %v1982 = vpack.c.b16 %v1870, %v1866
      %v1983 = vpack.c.b16 %v1875, %v1871
      %v1984 = vpack.c.b16 %v1876, %v1872
      %v1985 = vpack.c.b16 %v1877, %v1873
      %v1986 = vpack.c.b16 %v1878, %v1874
      %vm2095 = vcmask 392192
      %v2097 = vsel %vm2095, %v1551, 0
      %2099 = vmatpush.bf16.msra.mxu0 %v1907
      %2100 = vmatpush.bf16.msra.mxu0 %v1903
      %2101 = vmatpush.bf16.msra.mxu0 %v1899
      %2102 = vmatpush.bf16.msra.mxu0 %v1895
      %2103 = vmatpush.bf16.msra.mxu0 %v1891
      %2104 = vmatpush.bf16.msra.mxu0 %v1887
      %2105 = vmatpush.bf16.msra.mxu0 %v1883
      %2106 = vmatpush.bf16.msra.mxu0 %v1879
      %2107 = vmatmul.bf16.gmra.mxu0 %v1548
      %v2108 = vpop.f32.mrf.mxu0
      %v2109 = vadd.f32 0.0, %v2108
      %v2110 = vpop.f32.mrf.mxu0
      %2111 = vdwg.mxu0
      %2112 = vmatpush.bf16.msra.mxu0 %v1939
      %2113 = vmatpush.bf16.msra.mxu0 %v1935
      %2114 = vmatpush.bf16.msra.mxu0 %v1931
      %2115 = vmatpush.bf16.msra.mxu0 %v1927
      %2116 = vmatpush.bf16.msra.mxu0 %v1923
      %2117 = vmatpush.bf16.msra.mxu0 %v1919
      %2118 = vmatpush.bf16.msra.mxu0 %v1915
      %2119 = vmatpush.bf16.msra.mxu0 %v1911
      %2120 = vmatmul.bf16.gmra.mxu0 %v1549
      %v2121 = vpop.f32.mrf.mxu0
      %v2122 = vadd.f32 %v2109, %v2121
      %v2123 = vpop.f32.mrf.mxu0
      %2124 = vdwg.mxu0
      %2125 = vmatpush.bf16.msra.mxu0 %v1971
      %2126 = vmatpush.bf16.msra.mxu0 %v1967
      %2127 = vmatpush.bf16.msra.mxu0 %v1963
      %2128 = vmatpush.bf16.msra.mxu0 %v1959
      %2129 = vmatpush.bf16.msra.mxu0 %v1955
      %2130 = vmatpush.bf16.msra.mxu0 %v1951
      %2131 = vmatpush.bf16.msra.mxu0 %v1947
      %2132 = vmatpush.bf16.msra.mxu0 %v1943
      %2133 = vmatmul.bf16.gmra.mxu0 %v1550
      %v2134 = vpop.f32.mrf.mxu0
      %v2135 = vadd.f32 %v2122, %v2134
      %v2136 = vpop.f32.mrf.mxu0
      %2137 = vdwg.mxu0
      %2138 = vmatpush.bf16.msra.mxu0 0
      %2139 = vmatpush.bf16.msra.mxu0 0
      %2140 = vmatpush.bf16.msra.mxu0 0
      %2141 = vmatpush.bf16.msra.mxu0 0
      %2142 = vmatpush.bf16.msra.mxu0 0
      %2143 = vmatpush.bf16.msra.mxu0 %v1983
      %2144 = vmatpush.bf16.msra.mxu0 %v1979
      %2145 = vmatpush.bf16.msra.mxu0 %v1975
      %2146 = vmatmul.bf16.gmra.mxu0 %v2097
      %v2147 = vpop.f32.mrf.mxu0
      %v2148 = vadd.f32 %v2135, %v2147
      %v2149 = vpop.f32.mrf.mxu0
      %2150 = vdwg.mxu0
      %2151 = vmatpush.bf16.msra.mxu0 %v1908
      %2152 = vmatpush.bf16.msra.mxu0 %v1904
      %2153 = vmatpush.bf16.msra.mxu0 %v1900
      %2154 = vmatpush.bf16.msra.mxu0 %v1896
      %2155 = vmatpush.bf16.msra.mxu0 %v1892
      %2156 = vmatpush.bf16.msra.mxu0 %v1888
      %2157 = vmatpush.bf16.msra.mxu0 %v1884
      %2158 = vmatpush.bf16.msra.mxu0 %v1880
      %2159 = vmatmul.bf16.gmra.mxu0 %v1548
      %v2160 = vpop.f32.mrf.mxu0
      %v2161 = vadd.f32 0.0, %v2160
      %v2162 = vpop.f32.mrf.mxu0
      %2163 = vdwg.mxu0
      %2164 = vmatpush.bf16.msra.mxu0 %v1940
      %2165 = vmatpush.bf16.msra.mxu0 %v1936
      %2166 = vmatpush.bf16.msra.mxu0 %v1932
      %2167 = vmatpush.bf16.msra.mxu0 %v1928
      %2168 = vmatpush.bf16.msra.mxu0 %v1924
      %2169 = vmatpush.bf16.msra.mxu0 %v1920
      %2170 = vmatpush.bf16.msra.mxu0 %v1916
      %2171 = vmatpush.bf16.msra.mxu0 %v1912
      %2172 = vmatmul.bf16.gmra.mxu0 %v1549
      %v2173 = vpop.f32.mrf.mxu0
      %v2174 = vadd.f32 %v2161, %v2173
      %v2175 = vpop.f32.mrf.mxu0
      %2176 = vdwg.mxu0
      %2177 = vmatpush.bf16.msra.mxu0 %v1972
      %2178 = vmatpush.bf16.msra.mxu0 %v1968
      %2179 = vmatpush.bf16.msra.mxu0 %v1964
      %2180 = vmatpush.bf16.msra.mxu0 %v1960
      %2181 = vmatpush.bf16.msra.mxu0 %v1956
      %2182 = vmatpush.bf16.msra.mxu0 %v1952
      %2183 = vmatpush.bf16.msra.mxu0 %v1948
      %2184 = vmatpush.bf16.msra.mxu0 %v1944
      %2185 = vmatmul.bf16.gmra.mxu0 %v1550
      %v2186 = vpop.f32.mrf.mxu0
      %v2187 = vadd.f32 %v2174, %v2186
      %v2188 = vpop.f32.mrf.mxu0
      %2189 = vdwg.mxu0
      %2190 = vmatpush.bf16.msra.mxu0 0
      %2191 = vmatpush.bf16.msra.mxu0 0
      %2192 = vmatpush.bf16.msra.mxu0 0
      %2193 = vmatpush.bf16.msra.mxu0 0
      %2194 = vmatpush.bf16.msra.mxu0 0
      %2195 = vmatpush.bf16.msra.mxu0 %v1984
      %2196 = vmatpush.bf16.msra.mxu0 %v1980
      %2197 = vmatpush.bf16.msra.mxu0 %v1976
      %2198 = vmatmul.bf16.gmra.mxu0 %v2097
      %v2199 = vpop.f32.mrf.mxu0
      %v2200 = vadd.f32 %v2187, %v2199
      %v2201 = vpop.f32.mrf.mxu0
      %2202 = vdwg.mxu0
      %2203 = vmatpush.bf16.msra.mxu0 %v1909
      %2204 = vmatpush.bf16.msra.mxu0 %v1905
      %2205 = vmatpush.bf16.msra.mxu0 %v1901
      %2206 = vmatpush.bf16.msra.mxu0 %v1897
      %2207 = vmatpush.bf16.msra.mxu0 %v1893
      %2208 = vmatpush.bf16.msra.mxu0 %v1889
      %2209 = vmatpush.bf16.msra.mxu0 %v1885
      %2210 = vmatpush.bf16.msra.mxu0 %v1881
      %2211 = vmatmul.bf16.gmra.mxu0 %v1548
      %v2212 = vpop.f32.mrf.mxu0
      %v2213 = vadd.f32 0.0, %v2212
      %v2214 = vpop.f32.mrf.mxu0
      %2215 = vdwg.mxu0
      %2216 = vmatpush.bf16.msra.mxu0 %v1941
      %2217 = vmatpush.bf16.msra.mxu0 %v1937
      %2218 = vmatpush.bf16.msra.mxu0 %v1933
      %2219 = vmatpush.bf16.msra.mxu0 %v1929
      %2220 = vmatpush.bf16.msra.mxu0 %v1925
      %2221 = vmatpush.bf16.msra.mxu0 %v1921
      %2222 = vmatpush.bf16.msra.mxu0 %v1917
      %2223 = vmatpush.bf16.msra.mxu0 %v1913
      %2224 = vmatmul.bf16.gmra.mxu0 %v1549
      %v2225 = vpop.f32.mrf.mxu0
      %v2226 = vadd.f32 %v2213, %v2225
      %v2227 = vpop.f32.mrf.mxu0
      %2228 = vdwg.mxu0
      %2229 = vmatpush.bf16.msra.mxu0 %v1973
      %2230 = vmatpush.bf16.msra.mxu0 %v1969
      %2231 = vmatpush.bf16.msra.mxu0 %v1965
      %2232 = vmatpush.bf16.msra.mxu0 %v1961
      %2233 = vmatpush.bf16.msra.mxu0 %v1957
      %2234 = vmatpush.bf16.msra.mxu0 %v1953
      %2235 = vmatpush.bf16.msra.mxu0 %v1949
      %2236 = vmatpush.bf16.msra.mxu0 %v1945
      %2237 = vmatmul.bf16.gmra.mxu0 %v1550
      %v2238 = vpop.f32.mrf.mxu0
      %v2239 = vadd.f32 %v2226, %v2238
      %v2240 = vpop.f32.mrf.mxu0
      %2241 = vdwg.mxu0
      %2242 = vmatpush.bf16.msra.mxu0 0
      %2243 = vmatpush.bf16.msra.mxu0 0
      %2244 = vmatpush.bf16.msra.mxu0 0
      %2245 = vmatpush.bf16.msra.mxu0 0
      %2246 = vmatpush.bf16.msra.mxu0 0
      %2247 = vmatpush.bf16.msra.mxu0 %v1985
      %2248 = vmatpush.bf16.msra.mxu0 %v1981
      %2249 = vmatpush.bf16.msra.mxu0 %v1977
      %2250 = vmatmul.bf16.gmra.mxu0 %v2097
      %v2251 = vpop.f32.mrf.mxu0
      %v2252 = vadd.f32 %v2239, %v2251
      %v2253 = vpop.f32.mrf.mxu0
      %2254 = vdwg.mxu0
      %2255 = vmatpush.bf16.msra.mxu0 %v1910
      %2256 = vmatpush.bf16.msra.mxu0 %v1906
      %2257 = vmatpush.bf16.msra.mxu0 %v1902
      %2258 = vmatpush.bf16.msra.mxu0 %v1898
      %2259 = vmatpush.bf16.msra.mxu0 %v1894
      %2260 = vmatpush.bf16.msra.mxu0 %v1890
      %2261 = vmatpush.bf16.msra.mxu0 %v1886
      %2262 = vmatpush.bf16.msra.mxu0 %v1882
      %2263 = vmatmul.bf16.gmra.mxu0 %v1548
      %v2264 = vpop.f32.mrf.mxu0
      %v2265 = vadd.f32 0.0, %v2264
      %v2266 = vpop.f32.mrf.mxu0
      %2267 = vdwg.mxu0
      %2268 = vmatpush.bf16.msra.mxu0 %v1942
      %2269 = vmatpush.bf16.msra.mxu0 %v1938
      %2270 = vmatpush.bf16.msra.mxu0 %v1934
      %2271 = vmatpush.bf16.msra.mxu0 %v1930
      %2272 = vmatpush.bf16.msra.mxu0 %v1926
      %2273 = vmatpush.bf16.msra.mxu0 %v1922
      %2274 = vmatpush.bf16.msra.mxu0 %v1918
      %2275 = vmatpush.bf16.msra.mxu0 %v1914
      %2276 = vmatmul.bf16.gmra.mxu0 %v1549
      %v2277 = vpop.f32.mrf.mxu0
      %v2278 = vadd.f32 %v2265, %v2277
      %v2279 = vpop.f32.mrf.mxu0
      %2280 = vdwg.mxu0
      %2281 = vmatpush.bf16.msra.mxu0 %v1974
      %2282 = vmatpush.bf16.msra.mxu0 %v1970
      %2283 = vmatpush.bf16.msra.mxu0 %v1966
      %2284 = vmatpush.bf16.msra.mxu0 %v1962
      %2285 = vmatpush.bf16.msra.mxu0 %v1958
      %2286 = vmatpush.bf16.msra.mxu0 %v1954
      %2287 = vmatpush.bf16.msra.mxu0 %v1950
      %2288 = vmatpush.bf16.msra.mxu0 %v1946
      %2289 = vmatmul.bf16.gmra.mxu0 %v1550
      %v2290 = vpop.f32.mrf.mxu0
      %v2291 = vadd.f32 %v2278, %v2290
      %v2292 = vpop.f32.mrf.mxu0
      %2293 = vdwg.mxu0
      %2294 = vmatpush.bf16.msra.mxu0 0
      %2295 = vmatpush.bf16.msra.mxu0 0
      %2296 = vmatpush.bf16.msra.mxu0 0
      %2297 = vmatpush.bf16.msra.mxu0 0
      %2298 = vmatpush.bf16.msra.mxu0 0
      %2299 = vmatpush.bf16.msra.mxu0 %v1986
      %2300 = vmatpush.bf16.msra.mxu0 %v1982
      %2301 = vmatpush.bf16.msra.mxu0 %v1978
      %2302 = vmatmul.bf16.gmra.mxu0 %v2097
      %v2303 = vpop.f32.mrf.mxu0
      %v2304 = vadd.f32 %v2291, %v2303
      %v2305 = vpop.f32.mrf.mxu0
      %2306 = vdwg.mxu0
      %2308 = vset.pattern.permute.xlu0 0
      %2309 = vperm.xlu0 %2308, %v201
      %v2310 = vpop.permute.xlu0 %2309
      %v2312 = vmul.f32 %v2148, %v2310
      %v2313 = vmul.f32 %v2200, %v2310
      %v2314 = vmul.f32 %v2252, %v2310
      %v2315 = vmul.f32 %v2304, %v2310
      %2317 = vset.pattern.permute.xlu0 0
      %2318 = vperm.xlu0 %2317, %v202
      %v2319 = vpop.permute.xlu0 %2318
      %v2321 = vadd.f32 %v2312, %v2319
      %v2322 = vadd.f32 %v2313, %v2319
      %v2323 = vadd.f32 %v2314, %v2319
      %v2324 = vadd.f32 %v2315, %v2319
      %vm2325 = vcmp.ge.f32.partialorder %v2321, 0.0
      %vm2326 = vcmp.ge.f32.partialorder %v2322, 0.0
      %vm2327 = vcmp.ge.f32.partialorder %v2323, 0.0
      %vm2328 = vcmp.ge.f32.partialorder %v2324, 0.0
      %v2329 = vmul.f32 %v2321, 0.01
      %v2330 = vmul.f32 %v2322, 0.01
      %v2331 = vmul.f32 %v2323, 0.01
      %v2332 = vmul.f32 %v2324, 0.01
      %v2333 = vsel %vm2325, %v2321, %v2329
      %v2334 = vsel %vm2326, %v2322, %v2330
      %v2335 = vsel %vm2327, %v2323, %v2331
      %v2336 = vsel %vm2328, %v2324, %v2332
      %2337 = vst [vmem:[%s197] sm:$0xff] %v2333
      %2338 = vst [vmem:[%s197 + $0x8] sm:$0xff] %v2334
      %2339 = vst [vmem:[%s197 + $0x10] sm:$0xff] %v2335
      %2340 = vst [vmem:[%s197 + $0x18] sm:$0xff] %v2336
      %v2341 = vld [vmem:[%s192 + $0x10] sm:$0xff]
      %v2342 = vld [vmem:[%s192 + $0x18] sm:$0xff]
      %v2343 = vld [vmem:[%s192 + $0x3c] sm:$0xff]
      %v2344 = vld [vmem:[%s192 + $0x44] sm:$0xff]
      %2345 = vst [vmem:[#allocation2] sm:$0xff] %v2341
      %2346 = vst [vmem:[#allocation2 + $0x8] sm:$0xff] %v2342
      %2347 = vst [vmem:[#allocation2 + $0x10] sm:$0xff] %v2343
      %2348 = vst [vmem:[#allocation2 + $0x18] sm:$0xff] %v2344
      %v2349 = vld [vmem:[%s192 + $0x10] sm:$0xff]
      %v2350 = vld [vmem:[%s192 + $0x18] sm:$0xff]
      %v2351 = vld [vmem:[%s192 + $0x20] sm:$0xf]
      %v2352 = vld [vmem:[%s192 + $0x3c] sm:$0xff]
      %v2353 = vld [vmem:[%s192 + $0x44] sm:$0xff]
      %v2354 = vld [vmem:[%s192 + $0x4c] sm:$0xf]
      %2361 = vrot.lane.b32.xlu0 %v2349, 127
      %v2362 = vpop.permute.xlu0 %2361
      %2363 = vrot.lane.b32.xlu0 %v2350, 127
      %v2364 = vpop.permute.xlu0 %2363
      %2365 = vrot.lane.b32.xlu0 %v2351, 127
      %v2366 = vpop.permute.xlu0 %2365
      %2367 = vrot.lane.b32.xlu0 %v2352, 127
      %v2368 = vpop.permute.xlu0 %2367
      %2369 = vrot.lane.b32.xlu0 %v2353, 127
      %v2370 = vpop.permute.xlu0 %2369
      %2371 = vrot.lane.b32.xlu0 %v2354, 127
      %v2372 = vpop.permute.xlu0 %2371
      %v2373 = vrot.slane %v2362, 4
      %v2374 = vrot.slane %v2364, 4
      %v2375 = vrot.slane %v2366, 4
      %v2376 = vrot.slane %v2368, 4
      %v2377 = vrot.slane %v2370, 4
      %v2378 = vrot.slane %v2372, 4
      %v2379 = vsel %vm241, %v2373, %v2374
      %v2380 = vsel %vm243, %v2362, %v2379
      %v2381 = vsel %vm241, %v2374, %v2375
      %v2382 = vsel %vm243, %v2364, %v2381
      %v2383 = vsel %vm241, %v2376, %v2377
      %v2384 = vsel %vm243, %v2368, %v2383
      %v2385 = vsel %vm241, %v2377, %v2378
      %v2386 = vsel %vm243, %v2370, %v2385
      %2391 = vst [vmem:[#allocation2 + $0x20] sm:$0xff] %v2380
      %2392 = vst [vmem:[#allocation2 + $0x28] sm:$0xff] %v2382
      %2393 = vst [vmem:[#allocation2 + $0x30] sm:$0xff] %v2384
      %2394 = vst [vmem:[#allocation2 + $0x38] sm:$0xff] %v2386
      %v2395 = vld [vmem:[%s192 + $0x10] sm:$0xff]
      %v2396 = vld [vmem:[%s192 + $0x18] sm:$0xff]
      %v2397 = vld [vmem:[%s192 + $0x20] sm:$0xf]
      %v2398 = vld [vmem:[%s192 + $0x3c] sm:$0xff]
      %v2399 = vld [vmem:[%s192 + $0x44] sm:$0xff]
      %v2400 = vld [vmem:[%s192 + $0x4c] sm:$0xf]
      %2407 = vrot.lane.b32.xlu0 %v2395, 126
      %v2408 = vpop.permute.xlu0 %2407
      %2409 = vrot.lane.b32.xlu0 %v2396, 126
      %v2410 = vpop.permute.xlu0 %2409
      %2411 = vrot.lane.b32.xlu0 %v2397, 126
      %v2412 = vpop.permute.xlu0 %2411
      %2413 = vrot.lane.b32.xlu0 %v2398, 126
      %v2414 = vpop.permute.xlu0 %2413
      %2415 = vrot.lane.b32.xlu0 %v2399, 126
      %v2416 = vpop.permute.xlu0 %2415
      %2417 = vrot.lane.b32.xlu0 %v2400, 126
      %v2418 = vpop.permute.xlu0 %2417
      %v2419 = vrot.slane %v2408, 4
      %v2420 = vrot.slane %v2410, 4
      %v2421 = vrot.slane %v2412, 4
      %v2422 = vrot.slane %v2414, 4
      %v2423 = vrot.slane %v2416, 4
      %v2424 = vrot.slane %v2418, 4
      %v2425 = vsel %vm241, %v2419, %v2420
      %v2426 = vsel %vm290, %v2408, %v2425
      %v2427 = vsel %vm241, %v2420, %v2421
      %v2428 = vsel %vm290, %v2410, %v2427
      %v2429 = vsel %vm241, %v2422, %v2423
      %v2430 = vsel %vm290, %v2414, %v2429
      %v2431 = vsel %vm241, %v2423, %v2424
      %v2432 = vsel %vm290, %v2416, %v2431
      %2437 = vst [vmem:[#allocation2 + $0x40] sm:$0xff] %v2426
      %2438 = vst [vmem:[#allocation2 + $0x48] sm:$0xff] %v2428
      %2439 = vst [vmem:[#allocation2 + $0x50] sm:$0xff] %v2430
      %2440 = vst [vmem:[#allocation2 + $0x58] sm:$0xff] %v2432
      %v2441 = vld [vmem:[%s192 + $0x10] sm:$0xff]
      %v2442 = vld [vmem:[%s192 + $0x18] sm:$0xff]
      %v2443 = vld [vmem:[%s192 + $0x20] sm:$0xf]
      %v2444 = vld [vmem:[%s192 + $0x3c] sm:$0xff]
      %v2445 = vld [vmem:[%s192 + $0x44] sm:$0xff]
      %v2446 = vld [vmem:[%s192 + $0x4c] sm:$0xf]
      %2453 = vrot.lane.b32.xlu0 %v2441, 118
      %v2454 = vpop.permute.xlu0 %2453
      %2455 = vrot.lane.b32.xlu0 %v2442, 118
      %v2456 = vpop.permute.xlu0 %2455
      %2457 = vrot.lane.b32.xlu0 %v2443, 118
      %v2458 = vpop.permute.xlu0 %2457
      %2459 = vrot.lane.b32.xlu0 %v2444, 118
      %v2460 = vpop.permute.xlu0 %2459
      %2461 = vrot.lane.b32.xlu0 %v2445, 118
      %v2462 = vpop.permute.xlu0 %2461
      %2463 = vrot.lane.b32.xlu0 %v2446, 118
      %v2464 = vpop.permute.xlu0 %2463
      %v2465 = vrot.slane %v2454, 4
      %v2466 = vrot.slane %v2456, 4
      %v2467 = vrot.slane %v2458, 4
      %v2468 = vrot.slane %v2460, 4
      %v2469 = vrot.slane %v2462, 4
      %v2470 = vrot.slane %v2464, 4
      %v2471 = vsel %vm241, %v2465, %v2466
      %v2472 = vsel %vm337, %v2454, %v2471
      %v2473 = vsel %vm241, %v2466, %v2467
      %v2474 = vsel %vm337, %v2456, %v2473
      %v2475 = vsel %vm241, %v2468, %v2469
      %v2476 = vsel %vm337, %v2460, %v2475
      %v2477 = vsel %vm241, %v2469, %v2470
      %v2478 = vsel %vm337, %v2462, %v2477
      %2483 = vst [vmem:[#allocation2 + $0x60] sm:$0xff] %v2472
      %2484 = vst [vmem:[#allocation2 + $0x68] sm:$0xff] %v2474
      %2485 = vst [vmem:[#allocation2 + $0x70] sm:$0xff] %v2476
      %2486 = vst [vmem:[#allocation2 + $0x78] sm:$0xff] %v2478
      %v2487 = vld [vmem:[%s192 + $0x10] sm:$0xff]
      %v2488 = vld [vmem:[%s192 + $0x18] sm:$0xff]
      %v2489 = vld [vmem:[%s192 + $0x20] sm:$0xf]
      %v2490 = vld [vmem:[%s192 + $0x3c] sm:$0xff]
      %v2491 = vld [vmem:[%s192 + $0x44] sm:$0xff]
      %v2492 = vld [vmem:[%s192 + $0x4c] sm:$0xf]
      %2499 = vrot.lane.b32.xlu0 %v2487, 117
      %v2500 = vpop.permute.xlu0 %2499
      %2501 = vrot.lane.b32.xlu0 %v2488, 117
      %v2502 = vpop.permute.xlu0 %2501
      %2503 = vrot.lane.b32.xlu0 %v2489, 117
      %v2504 = vpop.permute.xlu0 %2503
      %2505 = vrot.lane.b32.xlu0 %v2490, 117
      %v2506 = vpop.permute.xlu0 %2505
      %2507 = vrot.lane.b32.xlu0 %v2491, 117
      %v2508 = vpop.permute.xlu0 %2507
      %2509 = vrot.lane.b32.xlu0 %v2492, 117
      %v2510 = vpop.permute.xlu0 %2509
      %v2511 = vrot.slane %v2500, 4
      %v2512 = vrot.slane %v2502, 4
      %v2513 = vrot.slane %v2504, 4
      %v2514 = vrot.slane %v2506, 4
      %v2515 = vrot.slane %v2508, 4
      %v2516 = vrot.slane %v2510, 4
      %v2517 = vsel %vm241, %v2511, %v2512
      %v2518 = vsel %vm384, %v2500, %v2517
      %v2519 = vsel %vm241, %v2512, %v2513
      %v2520 = vsel %vm384, %v2502, %v2519
      %v2521 = vsel %vm241, %v2514, %v2515
      %v2522 = vsel %vm384, %v2506, %v2521
      %v2523 = vsel %vm241, %v2515, %v2516
      %v2524 = vsel %vm384, %v2508, %v2523
      %2529 = vst [vmem:[#allocation2 + $0x80] sm:$0xff] %v2518
      %2530 = vst [vmem:[#allocation2 + $0x88] sm:$0xff] %v2520
      %2531 = vst [vmem:[#allocation2 + $0x90] sm:$0xff] %v2522
      %2532 = vst [vmem:[#allocation2 + $0x98] sm:$0xff] %v2524
      %v2533 = vld [vmem:[%s192 + $0x10] sm:$0xff]
      %v2534 = vld [vmem:[%s192 + $0x18] sm:$0xff]
      %v2535 = vld [vmem:[%s192 + $0x20] sm:$0xf]
      %v2536 = vld [vmem:[%s192 + $0x3c] sm:$0xff]
      %v2537 = vld [vmem:[%s192 + $0x44] sm:$0xff]
      %v2538 = vld [vmem:[%s192 + $0x4c] sm:$0xf]
      %2545 = vrot.lane.b32.xlu0 %v2533, 116
      %v2546 = vpop.permute.xlu0 %2545
      %2547 = vrot.lane.b32.xlu0 %v2534, 116
      %v2548 = vpop.permute.xlu0 %2547
      %2549 = vrot.lane.b32.xlu0 %v2535, 116
      %v2550 = vpop.permute.xlu0 %2549
      %2551 = vrot.lane.b32.xlu0 %v2536, 116
      %v2552 = vpop.permute.xlu0 %2551
      %2553 = vrot.lane.b32.xlu0 %v2537, 116
      %v2554 = vpop.permute.xlu0 %2553
      %2555 = vrot.lane.b32.xlu0 %v2538, 116
      %v2556 = vpop.permute.xlu0 %2555
      %v2557 = vrot.slane %v2546, 4
      %v2558 = vrot.slane %v2548, 4
      %v2559 = vrot.slane %v2550, 4
      %v2560 = vrot.slane %v2552, 4
      %v2561 = vrot.slane %v2554, 4
      %v2562 = vrot.slane %v2556, 4
      %v2563 = vsel %vm241, %v2557, %v2558
      %v2564 = vsel %vm431, %v2546, %v2563
      %v2565 = vsel %vm241, %v2558, %v2559
      %v2566 = vsel %vm431, %v2548, %v2565
      %v2567 = vsel %vm241, %v2560, %v2561
      %v2568 = vsel %vm431, %v2552, %v2567
      %v2569 = vsel %vm241, %v2561, %v2562
      %v2570 = vsel %vm431, %v2554, %v2569
      %2575 = vst [vmem:[#allocation2 + $0xa0] sm:$0xff] %v2564
      %2576 = vst [vmem:[#allocation2 + $0xa8] sm:$0xff] %v2566
      %2577 = vst [vmem:[#allocation2 + $0xb0] sm:$0xff] %v2568
      %2578 = vst [vmem:[#allocation2 + $0xb8] sm:$0xff] %v2570
      %v2579 = vld [vmem:[%s192 + $0x10] sm:$0xff]
      %v2580 = vld [vmem:[%s192 + $0x18] sm:$0xff]
      %v2581 = vld [vmem:[%s192 + $0x20] sm:$0xf]
      %v2582 = vld [vmem:[%s192 + $0x3c] sm:$0xff]
      %v2583 = vld [vmem:[%s192 + $0x44] sm:$0xff]
      %v2584 = vld [vmem:[%s192 + $0x4c] sm:$0xf]
      %2591 = vrot.lane.b32.xlu0 %v2579, 108
      %v2592 = vpop.permute.xlu0 %2591
      %2593 = vrot.lane.b32.xlu0 %v2580, 108
      %v2594 = vpop.permute.xlu0 %2593
      %2595 = vrot.lane.b32.xlu0 %v2581, 108
      %v2596 = vpop.permute.xlu0 %2595
      %2597 = vrot.lane.b32.xlu0 %v2582, 108
      %v2598 = vpop.permute.xlu0 %2597
      %2599 = vrot.lane.b32.xlu0 %v2583, 108
      %v2600 = vpop.permute.xlu0 %2599
      %2601 = vrot.lane.b32.xlu0 %v2584, 108
      %v2602 = vpop.permute.xlu0 %2601
      %v2603 = vrot.slane %v2592, 4
      %v2604 = vrot.slane %v2594, 4
      %v2605 = vrot.slane %v2596, 4
      %v2606 = vrot.slane %v2598, 4
      %v2607 = vrot.slane %v2600, 4
      %v2608 = vrot.slane %v2602, 4
      %v2609 = vsel %vm241, %v2603, %v2604
      %v2610 = vsel %vm478, %v2592, %v2609
      %v2611 = vsel %vm241, %v2604, %v2605
      %v2612 = vsel %vm478, %v2594, %v2611
      %v2613 = vsel %vm241, %v2606, %v2607
      %v2614 = vsel %vm478, %v2598, %v2613
      %v2615 = vsel %vm241, %v2607, %v2608
      %v2616 = vsel %vm478, %v2600, %v2615
      %2621 = vst [vmem:[#allocation2 + $0xc0] sm:$0xff] %v2610
      %2622 = vst [vmem:[#allocation2 + $0xc8] sm:$0xff] %v2612
      %2623 = vst [vmem:[#allocation2 + $0xd0] sm:$0xff] %v2614
      %2624 = vst [vmem:[#allocation2 + $0xd8] sm:$0xff] %v2616
      %v2625 = vld [vmem:[%s192 + $0x10] sm:$0xff]
      %v2626 = vld [vmem:[%s192 + $0x18] sm:$0xff]
      %v2627 = vld [vmem:[%s192 + $0x20] sm:$0xf]
      %v2628 = vld [vmem:[%s192 + $0x3c] sm:$0xff]
      %v2629 = vld [vmem:[%s192 + $0x44] sm:$0xff]
      %v2630 = vld [vmem:[%s192 + $0x4c] sm:$0xf]
      %2637 = vrot.lane.b32.xlu0 %v2625, 107
      %v2638 = vpop.permute.xlu0 %2637
      %2639 = vrot.lane.b32.xlu0 %v2626, 107
      %v2640 = vpop.permute.xlu0 %2639
      %2641 = vrot.lane.b32.xlu0 %v2627, 107
      %v2642 = vpop.permute.xlu0 %2641
      %2643 = vrot.lane.b32.xlu0 %v2628, 107
      %v2644 = vpop.permute.xlu0 %2643
      %2645 = vrot.lane.b32.xlu0 %v2629, 107
      %v2646 = vpop.permute.xlu0 %2645
      %2647 = vrot.lane.b32.xlu0 %v2630, 107
      %v2648 = vpop.permute.xlu0 %2647
      %v2649 = vrot.slane %v2638, 4
      %v2650 = vrot.slane %v2640, 4
      %v2651 = vrot.slane %v2642, 4
      %v2652 = vrot.slane %v2644, 4
      %v2653 = vrot.slane %v2646, 4
      %v2654 = vrot.slane %v2648, 4
      %v2655 = vsel %vm241, %v2649, %v2650
      %v2656 = vsel %vm525, %v2638, %v2655
      %v2657 = vsel %vm241, %v2650, %v2651
      %v2658 = vsel %vm525, %v2640, %v2657
      %v2659 = vsel %vm241, %v2652, %v2653
      %v2660 = vsel %vm525, %v2644, %v2659
      %v2661 = vsel %vm241, %v2653, %v2654
      %v2662 = vsel %vm525, %v2646, %v2661
      %2667 = vst [vmem:[#allocation2 + $0xe0] sm:$0xff] %v2656
      %2668 = vst [vmem:[#allocation2 + $0xe8] sm:$0xff] %v2658
      %2669 = vst [vmem:[#allocation2 + $0xf0] sm:$0xff] %v2660
      %2670 = vst [vmem:[#allocation2 + $0xf8] sm:$0xff] %v2662
      %v2671 = vld [vmem:[%s192 + $0x10] sm:$0xff]
      %v2672 = vld [vmem:[%s192 + $0x18] sm:$0xff]
      %v2673 = vld [vmem:[%s192 + $0x20] sm:$0xf]
      %v2674 = vld [vmem:[%s192 + $0x3c] sm:$0xff]
      %v2675 = vld [vmem:[%s192 + $0x44] sm:$0xff]
      %v2676 = vld [vmem:[%s192 + $0x4c] sm:$0xf]
      %2683 = vrot.lane.b32.xlu0 %v2671, 106
      %v2684 = vpop.permute.xlu0 %2683
      %2685 = vrot.lane.b32.xlu0 %v2672, 106
      %v2686 = vpop.permute.xlu0 %2685
      %2687 = vrot.lane.b32.xlu0 %v2673, 106
      %v2688 = vpop.permute.xlu0 %2687
      %2689 = vrot.lane.b32.xlu0 %v2674, 106
      %v2690 = vpop.permute.xlu0 %2689
      %2691 = vrot.lane.b32.xlu0 %v2675, 106
      %v2692 = vpop.permute.xlu0 %2691
      %2693 = vrot.lane.b32.xlu0 %v2676, 106
      %v2694 = vpop.permute.xlu0 %2693
      %v2695 = vrot.slane %v2684, 4
      %v2696 = vrot.slane %v2686, 4
      %v2697 = vrot.slane %v2688, 4
      %v2698 = vrot.slane %v2690, 4
      %v2699 = vrot.slane %v2692, 4
      %v2700 = vrot.slane %v2694, 4
      %v2701 = vsel %vm241, %v2695, %v2696
      %v2702 = vsel %vm572, %v2684, %v2701
      %v2703 = vsel %vm241, %v2696, %v2697
      %v2704 = vsel %vm572, %v2686, %v2703
      %v2705 = vsel %vm241, %v2698, %v2699
      %v2706 = vsel %vm572, %v2690, %v2705
      %v2707 = vsel %vm241, %v2699, %v2700
      %v2708 = vsel %vm572, %v2692, %v2707
      %2713 = vst [vmem:[#allocation2 + $0x100] sm:$0xff] %v2702
      %2714 = vst [vmem:[#allocation2 + $0x108] sm:$0xff] %v2704
      %2715 = vst [vmem:[#allocation2 + $0x110] sm:$0xff] %v2706
      %2716 = vst [vmem:[#allocation2 + $0x118] sm:$0xff] %v2708
      %v2717 = vld [vmem:[%s192 + $0x10] sm:$0xff]
      %v2718 = vld [vmem:[%s192 + $0x18] sm:$0xff]
      %v2719 = vld [vmem:[%s192 + $0x20] sm:$0xf]
      %v2720 = vld [vmem:[%s192 + $0x3c] sm:$0xff]
      %v2721 = vld [vmem:[%s192 + $0x44] sm:$0xff]
      %v2722 = vld [vmem:[%s192 + $0x4c] sm:$0xf]
      %2729 = vrot.lane.b32.xlu0 %v2717, 28
      %v2730 = vpop.permute.xlu0 %2729
      %2731 = vrot.lane.b32.xlu0 %v2718, 28
      %v2732 = vpop.permute.xlu0 %2731
      %2733 = vrot.lane.b32.xlu0 %v2719, 28
      %v2734 = vpop.permute.xlu0 %2733
      %2735 = vrot.lane.b32.xlu0 %v2720, 28
      %v2736 = vpop.permute.xlu0 %2735
      %2737 = vrot.lane.b32.xlu0 %v2721, 28
      %v2738 = vpop.permute.xlu0 %2737
      %2739 = vrot.lane.b32.xlu0 %v2722, 28
      %v2740 = vpop.permute.xlu0 %2739
      %v2741 = vrot.slane %v2730, 4
      %v2742 = vrot.slane %v2732, 4
      %v2743 = vrot.slane %v2734, 4
      %v2744 = vrot.slane %v2736, 4
      %v2745 = vrot.slane %v2738, 4
      %v2746 = vrot.slane %v2740, 4
      %v2747 = vsel %vm241, %v2741, %v2742
      %v2748 = vsel %vm619, %v2730, %v2747
      %v2749 = vsel %vm241, %v2742, %v2743
      %v2750 = vsel %vm619, %v2732, %v2749
      %v2751 = vsel %vm241, %v2744, %v2745
      %v2752 = vsel %vm619, %v2736, %v2751
      %v2753 = vsel %vm241, %v2745, %v2746
      %v2754 = vsel %vm619, %v2738, %v2753
      %2759 = vst [vmem:[#allocation2 + $0x120] sm:$0xff] %v2748
      %2760 = vst [vmem:[#allocation2 + $0x128] sm:$0xff] %v2750
      %2761 = vst [vmem:[#allocation2 + $0x130] sm:$0xff] %v2752
      %2762 = vst [vmem:[#allocation2 + $0x138] sm:$0xff] %v2754
      %v2763 = vld [vmem:[%s192 + $0x10] sm:$0xff]
      %v2764 = vld [vmem:[%s192 + $0x18] sm:$0xff]
      %v2765 = vld [vmem:[%s192 + $0x20] sm:$0xf]
      %v2766 = vld [vmem:[%s192 + $0x3c] sm:$0xff]
      %v2767 = vld [vmem:[%s192 + $0x44] sm:$0xff]
      %v2768 = vld [vmem:[%s192 + $0x4c] sm:$0xf]
      %2775 = vrot.lane.b32.xlu0 %v2763, 27
      %v2776 = vpop.permute.xlu0 %2775
      %2777 = vrot.lane.b32.xlu0 %v2764, 27
      %v2778 = vpop.permute.xlu0 %2777
      %2779 = vrot.lane.b32.xlu0 %v2765, 27
      %v2780 = vpop.permute.xlu0 %2779
      %2781 = vrot.lane.b32.xlu0 %v2766, 27
      %v2782 = vpop.permute.xlu0 %2781
      %2783 = vrot.lane.b32.xlu0 %v2767, 27
      %v2784 = vpop.permute.xlu0 %2783
      %2785 = vrot.lane.b32.xlu0 %v2768, 27
      %v2786 = vpop.permute.xlu0 %2785
      %v2787 = vrot.slane %v2776, 4
      %v2788 = vrot.slane %v2778, 4
      %v2789 = vrot.slane %v2780, 4
      %v2790 = vrot.slane %v2782, 4
      %v2791 = vrot.slane %v2784, 4
      %v2792 = vrot.slane %v2786, 4
      %v2793 = vsel %vm241, %v2787, %v2788
      %v2794 = vsel %vm666, %v2776, %v2793
      %v2795 = vsel %vm241, %v2788, %v2789
      %v2796 = vsel %vm666, %v2778, %v2795
      %v2797 = vsel %vm241, %v2790, %v2791
      %v2798 = vsel %vm666, %v2782, %v2797
      %v2799 = vsel %vm241, %v2791, %v2792
      %v2800 = vsel %vm666, %v2784, %v2799
      %2805 = vst [vmem:[#allocation2 + $0x140] sm:$0xff] %v2794
      %2806 = vst [vmem:[#allocation2 + $0x148] sm:$0xff] %v2796
      %2807 = vst [vmem:[#allocation2 + $0x150] sm:$0xff] %v2798
      %2808 = vst [vmem:[#allocation2 + $0x158] sm:$0xff] %v2800
      %v2809 = vld [vmem:[%s192 + $0x10] sm:$0xff]
      %v2810 = vld [vmem:[%s192 + $0x18] sm:$0xff]
      %v2811 = vld [vmem:[%s192 + $0x20] sm:$0xf]
      %v2812 = vld [vmem:[%s192 + $0x3c] sm:$0xff]
      %v2813 = vld [vmem:[%s192 + $0x44] sm:$0xff]
      %v2814 = vld [vmem:[%s192 + $0x4c] sm:$0xf]
      %2821 = vrot.lane.b32.xlu0 %v2809, 26
      %v2822 = vpop.permute.xlu0 %2821
      %2823 = vrot.lane.b32.xlu0 %v2810, 26
      %v2824 = vpop.permute.xlu0 %2823
      %2825 = vrot.lane.b32.xlu0 %v2811, 26
      %v2826 = vpop.permute.xlu0 %2825
      %2827 = vrot.lane.b32.xlu0 %v2812, 26
      %v2828 = vpop.permute.xlu0 %2827
      %2829 = vrot.lane.b32.xlu0 %v2813, 26
      %v2830 = vpop.permute.xlu0 %2829
      %2831 = vrot.lane.b32.xlu0 %v2814, 26
      %v2832 = vpop.permute.xlu0 %2831
      %v2833 = vrot.slane %v2822, 4
      %v2834 = vrot.slane %v2824, 4
      %v2835 = vrot.slane %v2826, 4
      %v2836 = vrot.slane %v2828, 4
      %v2837 = vrot.slane %v2830, 4
      %v2838 = vrot.slane %v2832, 4
      %v2839 = vsel %vm241, %v2833, %v2834
      %v2840 = vsel %vm713, %v2822, %v2839
      %v2841 = vsel %vm241, %v2834, %v2835
      %v2842 = vsel %vm713, %v2824, %v2841
      %v2843 = vsel %vm241, %v2836, %v2837
      %v2844 = vsel %vm713, %v2828, %v2843
      %v2845 = vsel %vm241, %v2837, %v2838
      %v2846 = vsel %vm713, %v2830, %v2845
      %2851 = vst [vmem:[#allocation2 + $0x160] sm:$0xff] %v2840
      %2852 = vst [vmem:[#allocation2 + $0x168] sm:$0xff] %v2842
      %2853 = vst [vmem:[#allocation2 + $0x170] sm:$0xff] %v2844
      %2854 = vst [vmem:[#allocation2 + $0x178] sm:$0xff] %v2846
      %v2855 = vld [vmem:[%s192 + $0x10] sm:$0xff]
      %v2856 = vld [vmem:[%s192 + $0x18] sm:$0xff]
      %v2857 = vld [vmem:[%s192 + $0x20] sm:$0xf]
      %v2858 = vld [vmem:[%s192 + $0x3c] sm:$0xff]
      %v2859 = vld [vmem:[%s192 + $0x44] sm:$0xff]
      %v2860 = vld [vmem:[%s192 + $0x4c] sm:$0xf]
      %2867 = vrot.lane.b32.xlu0 %v2855, 18
      %v2868 = vpop.permute.xlu0 %2867
      %2869 = vrot.lane.b32.xlu0 %v2856, 18
      %v2870 = vpop.permute.xlu0 %2869
      %2871 = vrot.lane.b32.xlu0 %v2857, 18
      %v2872 = vpop.permute.xlu0 %2871
      %2873 = vrot.lane.b32.xlu0 %v2858, 18
      %v2874 = vpop.permute.xlu0 %2873
      %2875 = vrot.lane.b32.xlu0 %v2859, 18
      %v2876 = vpop.permute.xlu0 %2875
      %2877 = vrot.lane.b32.xlu0 %v2860, 18
      %v2878 = vpop.permute.xlu0 %2877
      %v2879 = vrot.slane %v2868, 4
      %v2880 = vrot.slane %v2870, 4
      %v2881 = vrot.slane %v2872, 4
      %v2882 = vrot.slane %v2874, 4
      %v2883 = vrot.slane %v2876, 4
      %v2884 = vrot.slane %v2878, 4
      %v2885 = vsel %vm241, %v2879, %v2880
      %v2886 = vsel %vm760, %v2868, %v2885
      %v2887 = vsel %vm241, %v2880, %v2881
      %v2888 = vsel %vm760, %v2870, %v2887
      %v2889 = vsel %vm241, %v2882, %v2883
      %v2890 = vsel %vm760, %v2874, %v2889
      %v2891 = vsel %vm241, %v2883, %v2884
      %v2892 = vsel %vm760, %v2876, %v2891
      %2897 = vst [vmem:[#allocation2 + $0x180] sm:$0xff] %v2886
      %2898 = vst [vmem:[#allocation2 + $0x188] sm:$0xff] %v2888
      %2899 = vst [vmem:[#allocation2 + $0x190] sm:$0xff] %v2890
      %2900 = vst [vmem:[#allocation2 + $0x198] sm:$0xff] %v2892
      %v2901 = vld [vmem:[%s192 + $0x10] sm:$0xff]
      %v2902 = vld [vmem:[%s192 + $0x18] sm:$0xff]
      %v2903 = vld [vmem:[%s192 + $0x20] sm:$0xf]
      %v2904 = vld [vmem:[%s192 + $0x3c] sm:$0xff]
      %v2905 = vld [vmem:[%s192 + $0x44] sm:$0xff]
      %v2906 = vld [vmem:[%s192 + $0x4c] sm:$0xf]
      %2913 = vrot.lane.b32.xlu0 %v2901, 17
      %v2914 = vpop.permute.xlu0 %2913
      %2915 = vrot.lane.b32.xlu0 %v2902, 17
      %v2916 = vpop.permute.xlu0 %2915
      %2917 = vrot.lane.b32.xlu0 %v2903, 17
      %v2918 = vpop.permute.xlu0 %2917
      %2919 = vrot.lane.b32.xlu0 %v2904, 17
      %v2920 = vpop.permute.xlu0 %2919
      %2921 = vrot.lane.b32.xlu0 %v2905, 17
      %v2922 = vpop.permute.xlu0 %2921
      %2923 = vrot.lane.b32.xlu0 %v2906, 17
      %v2924 = vpop.permute.xlu0 %2923
      %v2925 = vrot.slane %v2914, 4
      %v2926 = vrot.slane %v2916, 4
      %v2927 = vrot.slane %v2918, 4
      %v2928 = vrot.slane %v2920, 4
      %v2929 = vrot.slane %v2922, 4
      %v2930 = vrot.slane %v2924, 4
      %v2931 = vsel %vm241, %v2925, %v2926
      %v2932 = vsel %vm807, %v2914, %v2931
      %v2933 = vsel %vm241, %v2926, %v2927
      %v2934 = vsel %vm807, %v2916, %v2933
      %v2935 = vsel %vm241, %v2928, %v2929
      %v2936 = vsel %vm807, %v2920, %v2935
      %v2937 = vsel %vm241, %v2929, %v2930
      %v2938 = vsel %vm807, %v2922, %v2937
      %2943 = vst [vmem:[#allocation2 + $0x1a0] sm:$0xff] %v2932
      %2944 = vst [vmem:[#allocation2 + $0x1a8] sm:$0xff] %v2934
      %2945 = vst [vmem:[#allocation2 + $0x1b0] sm:$0xff] %v2936
      %2946 = vst [vmem:[#allocation2 + $0x1b8] sm:$0xff] %v2938
      %v2947 = vld [vmem:[%s192 + $0x10] sm:$0xff]
      %v2948 = vld [vmem:[%s192 + $0x18] sm:$0xff]
      %v2949 = vld [vmem:[%s192 + $0x20] sm:$0xf]
      %v2950 = vld [vmem:[%s192 + $0x3c] sm:$0xff]
      %v2951 = vld [vmem:[%s192 + $0x44] sm:$0xff]
      %v2952 = vld [vmem:[%s192 + $0x4c] sm:$0xf]
      %2959 = vrot.lane.b32.xlu0 %v2947, 16
      %v2960 = vpop.permute.xlu0 %2959
      %2961 = vrot.lane.b32.xlu0 %v2948, 16
      %v2962 = vpop.permute.xlu0 %2961
      %2963 = vrot.lane.b32.xlu0 %v2949, 16
      %v2964 = vpop.permute.xlu0 %2963
      %2965 = vrot.lane.b32.xlu0 %v2950, 16
      %v2966 = vpop.permute.xlu0 %2965
      %2967 = vrot.lane.b32.xlu0 %v2951, 16
      %v2968 = vpop.permute.xlu0 %2967
      %2969 = vrot.lane.b32.xlu0 %v2952, 16
      %v2970 = vpop.permute.xlu0 %2969
      %v2971 = vrot.slane %v2960, 4
      %v2972 = vrot.slane %v2962, 4
      %v2973 = vrot.slane %v2964, 4
      %v2974 = vrot.slane %v2966, 4
      %v2975 = vrot.slane %v2968, 4
      %v2976 = vrot.slane %v2970, 4
      %v2977 = vsel %vm241, %v2971, %v2972
      %v2978 = vsel %vm854, %v2960, %v2977
      %v2979 = vsel %vm241, %v2972, %v2973
      %v2980 = vsel %vm854, %v2962, %v2979
      %v2981 = vsel %vm241, %v2974, %v2975
      %v2982 = vsel %vm854, %v2966, %v2981
      %v2983 = vsel %vm241, %v2975, %v2976
      %v2984 = vsel %vm854, %v2968, %v2983
      %2989 = vst [vmem:[#allocation2 + $0x1c0] sm:$0xff] %v2978
      %2990 = vst [vmem:[#allocation2 + $0x1c8] sm:$0xff] %v2980
      %2991 = vst [vmem:[#allocation2 + $0x1d0] sm:$0xff] %v2982
      %2992 = vst [vmem:[#allocation2 + $0x1d8] sm:$0xff] %v2984
      %v2993 = vld [vmem:[%s192 + $0x10] sm:$0xff]
      %v2994 = vld [vmem:[%s192 + $0x18] sm:$0xff]
      %v2995 = vld [vmem:[%s192 + $0x20] sm:$0xf]
      %v2996 = vld [vmem:[%s192 + $0x3c] sm:$0xff]
      %v2997 = vld [vmem:[%s192 + $0x44] sm:$0xff]
      %v2998 = vld [vmem:[%s192 + $0x4c] sm:$0xf]
      %3005 = vrot.lane.b32.xlu0 %v2993, 8
      %v3006 = vpop.permute.xlu0 %3005
      %3007 = vrot.lane.b32.xlu0 %v2994, 8
      %v3008 = vpop.permute.xlu0 %3007
      %3009 = vrot.lane.b32.xlu0 %v2995, 8
      %v3010 = vpop.permute.xlu0 %3009
      %3011 = vrot.lane.b32.xlu0 %v2996, 8
      %v3012 = vpop.permute.xlu0 %3011
      %3013 = vrot.lane.b32.xlu0 %v2997, 8
      %v3014 = vpop.permute.xlu0 %3013
      %3015 = vrot.lane.b32.xlu0 %v2998, 8
      %v3016 = vpop.permute.xlu0 %3015
      %v3017 = vrot.slane %v3006, 4
      %v3018 = vrot.slane %v3008, 4
      %v3019 = vrot.slane %v3010, 4
      %v3020 = vrot.slane %v3012, 4
      %v3021 = vrot.slane %v3014, 4
      %v3022 = vrot.slane %v3016, 4
      %v3023 = vsel %vm241, %v3017, %v3018
      %v3024 = vsel %vm901, %v3006, %v3023
      %v3025 = vsel %vm241, %v3018, %v3019
      %v3026 = vsel %vm901, %v3008, %v3025
      %v3027 = vsel %vm241, %v3020, %v3021
      %v3028 = vsel %vm901, %v3012, %v3027
      %v3029 = vsel %vm241, %v3021, %v3022
      %v3030 = vsel %vm901, %v3014, %v3029
      %3035 = vst [vmem:[#allocation2 + $0x1e0] sm:$0xff] %v3024
      %3036 = vst [vmem:[#allocation2 + $0x1e8] sm:$0xff] %v3026
      %3037 = vst [vmem:[#allocation2 + $0x1f0] sm:$0xff] %v3028
      %3038 = vst [vmem:[#allocation2 + $0x1f8] sm:$0xff] %v3030
      %v3039 = vld [vmem:[%s192 + $0x10] sm:$0xff]
      %v3040 = vld [vmem:[%s192 + $0x18] sm:$0xff]
      %v3041 = vld [vmem:[%s192 + $0x20] sm:$0xf]
      %v3042 = vld [vmem:[%s192 + $0x3c] sm:$0xff]
      %v3043 = vld [vmem:[%s192 + $0x44] sm:$0xff]
      %v3044 = vld [vmem:[%s192 + $0x4c] sm:$0xf]
      %3051 = vrot.lane.b32.xlu0 %v3039, 7
      %v3052 = vpop.permute.xlu0 %3051
      %3053 = vrot.lane.b32.xlu0 %v3040, 7
      %v3054 = vpop.permute.xlu0 %3053
      %3055 = vrot.lane.b32.xlu0 %v3041, 7
      %v3056 = vpop.permute.xlu0 %3055
      %3057 = vrot.lane.b32.xlu0 %v3042, 7
      %v3058 = vpop.permute.xlu0 %3057
      %3059 = vrot.lane.b32.xlu0 %v3043, 7
      %v3060 = vpop.permute.xlu0 %3059
      %3061 = vrot.lane.b32.xlu0 %v3044, 7
      %v3062 = vpop.permute.xlu0 %3061
      %v3063 = vrot.slane %v3052, 4
      %v3064 = vrot.slane %v3054, 4
      %v3065 = vrot.slane %v3056, 4
      %v3066 = vrot.slane %v3058, 4
      %v3067 = vrot.slane %v3060, 4
      %v3068 = vrot.slane %v3062, 4
      %v3069 = vsel %vm241, %v3063, %v3064
      %v3070 = vsel %vm948, %v3052, %v3069
      %v3071 = vsel %vm241, %v3064, %v3065
      %v3072 = vsel %vm948, %v3054, %v3071
      %v3073 = vsel %vm241, %v3066, %v3067
      %v3074 = vsel %vm948, %v3058, %v3073
      %v3075 = vsel %vm241, %v3067, %v3068
      %v3076 = vsel %vm948, %v3060, %v3075
      %3081 = vst [vmem:[#allocation2 + $0x200] sm:$0xff] %v3070
      %3082 = vst [vmem:[#allocation2 + $0x208] sm:$0xff] %v3072
      %3083 = vst [vmem:[#allocation2 + $0x210] sm:$0xff] %v3074
      %3084 = vst [vmem:[#allocation2 + $0x218] sm:$0xff] %v3076
      %v3085 = vld [vmem:[%s192 + $0x10] sm:$0xff]
      %v3086 = vld [vmem:[%s192 + $0x18] sm:$0xff]
      %v3087 = vld [vmem:[%s192 + $0x20] sm:$0xf]
      %v3088 = vld [vmem:[%s192 + $0x3c] sm:$0xff]
      %v3089 = vld [vmem:[%s192 + $0x44] sm:$0xff]
      %v3090 = vld [vmem:[%s192 + $0x4c] sm:$0xf]
      %3097 = vrot.lane.b32.xlu0 %v3085, 6
      %v3098 = vpop.permute.xlu0 %3097
      %3099 = vrot.lane.b32.xlu0 %v3086, 6
      %v3100 = vpop.permute.xlu0 %3099
      %3101 = vrot.lane.b32.xlu0 %v3087, 6
      %v3102 = vpop.permute.xlu0 %3101
      %3103 = vrot.lane.b32.xlu0 %v3088, 6
      %v3104 = vpop.permute.xlu0 %3103
      %3105 = vrot.lane.b32.xlu0 %v3089, 6
      %v3106 = vpop.permute.xlu0 %3105
      %3107 = vrot.lane.b32.xlu0 %v3090, 6
      %v3108 = vpop.permute.xlu0 %3107
      %v3109 = vrot.slane %v3098, 4
      %v3110 = vrot.slane %v3100, 4
      %v3111 = vrot.slane %v3102, 4
      %v3112 = vrot.slane %v3104, 4
      %v3113 = vrot.slane %v3106, 4
      %v3114 = vrot.slane %v3108, 4
      %v3115 = vsel %vm241, %v3109, %v3110
      %v3116 = vsel %vm995, %v3098, %v3115
      %v3117 = vsel %vm241, %v3110, %v3111
      %v3118 = vsel %vm995, %v3100, %v3117
      %v3119 = vsel %vm241, %v3112, %v3113
      %v3120 = vsel %vm995, %v3104, %v3119
      %v3121 = vsel %vm241, %v3113, %v3114
      %v3122 = vsel %vm995, %v3106, %v3121
      %3127 = vst [vmem:[#allocation2 + $0x220] sm:$0xff] %v3116
      %3128 = vst [vmem:[#allocation2 + $0x228] sm:$0xff] %v3118
      %3129 = vst [vmem:[#allocation2 + $0x230] sm:$0xff] %v3120
      %3130 = vst [vmem:[#allocation2 + $0x238] sm:$0xff] %v3122
      %v3131 = vld [vmem:[%s192 + $0x14] sm:$0xff]
      %v3132 = vld [vmem:[%s192 + $0x1c] sm:$0xff]
      %v3133 = vld [vmem:[%s192 + $0x24] sm:$0xf]
      %v3134 = vld [vmem:[%s192 + $0x40] sm:$0xff]
      %v3135 = vld [vmem:[%s192 + $0x48] sm:$0xff]
      %v3136 = vld [vmem:[%s192 + $0x50] sm:$0xf]
      %3143 = vrot.lane.b32.xlu0 %v3131, 56
      %v3144 = vpop.permute.xlu0 %3143
      %3145 = vrot.lane.b32.xlu0 %v3132, 56
      %v3146 = vpop.permute.xlu0 %3145
      %3147 = vrot.lane.b32.xlu0 %v3133, 56
      %v3148 = vpop.permute.xlu0 %3147
      %3149 = vrot.lane.b32.xlu0 %v3134, 56
      %v3150 = vpop.permute.xlu0 %3149
      %3151 = vrot.lane.b32.xlu0 %v3135, 56
      %v3152 = vpop.permute.xlu0 %3151
      %3153 = vrot.lane.b32.xlu0 %v3136, 56
      %v3154 = vpop.permute.xlu0 %3153
      %v3155 = vrot.slane %v3144, 4
      %v3156 = vrot.slane %v3146, 4
      %v3157 = vrot.slane %v3148, 4
      %v3158 = vrot.slane %v3150, 4
      %v3159 = vrot.slane %v3152, 4
      %v3160 = vrot.slane %v3154, 4
      %v3161 = vsel %vm241, %v3155, %v3156
      %v3162 = vsel %vm1042, %v3144, %v3161
      %v3163 = vsel %vm241, %v3156, %v3157
      %v3164 = vsel %vm1042, %v3146, %v3163
      %v3165 = vsel %vm241, %v3158, %v3159
      %v3166 = vsel %vm1042, %v3150, %v3165
      %v3167 = vsel %vm241, %v3159, %v3160
      %v3168 = vsel %vm1042, %v3152, %v3167
      %3173 = vst [vmem:[#allocation2 + $0x240] sm:$0xff] %v3162
      %3174 = vst [vmem:[#allocation2 + $0x248] sm:$0xff] %v3164
      %3175 = vst [vmem:[#allocation2 + $0x250] sm:$0xff] %v3166
      %3176 = vst [vmem:[#allocation2 + $0x258] sm:$0xff] %v3168
      %v3177 = vld [vmem:[%s192 + $0x14] sm:$0xff]
      %v3178 = vld [vmem:[%s192 + $0x1c] sm:$0xff]
      %v3179 = vld [vmem:[%s192 + $0x24] sm:$0xf]
      %v3180 = vld [vmem:[%s192 + $0x40] sm:$0xff]
      %v3181 = vld [vmem:[%s192 + $0x48] sm:$0xff]
      %v3182 = vld [vmem:[%s192 + $0x50] sm:$0xf]
      %3189 = vrot.lane.b32.xlu0 %v3177, 55
      %v3190 = vpop.permute.xlu0 %3189
      %3191 = vrot.lane.b32.xlu0 %v3178, 55
      %v3192 = vpop.permute.xlu0 %3191
      %3193 = vrot.lane.b32.xlu0 %v3179, 55
      %v3194 = vpop.permute.xlu0 %3193
      %3195 = vrot.lane.b32.xlu0 %v3180, 55
      %v3196 = vpop.permute.xlu0 %3195
      %3197 = vrot.lane.b32.xlu0 %v3181, 55
      %v3198 = vpop.permute.xlu0 %3197
      %3199 = vrot.lane.b32.xlu0 %v3182, 55
      %v3200 = vpop.permute.xlu0 %3199
      %v3201 = vrot.slane %v3190, 4
      %v3202 = vrot.slane %v3192, 4
      %v3203 = vrot.slane %v3194, 4
      %v3204 = vrot.slane %v3196, 4
      %v3205 = vrot.slane %v3198, 4
      %v3206 = vrot.slane %v3200, 4
      %v3207 = vsel %vm241, %v3201, %v3202
      %v3208 = vsel %vm1089, %v3190, %v3207
      %v3209 = vsel %vm241, %v3202, %v3203
      %v3210 = vsel %vm1089, %v3192, %v3209
      %v3211 = vsel %vm241, %v3204, %v3205
      %v3212 = vsel %vm1089, %v3196, %v3211
      %v3213 = vsel %vm241, %v3205, %v3206
      %v3214 = vsel %vm1089, %v3198, %v3213
      %3219 = vst [vmem:[#allocation2 + $0x260] sm:$0xff] %v3208
      %3220 = vst [vmem:[#allocation2 + $0x268] sm:$0xff] %v3210
      %3221 = vst [vmem:[#allocation2 + $0x270] sm:$0xff] %v3212
      %3222 = vst [vmem:[#allocation2 + $0x278] sm:$0xff] %v3214
      %v3223 = vld [vmem:[%s192 + $0x14] sm:$0xff]
      %v3224 = vld [vmem:[%s192 + $0x1c] sm:$0xff]
      %v3225 = vld [vmem:[%s192 + $0x24] sm:$0xf]
      %v3226 = vld [vmem:[%s192 + $0x40] sm:$0xff]
      %v3227 = vld [vmem:[%s192 + $0x48] sm:$0xff]
      %v3228 = vld [vmem:[%s192 + $0x50] sm:$0xf]
      %3235 = vrot.lane.b32.xlu0 %v3223, 54
      %v3236 = vpop.permute.xlu0 %3235
      %3237 = vrot.lane.b32.xlu0 %v3224, 54
      %v3238 = vpop.permute.xlu0 %3237
      %3239 = vrot.lane.b32.xlu0 %v3225, 54
      %v3240 = vpop.permute.xlu0 %3239
      %3241 = vrot.lane.b32.xlu0 %v3226, 54
      %v3242 = vpop.permute.xlu0 %3241
      %3243 = vrot.lane.b32.xlu0 %v3227, 54
      %v3244 = vpop.permute.xlu0 %3243
      %3245 = vrot.lane.b32.xlu0 %v3228, 54
      %v3246 = vpop.permute.xlu0 %3245
      %v3247 = vrot.slane %v3236, 4
      %v3248 = vrot.slane %v3238, 4
      %v3249 = vrot.slane %v3240, 4
      %v3250 = vrot.slane %v3242, 4
      %v3251 = vrot.slane %v3244, 4
      %v3252 = vrot.slane %v3246, 4
      %v3253 = vsel %vm241, %v3247, %v3248
      %v3254 = vsel %vm1136, %v3236, %v3253
      %v3255 = vsel %vm241, %v3248, %v3249
      %v3256 = vsel %vm1136, %v3238, %v3255
      %v3257 = vsel %vm241, %v3250, %v3251
      %v3258 = vsel %vm1136, %v3242, %v3257
      %v3259 = vsel %vm241, %v3251, %v3252
      %v3260 = vsel %vm1136, %v3244, %v3259
      %3265 = vst [vmem:[#allocation2 + $0x280] sm:$0xff] %v3254
      %3266 = vst [vmem:[#allocation2 + $0x288] sm:$0xff] %v3256
      %3267 = vst [vmem:[#allocation2 + $0x290] sm:$0xff] %v3258
      %3268 = vst [vmem:[#allocation2 + $0x298] sm:$0xff] %v3260
      %v3269 = vld [vmem:[%s192 + $0x14] sm:$0xff]
      %v3270 = vld [vmem:[%s192 + $0x1c] sm:$0xff]
      %v3271 = vld [vmem:[%s192 + $0x24] sm:$0xf]
      %v3272 = vld [vmem:[%s192 + $0x40] sm:$0xff]
      %v3273 = vld [vmem:[%s192 + $0x48] sm:$0xff]
      %v3274 = vld [vmem:[%s192 + $0x50] sm:$0xf]
      %3281 = vrot.lane.b32.xlu0 %v3269, 46
      %v3282 = vpop.permute.xlu0 %3281
      %3283 = vrot.lane.b32.xlu0 %v3270, 46
      %v3284 = vpop.permute.xlu0 %3283
      %3285 = vrot.lane.b32.xlu0 %v3271, 46
      %v3286 = vpop.permute.xlu0 %3285
      %3287 = vrot.lane.b32.xlu0 %v3272, 46
      %v3288 = vpop.permute.xlu0 %3287
      %3289 = vrot.lane.b32.xlu0 %v3273, 46
      %v3290 = vpop.permute.xlu0 %3289
      %3291 = vrot.lane.b32.xlu0 %v3274, 46
      %v3292 = vpop.permute.xlu0 %3291
      %v3293 = vrot.slane %v3282, 4
      %v3294 = vrot.slane %v3284, 4
      %v3295 = vrot.slane %v3286, 4
      %v3296 = vrot.slane %v3288, 4
      %v3297 = vrot.slane %v3290, 4
      %v3298 = vrot.slane %v3292, 4
      %v3299 = vsel %vm241, %v3293, %v3294
      %v3300 = vsel %vm1183, %v3282, %v3299
      %v3301 = vsel %vm241, %v3294, %v3295
      %v3302 = vsel %vm1183, %v3284, %v3301
      %v3303 = vsel %vm241, %v3296, %v3297
      %v3304 = vsel %vm1183, %v3288, %v3303
      %v3305 = vsel %vm241, %v3297, %v3298
      %v3306 = vsel %vm1183, %v3290, %v3305
      %3311 = vst [vmem:[#allocation2 + $0x2a0] sm:$0xff] %v3300
      %3312 = vst [vmem:[#allocation2 + $0x2a8] sm:$0xff] %v3302
      %3313 = vst [vmem:[#allocation2 + $0x2b0] sm:$0xff] %v3304
      %3314 = vst [vmem:[#allocation2 + $0x2b8] sm:$0xff] %v3306
      %v3315 = vld [vmem:[%s192 + $0x14] sm:$0xff]
      %v3316 = vld [vmem:[%s192 + $0x1c] sm:$0xff]
      %v3317 = vld [vmem:[%s192 + $0x24] sm:$0xf]
      %v3318 = vld [vmem:[%s192 + $0x40] sm:$0xff]
      %v3319 = vld [vmem:[%s192 + $0x48] sm:$0xff]
      %v3320 = vld [vmem:[%s192 + $0x50] sm:$0xf]
      %3327 = vrot.lane.b32.xlu0 %v3315, 45
      %v3328 = vpop.permute.xlu0 %3327
      %3329 = vrot.lane.b32.xlu0 %v3316, 45
      %v3330 = vpop.permute.xlu0 %3329
      %3331 = vrot.lane.b32.xlu0 %v3317, 45
      %v3332 = vpop.permute.xlu0 %3331
      %3333 = vrot.lane.b32.xlu0 %v3318, 45
      %v3334 = vpop.permute.xlu0 %3333
      %3335 = vrot.lane.b32.xlu0 %v3319, 45
      %v3336 = vpop.permute.xlu0 %3335
      %3337 = vrot.lane.b32.xlu0 %v3320, 45
      %v3338 = vpop.permute.xlu0 %3337
      %v3339 = vrot.slane %v3328, 4
      %v3340 = vrot.slane %v3330, 4
      %v3341 = vrot.slane %v3332, 4
      %v3342 = vrot.slane %v3334, 4
      %v3343 = vrot.slane %v3336, 4
      %v3344 = vrot.slane %v3338, 4
      %v3345 = vsel %vm241, %v3339, %v3340
      %v3346 = vsel %vm1230, %v3328, %v3345
      %v3347 = vsel %vm241, %v3340, %v3341
      %v3348 = vsel %vm1230, %v3330, %v3347
      %v3349 = vsel %vm241, %v3342, %v3343
      %v3350 = vsel %vm1230, %v3334, %v3349
      %v3351 = vsel %vm241, %v3343, %v3344
      %v3352 = vsel %vm1230, %v3336, %v3351
      %3357 = vst [vmem:[#allocation2 + $0x2c0] sm:$0xff] %v3346
      %3358 = vst [vmem:[#allocation2 + $0x2c8] sm:$0xff] %v3348
      %3359 = vst [vmem:[#allocation2 + $0x2d0] sm:$0xff] %v3350
      %3360 = vst [vmem:[#allocation2 + $0x2d8] sm:$0xff] %v3352
      %v3361 = vld [vmem:[%s192 + $0x14] sm:$0xff]
      %v3362 = vld [vmem:[%s192 + $0x1c] sm:$0xff]
      %v3363 = vld [vmem:[%s192 + $0x24] sm:$0xf]
      %v3364 = vld [vmem:[%s192 + $0x40] sm:$0xff]
      %v3365 = vld [vmem:[%s192 + $0x48] sm:$0xff]
      %v3366 = vld [vmem:[%s192 + $0x50] sm:$0xf]
      %3373 = vrot.lane.b32.xlu0 %v3361, 44
      %v3374 = vpop.permute.xlu0 %3373
      %3375 = vrot.lane.b32.xlu0 %v3362, 44
      %v3376 = vpop.permute.xlu0 %3375
      %3377 = vrot.lane.b32.xlu0 %v3363, 44
      %v3378 = vpop.permute.xlu0 %3377
      %3379 = vrot.lane.b32.xlu0 %v3364, 44
      %v3380 = vpop.permute.xlu0 %3379
      %3381 = vrot.lane.b32.xlu0 %v3365, 44
      %v3382 = vpop.permute.xlu0 %3381
      %3383 = vrot.lane.b32.xlu0 %v3366, 44
      %v3384 = vpop.permute.xlu0 %3383
      %v3385 = vrot.slane %v3374, 4
      %v3386 = vrot.slane %v3376, 4
      %v3387 = vrot.slane %v3378, 4
      %v3388 = vrot.slane %v3380, 4
      %v3389 = vrot.slane %v3382, 4
      %v3390 = vrot.slane %v3384, 4
      %v3391 = vsel %vm241, %v3385, %v3386
      %v3392 = vsel %vm1277, %v3374, %v3391
      %v3393 = vsel %vm241, %v3386, %v3387
      %v3394 = vsel %vm1277, %v3376, %v3393
      %v3395 = vsel %vm241, %v3388, %v3389
      %v3396 = vsel %vm1277, %v3380, %v3395
      %v3397 = vsel %vm241, %v3389, %v3390
      %v3398 = vsel %vm1277, %v3382, %v3397
      %3403 = vst [vmem:[#allocation2 + $0x2e0] sm:$0xff] %v3392
      %3404 = vst [vmem:[#allocation2 + $0x2e8] sm:$0xff] %v3394
      %3405 = vst [vmem:[#allocation2 + $0x2f0] sm:$0xff] %v3396
      %3406 = vst [vmem:[#allocation2 + $0x2f8] sm:$0xff] %v3398
      %v3407 = vld [vmem:[%s192 + $0x14] sm:$0xff]
      %v3408 = vld [vmem:[%s192 + $0x1c] sm:$0xff]
      %v3409 = vld [vmem:[%s192 + $0x24] sm:$0xf]
      %v3410 = vld [vmem:[%s192 + $0x40] sm:$0xff]
      %v3411 = vld [vmem:[%s192 + $0x48] sm:$0xff]
      %v3412 = vld [vmem:[%s192 + $0x50] sm:$0xf]
      %3419 = vrot.lane.b32.xlu0 %v3407, 36
      %v3420 = vpop.permute.xlu0 %3419
      %3421 = vrot.lane.b32.xlu0 %v3408, 36
      %v3422 = vpop.permute.xlu0 %3421
      %3423 = vrot.lane.b32.xlu0 %v3409, 36
      %v3424 = vpop.permute.xlu0 %3423
      %3425 = vrot.lane.b32.xlu0 %v3410, 36
      %v3426 = vpop.permute.xlu0 %3425
      %3427 = vrot.lane.b32.xlu0 %v3411, 36
      %v3428 = vpop.permute.xlu0 %3427
      %3429 = vrot.lane.b32.xlu0 %v3412, 36
      %v3430 = vpop.permute.xlu0 %3429
      %v3431 = vrot.slane %v3420, 4
      %v3432 = vrot.slane %v3422, 4
      %v3433 = vrot.slane %v3424, 4
      %v3434 = vrot.slane %v3426, 4
      %v3435 = vrot.slane %v3428, 4
      %v3436 = vrot.slane %v3430, 4
      %v3437 = vsel %vm241, %v3431, %v3432
      %v3438 = vsel %vm1324, %v3420, %v3437
      %v3439 = vsel %vm241, %v3432, %v3433
      %v3440 = vsel %vm1324, %v3422, %v3439
      %v3441 = vsel %vm241, %v3434, %v3435
      %v3442 = vsel %vm1324, %v3426, %v3441
      %v3443 = vsel %vm241, %v3435, %v3436
      %v3444 = vsel %vm1324, %v3428, %v3443
      %3449 = vst [vmem:[#allocation2 + $0x300] sm:$0xff] %v3438
      %3450 = vst [vmem:[#allocation2 + $0x308] sm:$0xff] %v3440
      %3451 = vst [vmem:[#allocation2 + $0x310] sm:$0xff] %v3442
      %3452 = vst [vmem:[#allocation2 + $0x318] sm:$0xff] %v3444
      %v3453 = vld [vmem:[%s192 + $0x14] sm:$0xff]
      %v3454 = vld [vmem:[%s192 + $0x1c] sm:$0xff]
      %v3455 = vld [vmem:[%s192 + $0x24] sm:$0xf]
      %v3456 = vld [vmem:[%s192 + $0x40] sm:$0xff]
      %v3457 = vld [vmem:[%s192 + $0x48] sm:$0xff]
      %v3458 = vld [vmem:[%s192 + $0x50] sm:$0xf]
      %3465 = vrot.lane.b32.xlu0 %v3453, 35
      %v3466 = vpop.permute.xlu0 %3465
      %3467 = vrot.lane.b32.xlu0 %v3454, 35
      %v3468 = vpop.permute.xlu0 %3467
      %3469 = vrot.lane.b32.xlu0 %v3455, 35
      %v3470 = vpop.permute.xlu0 %3469
      %3471 = vrot.lane.b32.xlu0 %v3456, 35
      %v3472 = vpop.permute.xlu0 %3471
      %3473 = vrot.lane.b32.xlu0 %v3457, 35
      %v3474 = vpop.permute.xlu0 %3473
      %3475 = vrot.lane.b32.xlu0 %v3458, 35
      %v3476 = vpop.permute.xlu0 %3475
      %v3477 = vrot.slane %v3466, 4
      %v3478 = vrot.slane %v3468, 4
      %v3479 = vrot.slane %v3470, 4
      %v3480 = vrot.slane %v3472, 4
      %v3481 = vrot.slane %v3474, 4
      %v3482 = vrot.slane %v3476, 4
      %v3483 = vsel %vm241, %v3477, %v3478
      %v3484 = vsel %vm1371, %v3466, %v3483
      %v3485 = vsel %vm241, %v3478, %v3479
      %v3486 = vsel %vm1371, %v3468, %v3485
      %v3487 = vsel %vm241, %v3480, %v3481
      %v3488 = vsel %vm1371, %v3472, %v3487
      %v3489 = vsel %vm241, %v3481, %v3482
      %v3490 = vsel %vm1371, %v3474, %v3489
      %3495 = vst [vmem:[#allocation2 + $0x320] sm:$0xff] %v3484
      %3496 = vst [vmem:[#allocation2 + $0x328] sm:$0xff] %v3486
      %3497 = vst [vmem:[#allocation2 + $0x330] sm:$0xff] %v3488
      %3498 = vst [vmem:[#allocation2 + $0x338] sm:$0xff] %v3490
      %v3499 = vld [vmem:[%s192 + $0x14] sm:$0xff]
      %v3500 = vld [vmem:[%s192 + $0x1c] sm:$0xff]
      %v3501 = vld [vmem:[%s192 + $0x24] sm:$0xf]
      %v3502 = vld [vmem:[%s192 + $0x40] sm:$0xff]
      %v3503 = vld [vmem:[%s192 + $0x48] sm:$0xff]
      %v3504 = vld [vmem:[%s192 + $0x50] sm:$0xf]
      %3511 = vrot.lane.b32.xlu0 %v3499, 34
      %v3512 = vpop.permute.xlu0 %3511
      %3513 = vrot.lane.b32.xlu0 %v3500, 34
      %v3514 = vpop.permute.xlu0 %3513
      %3515 = vrot.lane.b32.xlu0 %v3501, 34
      %v3516 = vpop.permute.xlu0 %3515
      %3517 = vrot.lane.b32.xlu0 %v3502, 34
      %v3518 = vpop.permute.xlu0 %3517
      %3519 = vrot.lane.b32.xlu0 %v3503, 34
      %v3520 = vpop.permute.xlu0 %3519
      %3521 = vrot.lane.b32.xlu0 %v3504, 34
      %v3522 = vpop.permute.xlu0 %3521
      %v3523 = vrot.slane %v3512, 4
      %v3524 = vrot.slane %v3514, 4
      %v3525 = vrot.slane %v3516, 4
      %v3526 = vrot.slane %v3518, 4
      %v3527 = vrot.slane %v3520, 4
      %v3528 = vrot.slane %v3522, 4
      %v3529 = vsel %vm241, %v3523, %v3524
      %v3530 = vsel %vm1418, %v3512, %v3529
      %v3531 = vsel %vm241, %v3524, %v3525
      %v3532 = vsel %vm1418, %v3514, %v3531
      %v3533 = vsel %vm241, %v3526, %v3527
      %v3534 = vsel %vm1418, %v3518, %v3533
      %v3535 = vsel %vm241, %v3527, %v3528
      %v3536 = vsel %vm1418, %v3520, %v3535
      %3541 = vst [vmem:[#allocation2 + $0x340] sm:$0xff] %v3530
      %3542 = vst [vmem:[#allocation2 + $0x348] sm:$0xff] %v3532
      %3543 = vst [vmem:[#allocation2 + $0x350] sm:$0xff] %v3534
      %3544 = vst [vmem:[#allocation2 + $0x358] sm:$0xff] %v3536
      %v3545 = vld [vmem:[#allocation2] sm:$0xff]
      %v3546 = vld [vmem:[#allocation2 + $0x8] sm:$0xff]
      %v3547 = vld [vmem:[#allocation2 + $0x10] sm:$0xff]
      %v3548 = vld [vmem:[#allocation2 + $0x18] sm:$0xff]
      %v3549 = vld [vmem:[#allocation2 + $0x20] sm:$0xff]
      %v3550 = vld [vmem:[#allocation2 + $0x28] sm:$0xff]
      %v3551 = vld [vmem:[#allocation2 + $0x30] sm:$0xff]
      %v3552 = vld [vmem:[#allocation2 + $0x38] sm:$0xff]
      %v3553 = vld [vmem:[#allocation2 + $0x40] sm:$0xff]
      %v3554 = vld [vmem:[#allocation2 + $0x48] sm:$0xff]
      %v3555 = vld [vmem:[#allocation2 + $0x50] sm:$0xff]
      %v3556 = vld [vmem:[#allocation2 + $0x58] sm:$0xff]
      %v3557 = vld [vmem:[#allocation2 + $0x60] sm:$0xff]
      %v3558 = vld [vmem:[#allocation2 + $0x68] sm:$0xff]
      %v3559 = vld [vmem:[#allocation2 + $0x70] sm:$0xff]
      %v3560 = vld [vmem:[#allocation2 + $0x78] sm:$0xff]
      %v3561 = vld [vmem:[#allocation2 + $0x80] sm:$0xff]
      %v3562 = vld [vmem:[#allocation2 + $0x88] sm:$0xff]
      %v3563 = vld [vmem:[#allocation2 + $0x90] sm:$0xff]
      %v3564 = vld [vmem:[#allocation2 + $0x98] sm:$0xff]
      %v3565 = vld [vmem:[#allocation2 + $0xa0] sm:$0xff]
      %v3566 = vld [vmem:[#allocation2 + $0xa8] sm:$0xff]
      %v3567 = vld [vmem:[#allocation2 + $0xb0] sm:$0xff]
      %v3568 = vld [vmem:[#allocation2 + $0xb8] sm:$0xff]
      %v3569 = vld [vmem:[#allocation2 + $0xc0] sm:$0xff]
      %v3570 = vld [vmem:[#allocation2 + $0xc8] sm:$0xff]
      %v3571 = vld [vmem:[#allocation2 + $0xd0] sm:$0xff]
      %v3572 = vld [vmem:[#allocation2 + $0xd8] sm:$0xff]
      %v3573 = vld [vmem:[#allocation2 + $0xe0] sm:$0xff]
      %v3574 = vld [vmem:[#allocation2 + $0xe8] sm:$0xff]
      %v3575 = vld [vmem:[#allocation2 + $0xf0] sm:$0xff]
      %v3576 = vld [vmem:[#allocation2 + $0xf8] sm:$0xff]
      %v3577 = vld [vmem:[#allocation2 + $0x100] sm:$0xff]
      %v3578 = vld [vmem:[#allocation2 + $0x108] sm:$0xff]
      %v3579 = vld [vmem:[#allocation2 + $0x110] sm:$0xff]
      %v3580 = vld [vmem:[#allocation2 + $0x118] sm:$0xff]
      %v3581 = vld [vmem:[#allocation2 + $0x120] sm:$0xff]
      %v3582 = vld [vmem:[#allocation2 + $0x128] sm:$0xff]
      %v3583 = vld [vmem:[#allocation2 + $0x130] sm:$0xff]
      %v3584 = vld [vmem:[#allocation2 + $0x138] sm:$0xff]
      %v3585 = vld [vmem:[#allocation2 + $0x140] sm:$0xff]
      %v3586 = vld [vmem:[#allocation2 + $0x148] sm:$0xff]
      %v3587 = vld [vmem:[#allocation2 + $0x150] sm:$0xff]
      %v3588 = vld [vmem:[#allocation2 + $0x158] sm:$0xff]
      %v3589 = vld [vmem:[#allocation2 + $0x160] sm:$0xff]
      %v3590 = vld [vmem:[#allocation2 + $0x168] sm:$0xff]
      %v3591 = vld [vmem:[#allocation2 + $0x170] sm:$0xff]
      %v3592 = vld [vmem:[#allocation2 + $0x178] sm:$0xff]
      %v3593 = vld [vmem:[#allocation2 + $0x180] sm:$0xff]
      %v3594 = vld [vmem:[#allocation2 + $0x188] sm:$0xff]
      %v3595 = vld [vmem:[#allocation2 + $0x190] sm:$0xff]
      %v3596 = vld [vmem:[#allocation2 + $0x198] sm:$0xff]
      %v3597 = vld [vmem:[#allocation2 + $0x1a0] sm:$0xff]
      %v3598 = vld [vmem:[#allocation2 + $0x1a8] sm:$0xff]
      %v3599 = vld [vmem:[#allocation2 + $0x1b0] sm:$0xff]
      %v3600 = vld [vmem:[#allocation2 + $0x1b8] sm:$0xff]
      %v3601 = vld [vmem:[#allocation2 + $0x1c0] sm:$0xff]
      %v3602 = vld [vmem:[#allocation2 + $0x1c8] sm:$0xff]
      %v3603 = vld [vmem:[#allocation2 + $0x1d0] sm:$0xff]
      %v3604 = vld [vmem:[#allocation2 + $0x1d8] sm:$0xff]
      %v3605 = vld [vmem:[#allocation2 + $0x1e0] sm:$0xff]
      %v3606 = vld [vmem:[#allocation2 + $0x1e8] sm:$0xff]
      %v3607 = vld [vmem:[#allocation2 + $0x1f0] sm:$0xff]
      %v3608 = vld [vmem:[#allocation2 + $0x1f8] sm:$0xff]
      %v3609 = vld [vmem:[#allocation2 + $0x200] sm:$0xff]
      %v3610 = vld [vmem:[#allocation2 + $0x208] sm:$0xff]
      %v3611 = vld [vmem:[#allocation2 + $0x210] sm:$0xff]
      %v3612 = vld [vmem:[#allocation2 + $0x218] sm:$0xff]
      %v3613 = vld [vmem:[#allocation2 + $0x220] sm:$0xff]
      %v3614 = vld [vmem:[#allocation2 + $0x228] sm:$0xff]
      %v3615 = vld [vmem:[#allocation2 + $0x230] sm:$0xff]
      %v3616 = vld [vmem:[#allocation2 + $0x238] sm:$0xff]
      %v3617 = vld [vmem:[#allocation2 + $0x240] sm:$0xff]
      %v3618 = vld [vmem:[#allocation2 + $0x248] sm:$0xff]
      %v3619 = vld [vmem:[#allocation2 + $0x250] sm:$0xff]
      %v3620 = vld [vmem:[#allocation2 + $0x258] sm:$0xff]
      %v3621 = vld [vmem:[#allocation2 + $0x260] sm:$0xff]
      %v3622 = vld [vmem:[#allocation2 + $0x268] sm:$0xff]
      %v3623 = vld [vmem:[#allocation2 + $0x270] sm:$0xff]
      %v3624 = vld [vmem:[#allocation2 + $0x278] sm:$0xff]
      %v3625 = vld [vmem:[#allocation2 + $0x280] sm:$0xff]
      %v3626 = vld [vmem:[#allocation2 + $0x288] sm:$0xff]
      %v3627 = vld [vmem:[#allocation2 + $0x290] sm:$0xff]
      %v3628 = vld [vmem:[#allocation2 + $0x298] sm:$0xff]
      %v3629 = vld [vmem:[#allocation2 + $0x2a0] sm:$0xff]
      %v3630 = vld [vmem:[#allocation2 + $0x2a8] sm:$0xff]
      %v3631 = vld [vmem:[#allocation2 + $0x2b0] sm:$0xff]
      %v3632 = vld [vmem:[#allocation2 + $0x2b8] sm:$0xff]
      %v3633 = vld [vmem:[#allocation2 + $0x2c0] sm:$0xff]
      %v3634 = vld [vmem:[#allocation2 + $0x2c8] sm:$0xff]
      %v3635 = vld [vmem:[#allocation2 + $0x2d0] sm:$0xff]
      %v3636 = vld [vmem:[#allocation2 + $0x2d8] sm:$0xff]
      %v3637 = vld [vmem:[#allocation2 + $0x2e0] sm:$0xff]
      %v3638 = vld [vmem:[#allocation2 + $0x2e8] sm:$0xff]
      %v3639 = vld [vmem:[#allocation2 + $0x2f0] sm:$0xff]
      %v3640 = vld [vmem:[#allocation2 + $0x2f8] sm:$0xff]
      %v3641 = vld [vmem:[#allocation2 + $0x300] sm:$0xff]
      %v3642 = vld [vmem:[#allocation2 + $0x308] sm:$0xff]
      %v3643 = vld [vmem:[#allocation2 + $0x310] sm:$0xff]
      %v3644 = vld [vmem:[#allocation2 + $0x318] sm:$0xff]
      %v3645 = vld [vmem:[#allocation2 + $0x320] sm:$0xff]
      %v3646 = vld [vmem:[#allocation2 + $0x328] sm:$0xff]
      %v3647 = vld [vmem:[#allocation2 + $0x330] sm:$0xff]
      %v3648 = vld [vmem:[#allocation2 + $0x338] sm:$0xff]
      %v3649 = vld [vmem:[#allocation2 + $0x340] sm:$0xff]
      %v3650 = vld [vmem:[#allocation2 + $0x348] sm:$0xff]
      %v3651 = vld [vmem:[#allocation2 + $0x350] sm:$0xff]
      %v3652 = vld [vmem:[#allocation2 + $0x358] sm:$0xff]
      %v3761 = vunpack.c.l.b16 %v3545
      %v3762 = vunpack.c.h.b16 %v3545
      %v3763 = vunpack.c.l.b16 %v3546
      %v3764 = vunpack.c.h.b16 %v3546
      %v3765 = vunpack.c.l.b16 %v3547
      %v3766 = vunpack.c.h.b16 %v3547
      %v3767 = vunpack.c.l.b16 %v3548
      %v3768 = vunpack.c.h.b16 %v3548
      %v3769 = vunpack.c.l.b16 %v3549
      %v3770 = vunpack.c.h.b16 %v3549
      %v3771 = vunpack.c.l.b16 %v3550
      %v3772 = vunpack.c.h.b16 %v3550
      %v3773 = vunpack.c.l.b16 %v3551
      %v3774 = vunpack.c.h.b16 %v3551
      %v3775 = vunpack.c.l.b16 %v3552
      %v3776 = vunpack.c.h.b16 %v3552
      %v3777 = vunpack.c.l.b16 %v3553
      %v3778 = vunpack.c.h.b16 %v3553
      %v3779 = vunpack.c.l.b16 %v3554
      %v3780 = vunpack.c.h.b16 %v3554
      %v3781 = vunpack.c.l.b16 %v3555
      %v3782 = vunpack.c.h.b16 %v3555
      %v3783 = vunpack.c.l.b16 %v3556
      %v3784 = vunpack.c.h.b16 %v3556
      %v3785 = vunpack.c.l.b16 %v3557
      %v3786 = vunpack.c.h.b16 %v3557
      %v3787 = vunpack.c.l.b16 %v3558
      %v3788 = vunpack.c.h.b16 %v3558
      %v3789 = vunpack.c.l.b16 %v3559
      %v3790 = vunpack.c.h.b16 %v3559
      %v3791 = vunpack.c.l.b16 %v3560
      %v3792 = vunpack.c.h.b16 %v3560
      %v3793 = vunpack.c.l.b16 %v3561
      %v3794 = vunpack.c.h.b16 %v3561
      %v3795 = vunpack.c.l.b16 %v3562
      %v3796 = vunpack.c.h.b16 %v3562
      %v3797 = vunpack.c.l.b16 %v3563
      %v3798 = vunpack.c.h.b16 %v3563
      %v3799 = vunpack.c.l.b16 %v3564
      %v3800 = vunpack.c.h.b16 %v3564
      %v3801 = vunpack.c.l.b16 %v3565
      %v3802 = vunpack.c.h.b16 %v3565
      %v3803 = vunpack.c.l.b16 %v3566
      %v3804 = vunpack.c.h.b16 %v3566
      %v3805 = vunpack.c.l.b16 %v3567
      %v3806 = vunpack.c.h.b16 %v3567
      %v3807 = vunpack.c.l.b16 %v3568
      %v3808 = vunpack.c.h.b16 %v3568
      %v3809 = vunpack.c.l.b16 %v3569
      %v3810 = vunpack.c.h.b16 %v3569
      %v3811 = vunpack.c.l.b16 %v3570
      %v3812 = vunpack.c.h.b16 %v3570
      %v3813 = vunpack.c.l.b16 %v3571
      %v3814 = vunpack.c.h.b16 %v3571
      %v3815 = vunpack.c.l.b16 %v3572
      %v3816 = vunpack.c.h.b16 %v3572
      %v3817 = vunpack.c.l.b16 %v3573
      %v3818 = vunpack.c.h.b16 %v3573
      %v3819 = vunpack.c.l.b16 %v3574
      %v3820 = vunpack.c.h.b16 %v3574
      %v3821 = vunpack.c.l.b16 %v3575
      %v3822 = vunpack.c.h.b16 %v3575
      %v3823 = vunpack.c.l.b16 %v3576
      %v3824 = vunpack.c.h.b16 %v3576
      %v3825 = vunpack.c.l.b16 %v3577
      %v3826 = vunpack.c.h.b16 %v3577
      %v3827 = vunpack.c.l.b16 %v3578
      %v3828 = vunpack.c.h.b16 %v3578
      %v3829 = vunpack.c.l.b16 %v3579
      %v3830 = vunpack.c.h.b16 %v3579
      %v3831 = vunpack.c.l.b16 %v3580
      %v3832 = vunpack.c.h.b16 %v3580
      %v3833 = vunpack.c.l.b16 %v3581
      %v3834 = vunpack.c.h.b16 %v3581
      %v3835 = vunpack.c.l.b16 %v3582
      %v3836 = vunpack.c.h.b16 %v3582
      %v3837 = vunpack.c.l.b16 %v3583
      %v3838 = vunpack.c.h.b16 %v3583
      %v3839 = vunpack.c.l.b16 %v3584
      %v3840 = vunpack.c.h.b16 %v3584
      %v3841 = vunpack.c.l.b16 %v3585
      %v3842 = vunpack.c.h.b16 %v3585
      %v3843 = vunpack.c.l.b16 %v3586
      %v3844 = vunpack.c.h.b16 %v3586
      %v3845 = vunpack.c.l.b16 %v3587
      %v3846 = vunpack.c.h.b16 %v3587
      %v3847 = vunpack.c.l.b16 %v3588
      %v3848 = vunpack.c.h.b16 %v3588
      %v3849 = vunpack.c.l.b16 %v3589
      %v3850 = vunpack.c.h.b16 %v3589
      %v3851 = vunpack.c.l.b16 %v3590
      %v3852 = vunpack.c.h.b16 %v3590
      %v3853 = vunpack.c.l.b16 %v3591
      %v3854 = vunpack.c.h.b16 %v3591
      %v3855 = vunpack.c.l.b16 %v3592
      %v3856 = vunpack.c.h.b16 %v3592
      %v3857 = vunpack.c.l.b16 %v3593
      %v3858 = vunpack.c.h.b16 %v3593
      %v3859 = vunpack.c.l.b16 %v3594
      %v3860 = vunpack.c.h.b16 %v3594
      %v3861 = vunpack.c.l.b16 %v3595
      %v3862 = vunpack.c.h.b16 %v3595
      %v3863 = vunpack.c.l.b16 %v3596
      %v3864 = vunpack.c.h.b16 %v3596
      %v3865 = vunpack.c.l.b16 %v3597
      %v3866 = vunpack.c.h.b16 %v3597
      %v3867 = vunpack.c.l.b16 %v3598
      %v3868 = vunpack.c.h.b16 %v3598
      %v3869 = vunpack.c.l.b16 %v3599
      %v3870 = vunpack.c.h.b16 %v3599
      %v3871 = vunpack.c.l.b16 %v3600
      %v3872 = vunpack.c.h.b16 %v3600
      %v3873 = vunpack.c.l.b16 %v3601
      %v3874 = vunpack.c.h.b16 %v3601
      %v3875 = vunpack.c.l.b16 %v3602
      %v3876 = vunpack.c.h.b16 %v3602
      %v3877 = vunpack.c.l.b16 %v3603
      %v3878 = vunpack.c.h.b16 %v3603
      %v3879 = vunpack.c.l.b16 %v3604
      %v3880 = vunpack.c.h.b16 %v3604
      %v3881 = vunpack.c.l.b16 %v3605
      %v3882 = vunpack.c.h.b16 %v3605
      %v3883 = vunpack.c.l.b16 %v3606
      %v3884 = vunpack.c.h.b16 %v3606
      %v3885 = vunpack.c.l.b16 %v3607
      %v3886 = vunpack.c.h.b16 %v3607
      %v3887 = vunpack.c.l.b16 %v3608
      %v3888 = vunpack.c.h.b16 %v3608
      %v3889 = vunpack.c.l.b16 %v3609
      %v3890 = vunpack.c.h.b16 %v3609
      %v3891 = vunpack.c.l.b16 %v3610
      %v3892 = vunpack.c.h.b16 %v3610
      %v3893 = vunpack.c.l.b16 %v3611
      %v3894 = vunpack.c.h.b16 %v3611
      %v3895 = vunpack.c.l.b16 %v3612
      %v3896 = vunpack.c.h.b16 %v3612
      %v3897 = vunpack.c.l.b16 %v3613
      %v3898 = vunpack.c.h.b16 %v3613
      %v3899 = vunpack.c.l.b16 %v3614
      %v3900 = vunpack.c.h.b16 %v3614
      %v3901 = vunpack.c.l.b16 %v3615
      %v3902 = vunpack.c.h.b16 %v3615
      %v3903 = vunpack.c.l.b16 %v3616
      %v3904 = vunpack.c.h.b16 %v3616
      %v3905 = vunpack.c.l.b16 %v3617
      %v3906 = vunpack.c.h.b16 %v3617
      %v3907 = vunpack.c.l.b16 %v3618
      %v3908 = vunpack.c.h.b16 %v3618
      %v3909 = vunpack.c.l.b16 %v3619
      %v3910 = vunpack.c.h.b16 %v3619
      %v3911 = vunpack.c.l.b16 %v3620
      %v3912 = vunpack.c.h.b16 %v3620
      %v3913 = vunpack.c.l.b16 %v3621
      %v3914 = vunpack.c.h.b16 %v3621
      %v3915 = vunpack.c.l.b16 %v3622
      %v3916 = vunpack.c.h.b16 %v3622
      %v3917 = vunpack.c.l.b16 %v3623
      %v3918 = vunpack.c.h.b16 %v3623
      %v3919 = vunpack.c.l.b16 %v3624
      %v3920 = vunpack.c.h.b16 %v3624
      %v3921 = vunpack.c.l.b16 %v3625
      %v3922 = vunpack.c.h.b16 %v3625
      %v3923 = vunpack.c.l.b16 %v3626
      %v3924 = vunpack.c.h.b16 %v3626
      %v3925 = vunpack.c.l.b16 %v3627
      %v3926 = vunpack.c.h.b16 %v3627
      %v3927 = vunpack.c.l.b16 %v3628
      %v3928 = vunpack.c.h.b16 %v3628
      %v3929 = vunpack.c.l.b16 %v3629
      %v3930 = vunpack.c.h.b16 %v3629
      %v3931 = vunpack.c.l.b16 %v3630
      %v3932 = vunpack.c.h.b16 %v3630
      %v3933 = vunpack.c.l.b16 %v3631
      %v3934 = vunpack.c.h.b16 %v3631
      %v3935 = vunpack.c.l.b16 %v3632
      %v3936 = vunpack.c.h.b16 %v3632
      %v3937 = vunpack.c.l.b16 %v3633
      %v3938 = vunpack.c.h.b16 %v3633
      %v3939 = vunpack.c.l.b16 %v3634
      %v3940 = vunpack.c.h.b16 %v3634
      %v3941 = vunpack.c.l.b16 %v3635
      %v3942 = vunpack.c.h.b16 %v3635
      %v3943 = vunpack.c.l.b16 %v3636
      %v3944 = vunpack.c.h.b16 %v3636
      %v3945 = vunpack.c.l.b16 %v3637
      %v3946 = vunpack.c.h.b16 %v3637
      %v3947 = vunpack.c.l.b16 %v3638
      %v3948 = vunpack.c.h.b16 %v3638
      %v3949 = vunpack.c.l.b16 %v3639
      %v3950 = vunpack.c.h.b16 %v3639
      %v3951 = vunpack.c.l.b16 %v3640
      %v3952 = vunpack.c.h.b16 %v3640
      %v3953 = vunpack.c.l.b16 %v3641
      %v3954 = vunpack.c.h.b16 %v3641
      %v3955 = vunpack.c.l.b16 %v3642
      %v3956 = vunpack.c.h.b16 %v3642
      %v3957 = vunpack.c.l.b16 %v3643
      %v3958 = vunpack.c.h.b16 %v3643
      %v3959 = vunpack.c.l.b16 %v3644
      %v3960 = vunpack.c.h.b16 %v3644
      %v3961 = vunpack.c.l.b16 %v3645
      %v3962 = vunpack.c.h.b16 %v3645
      %v3963 = vunpack.c.l.b16 %v3646
      %v3964 = vunpack.c.h.b16 %v3646
      %v3965 = vunpack.c.l.b16 %v3647
      %v3966 = vunpack.c.h.b16 %v3647
      %v3967 = vunpack.c.l.b16 %v3648
      %v3968 = vunpack.c.h.b16 %v3648
      %v3969 = vunpack.c.l.b16 %v3649
      %v3970 = vunpack.c.h.b16 %v3649
      %v3971 = vunpack.c.l.b16 %v3650
      %v3972 = vunpack.c.h.b16 %v3650
      %v3973 = vunpack.c.l.b16 %v3651
      %v3974 = vunpack.c.h.b16 %v3651
      %v3975 = vunpack.c.l.b16 %v3652
      %v3976 = vunpack.c.h.b16 %v3652
      %v3977 = vpack.c.b16 %v3765, %v3761
      %v3978 = vpack.c.b16 %v3766, %v3762
      %v3979 = vpack.c.b16 %v3767, %v3763
      %v3980 = vpack.c.b16 %v3768, %v3764
      %v3981 = vpack.c.b16 %v3773, %v3769
      %v3982 = vpack.c.b16 %v3774, %v3770
      %v3983 = vpack.c.b16 %v3775, %v3771
      %v3984 = vpack.c.b16 %v3776, %v3772
      %v3985 = vpack.c.b16 %v3781, %v3777
      %v3986 = vpack.c.b16 %v3782, %v3778
      %v3987 = vpack.c.b16 %v3783, %v3779
      %v3988 = vpack.c.b16 %v3784, %v3780
      %v3989 = vpack.c.b16 %v3789, %v3785
      %v3990 = vpack.c.b16 %v3790, %v3786
      %v3991 = vpack.c.b16 %v3791, %v3787
      %v3992 = vpack.c.b16 %v3792, %v3788
      %v3993 = vpack.c.b16 %v3797, %v3793
      %v3994 = vpack.c.b16 %v3798, %v3794
      %v3995 = vpack.c.b16 %v3799, %v3795
      %v3996 = vpack.c.b16 %v3800, %v3796
      %v3997 = vpack.c.b16 %v3805, %v3801
      %v3998 = vpack.c.b16 %v3806, %v3802
      %v3999 = vpack.c.b16 %v3807, %v3803
      %v4000 = vpack.c.b16 %v3808, %v3804
      %v4001 = vpack.c.b16 %v3813, %v3809
      %v4002 = vpack.c.b16 %v3814, %v3810
      %v4003 = vpack.c.b16 %v3815, %v3811
      %v4004 = vpack.c.b16 %v3816, %v3812
      %v4005 = vpack.c.b16 %v3821, %v3817
      %v4006 = vpack.c.b16 %v3822, %v3818
      %v4007 = vpack.c.b16 %v3823, %v3819
      %v4008 = vpack.c.b16 %v3824, %v3820
      %v4009 = vpack.c.b16 %v3829, %v3825
      %v4010 = vpack.c.b16 %v3830, %v3826
      %v4011 = vpack.c.b16 %v3831, %v3827
      %v4012 = vpack.c.b16 %v3832, %v3828
      %v4013 = vpack.c.b16 %v3837, %v3833
      %v4014 = vpack.c.b16 %v3838, %v3834
      %v4015 = vpack.c.b16 %v3839, %v3835
      %v4016 = vpack.c.b16 %v3840, %v3836
      %v4017 = vpack.c.b16 %v3845, %v3841
      %v4018 = vpack.c.b16 %v3846, %v3842
      %v4019 = vpack.c.b16 %v3847, %v3843
      %v4020 = vpack.c.b16 %v3848, %v3844
      %v4021 = vpack.c.b16 %v3853, %v3849
      %v4022 = vpack.c.b16 %v3854, %v3850
      %v4023 = vpack.c.b16 %v3855, %v3851
      %v4024 = vpack.c.b16 %v3856, %v3852
      %v4025 = vpack.c.b16 %v3861, %v3857
      %v4026 = vpack.c.b16 %v3862, %v3858
      %v4027 = vpack.c.b16 %v3863, %v3859
      %v4028 = vpack.c.b16 %v3864, %v3860
      %v4029 = vpack.c.b16 %v3869, %v3865
      %v4030 = vpack.c.b16 %v3870, %v3866
      %v4031 = vpack.c.b16 %v3871, %v3867
      %v4032 = vpack.c.b16 %v3872, %v3868
      %v4033 = vpack.c.b16 %v3877, %v3873
      %v4034 = vpack.c.b16 %v3878, %v3874
      %v4035 = vpack.c.b16 %v3879, %v3875
      %v4036 = vpack.c.b16 %v3880, %v3876
      %v4037 = vpack.c.b16 %v3885, %v3881
      %v4038 = vpack.c.b16 %v3886, %v3882
      %v4039 = vpack.c.b16 %v3887, %v3883
      %v4040 = vpack.c.b16 %v3888, %v3884
      %v4041 = vpack.c.b16 %v3893, %v3889
      %v4042 = vpack.c.b16 %v3894, %v3890
      %v4043 = vpack.c.b16 %v3895, %v3891
      %v4044 = vpack.c.b16 %v3896, %v3892
      %v4045 = vpack.c.b16 %v3901, %v3897
      %v4046 = vpack.c.b16 %v3902, %v3898
      %v4047 = vpack.c.b16 %v3903, %v3899
      %v4048 = vpack.c.b16 %v3904, %v3900
      %v4049 = vpack.c.b16 %v3909, %v3905
      %v4050 = vpack.c.b16 %v3910, %v3906
      %v4051 = vpack.c.b16 %v3911, %v3907
      %v4052 = vpack.c.b16 %v3912, %v3908
      %v4053 = vpack.c.b16 %v3917, %v3913
      %v4054 = vpack.c.b16 %v3918, %v3914
      %v4055 = vpack.c.b16 %v3919, %v3915
      %v4056 = vpack.c.b16 %v3920, %v3916
      %v4057 = vpack.c.b16 %v3925, %v3921
      %v4058 = vpack.c.b16 %v3926, %v3922
      %v4059 = vpack.c.b16 %v3927, %v3923
      %v4060 = vpack.c.b16 %v3928, %v3924
      %v4061 = vpack.c.b16 %v3933, %v3929
      %v4062 = vpack.c.b16 %v3934, %v3930
      %v4063 = vpack.c.b16 %v3935, %v3931
      %v4064 = vpack.c.b16 %v3936, %v3932
      %v4065 = vpack.c.b16 %v3941, %v3937
      %v4066 = vpack.c.b16 %v3942, %v3938
      %v4067 = vpack.c.b16 %v3943, %v3939
      %v4068 = vpack.c.b16 %v3944, %v3940
      %v4069 = vpack.c.b16 %v3949, %v3945
      %v4070 = vpack.c.b16 %v3950, %v3946
      %v4071 = vpack.c.b16 %v3951, %v3947
      %v4072 = vpack.c.b16 %v3952, %v3948
      %v4073 = vpack.c.b16 %v3957, %v3953
      %v4074 = vpack.c.b16 %v3958, %v3954
      %v4075 = vpack.c.b16 %v3959, %v3955
      %v4076 = vpack.c.b16 %v3960, %v3956
      %v4077 = vpack.c.b16 %v3965, %v3961
      %v4078 = vpack.c.b16 %v3966, %v3962
      %v4079 = vpack.c.b16 %v3967, %v3963
      %v4080 = vpack.c.b16 %v3968, %v3964
      %v4081 = vpack.c.b16 %v3973, %v3969
      %v4082 = vpack.c.b16 %v3974, %v3970
      %v4083 = vpack.c.b16 %v3975, %v3971
      %v4084 = vpack.c.b16 %v3976, %v3972
      %4193 = vmatpush.bf16.msra.mxu0 %v4005
      %4194 = vmatpush.bf16.msra.mxu0 %v4001
      %4195 = vmatpush.bf16.msra.mxu0 %v3997
      %4196 = vmatpush.bf16.msra.mxu0 %v3993
      %4197 = vmatpush.bf16.msra.mxu0 %v3989
      %4198 = vmatpush.bf16.msra.mxu0 %v3985
      %4199 = vmatpush.bf16.msra.mxu0 %v3981
      %4200 = vmatpush.bf16.msra.mxu0 %v3977
      %4201 = vmatmul.bf16.gmra.mxu0 %v1548
      %v4202 = vpop.f32.mrf.mxu0
      %v4203 = vadd.f32 0.0, %v4202
      %v4204 = vpop.f32.mrf.mxu0
      %4205 = vdwg.mxu0
      %4206 = vmatpush.bf16.msra.mxu0 %v4037
      %4207 = vmatpush.bf16.msra.mxu0 %v4033
      %4208 = vmatpush.bf16.msra.mxu0 %v4029
      %4209 = vmatpush.bf16.msra.mxu0 %v4025
      %4210 = vmatpush.bf16.msra.mxu0 %v4021
      %4211 = vmatpush.bf16.msra.mxu0 %v4017
      %4212 = vmatpush.bf16.msra.mxu0 %v4013
      %4213 = vmatpush.bf16.msra.mxu0 %v4009
      %4214 = vmatmul.bf16.gmra.mxu0 %v1549
      %v4215 = vpop.f32.mrf.mxu0
      %v4216 = vadd.f32 %v4203, %v4215
      %v4217 = vpop.f32.mrf.mxu0
      %4218 = vdwg.mxu0
      %4219 = vmatpush.bf16.msra.mxu0 %v4069
      %4220 = vmatpush.bf16.msra.mxu0 %v4065
      %4221 = vmatpush.bf16.msra.mxu0 %v4061
      %4222 = vmatpush.bf16.msra.mxu0 %v4057
      %4223 = vmatpush.bf16.msra.mxu0 %v4053
      %4224 = vmatpush.bf16.msra.mxu0 %v4049
      %4225 = vmatpush.bf16.msra.mxu0 %v4045
      %4226 = vmatpush.bf16.msra.mxu0 %v4041
      %4227 = vmatmul.bf16.gmra.mxu0 %v1550
      %v4228 = vpop.f32.mrf.mxu0
      %v4229 = vadd.f32 %v4216, %v4228
      %v4230 = vpop.f32.mrf.mxu0
      %4231 = vdwg.mxu0
      %4232 = vmatpush.bf16.msra.mxu0 0
      %4233 = vmatpush.bf16.msra.mxu0 0
      %4234 = vmatpush.bf16.msra.mxu0 0
      %4235 = vmatpush.bf16.msra.mxu0 0
      %4236 = vmatpush.bf16.msra.mxu0 0
      %4237 = vmatpush.bf16.msra.mxu0 %v4081
      %4238 = vmatpush.bf16.msra.mxu0 %v4077
      %4239 = vmatpush.bf16.msra.mxu0 %v4073
      %4240 = vmatmul.bf16.gmra.mxu0 %v2097
      %v4241 = vpop.f32.mrf.mxu0
      %v4242 = vadd.f32 %v4229, %v4241
      %v4243 = vpop.f32.mrf.mxu0
      %4244 = vdwg.mxu0
      %4245 = vmatpush.bf16.msra.mxu0 %v4006
      %4246 = vmatpush.bf16.msra.mxu0 %v4002
      %4247 = vmatpush.bf16.msra.mxu0 %v3998
      %4248 = vmatpush.bf16.msra.mxu0 %v3994
      %4249 = vmatpush.bf16.msra.mxu0 %v3990
      %4250 = vmatpush.bf16.msra.mxu0 %v3986
      %4251 = vmatpush.bf16.msra.mxu0 %v3982
      %4252 = vmatpush.bf16.msra.mxu0 %v3978
      %4253 = vmatmul.bf16.gmra.mxu0 %v1548
      %v4254 = vpop.f32.mrf.mxu0
      %v4255 = vadd.f32 0.0, %v4254
      %v4256 = vpop.f32.mrf.mxu0
      %4257 = vdwg.mxu0
      %4258 = vmatpush.bf16.msra.mxu0 %v4038
      %4259 = vmatpush.bf16.msra.mxu0 %v4034
      %4260 = vmatpush.bf16.msra.mxu0 %v4030
      %4261 = vmatpush.bf16.msra.mxu0 %v4026
      %4262 = vmatpush.bf16.msra.mxu0 %v4022
      %4263 = vmatpush.bf16.msra.mxu0 %v4018
      %4264 = vmatpush.bf16.msra.mxu0 %v4014
      %4265 = vmatpush.bf16.msra.mxu0 %v4010
      %4266 = vmatmul.bf16.gmra.mxu0 %v1549
      %v4267 = vpop.f32.mrf.mxu0
      %v4268 = vadd.f32 %v4255, %v4267
      %v4269 = vpop.f32.mrf.mxu0
      %4270 = vdwg.mxu0
      %4271 = vmatpush.bf16.msra.mxu0 %v4070
      %4272 = vmatpush.bf16.msra.mxu0 %v4066
      %4273 = vmatpush.bf16.msra.mxu0 %v4062
      %4274 = vmatpush.bf16.msra.mxu0 %v4058
      %4275 = vmatpush.bf16.msra.mxu0 %v4054
      %4276 = vmatpush.bf16.msra.mxu0 %v4050
      %4277 = vmatpush.bf16.msra.mxu0 %v4046
      %4278 = vmatpush.bf16.msra.mxu0 %v4042
      %4279 = vmatmul.bf16.gmra.mxu0 %v1550
      %v4280 = vpop.f32.mrf.mxu0
      %v4281 = vadd.f32 %v4268, %v4280
      %v4282 = vpop.f32.mrf.mxu0
      %4283 = vdwg.mxu0
      %4284 = vmatpush.bf16.msra.mxu0 0
      %4285 = vmatpush.bf16.msra.mxu0 0
      %4286 = vmatpush.bf16.msra.mxu0 0
      %4287 = vmatpush.bf16.msra.mxu0 0
      %4288 = vmatpush.bf16.msra.mxu0 0
      %4289 = vmatpush.bf16.msra.mxu0 %v4082
      %4290 = vmatpush.bf16.msra.mxu0 %v4078
      %4291 = vmatpush.bf16.msra.mxu0 %v4074
      %4292 = vmatmul.bf16.gmra.mxu0 %v2097
      %v4293 = vpop.f32.mrf.mxu0
      %v4294 = vadd.f32 %v4281, %v4293
      %v4295 = vpop.f32.mrf.mxu0
      %4296 = vdwg.mxu0
      %4297 = vmatpush.bf16.msra.mxu0 %v4007
      %4298 = vmatpush.bf16.msra.mxu0 %v4003
      %4299 = vmatpush.bf16.msra.mxu0 %v3999
      %4300 = vmatpush.bf16.msra.mxu0 %v3995
      %4301 = vmatpush.bf16.msra.mxu0 %v3991
      %4302 = vmatpush.bf16.msra.mxu0 %v3987
      %4303 = vmatpush.bf16.msra.mxu0 %v3983
      %4304 = vmatpush.bf16.msra.mxu0 %v3979
      %4305 = vmatmul.bf16.gmra.mxu0 %v1548
      %v4306 = vpop.f32.mrf.mxu0
      %v4307 = vadd.f32 0.0, %v4306
      %v4308 = vpop.f32.mrf.mxu0
      %4309 = vdwg.mxu0
      %4310 = vmatpush.bf16.msra.mxu0 %v4039
      %4311 = vmatpush.bf16.msra.mxu0 %v4035
      %4312 = vmatpush.bf16.msra.mxu0 %v4031
      %4313 = vmatpush.bf16.msra.mxu0 %v4027
      %4314 = vmatpush.bf16.msra.mxu0 %v4023
      %4315 = vmatpush.bf16.msra.mxu0 %v4019
      %4316 = vmatpush.bf16.msra.mxu0 %v4015
      %4317 = vmatpush.bf16.msra.mxu0 %v4011
      %4318 = vmatmul.bf16.gmra.mxu0 %v1549
      %v4319 = vpop.f32.mrf.mxu0
      %v4320 = vadd.f32 %v4307, %v4319
      %v4321 = vpop.f32.mrf.mxu0
      %4322 = vdwg.mxu0
      %4323 = vmatpush.bf16.msra.mxu0 %v4071
      %4324 = vmatpush.bf16.msra.mxu0 %v4067
      %4325 = vmatpush.bf16.msra.mxu0 %v4063
      %4326 = vmatpush.bf16.msra.mxu0 %v4059
      %4327 = vmatpush.bf16.msra.mxu0 %v4055
      %4328 = vmatpush.bf16.msra.mxu0 %v4051
      %4329 = vmatpush.bf16.msra.mxu0 %v4047
      %4330 = vmatpush.bf16.msra.mxu0 %v4043
      %4331 = vmatmul.bf16.gmra.mxu0 %v1550
      %v4332 = vpop.f32.mrf.mxu0
      %v4333 = vadd.f32 %v4320, %v4332
      %v4334 = vpop.f32.mrf.mxu0
      %4335 = vdwg.mxu0
      %4336 = vmatpush.bf16.msra.mxu0 0
      %4337 = vmatpush.bf16.msra.mxu0 0
      %4338 = vmatpush.bf16.msra.mxu0 0
      %4339 = vmatpush.bf16.msra.mxu0 0
      %4340 = vmatpush.bf16.msra.mxu0 0
      %4341 = vmatpush.bf16.msra.mxu0 %v4083
      %4342 = vmatpush.bf16.msra.mxu0 %v4079
      %4343 = vmatpush.bf16.msra.mxu0 %v4075
      %4344 = vmatmul.bf16.gmra.mxu0 %v2097
      %v4345 = vpop.f32.mrf.mxu0
      %v4346 = vadd.f32 %v4333, %v4345
      %v4347 = vpop.f32.mrf.mxu0
      %4348 = vdwg.mxu0
      %4349 = vmatpush.bf16.msra.mxu0 %v4008
      %4350 = vmatpush.bf16.msra.mxu0 %v4004
      %4351 = vmatpush.bf16.msra.mxu0 %v4000
      %4352 = vmatpush.bf16.msra.mxu0 %v3996
      %4353 = vmatpush.bf16.msra.mxu0 %v3992
      %4354 = vmatpush.bf16.msra.mxu0 %v3988
      %4355 = vmatpush.bf16.msra.mxu0 %v3984
      %4356 = vmatpush.bf16.msra.mxu0 %v3980
      %4357 = vmatmul.bf16.gmra.mxu0 %v1548
      %v4358 = vpop.f32.mrf.mxu0
      %v4359 = vadd.f32 0.0, %v4358
      %v4360 = vpop.f32.mrf.mxu0
      %4361 = vdwg.mxu0
      %4362 = vmatpush.bf16.msra.mxu0 %v4040
      %4363 = vmatpush.bf16.msra.mxu0 %v4036
      %4364 = vmatpush.bf16.msra.mxu0 %v4032
      %4365 = vmatpush.bf16.msra.mxu0 %v4028
      %4366 = vmatpush.bf16.msra.mxu0 %v4024
      %4367 = vmatpush.bf16.msra.mxu0 %v4020
      %4368 = vmatpush.bf16.msra.mxu0 %v4016
      %4369 = vmatpush.bf16.msra.mxu0 %v4012
      %4370 = vmatmul.bf16.gmra.mxu0 %v1549
      %v4371 = vpop.f32.mrf.mxu0
      %v4372 = vadd.f32 %v4359, %v4371
      %v4373 = vpop.f32.mrf.mxu0
      %4374 = vdwg.mxu0
      %4375 = vmatpush.bf16.msra.mxu0 %v4072
      %4376 = vmatpush.bf16.msra.mxu0 %v4068
      %4377 = vmatpush.bf16.msra.mxu0 %v4064
      %4378 = vmatpush.bf16.msra.mxu0 %v4060
      %4379 = vmatpush.bf16.msra.mxu0 %v4056
      %4380 = vmatpush.bf16.msra.mxu0 %v4052
      %4381 = vmatpush.bf16.msra.mxu0 %v4048
      %4382 = vmatpush.bf16.msra.mxu0 %v4044
      %4383 = vmatmul.bf16.gmra.mxu0 %v1550
      %v4384 = vpop.f32.mrf.mxu0
      %v4385 = vadd.f32 %v4372, %v4384
      %v4386 = vpop.f32.mrf.mxu0
      %4387 = vdwg.mxu0
      %4388 = vmatpush.bf16.msra.mxu0 0
      %4389 = vmatpush.bf16.msra.mxu0 0
      %4390 = vmatpush.bf16.msra.mxu0 0
      %4391 = vmatpush.bf16.msra.mxu0 0
      %4392 = vmatpush.bf16.msra.mxu0 0
      %4393 = vmatpush.bf16.msra.mxu0 %v4084
      %4394 = vmatpush.bf16.msra.mxu0 %v4080
      %4395 = vmatpush.bf16.msra.mxu0 %v4076
      %4396 = vmatmul.bf16.gmra.mxu0 %v2097
      %v4397 = vpop.f32.mrf.mxu0
      %v4398 = vadd.f32 %v4385, %v4397
      %v4399 = vpop.f32.mrf.mxu0
      %4400 = vdwg.mxu0
      %v4401 = vmul.f32 %v4242, %v2310
      %v4402 = vmul.f32 %v4294, %v2310
      %v4403 = vmul.f32 %v4346, %v2310
      %v4404 = vmul.f32 %v4398, %v2310
      %v4405 = vadd.f32 %v4401, %v2319
      %v4406 = vadd.f32 %v4402, %v2319
      %v4407 = vadd.f32 %v4403, %v2319
      %v4408 = vadd.f32 %v4404, %v2319
      %vm4409 = vcmp.ge.f32.partialorder %v4405, 0.0
      %vm4410 = vcmp.ge.f32.partialorder %v4406, 0.0
      %vm4411 = vcmp.ge.f32.partialorder %v4407, 0.0
      %vm4412 = vcmp.ge.f32.partialorder %v4408, 0.0
      %v4413 = vmul.f32 %v4405, 0.01
      %v4414 = vmul.f32 %v4406, 0.01
      %v4415 = vmul.f32 %v4407, 0.01
      %v4416 = vmul.f32 %v4408, 0.01
      %v4417 = vsel %vm4409, %v4405, %v4413
      %v4418 = vsel %vm4410, %v4406, %v4414
      %v4419 = vsel %vm4411, %v4407, %v4415
      %v4420 = vsel %vm4412, %v4408, %v4416
      %4421 = vst [vmem:[%s197 + $0x20] sm:$0xff] %v4417
      %4422 = vst [vmem:[%s197 + $0x28] sm:$0xff] %v4418
      %4423 = vst [vmem:[%s197 + $0x30] sm:$0xff] %v4419
      %4424 = vst [vmem:[%s197 + $0x38] sm:$0xff] %v4420
      %p4425 = scmp.lt.s32.totalorder %s15, 1
      %s4426 = scalar_select %p4425, %s15, 1
      %s4427 = smul.addr %s4426, 8
      %s4428 = smul.addr %s4427, 8
      %s4429 = scalar_lea.vmem %s4, %s4428
      // Predicated region
      $region37: #{conv_block_forward.3} parent=35 // pred_check
        %p4430 = pneg %p122
      $region38: #{conv_block_forward.3} parent=35 // pred_check_branch
        %4432 = sbr.rel (%p4430) target = $region40
      $region39: #{conv_block_forward.3} parent=35 // pred_region
        _
      $region40: #{conv_block_forward.3} parent=35 // pred_fallthru
        _
    $region36: #{conv_block_forward.3} parent=5 // pred_fallthru
      _
    %p4433 = scmp.le.s32.totalorder 2, %s10
    // Predicated region
    $region41: #{conv_block_forward.3} parent=5 // pred_check
      %p4434 = pneg %p4433
    $region42: #{conv_block_forward.3} parent=5 // pred_check_branch
      %4436 = sbr.rel (%p4434) target = $region44
    $region43: #{conv_block_forward.3} parent=5 // pred_region
      %s4437 = ssub.s32 %s10, 2
      // Predicated region
      $region45: #{conv_block_forward.3} parent=43 // pred_check
        %p4438 = pneg %p128
      $region46: #{conv_block_forward.3} parent=43 // pred_check_branch
        %4440 = sbr.rel (%p4438) target = $region48
      $region47: #{conv_block_forward.3} parent=43 // pred_region
        %p4441 = scmp.lt.s32.totalorder %s16, 1
        %s4442 = scalar_select %p4441, %s16, 1
        %s4443 = smul.addr %s4442, 8
        %s4444 = smul.addr %s4443, 8
        %s4445 = scalar_lea.vmem %s4, %s4444
      $region48: #{conv_block_forward.3} parent=43 // pred_fallthru
        _
    $region44: #{conv_block_forward.3} parent=5 // pred_fallthru
      _
  $region6: #{conv_block_forward.3} parent=0 // loop_footer
    %s14 = sadd.s32 1, %s10
  $region7: #{conv_block_forward.3} parent=0 // loop_footer_branch
    %9 = sbr.rel target = $region3
  $region8: #{conv_block_forward.3} parent=0 // loop_exit
    _

</llo_original>
